<compile_context>
chip_gen: v6e
topology: v6e:2x2x1
jax: 0.10.0
libtpu: 0.0.40
codegen_flags: <defaults>
</compile_context>

<pallas_src>
import functools

import jax
import jax.numpy as jnp
from jax.experimental import pallas as pl
from jax.experimental.pallas import tpu as pltpu


# ----------------------------------------------------------------------------
# In-kernel math
# ----------------------------------------------------------------------------
def _gelu_f32(x):
    # tanh-approx GELU (torch F.gelu(approximate='tanh')); f32 math.
    c = 0.7978845608028654  # sqrt(2/pi)
    return 0.5 * x * (1.0 + jnp.tanh(c * (x + 0.044715 * (x * x * x))))


# ----------------------------------------------------------------------------
# Fused MLP-encoder kernel
#   grid = (batch tiles [parallel], k tiles of fc1's output dim [arbitrary]).
#   Default launch uses a single k step (all weights resident in VMEM).
#   refs: x-tile, W1-tile, b1(full), W2-tile, b2, W3, b3, out-tile, acc(scratch)
# ----------------------------------------------------------------------------
def _mlp_encoder_kernel(x_ref, w1_ref, b1_ref, w2_ref, b2_ref, w3_ref, b3_ref,
                        o_ref, acc_ref, *, tile_k):
    k = pl.program_id(1)

    @pl.when(k == 0)
    def _init():
        acc_ref[...] = jnp.zeros_like(acc_ref)

    # fc1 tile: (Bt, d_in) @ (d_in, TK) -> (Bt, TK), bias + GELU in f32.
    h1 = jnp.dot(x_ref[...], w1_ref[...], preferred_element_type=jnp.float32)
    k_off = pl.multiple_of(k * tile_k, tile_k)
    h1 = _gelu_f32(h1 + b1_ref[:, pl.ds(k_off, tile_k)])

    # fc2 partial product, accumulated in the f32 VMEM scratch.
    acc_ref[...] += jnp.dot(h1.astype(w2_ref.dtype), w2_ref[...],
                            preferred_element_type=jnp.float32)

    @pl.when(k == pl.num_programs(1) - 1)
    def _finalize():
        h2 = _gelu_f32(acc_ref[...] + b2_ref[...])
        out = jnp.dot(h2.astype(w3_ref.dtype), w3_ref[...],
                      preferred_element_type=jnp.float32) + b3_ref[...]
        o_ref[...] = out.astype(o_ref.dtype)


# ----------------------------------------------------------------------------
# Wrapper
# ----------------------------------------------------------------------------
def prepare_params(params):
    """Convert PyTorch-layout (out, in) f32 params into streaming layout:
    bf16 (in, out) weights, f32 (1, out) biases.  Do this once, outside jit."""
    # TODO(synk): optional int8 (v5e/v6e) / fp8-e4m3 (v7x) weight path with
    # per-output-channel f32 scales would halve the weight DMA bound.
    (w1, b1), (w2, b2), (w3, b3) = params["fc1"], params["fc2"], params["fc3"]
    return {
        "w1": jnp.asarray(w1.T, jnp.bfloat16),
        "b1": jnp.asarray(b1, jnp.float32).reshape(1, -1),
        "w2": jnp.asarray(w2.T, jnp.bfloat16),
        "b2": jnp.asarray(b2, jnp.float32).reshape(1, -1),
        "w3": jnp.asarray(w3.T, jnp.bfloat16),
        "b3": jnp.asarray(b3, jnp.float32).reshape(1, -1),
    }


def mlp_encoder_forward(prep, x, *, tile_b=None, tile_k=None):
    """x: (B, point_size, 3) (or already (B, point_size*3)). Returns (B, latent)."""
    B = x.shape[0]
    x2 = x.reshape(B, -1).astype(jnp.bfloat16)

    w1, b1 = prep["w1"], prep["b1"]          # (d_in, H1), (1, H1)
    w2, b2 = prep["w2"], prep["b2"]          # (H1, H2),  (1, H2)
    w3, b3 = prep["w3"], prep["b3"]          # (H2, L),   (1, L)
    d_in, h1 = w1.shape
    h1_2, h2 = w2.shape
    h2_2, latent = w3.shape
    assert x2.shape[1] == d_in and h1 == h1_2 and h2 == h2_2

    # Default: single k step -> all weights full-block resident in VMEM
    # (the weight-DMA-bound small-B regime; ~10 MB double-buffered).
    if tile_k is None:
        tile_k = h1
    tile_k = min(tile_k, h1)
    assert h1 % tile_k == 0, "fc1 width must be divisible by tile_k"
    n_k = h1 // tile_k

    # Batch tiling: bounded VMEM per step + a 'parallel' axis for megacore.
    if tile_b is None:
        tile_b = B if B <= 256 else 256
    b_pad = pl.cdiv(B, tile_b) * tile_b
    if b_pad != B:
        assert tile_b % 8 == 0, "padded batch tile must be sublane-aligned"
        x2 = jnp.pad(x2, ((0, b_pad - B), (0, 0)))
    n_b = b_pad // tile_b

    kernel = functools.partial(_mlp_encoder_kernel, tile_k=tile_k)

    out = pl.pallas_call(
        kernel,
        out_shape=jax.ShapeDtypeStruct((b_pad, latent), jnp.float32),
        grid=(n_b, n_k),
        in_specs=[
            pl.BlockSpec((tile_b, d_in), lambda b, k: (b, 0)),     # x: batch tile
            pl.BlockSpec((d_in, tile_k), lambda b, k: (0, k)),     # W1 (full blk by default)
            pl.BlockSpec((1, h1), lambda b, k: (0, 0)),            # b1: resident, sliced in-kernel
            pl.BlockSpec((tile_k, h2), lambda b, k: (k, 0)),       # W2 (full blk by default)
            pl.BlockSpec((1, h2), lambda b, k: (0, 0)),            # b2: resident
            pl.BlockSpec((h2, latent), lambda b, k: (0, 0)),       # W3: resident (tiny)
            pl.BlockSpec((1, latent), lambda b, k: (0, 0)),        # b3: resident
        ],
        out_specs=pl.BlockSpec((tile_b, latent), lambda b, k: (b, 0)),
        scratch_shapes=[pltpu.VMEM((tile_b, h2), jnp.float32)],    # fc2 accumulator
        compiler_params=pltpu.CompilerParams(
            dimension_semantics=("parallel", "arbitrary"),
            vmem_limit_bytes=32 * 1024 * 1024,
        ),
    )(x2, w1, b1, w2, b2, w3, b3)

    return out[:B] if b_pad != B else out


# ----------------------------------------------------------------------------
# Deterministic synthetic parameters (PyTorch layout: weight (out, in))
# ----------------------------------------------------------------------------
def init_params(point_size, latent_size, seed=1):
    ks = jax.random.split(jax.random.PRNGKey(seed), 6)

    def lin(kw, kb, fan_in, fan_out):
        w = jax.random.normal(kw, (fan_out, fan_in), jnp.float32) / jnp.sqrt(fan_in)
        b = jax.random.normal(kb, (fan_out,), jnp.float32) * 0.01
        return w, b

    return {
        "fc1": lin(ks[0], ks[1], point_size * 3, 2048),
        "fc2": lin(ks[2], ks[3], 2048, 1024),
        "fc3": lin(ks[4], ks[5], 1024, latent_size),
    }


def _reference_forward(prep, x):
    """Pure-JAX reference on the same bf16-quantized weights (tanh GELU)."""
    B = x.shape[0]
    h = x.reshape(B, -1).astype(jnp.bfloat16).astype(jnp.float32)
    w1 = prep["w1"].astype(jnp.float32)
    w2 = prep["w2"].astype(jnp.float32)
    w3 = prep["w3"].astype(jnp.float32)
    h = _gelu_f32(h @ w1 + prep["b1"])
    h = _gelu_f32(h.astype(jnp.bfloat16).astype(jnp.float32) @ w2 + prep["b2"])
    return h.astype(jnp.bfloat16).astype(jnp.float32) @ w3 + prep["b3"]


# ----------------------------------------------------------------------------
if __name__ == "__main__":
    B = 2
    POINT_SIZE = 64
    LATENT_SIZE = 32

    key = jax.random.PRNGKey(0)
    x = jax.random.normal(key, (B, POINT_SIZE, 3), dtype=jnp.float32)

    params = init_params(POINT_SIZE, LATENT_SIZE)
    prep = prepare_params(params)

    fwd = jax.jit(mlp_encoder_forward)
    out = jax.block_until_ready(fwd(prep, x))

    assert out.shape == (B, LATENT_SIZE), out.shape
    assert out.dtype == jnp.float32
    assert bool(jnp.all(jnp.isfinite(out)))

    ref = _reference_forward(prep, x)
    assert bool(jnp.allclose(out, ref, rtol=1e-2, atol=1e-2)), (
        float(jnp.max(jnp.abs(out - ref))))

    # Exercise the large-batch / k-tiling fallback path too.
    out2 = jax.block_until_ready(
        jax.jit(functools.partial(mlp_encoder_forward, tile_k=512))(prep, x))
    assert bool(jnp.allclose(out2, ref, rtol=1e-2, atol=1e-2))

    print("KERNEL_OK")
</pallas_src>

<mosaic_0001>
module attributes {stable_mosaic.version = 11 : i64} {
  func.func @_mlp_encoder_kernel(%arg0: i32, %arg1: i32, %arg2: memref<2x192xbf16, #tpu.memory_space<vmem>>, %arg3: memref<192x2048xbf16, #tpu.memory_space<vmem>>, %arg4: memref<1x2048xf32, #tpu.memory_space<vmem>>, %arg5: memref<2048x1024xbf16, #tpu.memory_space<vmem>>, %arg6: memref<1x1024xf32, #tpu.memory_space<vmem>>, %arg7: memref<1024x32xbf16, #tpu.memory_space<vmem>>, %arg8: memref<1x32xf32, #tpu.memory_space<vmem>>, %arg9: memref<2x32xf32, #tpu.memory_space<vmem>>, %arg10: memref<2x1024xf32, #tpu.memory_space<vmem>>) attributes {dimension_semantics = [#tpu.dimension_semantics<parallel>, #tpu.dimension_semantics<arbitrary>], iteration_bounds = array<i64: 1, 1>, scalar_prefetch = 0 : i64, scratch_operands = 1 : i64, tpu.core_type = #tpu.core_type<tc>, window_params = [{transform_indices = @transform_0, window_bounds = array<i64: 2, 192>}, {transform_indices = @transform_1, window_bounds = array<i64: 192, 2048>}, {pipeline_mode = #tpu.pipeline_mode<synchronous>, transform_indices = @transform_2, window_bounds = array<i64: 1, 2048>}, {transform_indices = @transform_3, window_bounds = array<i64: 2048, 1024>}, {pipeline_mode = #tpu.pipeline_mode<synchronous>, transform_indices = @transform_4, window_bounds = array<i64: 1, 1024>}, {pipeline_mode = #tpu.pipeline_mode<synchronous>, transform_indices = @transform_5, window_bounds = array<i64: 1024, 32>}, {pipeline_mode = #tpu.pipeline_mode<synchronous>, transform_indices = @transform_6, window_bounds = array<i64: 1, 32>}, {transform_indices = @transform_7, window_bounds = array<i64: 2, 32>}]} {
    %c0_i32 = arith.constant 0 : i32
    %0 = arith.cmpi eq, %arg1, %c0_i32 : i32
    %1 = arith.extui %0 : i1 to i32
    %c0_i32_0 = arith.constant 0 : i32
    %2 = arith.cmpi ne, %1, %c0_i32_0 : i32
    scf.if %2 {
      %cst_18 = arith.constant 0.000000e+00 : f32
      %34 = vector.broadcast %cst_18 : f32 to vector<2x1024xf32>
      %c0_19 = arith.constant 0 : index
      %c0_20 = arith.constant 0 : index
      %35 = vector.load %arg10[%c0_19, %c0_20] : memref<2x1024xf32, #tpu.memory_space<vmem>>, vector<2x1024xf32>
      tpu.vector_store %arg10[%c0_19, %c0_20], %34 {strides = array<i32>} : memref<2x1024xf32, #tpu.memory_space<vmem>>, vector<2x1024xf32>,
    } else {
    }
    %c0 = arith.constant 0 : index
    %c0_1 = arith.constant 0 : index
    %3 = vector.load %arg2[%c0, %c0_1] : memref<2x192xbf16, #tpu.memory_space<vmem>>, vector<2x192xbf16>
    %c0_2 = arith.constant 0 : index
    %c0_3 = arith.constant 0 : index
    %4 = vector.load %arg3[%c0_2, %c0_3] : memref<192x2048xbf16, #tpu.memory_space<vmem>>, vector<192x2048xbf16>
    %cst = arith.constant dense<0.000000e+00> : vector<2x2048xf32>
    %5 = tpu.matmul %3, %4, %cst {dimension_numbers = #tpu.dot_dimension_numbers<[1], [0], [0], [1], [0, 0, 1, 1], [], []>} : vector<2x192xbf16>, vector<192x2048xbf16>, vector<2x2048xf32> -> vector<2x2048xf32>
    %c2048_i32 = arith.constant 2048 : i32
    %6 = arith.muli %arg1, %c2048_i32 : i32
    %7 = tpu.assume_multiple %6, 2048 : i32
    %c0_4 = arith.constant 0 : index
    %8 = arith.index_cast %7 : i32 to index
    %9 = vector.load %arg4[%c0_4, %8] : memref<1x2048xf32, #tpu.memory_space<vmem>>, vector<1x2048xf32>
    %10 = vector.broadcast %9 : vector<1x2048xf32> to vector<2x2048xf32>
    %11 = arith.addf %5, %10 : vector<2x2048xf32>
    %cst_5 = arith.constant 5.000000e-01 : f32
    %12 = vector.broadcast %cst_5 : f32 to vector<2x2048xf32>
    %13 = arith.mulf %12, %11 : vector<2x2048xf32>
    %14 = arith.mulf %11, %11 : vector<2x2048xf32>
    %15 = arith.mulf %14, %11 : vector<2x2048xf32>
    %cst_6 = arith.constant 4.471500e-02 : f32
    %16 = vector.broadcast %cst_6 : f32 to vector<2x2048xf32>
    %17 = arith.mulf %16, %15 : vector<2x2048xf32>
    %18 = arith.addf %11, %17 : vector<2x2048xf32>
    %cst_7 = arith.constant 0.797884583 : f32
    %19 = vector.broadcast %cst_7 : f32 to vector<2x2048xf32>
    %20 = arith.mulf %19, %18 : vector<2x2048xf32>
    %21 = math.tanh %20 : vector<2x2048xf32>
    %cst_8 = arith.constant 1.000000e+00 : f32
    %22 = vector.broadcast %cst_8 : f32 to vector<2x2048xf32>
    %23 = arith.addf %22, %21 : vector<2x2048xf32>
    %24 = arith.mulf %13, %23 : vector<2x2048xf32>
    %c0_9 = arith.constant 0 : index
    %c0_10 = arith.constant 0 : index
    %25 = vector.load %arg10[%c0_9, %c0_10] : memref<2x1024xf32, #tpu.memory_space<vmem>>, vector<2x1024xf32>
    %26 = arith.truncf %24 : vector<2x2048xf32> to vector<2x2048xbf16>
    %c0_11 = arith.constant 0 : index
    %c0_12 = arith.constant 0 : index
    %27 = vector.load %arg5[%c0_11, %c0_12] : memref<2048x1024xbf16, #tpu.memory_space<vmem>>, vector<2048x1024xbf16>
    %cst_13 = arith.constant dense<0.000000e+00> : vector<2x1024xf32>
    %28 = tpu.matmul %26, %27, %cst_13 {dimension_numbers = #tpu.dot_dimension_numbers<[1], [0], [0], [1], [0, 0, 1, 1], [], []>} : vector<2x2048xbf16>, vector<2048x1024xbf16>, vector<2x1024xf32> -> vector<2x1024xf32>
    %29 = arith.addf %25, %28 : vector<2x1024xf32>
    %c0_14 = arith.constant 0 : index
    %c0_15 = arith.constant 0 : index
    %30 = vector.load %arg10[%c0_14, %c0_15] : memref<2x1024xf32, #tpu.memory_space<vmem>>, vector<2x1024xf32>
    tpu.vector_store %arg10[%c0_14, %c0_15], %29 {strides = array<i32>} : memref<2x1024xf32, #tpu.memory_space<vmem>>, vector<2x1024xf32>,
    %c0_i32_16 = arith.constant 0 : i32
    %31 = arith.cmpi eq, %arg1, %c0_i32_16 : i32
    %32 = arith.extui %31 : i1 to i32
    %c0_i32_17 = arith.constant 0 : i32
    %33 = arith.cmpi ne, %32, %c0_i32_17 : i32
    scf.if %33 {
      %c0_18 = arith.constant 0 : index
      %c0_19 = arith.constant 0 : index
      %34 = vector.load %arg10[%c0_18, %c0_19] : memref<2x1024xf32, #tpu.memory_space<vmem>>, vector<2x1024xf32>
      %c0_20 = arith.constant 0 : index
      %c0_21 = arith.constant 0 : index
      %35 = vector.load %arg6[%c0_20, %c0_21] : memref<1x1024xf32, #tpu.memory_space<vmem>>, vector<1x1024xf32>
      %36 = vector.broadcast %35 : vector<1x1024xf32> to vector<2x1024xf32>
      %37 = arith.addf %34, %36 : vector<2x1024xf32>
      %cst_22 = arith.constant 5.000000e-01 : f32
      %38 = vector.broadcast %cst_22 : f32 to vector<2x1024xf32>
      %39 = arith.mulf %38, %37 : vector<2x1024xf32>
      %40 = arith.mulf %37, %37 : vector<2x1024xf32>
      %41 = arith.mulf %40, %37 : vector<2x1024xf32>
      %cst_23 = arith.constant 4.471500e-02 : f32
      %42 = vector.broadcast %cst_23 : f32 to vector<2x1024xf32>
      %43 = arith.mulf %42, %41 : vector<2x1024xf32>
      %44 = arith.addf %37, %43 : vector<2x1024xf32>
      %cst_24 = arith.constant 0.797884583 : f32
      %45 = vector.broadcast %cst_24 : f32 to vector<2x1024xf32>
      %46 = arith.mulf %45, %44 : vector<2x1024xf32>
      %47 = math.tanh %46 : vector<2x1024xf32>
      %cst_25 = arith.constant 1.000000e+00 : f32
      %48 = vector.broadcast %cst_25 : f32 to vector<2x1024xf32>
      %49 = arith.addf %48, %47 : vector<2x1024xf32>
      %50 = arith.mulf %39, %49 : vector<2x1024xf32>
      %51 = arith.truncf %50 : vector<2x1024xf32> to vector<2x1024xbf16>
      %c0_26 = arith.constant 0 : index
      %c0_27 = arith.constant 0 : index
      %52 = vector.load %arg7[%c0_26, %c0_27] : memref<1024x32xbf16, #tpu.memory_space<vmem>>, vector<1024x32xbf16>
      %cst_28 = arith.constant dense<0.000000e+00> : vector<2x32xf32>
      %53 = tpu.matmul %51, %52, %cst_28 {dimension_numbers = #tpu.dot_dimension_numbers<[1], [0], [0], [1], [0, 0, 1, 1], [], []>} : vector<2x1024xbf16>, vector<1024x32xbf16>, vector<2x32xf32> -> vector<2x32xf32>
      %c0_29 = arith.constant 0 : index
      %c0_30 = arith.constant 0 : index
      %54 = vector.load %arg8[%c0_29, %c0_30] : memref<1x32xf32, #tpu.memory_space<vmem>>, vector<1x32xf32>
      %55 = vector.broadcast %54 : vector<1x32xf32> to vector<2x32xf32>
      %56 = arith.addf %53, %55 : vector<2x32xf32>
      %c0_31 = arith.constant 0 : index
      %c0_32 = arith.constant 0 : index
      %57 = vector.load %arg9[%c0_31, %c0_32] : memref<2x32xf32, #tpu.memory_space<vmem>>, vector<2x32xf32>
      tpu.vector_store %arg9[%c0_31, %c0_32], %56 {strides = array<i32>} : memref<2x32xf32, #tpu.memory_space<vmem>>, vector<2x32xf32>,
    } else {
    }
    return
  }
  func.func @transform_0(%arg0: i32, %arg1: i32) -> (i32, i32) {
    %c0_i32 = arith.constant 0 : i32
    %c0_i32_0 = arith.constant 0 : i32
    return %arg0, %c0_i32 : i32, i32
  }
  func.func @transform_1(%arg0: i32, %arg1: i32) -> (i32, i32) {
    %c0_i32 = arith.constant 0 : i32
    %c0_i32_0 = arith.constant 0 : i32
    return %c0_i32, %arg1 : i32, i32
  }
  func.func @transform_2(%arg0: i32, %arg1: i32) -> (i32, i32) {
    %c0_i32 = arith.constant 0 : i32
    %c0_i32_0 = arith.constant 0 : i32
    %c0_i32_1 = arith.constant 0 : i32
    return %c0_i32, %c0_i32_0 : i32, i32
  }
  func.func @transform_3(%arg0: i32, %arg1: i32) -> (i32, i32) {
    %c0_i32 = arith.constant 0 : i32
    %c0_i32_0 = arith.constant 0 : i32
    return %arg1, %c0_i32 : i32, i32
  }
  func.func @transform_4(%arg0: i32, %arg1: i32) -> (i32, i32) {
    %c0_i32 = arith.constant 0 : i32
    %c0_i32_0 = arith.constant 0 : i32
    %c0_i32_1 = arith.constant 0 : i32
    return %c0_i32, %c0_i32_0 : i32, i32
  }
  func.func @transform_5(%arg0: i32, %arg1: i32) -> (i32, i32) {
    %c0_i32 = arith.constant 0 : i32
    %c0_i32_0 = arith.constant 0 : i32
    %c0_i32_1 = arith.constant 0 : i32
    return %c0_i32, %c0_i32_0 : i32, i32
  }
  func.func @transform_6(%arg0: i32, %arg1: i32) -> (i32, i32) {
    %c0_i32 = arith.constant 0 : i32
    %c0_i32_0 = arith.constant 0 : i32
    %c0_i32_1 = arith.constant 0 : i32
    return %c0_i32, %c0_i32_0 : i32, i32
  }
  func.func @transform_7(%arg0: i32, %arg1: i32) -> (i32, i32) {
    %c0_i32 = arith.constant 0 : i32
    %c0_i32_0 = arith.constant 0 : i32
    return %arg0, %c0_i32 : i32, i32
  }
}

</mosaic_0001>

<llo_original>
// kernel: mlp_encoder_forward.1
$region0: #{mlp_encoder_forward.1}
  #allocation0 [shape = 'u32[]', space=smem, size = 0x4, offset = 0x4, fixed_abs, tag = 'smem constant byte address 0x4 - core index']
  #allocation1 [shape = 'u32[144,128]{1,0:T(1,128)}', space=vmem, size = 0x12000, scoped, tag = 'internal scratch']
  #allocation2 [shape = 'f32[2,1024]{1,0:T(2,128)}', space=vmem, size = 0x2000, scoped, tag = 'scratch operand']
  %s0 = inlined_call_operand.vmem [shape: bf16[2,192], index: 0, kind: input, shape index: {}]
  %s1 = inlined_call_operand.hbm [shape: bf16[192,2048], index: 1, kind: input, shape index: {}]
  %s2 = inlined_call_operand.hbm [shape: f32[1,2048], index: 2, kind: input, shape index: {}]
  %s3 = inlined_call_operand.hbm [shape: bf16[2048,1024], index: 3, kind: input, shape index: {}]
  %s4 = inlined_call_operand.hbm [shape: f32[1,1024], index: 4, kind: input, shape index: {}]
  %s5 = inlined_call_operand.vmem [shape: bf16[1024,32], index: 5, kind: input, shape index: {}]
  %s6 = inlined_call_operand.hbm [shape: f32[1,32], index: 6, kind: input, shape index: {}]
  %s7 = inlined_call_operand.hbm [shape: f32[2,32], index: 7, kind: output, shape index: {}]
  %s8 = sld [smem:[#allocation0]]
  $region66: #{mlp_encoder_forward.1} parent=0
    _
  %s10 = ssub.s32 1, %s8
  %s11 = scalar_select 0, %s10, %s8
  $region1: #{mlp_encoder_forward.1} parent=0
    #allocation3 [shape = 'u8[786432]{0}', space=vmem, size = 0xc0000, scoped, tag = 'input window, operand 1, single buffered']
    #allocation4 [shape = 's32[1]{0}', space=sflag, size = 0x4, scoped, tag = 'scoped memory for mlp_encoder_forward.1']
    #allocation5 [shape = 's32[1]{0}', space=sflag, size = 0x4, scoped, tag = 'scoped memory for mlp_encoder_forward.1']
    #allocation6 [shape = 'u8[8192]{0}', space=vmem, size = 0x2000, scoped, tag = 'input window, operand 2, single buffered']
    #allocation7 [shape = 's32[1]{0}', space=sflag, size = 0x4, scoped, tag = 'scoped memory for mlp_encoder_forward.1']
    #allocation8 [shape = 'u8[4194304]{0}', space=vmem, size = 0x400000, scoped, tag = 'input window, operand 3, single buffered']
    #allocation9 [shape = 'u8[4096]{0}', space=vmem, size = 0x1000, scoped, tag = 'input window, operand 4, single buffered']
    #allocation10 [shape = 's32[1]{0}', space=sflag, size = 0x4, scoped, tag = 'scoped memory for mlp_encoder_forward.1']
    #allocation11 [shape = 'u8[512]{0}', space=vmem, size = 0x400, scoped, tag = 'input window, operand 6, single buffered']
    #allocation12 [shape = 'u8[1024]{0}', space=vmem, size = 0x400, scoped, tag = 'output window, operand 0, single buffered']
    %12 = vsyncpa [#allocation4], 0
    %13 = vsyncpa [#allocation7], 0
    %14 = vsyncpa [#allocation10], 0
    %15 = vsyncpa [#allocation5], 0
    // Predicated region
    $region2: #{mlp_encoder_forward.1} parent=1 // pred_check
      _
    $region3: #{mlp_encoder_forward.1} parent=1 // pred_check_branch
      %17 = sbr.rel (0) target = $region5
    $region4: #{mlp_encoder_forward.1} parent=1 // pred_region
      _
    $region5: #{mlp_encoder_forward.1} parent=1 // pred_fallthru
      _
    // Predicated region
    $region6: #{mlp_encoder_forward.1} parent=1 // pred_check
      _
    $region7: #{mlp_encoder_forward.1} parent=1 // pred_check_branch
      %19 = sbr.rel (0) target = $region9
    $region8: #{mlp_encoder_forward.1} parent=1 // pred_region
      %s21 = ssub.s32 24576, 24576
      %22 = vsyncadd [#allocation4], %s21
      %s23 = sshll.u32 [#allocation3], 4
      %s24 = int_to_ptr.vmem [resolvable:$true] %s23
      %29 = dma.hbm_to_vmem [thread:$0]  %s1, 24576, %s24, [#allocation4], 1024, 1024, 64
    $region9: #{mlp_encoder_forward.1} parent=1 // pred_fallthru
      _
    // Predicated region
    $region10: #{mlp_encoder_forward.1} parent=1 // pred_check
      _
    $region11: #{mlp_encoder_forward.1} parent=1 // pred_check_branch
      %31 = sbr.rel (0) target = $region13
    $region12: #{mlp_encoder_forward.1} parent=1 // pred_region
      %s33 = ssub.s32 256, 256
      %34 = vsyncadd [#allocation7], %s33
      %s36 = sshll.u32 [#allocation6], 4
      %s37 = int_to_ptr.vmem [resolvable:$true] %s36
      %39 = dma.hbm_to_vmem [thread:$0]  %s2, 256, %s37, [#allocation7]
    $region13: #{mlp_encoder_forward.1} parent=1 // pred_fallthru
      _
    // Predicated region
    $region14: #{mlp_encoder_forward.1} parent=1 // pred_check
      _
    $region15: #{mlp_encoder_forward.1} parent=1 // pred_check_branch
      %41 = sbr.rel (0) target = $region17
    $region16: #{mlp_encoder_forward.1} parent=1 // pred_region
      %s43 = ssub.s32 131072, 131072
      %44 = vsyncadd [#allocation7], %s43
      %s45 = sshll.u32 [#allocation8], 4
      %s46 = int_to_ptr.vmem [resolvable:$true] %s45
      %51 = dma.hbm_to_vmem [thread:$0]  %s3, 131072, %s46, [#allocation7], 512, 512, 32
    $region17: #{mlp_encoder_forward.1} parent=1 // pred_fallthru
      _
    // Predicated region
    $region18: #{mlp_encoder_forward.1} parent=1 // pred_check
      _
    $region19: #{mlp_encoder_forward.1} parent=1 // pred_check_branch
      %53 = sbr.rel (0) target = $region21
    $region20: #{mlp_encoder_forward.1} parent=1 // pred_region
      %s55 = ssub.s32 128, 128
      %56 = vsyncadd [#allocation10], %s55
      %s58 = sshll.u32 [#allocation9], 4
      %s59 = int_to_ptr.vmem [resolvable:$true] %s58
      %61 = dma.hbm_to_vmem [thread:$0]  %s4, 128, %s59, [#allocation10]
    $region21: #{mlp_encoder_forward.1} parent=1 // pred_fallthru
      _
    // Predicated region
    $region22: #{mlp_encoder_forward.1} parent=1 // pred_check
      _
    $region23: #{mlp_encoder_forward.1} parent=1 // pred_check_branch
      %63 = sbr.rel (0) target = $region25
    $region24: #{mlp_encoder_forward.1} parent=1 // pred_region
      _
    $region25: #{mlp_encoder_forward.1} parent=1 // pred_fallthru
      _
    // Predicated region
    $region26: #{mlp_encoder_forward.1} parent=1 // pred_check
      _
    $region27: #{mlp_encoder_forward.1} parent=1 // pred_check_branch
      %65 = sbr.rel (0) target = $region29
    $region28: #{mlp_encoder_forward.1} parent=1 // pred_region
      %s67 = ssub.s32 16, 16
      %68 = vsyncadd [#allocation10], %s67
      %s70 = sshll.u32 [#allocation11], 4
      %s71 = int_to_ptr.vmem [resolvable:$true] %s70
      %73 = dma.hbm_to_vmem [thread:$0]  %s6, 16, %s71, [#allocation10]
    $region29: #{mlp_encoder_forward.1} parent=1 // pred_fallthru
      _
    // Predicated region
    $region30: #{mlp_encoder_forward.1} parent=1 // pred_check
      _
    $region31: #{mlp_encoder_forward.1} parent=1 // pred_check_branch
      %75 = sbr.rel (0) target = $region33
    $region32: #{mlp_encoder_forward.1} parent=1 // pred_region
      %76 = dma.done [#allocation4], 24576
    $region33: #{mlp_encoder_forward.1} parent=1 // pred_fallthru
      _
    // Predicated region
    $region34: #{mlp_encoder_forward.1} parent=1 // pred_check
      _
    $region35: #{mlp_encoder_forward.1} parent=1 // pred_check_branch
      %78 = sbr.rel (0) target = $region37
    $region36: #{mlp_encoder_forward.1} parent=1 // pred_region
      %79 = dma.done [#allocation7], 256
    $region37: #{mlp_encoder_forward.1} parent=1 // pred_fallthru
      _
    // Predicated region
    $region38: #{mlp_encoder_forward.1} parent=1 // pred_check
      _
    $region39: #{mlp_encoder_forward.1} parent=1 // pred_check_branch
      %81 = sbr.rel (0) target = $region41
    $region40: #{mlp_encoder_forward.1} parent=1 // pred_region
      %82 = dma.done [#allocation7], 131072
    $region41: #{mlp_encoder_forward.1} parent=1 // pred_fallthru
      _
    // Predicated region
    $region42: #{mlp_encoder_forward.1} parent=1 // pred_check
      _
    $region43: #{mlp_encoder_forward.1} parent=1 // pred_check_branch
      %84 = sbr.rel (0) target = $region45
    $region44: #{mlp_encoder_forward.1} parent=1 // pred_region
      %85 = dma.done [#allocation10], 128
    $region45: #{mlp_encoder_forward.1} parent=1 // pred_fallthru
      _
    // Predicated region
    $region46: #{mlp_encoder_forward.1} parent=1 // pred_check
      _
    $region47: #{mlp_encoder_forward.1} parent=1 // pred_check_branch
      %87 = sbr.rel (0) target = $region49
    $region48: #{mlp_encoder_forward.1} parent=1 // pred_region
      %88 = dma.done [#allocation10], 16
    $region49: #{mlp_encoder_forward.1} parent=1 // pred_fallthru
      _
    %p90 = scmp.eq.s32.totalorder 0, 0
    // Predicated region
    $region50: #{mlp_encoder_forward.1} parent=1 // pred_check
      %p91 = pneg %p90
    $region51: #{mlp_encoder_forward.1} parent=1 // pred_check_branch
      %93 = sbr.rel (%p91) target = $region53
    $region52: #{mlp_encoder_forward.1} parent=1 // pred_region
      %94 = vst [vmem:[#allocation2] sm:$0xff] 0.0
      %95 = vst [vmem:[#allocation2 + $0x8] sm:$0xff] 0.0
    $region53: #{mlp_encoder_forward.1} parent=1 // pred_fallthru
      _
    %v96 = vld [vmem:[%s0] sm:$0x3]
    %v97 = vld [vmem:[#allocation3] sm:$0xff]
    %v98 = vld [vmem:[#allocation3 + $0x8] sm:$0xff]
    %v99 = vld [vmem:[#allocation3 + $0x10] sm:$0xff]
    %v100 = vld [vmem:[#allocation3 + $0x18] sm:$0xff]
    %v101 = vld [vmem:[#allocation3 + $0x20] sm:$0xff]
    %v102 = vld [vmem:[#allocation3 + $0x28] sm:$0xff]
    %v103 = vld [vmem:[#allocation3 + $0x30] sm:$0xff]
    %v104 = vld [vmem:[#allocation3 + $0x38] sm:$0xff]
    %v105 = vld [vmem:[#allocation3 + $0x40] sm:$0xff]
    %v106 = vld [vmem:[#allocation3 + $0x48] sm:$0xff]
    %v107 = vld [vmem:[#allocation3 + $0x50] sm:$0xff]
    %v108 = vld [vmem:[#allocation3 + $0x58] sm:$0xff]
    %v109 = vld [vmem:[#allocation3 + $0x60] sm:$0xff]
    %v110 = vld [vmem:[#allocation3 + $0x68] sm:$0xff]
    %v111 = vld [vmem:[#allocation3 + $0x70] sm:$0xff]
    %v112 = vld [vmem:[#allocation3 + $0x78] sm:$0xff]
    %v113 = vld [vmem:[#allocation3 + $0x80] sm:$0xff]
    %v114 = vld [vmem:[#allocation3 + $0x88] sm:$0xff]
    %v115 = vld [vmem:[#allocation3 + $0x90] sm:$0xff]
    %v116 = vld [vmem:[#allocation3 + $0x98] sm:$0xff]
    %v117 = vld [vmem:[#allocation3 + $0xa0] sm:$0xff]
    %v118 = vld [vmem:[#allocation3 + $0xa8] sm:$0xff]
    %v119 = vld [vmem:[#allocation3 + $0xb0] sm:$0xff]
    %v120 = vld [vmem:[#allocation3 + $0xb8] sm:$0xff]
    %v121 = vld [vmem:[#allocation3 + $0xc0] sm:$0xff]
    %v122 = vld [vmem:[#allocation3 + $0xc8] sm:$0xff]
    %v123 = vld [vmem:[#allocation3 + $0xd0] sm:$0xff]
    %v124 = vld [vmem:[#allocation3 + $0xd8] sm:$0xff]
    %v125 = vld [vmem:[#allocation3 + $0xe0] sm:$0xff]
    %v126 = vld [vmem:[#allocation3 + $0xe8] sm:$0xff]
    %v127 = vld [vmem:[#allocation3 + $0xf0] sm:$0xff]
    %v128 = vld [vmem:[#allocation3 + $0xf8] sm:$0xff]
    %v129 = vld [vmem:[#allocation3 + $0x100] sm:$0xff]
    %v130 = vld [vmem:[#allocation3 + $0x108] sm:$0xff]
    %v131 = vld [vmem:[#allocation3 + $0x110] sm:$0xff]
    %v132 = vld [vmem:[#allocation3 + $0x118] sm:$0xff]
    %v133 = vld [vmem:[#allocation3 + $0x120] sm:$0xff]
    %v134 = vld [vmem:[#allocation3 + $0x128] sm:$0xff]
    %v135 = vld [vmem:[#allocation3 + $0x130] sm:$0xff]
    %v136 = vld [vmem:[#allocation3 + $0x138] sm:$0xff]
    %v137 = vld [vmem:[#allocation3 + $0x140] sm:$0xff]
    %v138 = vld [vmem:[#allocation3 + $0x148] sm:$0xff]
    %v139 = vld [vmem:[#allocation3 + $0x150] sm:$0xff]
    %v140 = vld [vmem:[#allocation3 + $0x158] sm:$0xff]
    %v141 = vld [vmem:[#allocation3 + $0x160] sm:$0xff]
    %v142 = vld [vmem:[#allocation3 + $0x168] sm:$0xff]
    %v143 = vld [vmem:[#allocation3 + $0x170] sm:$0xff]
    %v144 = vld [vmem:[#allocation3 + $0x178] sm:$0xff]
    %v145 = vld [vmem:[#allocation3 + $0x180] sm:$0xff]
    %v146 = vld [vmem:[#allocation3 + $0x188] sm:$0xff]
    %v147 = vld [vmem:[#allocation3 + $0x190] sm:$0xff]
    %v148 = vld [vmem:[#allocation3 + $0x198] sm:$0xff]
    %v149 = vld [vmem:[#allocation3 + $0x1a0] sm:$0xff]
    %v150 = vld [vmem:[#allocation3 + $0x1a8] sm:$0xff]
    %v151 = vld [vmem:[#allocation3 + $0x1b0] sm:$0xff]
    %v152 = vld [vmem:[#allocation3 + $0x1b8] sm:$0xff]
    %v153 = vld [vmem:[#allocation3 + $0x1c0] sm:$0xff]
    %v154 = vld [vmem:[#allocation3 + $0x1c8] sm:$0xff]
    %v155 = vld [vmem:[#allocation3 + $0x1d0] sm:$0xff]
    %v156 = vld [vmem:[#allocation3 + $0x1d8] sm:$0xff]
    %v157 = vld [vmem:[#allocation3 + $0x1e0] sm:$0xff]
    %v158 = vld [vmem:[#allocation3 + $0x1e8] sm:$0xff]
    %v159 = vld [vmem:[#allocation3 + $0x1f0] sm:$0xff]
    %v160 = vld [vmem:[#allocation3 + $0x1f8] sm:$0xff]
    %v161 = vld [vmem:[#allocation3 + $0x200] sm:$0xff]
    %v162 = vld [vmem:[#allocation3 + $0x208] sm:$0xff]
    %v163 = vld [vmem:[#allocation3 + $0x210] sm:$0xff]
    %v164 = vld [vmem:[#allocation3 + $0x218] sm:$0xff]
    %v165 = vld [vmem:[#allocation3 + $0x220] sm:$0xff]
    %v166 = vld [vmem:[#allocation3 + $0x228] sm:$0xff]
    %v167 = vld [vmem:[#allocation3 + $0x230] sm:$0xff]
    %v168 = vld [vmem:[#allocation3 + $0x238] sm:$0xff]
    %v169 = vld [vmem:[#allocation3 + $0x240] sm:$0xff]
    %v170 = vld [vmem:[#allocation3 + $0x248] sm:$0xff]
    %v171 = vld [vmem:[#allocation3 + $0x250] sm:$0xff]
    %v172 = vld [vmem:[#allocation3 + $0x258] sm:$0xff]
    %v173 = vld [vmem:[#allocation3 + $0x260] sm:$0xff]
    %v174 = vld [vmem:[#allocation3 + $0x268] sm:$0xff]
    %v175 = vld [vmem:[#allocation3 + $0x270] sm:$0xff]
    %v176 = vld [vmem:[#allocation3 + $0x278] sm:$0xff]
    %v177 = vld [vmem:[#allocation3 + $0x280] sm:$0xff]
    %v178 = vld [vmem:[#allocation3 + $0x288] sm:$0xff]
    %v179 = vld [vmem:[#allocation3 + $0x290] sm:$0xff]
    %v180 = vld [vmem:[#allocation3 + $0x298] sm:$0xff]
    %v181 = vld [vmem:[#allocation3 + $0x2a0] sm:$0xff]
    %v182 = vld [vmem:[#allocation3 + $0x2a8] sm:$0xff]
    %v183 = vld [vmem:[#allocation3 + $0x2b0] sm:$0xff]
    %v184 = vld [vmem:[#allocation3 + $0x2b8] sm:$0xff]
    %v185 = vld [vmem:[#allocation3 + $0x2c0] sm:$0xff]
    %v186 = vld [vmem:[#allocation3 + $0x2c8] sm:$0xff]
    %v187 = vld [vmem:[#allocation3 + $0x2d0] sm:$0xff]
    %v188 = vld [vmem:[#allocation3 + $0x2d8] sm:$0xff]
    %v189 = vld [vmem:[#allocation3 + $0x2e0] sm:$0xff]
    %v190 = vld [vmem:[#allocation3 + $0x2e8] sm:$0xff]
    %v191 = vld [vmem:[#allocation3 + $0x2f0] sm:$0xff]
    %v192 = vld [vmem:[#allocation3 + $0x2f8] sm:$0xff]
    %v193 = vld [vmem:[#allocation3 + $0x300] sm:$0xff]
    %v194 = vld [vmem:[#allocation3 + $0x308] sm:$0xff]
    %v195 = vld [vmem:[#allocation3 + $0x310] sm:$0xff]
    %v196 = vld [vmem:[#allocation3 + $0x318] sm:$0xff]
    %v197 = vld [vmem:[#allocation3 + $0x320] sm:$0xff]
    %v198 = vld [vmem:[#allocation3 + $0x328] sm:$0xff]
    %v199 = vld [vmem:[#allocation3 + $0x330] sm:$0xff]
    %v200 = vld [vmem:[#allocation3 + $0x338] sm:$0xff]
    %v201 = vld [vmem:[#allocation3 + $0x340] sm:$0xff]
    %v202 = vld [vmem:[#allocation3 + $0x348] sm:$0xff]
    %v203 = vld [vmem:[#allocation3 + $0x350] sm:$0xff]
    %v204 = vld [vmem:[#allocation3 + $0x358] sm:$0xff]
    %v205 = vld [vmem:[#allocation3 + $0x360] sm:$0xff]
    %v206 = vld [vmem:[#allocation3 + $0x368] sm:$0xff]
    %v207 = vld [vmem:[#allocation3 + $0x370] sm:$0xff]
    %v208 = vld [vmem:[#allocation3 + $0x378] sm:$0xff]
    %v209 = vld [vmem:[#allocation3 + $0x380] sm:$0xff]
    %v210 = vld [vmem:[#allocation3 + $0x388] sm:$0xff]
    %v211 = vld [vmem:[#allocation3 + $0x390] sm:$0xff]
    %v212 = vld [vmem:[#allocation3 + $0x398] sm:$0xff]
    %v213 = vld [vmem:[#allocation3 + $0x3a0] sm:$0xff]
    %v214 = vld [vmem:[#allocation3 + $0x3a8] sm:$0xff]
    %v215 = vld [vmem:[#allocation3 + $0x3b0] sm:$0xff]
    %v216 = vld [vmem:[#allocation3 + $0x3b8] sm:$0xff]
    %v217 = vld [vmem:[#allocation3 + $0x3c0] sm:$0xff]
    %v218 = vld [vmem:[#allocation3 + $0x3c8] sm:$0xff]
    %v219 = vld [vmem:[#allocation3 + $0x3d0] sm:$0xff]
    %v220 = vld [vmem:[#allocation3 + $0x3d8] sm:$0xff]
    %v221 = vld [vmem:[#allocation3 + $0x3e0] sm:$0xff]
    %v222 = vld [vmem:[#allocation3 + $0x3e8] sm:$0xff]
    %v223 = vld [vmem:[#allocation3 + $0x3f0] sm:$0xff]
    %v224 = vld [vmem:[#allocation3 + $0x3f8] sm:$0xff]
    %v225 = vld [vmem:[#allocation3 + $0x400] sm:$0xff]
    %v226 = vld [vmem:[#allocation3 + $0x408] sm:$0xff]
    %v227 = vld [vmem:[#allocation3 + $0x410] sm:$0xff]
    %v228 = vld [vmem:[#allocation3 + $0x418] sm:$0xff]
    %v229 = vld [vmem:[#allocation3 + $0x420] sm:$0xff]
    %v230 = vld [vmem:[#allocation3 + $0x428] sm:$0xff]
    %v231 = vld [vmem:[#allocation3 + $0x430] sm:$0xff]
    %v232 = vld [vmem:[#allocation3 + $0x438] sm:$0xff]
    %v233 = vld [vmem:[#allocation3 + $0x440] sm:$0xff]
    %v234 = vld [vmem:[#allocation3 + $0x448] sm:$0xff]
    %v235 = vld [vmem:[#allocation3 + $0x450] sm:$0xff]
    %v236 = vld [vmem:[#allocation3 + $0x458] sm:$0xff]
    %v237 = vld [vmem:[#allocation3 + $0x460] sm:$0xff]
    %v238 = vld [vmem:[#allocation3 + $0x468] sm:$0xff]
    %v239 = vld [vmem:[#allocation3 + $0x470] sm:$0xff]
    %v240 = vld [vmem:[#allocation3 + $0x478] sm:$0xff]
    %v241 = vld [vmem:[#allocation3 + $0x480] sm:$0xff]
    %v242 = vld [vmem:[#allocation3 + $0x488] sm:$0xff]
    %v243 = vld [vmem:[#allocation3 + $0x490] sm:$0xff]
    %v244 = vld [vmem:[#allocation3 + $0x498] sm:$0xff]
    %v245 = vld [vmem:[#allocation3 + $0x4a0] sm:$0xff]
    %v246 = vld [vmem:[#allocation3 + $0x4a8] sm:$0xff]
    %v247 = vld [vmem:[#allocation3 + $0x4b0] sm:$0xff]
    %v248 = vld [vmem:[#allocation3 + $0x4b8] sm:$0xff]
    %v249 = vld [vmem:[#allocation3 + $0x4c0] sm:$0xff]
    %v250 = vld [vmem:[#allocation3 + $0x4c8] sm:$0xff]
    %v251 = vld [vmem:[#allocation3 + $0x4d0] sm:$0xff]
    %v252 = vld [vmem:[#allocation3 + $0x4d8] sm:$0xff]
    %v253 = vld [vmem:[#allocation3 + $0x4e0] sm:$0xff]
    %v254 = vld [vmem:[#allocation3 + $0x4e8] sm:$0xff]
    %v255 = vld [vmem:[#allocation3 + $0x4f0] sm:$0xff]
    %v256 = vld [vmem:[#allocation3 + $0x4f8] sm:$0xff]
    %v257 = vld [vmem:[#allocation3 + $0x500] sm:$0xff]
    %v258 = vld [vmem:[#allocation3 + $0x508] sm:$0xff]
    %v259 = vld [vmem:[#allocation3 + $0x510] sm:$0xff]
    %v260 = vld [vmem:[#allocation3 + $0x518] sm:$0xff]
    %v261 = vld [vmem:[#allocation3 + $0x520] sm:$0xff]
    %v262 = vld [vmem:[#allocation3 + $0x528] sm:$0xff]
    %v263 = vld [vmem:[#allocation3 + $0x530] sm:$0xff]
    %v264 = vld [vmem:[#allocation3 + $0x538] sm:$0xff]
    %v265 = vld [vmem:[#allocation3 + $0x540] sm:$0xff]
    %v266 = vld [vmem:[#allocation3 + $0x548] sm:$0xff]
    %v267 = vld [vmem:[#allocation3 + $0x550] sm:$0xff]
    %v268 = vld [vmem:[#allocation3 + $0x558] sm:$0xff]
    %v269 = vld [vmem:[#allocation3 + $0x560] sm:$0xff]
    %v270 = vld [vmem:[#allocation3 + $0x568] sm:$0xff]
    %v271 = vld [vmem:[#allocation3 + $0x570] sm:$0xff]
    %v272 = vld [vmem:[#allocation3 + $0x578] sm:$0xff]
    %v273 = vld [vmem:[#allocation3 + $0x580] sm:$0xff]
    %v274 = vld [vmem:[#allocation3 + $0x588] sm:$0xff]
    %v275 = vld [vmem:[#allocation3 + $0x590] sm:$0xff]
    %v276 = vld [vmem:[#allocation3 + $0x598] sm:$0xff]
    %v277 = vld [vmem:[#allocation3 + $0x5a0] sm:$0xff]
    %v278 = vld [vmem:[#allocation3 + $0x5a8] sm:$0xff]
    %v279 = vld [vmem:[#allocation3 + $0x5b0] sm:$0xff]
    %v280 = vld [vmem:[#allocation3 + $0x5b8] sm:$0xff]
    %v281 = vld [vmem:[#allocation3 + $0x5c0] sm:$0xff]
    %v282 = vld [vmem:[#allocation3 + $0x5c8] sm:$0xff]
    %v283 = vld [vmem:[#allocation3 + $0x5d0] sm:$0xff]
    %v284 = vld [vmem:[#allocation3 + $0x5d8] sm:$0xff]
    %v285 = vld [vmem:[#allocation3 + $0x5e0] sm:$0xff]
    %v286 = vld [vmem:[#allocation3 + $0x5e8] sm:$0xff]
    %v287 = vld [vmem:[#allocation3 + $0x5f0] sm:$0xff]
    %v288 = vld [vmem:[#allocation3 + $0x5f8] sm:$0xff]
    %s289 = smul.u32 0, 2048
    %s290 = sshra.s32 %s289, 7
    %s291 = sand.u32 %s289, 127
    %s292 = scalar_lea.vmem [#allocation6], %s290
    %v293 = vld [vmem:[%s292] sm:$0xff]
    %v294 = vld [vmem:[%s292 + $0x8] sm:$0xff]
    %v297 = vlaneseq
    %v298 = vshrl.u32 %v297, 7
    %v299 = vsub.s32 0, %v298
    %v300 = vrot.slane %v293, %v299
    %v301 = vlaneseq
    %v302 = vshrl.u32 %v301, 7
    %v303 = vsub.s32 1, %v302
    %v304 = vrot.slane %v293, %v303
    %v305 = vlaneseq
    %v306 = vshrl.u32 %v305, 7
    %v307 = vsub.s32 2, %v306
    %v308 = vrot.slane %v293, %v307
    %v309 = vlaneseq
    %v310 = vshrl.u32 %v309, 7
    %v311 = vsub.s32 3, %v310
    %v312 = vrot.slane %v293, %v311
    %v313 = vlaneseq
    %v314 = vshrl.u32 %v313, 7
    %v315 = vsub.s32 4, %v314
    %v316 = vrot.slane %v293, %v315
    %v317 = vlaneseq
    %v318 = vshrl.u32 %v317, 7
    %v319 = vsub.s32 5, %v318
    %v320 = vrot.slane %v293, %v319
    %v321 = vlaneseq
    %v322 = vshrl.u32 %v321, 7
    %v323 = vsub.s32 6, %v322
    %v324 = vrot.slane %v293, %v323
    %v325 = vlaneseq
    %v326 = vshrl.u32 %v325, 7
    %v327 = vsub.s32 7, %v326
    %v328 = vrot.slane %v293, %v327
    %v329 = vlaneseq
    %v330 = vshrl.u32 %v329, 7
    %v331 = vsub.s32 0, %v330
    %v332 = vrot.slane %v294, %v331
    %v333 = vlaneseq
    %v334 = vshrl.u32 %v333, 7
    %v335 = vsub.s32 1, %v334
    %v336 = vrot.slane %v294, %v335
    %v337 = vlaneseq
    %v338 = vshrl.u32 %v337, 7
    %v339 = vsub.s32 2, %v338
    %v340 = vrot.slane %v294, %v339
    %v341 = vlaneseq
    %v342 = vshrl.u32 %v341, 7
    %v343 = vsub.s32 3, %v342
    %v344 = vrot.slane %v294, %v343
    %v345 = vlaneseq
    %v346 = vshrl.u32 %v345, 7
    %v347 = vsub.s32 4, %v346
    %v348 = vrot.slane %v294, %v347
    %v349 = vlaneseq
    %v350 = vshrl.u32 %v349, 7
    %v351 = vsub.s32 5, %v350
    %v352 = vrot.slane %v294, %v351
    %v353 = vlaneseq
    %v354 = vshrl.u32 %v353, 7
    %v355 = vsub.s32 6, %v354
    %v356 = vrot.slane %v294, %v355
    %v357 = vlaneseq
    %v358 = vshrl.u32 %v357, 7
    %v359 = vsub.s32 7, %v358
    %v360 = vrot.slane %v294, %v359
    %v379 = vunpack.c.l.s4 1966171168
    %v380 = vunpack.c.0.s8 %v379
    %v381 = vlaneseq
    %v382 = vshrl.u32 %v381, 7
    %v383 = vsub.s32 %v380, %v382
    %v384 = vrot.slane %v96, %v383
    %v385 = vcombine.high %v384, %v384
    %v387 = vunpack.c.l.s4 1966171168
    %v388 = vunpack.c.0.s8 %v387
    %v389 = vlaneseq
    %v390 = vshrl.u32 %v389, 7
    %v391 = vsub.s32 %v388, %v390
    %v392 = vrot.slane %v384, %v391
    %v394 = vunpack.c.l.s4 1966171168
    %v395 = vunpack.c.0.s8 %v394
    %v396 = vlaneseq
    %v397 = vshrl.u32 %v396, 7
    %v398 = vsub.s32 %v395, %v397
    %v399 = vrot.slane %v385, %v398
    %v593 = vunpack.c.l.b16 %v97
    %v594 = vunpack.c.h.b16 %v97
    %v595 = vunpack.c.l.b16 %v98
    %v596 = vunpack.c.h.b16 %v98
    %v597 = vunpack.c.l.b16 %v99
    %v598 = vunpack.c.h.b16 %v99
    %v599 = vunpack.c.l.b16 %v100
    %v600 = vunpack.c.h.b16 %v100
    %v601 = vunpack.c.l.b16 %v101
    %v602 = vunpack.c.h.b16 %v101
    %v603 = vunpack.c.l.b16 %v102
    %v604 = vunpack.c.h.b16 %v102
    %v605 = vunpack.c.l.b16 %v103
    %v606 = vunpack.c.h.b16 %v103
    %v607 = vunpack.c.l.b16 %v104
    %v608 = vunpack.c.h.b16 %v104
    %v609 = vunpack.c.l.b16 %v105
    %v610 = vunpack.c.h.b16 %v105
    %v611 = vunpack.c.l.b16 %v106
    %v612 = vunpack.c.h.b16 %v106
    %v613 = vunpack.c.l.b16 %v107
    %v614 = vunpack.c.h.b16 %v107
    %v615 = vunpack.c.l.b16 %v108
    %v616 = vunpack.c.h.b16 %v108
    %v617 = vunpack.c.l.b16 %v109
    %v618 = vunpack.c.h.b16 %v109
    %v619 = vunpack.c.l.b16 %v110
    %v620 = vunpack.c.h.b16 %v110
    %v621 = vunpack.c.l.b16 %v111
    %v622 = vunpack.c.h.b16 %v111
    %v623 = vunpack.c.l.b16 %v112
    %v624 = vunpack.c.h.b16 %v112
    %v625 = vunpack.c.l.b16 %v113
    %v626 = vunpack.c.h.b16 %v113
    %v627 = vunpack.c.l.b16 %v114
    %v628 = vunpack.c.h.b16 %v114
    %v629 = vunpack.c.l.b16 %v115
    %v630 = vunpack.c.h.b16 %v115
    %v631 = vunpack.c.l.b16 %v116
    %v632 = vunpack.c.h.b16 %v116
    %v633 = vunpack.c.l.b16 %v117
    %v634 = vunpack.c.h.b16 %v117
    %v635 = vunpack.c.l.b16 %v118
    %v636 = vunpack.c.h.b16 %v118
    %v637 = vunpack.c.l.b16 %v119
    %v638 = vunpack.c.h.b16 %v119
    %v639 = vunpack.c.l.b16 %v120
    %v640 = vunpack.c.h.b16 %v120
    %v641 = vunpack.c.l.b16 %v121
    %v642 = vunpack.c.h.b16 %v121
    %v643 = vunpack.c.l.b16 %v122
    %v644 = vunpack.c.h.b16 %v122
    %v645 = vunpack.c.l.b16 %v123
    %v646 = vunpack.c.h.b16 %v123
    %v647 = vunpack.c.l.b16 %v124
    %v648 = vunpack.c.h.b16 %v124
    %v649 = vunpack.c.l.b16 %v125
    %v650 = vunpack.c.h.b16 %v125
    %v651 = vunpack.c.l.b16 %v126
    %v652 = vunpack.c.h.b16 %v126
    %v653 = vunpack.c.l.b16 %v127
    %v654 = vunpack.c.h.b16 %v127
    %v655 = vunpack.c.l.b16 %v128
    %v656 = vunpack.c.h.b16 %v128
    %v657 = vunpack.c.l.b16 %v129
    %v658 = vunpack.c.h.b16 %v129
    %v659 = vunpack.c.l.b16 %v130
    %v660 = vunpack.c.h.b16 %v130
    %v661 = vunpack.c.l.b16 %v131
    %v662 = vunpack.c.h.b16 %v131
    %v663 = vunpack.c.l.b16 %v132
    %v664 = vunpack.c.h.b16 %v132
    %v665 = vunpack.c.l.b16 %v133
    %v666 = vunpack.c.h.b16 %v133
    %v667 = vunpack.c.l.b16 %v134
    %v668 = vunpack.c.h.b16 %v134
    %v669 = vunpack.c.l.b16 %v135
    %v670 = vunpack.c.h.b16 %v135
    %v671 = vunpack.c.l.b16 %v136
    %v672 = vunpack.c.h.b16 %v136
    %v673 = vunpack.c.l.b16 %v137
    %v674 = vunpack.c.h.b16 %v137
    %v675 = vunpack.c.l.b16 %v138
    %v676 = vunpack.c.h.b16 %v138
    %v677 = vunpack.c.l.b16 %v139
    %v678 = vunpack.c.h.b16 %v139
    %v679 = vunpack.c.l.b16 %v140
    %v680 = vunpack.c.h.b16 %v140
    %v681 = vunpack.c.l.b16 %v141
    %v682 = vunpack.c.h.b16 %v141
    %v683 = vunpack.c.l.b16 %v142
    %v684 = vunpack.c.h.b16 %v142
    %v685 = vunpack.c.l.b16 %v143
    %v686 = vunpack.c.h.b16 %v143
    %v687 = vunpack.c.l.b16 %v144
    %v688 = vunpack.c.h.b16 %v144
    %v689 = vunpack.c.l.b16 %v145
    %v690 = vunpack.c.h.b16 %v145
    %v691 = vunpack.c.l.b16 %v146
    %v692 = vunpack.c.h.b16 %v146
    %v693 = vunpack.c.l.b16 %v147
    %v694 = vunpack.c.h.b16 %v147
    %v695 = vunpack.c.l.b16 %v148
    %v696 = vunpack.c.h.b16 %v148
    %v697 = vunpack.c.l.b16 %v149
    %v698 = vunpack.c.h.b16 %v149
    %v699 = vunpack.c.l.b16 %v150
    %v700 = vunpack.c.h.b16 %v150
    %v701 = vunpack.c.l.b16 %v151
    %v702 = vunpack.c.h.b16 %v151
    %v703 = vunpack.c.l.b16 %v152
    %v704 = vunpack.c.h.b16 %v152
    %v705 = vunpack.c.l.b16 %v153
    %v706 = vunpack.c.h.b16 %v153
    %v707 = vunpack.c.l.b16 %v154
    %v708 = vunpack.c.h.b16 %v154
    %v709 = vunpack.c.l.b16 %v155
    %v710 = vunpack.c.h.b16 %v155
    %v711 = vunpack.c.l.b16 %v156
    %v712 = vunpack.c.h.b16 %v156
    %v713 = vunpack.c.l.b16 %v157
    %v714 = vunpack.c.h.b16 %v157
    %v715 = vunpack.c.l.b16 %v158
    %v716 = vunpack.c.h.b16 %v158
    %v717 = vunpack.c.l.b16 %v159
    %v718 = vunpack.c.h.b16 %v159
    %v719 = vunpack.c.l.b16 %v160
    %v720 = vunpack.c.h.b16 %v160
    %v721 = vunpack.c.l.b16 %v161
    %v722 = vunpack.c.h.b16 %v161
    %v723 = vunpack.c.l.b16 %v162
    %v724 = vunpack.c.h.b16 %v162
    %v725 = vunpack.c.l.b16 %v163
    %v726 = vunpack.c.h.b16 %v163
    %v727 = vunpack.c.l.b16 %v164
    %v728 = vunpack.c.h.b16 %v164
    %v729 = vunpack.c.l.b16 %v165
    %v730 = vunpack.c.h.b16 %v165
    %v731 = vunpack.c.l.b16 %v166
    %v732 = vunpack.c.h.b16 %v166
    %v733 = vunpack.c.l.b16 %v167
    %v734 = vunpack.c.h.b16 %v167
    %v735 = vunpack.c.l.b16 %v168
    %v736 = vunpack.c.h.b16 %v168
    %v737 = vunpack.c.l.b16 %v169
    %v738 = vunpack.c.h.b16 %v169
    %v739 = vunpack.c.l.b16 %v170
    %v740 = vunpack.c.h.b16 %v170
    %v741 = vunpack.c.l.b16 %v171
    %v742 = vunpack.c.h.b16 %v171
    %v743 = vunpack.c.l.b16 %v172
    %v744 = vunpack.c.h.b16 %v172
    %v745 = vunpack.c.l.b16 %v173
    %v746 = vunpack.c.h.b16 %v173
    %v747 = vunpack.c.l.b16 %v174
    %v748 = vunpack.c.h.b16 %v174
    %v749 = vunpack.c.l.b16 %v175
    %v750 = vunpack.c.h.b16 %v175
    %v751 = vunpack.c.l.b16 %v176
    %v752 = vunpack.c.h.b16 %v176
    %v753 = vunpack.c.l.b16 %v177
    %v754 = vunpack.c.h.b16 %v177
    %v755 = vunpack.c.l.b16 %v178
    %v756 = vunpack.c.h.b16 %v178
    %v757 = vunpack.c.l.b16 %v179
    %v758 = vunpack.c.h.b16 %v179
    %v759 = vunpack.c.l.b16 %v180
    %v760 = vunpack.c.h.b16 %v180
    %v761 = vunpack.c.l.b16 %v181
    %v762 = vunpack.c.h.b16 %v181
    %v763 = vunpack.c.l.b16 %v182
    %v764 = vunpack.c.h.b16 %v182
    %v765 = vunpack.c.l.b16 %v183
    %v766 = vunpack.c.h.b16 %v183
    %v767 = vunpack.c.l.b16 %v184
    %v768 = vunpack.c.h.b16 %v184
    %v769 = vunpack.c.l.b16 %v185
    %v770 = vunpack.c.h.b16 %v185
    %v771 = vunpack.c.l.b16 %v186
    %v772 = vunpack.c.h.b16 %v186
    %v773 = vunpack.c.l.b16 %v187
    %v774 = vunpack.c.h.b16 %v187
    %v775 = vunpack.c.l.b16 %v188
    %v776 = vunpack.c.h.b16 %v188
    %v777 = vunpack.c.l.b16 %v189
    %v778 = vunpack.c.h.b16 %v189
    %v779 = vunpack.c.l.b16 %v190
    %v780 = vunpack.c.h.b16 %v190
    %v781 = vunpack.c.l.b16 %v191
    %v782 = vunpack.c.h.b16 %v191
    %v783 = vunpack.c.l.b16 %v192
    %v784 = vunpack.c.h.b16 %v192
    %v785 = vunpack.c.l.b16 %v193
    %v786 = vunpack.c.h.b16 %v193
    %v787 = vunpack.c.l.b16 %v194
    %v788 = vunpack.c.h.b16 %v194
    %v789 = vunpack.c.l.b16 %v195
    %v790 = vunpack.c.h.b16 %v195
    %v791 = vunpack.c.l.b16 %v196
    %v792 = vunpack.c.h.b16 %v196
    %v793 = vunpack.c.l.b16 %v197
    %v794 = vunpack.c.h.b16 %v197
    %v795 = vunpack.c.l.b16 %v198
    %v796 = vunpack.c.h.b16 %v198
    %v797 = vunpack.c.l.b16 %v199
    %v798 = vunpack.c.h.b16 %v199
    %v799 = vunpack.c.l.b16 %v200
    %v800 = vunpack.c.h.b16 %v200
    %v801 = vunpack.c.l.b16 %v201
    %v802 = vunpack.c.h.b16 %v201
    %v803 = vunpack.c.l.b16 %v202
    %v804 = vunpack.c.h.b16 %v202
    %v805 = vunpack.c.l.b16 %v203
    %v806 = vunpack.c.h.b16 %v203
    %v807 = vunpack.c.l.b16 %v204
    %v808 = vunpack.c.h.b16 %v204
    %v809 = vunpack.c.l.b16 %v205
    %v810 = vunpack.c.h.b16 %v205
    %v811 = vunpack.c.l.b16 %v206
    %v812 = vunpack.c.h.b16 %v206
    %v813 = vunpack.c.l.b16 %v207
    %v814 = vunpack.c.h.b16 %v207
    %v815 = vunpack.c.l.b16 %v208
    %v816 = vunpack.c.h.b16 %v208
    %v817 = vunpack.c.l.b16 %v209
    %v818 = vunpack.c.h.b16 %v209
    %v819 = vunpack.c.l.b16 %v210
    %v820 = vunpack.c.h.b16 %v210
    %v821 = vunpack.c.l.b16 %v211
    %v822 = vunpack.c.h.b16 %v211
    %v823 = vunpack.c.l.b16 %v212
    %v824 = vunpack.c.h.b16 %v212
    %v825 = vunpack.c.l.b16 %v213
    %v826 = vunpack.c.h.b16 %v213
    %v827 = vunpack.c.l.b16 %v214
    %v828 = vunpack.c.h.b16 %v214
    %v829 = vunpack.c.l.b16 %v215
    %v830 = vunpack.c.h.b16 %v215
    %v831 = vunpack.c.l.b16 %v216
    %v832 = vunpack.c.h.b16 %v216
    %v833 = vunpack.c.l.b16 %v217
    %v834 = vunpack.c.h.b16 %v217
    %v835 = vunpack.c.l.b16 %v218
    %v836 = vunpack.c.h.b16 %v218
    %v837 = vunpack.c.l.b16 %v219
    %v838 = vunpack.c.h.b16 %v219
    %v839 = vunpack.c.l.b16 %v220
    %v840 = vunpack.c.h.b16 %v220
    %v841 = vunpack.c.l.b16 %v221
    %v842 = vunpack.c.h.b16 %v221
    %v843 = vunpack.c.l.b16 %v222
    %v844 = vunpack.c.h.b16 %v222
    %v845 = vunpack.c.l.b16 %v223
    %v846 = vunpack.c.h.b16 %v223
    %v847 = vunpack.c.l.b16 %v224
    %v848 = vunpack.c.h.b16 %v224
    %v849 = vunpack.c.l.b16 %v225
    %v850 = vunpack.c.h.b16 %v225
    %v851 = vunpack.c.l.b16 %v226
    %v852 = vunpack.c.h.b16 %v226
    %v853 = vunpack.c.l.b16 %v227
    %v854 = vunpack.c.h.b16 %v227
    %v855 = vunpack.c.l.b16 %v228
    %v856 = vunpack.c.h.b16 %v228
    %v857 = vunpack.c.l.b16 %v229
    %v858 = vunpack.c.h.b16 %v229
    %v859 = vunpack.c.l.b16 %v230
    %v860 = vunpack.c.h.b16 %v230
    %v861 = vunpack.c.l.b16 %v231
    %v862 = vunpack.c.h.b16 %v231
    %v863 = vunpack.c.l.b16 %v232
    %v864 = vunpack.c.h.b16 %v232
    %v865 = vunpack.c.l.b16 %v233
    %v866 = vunpack.c.h.b16 %v233
    %v867 = vunpack.c.l.b16 %v234
    %v868 = vunpack.c.h.b16 %v234
    %v869 = vunpack.c.l.b16 %v235
    %v870 = vunpack.c.h.b16 %v235
    %v871 = vunpack.c.l.b16 %v236
    %v872 = vunpack.c.h.b16 %v236
    %v873 = vunpack.c.l.b16 %v237
    %v874 = vunpack.c.h.b16 %v237
    %v875 = vunpack.c.l.b16 %v238
    %v876 = vunpack.c.h.b16 %v238
    %v877 = vunpack.c.l.b16 %v239
    %v878 = vunpack.c.h.b16 %v239
    %v879 = vunpack.c.l.b16 %v240
    %v880 = vunpack.c.h.b16 %v240
    %v881 = vunpack.c.l.b16 %v241
    %v882 = vunpack.c.h.b16 %v241
    %v883 = vunpack.c.l.b16 %v242
    %v884 = vunpack.c.h.b16 %v242
    %v885 = vunpack.c.l.b16 %v243
    %v886 = vunpack.c.h.b16 %v243
    %v887 = vunpack.c.l.b16 %v244
    %v888 = vunpack.c.h.b16 %v244
    %v889 = vunpack.c.l.b16 %v245
    %v890 = vunpack.c.h.b16 %v245
    %v891 = vunpack.c.l.b16 %v246
    %v892 = vunpack.c.h.b16 %v246
    %v893 = vunpack.c.l.b16 %v247
    %v894 = vunpack.c.h.b16 %v247
    %v895 = vunpack.c.l.b16 %v248
    %v896 = vunpack.c.h.b16 %v248
    %v897 = vunpack.c.l.b16 %v249
    %v898 = vunpack.c.h.b16 %v249
    %v899 = vunpack.c.l.b16 %v250
    %v900 = vunpack.c.h.b16 %v250
    %v901 = vunpack.c.l.b16 %v251
    %v902 = vunpack.c.h.b16 %v251
    %v903 = vunpack.c.l.b16 %v252
    %v904 = vunpack.c.h.b16 %v252
    %v905 = vunpack.c.l.b16 %v253
    %v906 = vunpack.c.h.b16 %v253
    %v907 = vunpack.c.l.b16 %v254
    %v908 = vunpack.c.h.b16 %v254
    %v909 = vunpack.c.l.b16 %v255
    %v910 = vunpack.c.h.b16 %v255
    %v911 = vunpack.c.l.b16 %v256
    %v912 = vunpack.c.h.b16 %v256
    %v913 = vunpack.c.l.b16 %v257
    %v914 = vunpack.c.h.b16 %v257
    %v915 = vunpack.c.l.b16 %v258
    %v916 = vunpack.c.h.b16 %v258
    %v917 = vunpack.c.l.b16 %v259
    %v918 = vunpack.c.h.b16 %v259
    %v919 = vunpack.c.l.b16 %v260
    %v920 = vunpack.c.h.b16 %v260
    %v921 = vunpack.c.l.b16 %v261
    %v922 = vunpack.c.h.b16 %v261
    %v923 = vunpack.c.l.b16 %v262
    %v924 = vunpack.c.h.b16 %v262
    %v925 = vunpack.c.l.b16 %v263
    %v926 = vunpack.c.h.b16 %v263
    %v927 = vunpack.c.l.b16 %v264
    %v928 = vunpack.c.h.b16 %v264
    %v929 = vunpack.c.l.b16 %v265
    %v930 = vunpack.c.h.b16 %v265
    %v931 = vunpack.c.l.b16 %v266
    %v932 = vunpack.c.h.b16 %v266
    %v933 = vunpack.c.l.b16 %v267
    %v934 = vunpack.c.h.b16 %v267
    %v935 = vunpack.c.l.b16 %v268
    %v936 = vunpack.c.h.b16 %v268
    %v937 = vunpack.c.l.b16 %v269
    %v938 = vunpack.c.h.b16 %v269
    %v939 = vunpack.c.l.b16 %v270
    %v940 = vunpack.c.h.b16 %v270
    %v941 = vunpack.c.l.b16 %v271
    %v942 = vunpack.c.h.b16 %v271
    %v943 = vunpack.c.l.b16 %v272
    %v944 = vunpack.c.h.b16 %v272
    %v945 = vunpack.c.l.b16 %v273
    %v946 = vunpack.c.h.b16 %v273
    %v947 = vunpack.c.l.b16 %v274
    %v948 = vunpack.c.h.b16 %v274
    %v949 = vunpack.c.l.b16 %v275
    %v950 = vunpack.c.h.b16 %v275
    %v951 = vunpack.c.l.b16 %v276
    %v952 = vunpack.c.h.b16 %v276
    %v953 = vunpack.c.l.b16 %v277
    %v954 = vunpack.c.h.b16 %v277
    %v955 = vunpack.c.l.b16 %v278
    %v956 = vunpack.c.h.b16 %v278
    %v957 = vunpack.c.l.b16 %v279
    %v958 = vunpack.c.h.b16 %v279
    %v959 = vunpack.c.l.b16 %v280
    %v960 = vunpack.c.h.b16 %v280
    %v961 = vunpack.c.l.b16 %v281
    %v962 = vunpack.c.h.b16 %v281
    %v963 = vunpack.c.l.b16 %v282
    %v964 = vunpack.c.h.b16 %v282
    %v965 = vunpack.c.l.b16 %v283
    %v966 = vunpack.c.h.b16 %v283
    %v967 = vunpack.c.l.b16 %v284
    %v968 = vunpack.c.h.b16 %v284
    %v969 = vunpack.c.l.b16 %v285
    %v970 = vunpack.c.h.b16 %v285
    %v971 = vunpack.c.l.b16 %v286
    %v972 = vunpack.c.h.b16 %v286
    %v973 = vunpack.c.l.b16 %v287
    %v974 = vunpack.c.h.b16 %v287
    %v975 = vunpack.c.l.b16 %v288
    %v976 = vunpack.c.h.b16 %v288
    %v977 = vpack.c.b16 %v609, %v593
    %v978 = vpack.c.b16 %v610, %v594
    %v979 = vpack.c.b16 %v611, %v595
    %v980 = vpack.c.b16 %v612, %v596
    %v981 = vpack.c.b16 %v613, %v597
    %v982 = vpack.c.b16 %v614, %v598
    %v983 = vpack.c.b16 %v615, %v599
    %v984 = vpack.c.b16 %v616, %v600
    %v985 = vpack.c.b16 %v617, %v601
    %v986 = vpack.c.b16 %v618, %v602
    %v987 = vpack.c.b16 %v619, %v603
    %v988 = vpack.c.b16 %v620, %v604
    %v989 = vpack.c.b16 %v621, %v605
    %v990 = vpack.c.b16 %v622, %v606
    %v991 = vpack.c.b16 %v623, %v607
    %v992 = vpack.c.b16 %v624, %v608
    %v993 = vpack.c.b16 %v641, %v625
    %v994 = vpack.c.b16 %v642, %v626
    %v995 = vpack.c.b16 %v643, %v627
    %v996 = vpack.c.b16 %v644, %v628
    %v997 = vpack.c.b16 %v645, %v629
    %v998 = vpack.c.b16 %v646, %v630
    %v999 = vpack.c.b16 %v647, %v631
    %v1000 = vpack.c.b16 %v648, %v632
    %v1001 = vpack.c.b16 %v649, %v633
    %v1002 = vpack.c.b16 %v650, %v634
    %v1003 = vpack.c.b16 %v651, %v635
    %v1004 = vpack.c.b16 %v652, %v636
    %v1005 = vpack.c.b16 %v653, %v637
    %v1006 = vpack.c.b16 %v654, %v638
    %v1007 = vpack.c.b16 %v655, %v639
    %v1008 = vpack.c.b16 %v656, %v640
    %v1009 = vpack.c.b16 %v673, %v657
    %v1010 = vpack.c.b16 %v674, %v658
    %v1011 = vpack.c.b16 %v675, %v659
    %v1012 = vpack.c.b16 %v676, %v660
    %v1013 = vpack.c.b16 %v677, %v661
    %v1014 = vpack.c.b16 %v678, %v662
    %v1015 = vpack.c.b16 %v679, %v663
    %v1016 = vpack.c.b16 %v680, %v664
    %v1017 = vpack.c.b16 %v681, %v665
    %v1018 = vpack.c.b16 %v682, %v666
    %v1019 = vpack.c.b16 %v683, %v667
    %v1020 = vpack.c.b16 %v684, %v668
    %v1021 = vpack.c.b16 %v685, %v669
    %v1022 = vpack.c.b16 %v686, %v670
    %v1023 = vpack.c.b16 %v687, %v671
    %v1024 = vpack.c.b16 %v688, %v672
    %v1025 = vpack.c.b16 %v705, %v689
    %v1026 = vpack.c.b16 %v706, %v690
    %v1027 = vpack.c.b16 %v707, %v691
    %v1028 = vpack.c.b16 %v708, %v692
    %v1029 = vpack.c.b16 %v709, %v693
    %v1030 = vpack.c.b16 %v710, %v694
    %v1031 = vpack.c.b16 %v711, %v695
    %v1032 = vpack.c.b16 %v712, %v696
    %v1033 = vpack.c.b16 %v713, %v697
    %v1034 = vpack.c.b16 %v714, %v698
    %v1035 = vpack.c.b16 %v715, %v699
    %v1036 = vpack.c.b16 %v716, %v700
    %v1037 = vpack.c.b16 %v717, %v701
    %v1038 = vpack.c.b16 %v718, %v702
    %v1039 = vpack.c.b16 %v719, %v703
    %v1040 = vpack.c.b16 %v720, %v704
    %v1041 = vpack.c.b16 %v737, %v721
    %v1042 = vpack.c.b16 %v738, %v722
    %v1043 = vpack.c.b16 %v739, %v723
    %v1044 = vpack.c.b16 %v740, %v724
    %v1045 = vpack.c.b16 %v741, %v725
    %v1046 = vpack.c.b16 %v742, %v726
    %v1047 = vpack.c.b16 %v743, %v727
    %v1048 = vpack.c.b16 %v744, %v728
    %v1049 = vpack.c.b16 %v745, %v729
    %v1050 = vpack.c.b16 %v746, %v730
    %v1051 = vpack.c.b16 %v747, %v731
    %v1052 = vpack.c.b16 %v748, %v732
    %v1053 = vpack.c.b16 %v749, %v733
    %v1054 = vpack.c.b16 %v750, %v734
    %v1055 = vpack.c.b16 %v751, %v735
    %v1056 = vpack.c.b16 %v752, %v736
    %v1057 = vpack.c.b16 %v769, %v753
    %v1058 = vpack.c.b16 %v770, %v754
    %v1059 = vpack.c.b16 %v771, %v755
    %v1060 = vpack.c.b16 %v772, %v756
    %v1061 = vpack.c.b16 %v773, %v757
    %v1062 = vpack.c.b16 %v774, %v758
    %v1063 = vpack.c.b16 %v775, %v759
    %v1064 = vpack.c.b16 %v776, %v760
    %v1065 = vpack.c.b16 %v777, %v761
    %v1066 = vpack.c.b16 %v778, %v762
    %v1067 = vpack.c.b16 %v779, %v763
    %v1068 = vpack.c.b16 %v780, %v764
    %v1069 = vpack.c.b16 %v781, %v765
    %v1070 = vpack.c.b16 %v782, %v766
    %v1071 = vpack.c.b16 %v783, %v767
    %v1072 = vpack.c.b16 %v784, %v768
    %v1073 = vpack.c.b16 %v801, %v785
    %v1074 = vpack.c.b16 %v802, %v786
    %v1075 = vpack.c.b16 %v803, %v787
    %v1076 = vpack.c.b16 %v804, %v788
    %v1077 = vpack.c.b16 %v805, %v789
    %v1078 = vpack.c.b16 %v806, %v790
    %v1079 = vpack.c.b16 %v807, %v791
    %v1080 = vpack.c.b16 %v808, %v792
    %v1081 = vpack.c.b16 %v809, %v793
    %v1082 = vpack.c.b16 %v810, %v794
    %v1083 = vpack.c.b16 %v811, %v795
    %v1084 = vpack.c.b16 %v812, %v796
    %v1085 = vpack.c.b16 %v813, %v797
    %v1086 = vpack.c.b16 %v814, %v798
    %v1087 = vpack.c.b16 %v815, %v799
    %v1088 = vpack.c.b16 %v816, %v800
    %v1089 = vpack.c.b16 %v833, %v817
    %v1090 = vpack.c.b16 %v834, %v818
    %v1091 = vpack.c.b16 %v835, %v819
    %v1092 = vpack.c.b16 %v836, %v820
    %v1093 = vpack.c.b16 %v837, %v821
    %v1094 = vpack.c.b16 %v838, %v822
    %v1095 = vpack.c.b16 %v839, %v823
    %v1096 = vpack.c.b16 %v840, %v824
    %v1097 = vpack.c.b16 %v841, %v825
    %v1098 = vpack.c.b16 %v842, %v826
    %v1099 = vpack.c.b16 %v843, %v827
    %v1100 = vpack.c.b16 %v844, %v828
    %v1101 = vpack.c.b16 %v845, %v829
    %v1102 = vpack.c.b16 %v846, %v830
    %v1103 = vpack.c.b16 %v847, %v831
    %v1104 = vpack.c.b16 %v848, %v832
    %v1105 = vpack.c.b16 %v865, %v849
    %v1106 = vpack.c.b16 %v866, %v850
    %v1107 = vpack.c.b16 %v867, %v851
    %v1108 = vpack.c.b16 %v868, %v852
    %v1109 = vpack.c.b16 %v869, %v853
    %v1110 = vpack.c.b16 %v870, %v854
    %v1111 = vpack.c.b16 %v871, %v855
    %v1112 = vpack.c.b16 %v872, %v856
    %v1113 = vpack.c.b16 %v873, %v857
    %v1114 = vpack.c.b16 %v874, %v858
    %v1115 = vpack.c.b16 %v875, %v859
    %v1116 = vpack.c.b16 %v876, %v860
    %v1117 = vpack.c.b16 %v877, %v861
    %v1118 = vpack.c.b16 %v878, %v862
    %v1119 = vpack.c.b16 %v879, %v863
    %v1120 = vpack.c.b16 %v880, %v864
    %v1121 = vpack.c.b16 %v897, %v881
    %v1122 = vpack.c.b16 %v898, %v882
    %v1123 = vpack.c.b16 %v899, %v883
    %v1124 = vpack.c.b16 %v900, %v884
    %v1125 = vpack.c.b16 %v901, %v885
    %v1126 = vpack.c.b16 %v902, %v886
    %v1127 = vpack.c.b16 %v903, %v887
    %v1128 = vpack.c.b16 %v904, %v888
    %v1129 = vpack.c.b16 %v905, %v889
    %v1130 = vpack.c.b16 %v906, %v890
    %v1131 = vpack.c.b16 %v907, %v891
    %v1132 = vpack.c.b16 %v908, %v892
    %v1133 = vpack.c.b16 %v909, %v893
    %v1134 = vpack.c.b16 %v910, %v894
    %v1135 = vpack.c.b16 %v911, %v895
    %v1136 = vpack.c.b16 %v912, %v896
    %v1137 = vpack.c.b16 %v929, %v913
    %v1138 = vpack.c.b16 %v930, %v914
    %v1139 = vpack.c.b16 %v931, %v915
    %v1140 = vpack.c.b16 %v932, %v916
    %v1141 = vpack.c.b16 %v933, %v917
    %v1142 = vpack.c.b16 %v934, %v918
    %v1143 = vpack.c.b16 %v935, %v919
    %v1144 = vpack.c.b16 %v936, %v920
    %v1145 = vpack.c.b16 %v937, %v921
    %v1146 = vpack.c.b16 %v938, %v922
    %v1147 = vpack.c.b16 %v939, %v923
    %v1148 = vpack.c.b16 %v940, %v924
    %v1149 = vpack.c.b16 %v941, %v925
    %v1150 = vpack.c.b16 %v942, %v926
    %v1151 = vpack.c.b16 %v943, %v927
    %v1152 = vpack.c.b16 %v944, %v928
    %v1153 = vpack.c.b16 %v961, %v945
    %v1154 = vpack.c.b16 %v962, %v946
    %v1155 = vpack.c.b16 %v963, %v947
    %v1156 = vpack.c.b16 %v964, %v948
    %v1157 = vpack.c.b16 %v965, %v949
    %v1158 = vpack.c.b16 %v966, %v950
    %v1159 = vpack.c.b16 %v967, %v951
    %v1160 = vpack.c.b16 %v968, %v952
    %v1161 = vpack.c.b16 %v969, %v953
    %v1162 = vpack.c.b16 %v970, %v954
    %v1163 = vpack.c.b16 %v971, %v955
    %v1164 = vpack.c.b16 %v972, %v956
    %v1165 = vpack.c.b16 %v973, %v957
    %v1166 = vpack.c.b16 %v974, %v958
    %v1167 = vpack.c.b16 %v975, %v959
    %v1168 = vpack.c.b16 %v976, %v960
    %vm1361 = vcmask 523264
    %v1363 = vsel %vm1361, %v399, 0
    %1365 = vmatprep.subr.bf16.mxu0 %v1090
    %1366 = vmatpush1.bf16.msra.mxu0 %v1089
    %1367 = vmatprep.subr.bf16.mxu0 %v1074
    %1368 = vmatpush1.bf16.msra.mxu0 %v1073
    %1369 = vmatprep.subr.bf16.mxu0 %v1058
    %1370 = vmatpush1.bf16.msra.mxu0 %v1057
    %1371 = vmatprep.subr.bf16.mxu0 %v1042
    %1372 = vmatpush1.bf16.msra.mxu0 %v1041
    %1373 = vmatprep.subr.bf16.mxu0 %v1026
    %1374 = vmatpush1.bf16.msra.mxu0 %v1025
    %1375 = vmatprep.subr.bf16.mxu0 %v1010
    %1376 = vmatpush1.bf16.msra.mxu0 %v1009
    %1377 = vmatprep.subr.bf16.mxu0 %v994
    %1378 = vmatpush1.bf16.msra.mxu0 %v993
    %1379 = vmatprep.subr.bf16.mxu0 %v978
    %1380 = vmatpush1.bf16.msra.mxu0 %v977
    %1381 = vmatprep.subr.bf16.mxu0 0
    %1382 = vmatpush2.bf16.msra.mxu0 0
    %1383 = vmatprep.subr.bf16.mxu0 0
    %1384 = vmatpush2.bf16.msra.mxu0 0
    %1385 = vmatprep.subr.bf16.mxu0 0
    %1386 = vmatpush2.bf16.msra.mxu0 0
    %1387 = vmatprep.subr.bf16.mxu0 0
    %1388 = vmatpush2.bf16.msra.mxu0 0
    %1389 = vmatprep.subr.bf16.mxu0 %v1154
    %1390 = vmatpush2.bf16.msra.mxu0 %v1153
    %1391 = vmatprep.subr.bf16.mxu0 %v1138
    %1392 = vmatpush2.bf16.msra.mxu0 %v1137
    %1393 = vmatprep.subr.bf16.mxu0 %v1122
    %1394 = vmatpush2.bf16.msra.mxu0 %v1121
    %1395 = vmatprep.subr.bf16.mxu0 %v1106
    %1396 = vmatpush2.bf16.msra.mxu0 %v1105
    %1397 = vmatprep.mubr.bf16.mxu0 %v1363
    %1398 = vmatmul.mubr.bf16.gmra.mxu0 %v392
    %v1399 = vpop.f32.mrf.mxu0
    %v1400 = vadd.f32 %v300, %v1399
    %v1401 = vpop.f32.mrf.mxu0
    %v1402 = vadd.f32 %v304, %v1401
    %v1403 = vpop.f32.mrf.mxu0
    %v1404 = vpop.f32.mrf.mxu0
    %1405 = vdwg.mxu0
    %1406 = vmatprep.subr.bf16.mxu0 %v1092
    %1407 = vmatpush1.bf16.msra.mxu0 %v1091
    %1408 = vmatprep.subr.bf16.mxu0 %v1076
    %1409 = vmatpush1.bf16.msra.mxu0 %v1075
    %1410 = vmatprep.subr.bf16.mxu0 %v1060
    %1411 = vmatpush1.bf16.msra.mxu0 %v1059
    %1412 = vmatprep.subr.bf16.mxu0 %v1044
    %1413 = vmatpush1.bf16.msra.mxu0 %v1043
    %1414 = vmatprep.subr.bf16.mxu0 %v1028
    %1415 = vmatpush1.bf16.msra.mxu0 %v1027
    %1416 = vmatprep.subr.bf16.mxu0 %v1012
    %1417 = vmatpush1.bf16.msra.mxu0 %v1011
    %1418 = vmatprep.subr.bf16.mxu0 %v996
    %1419 = vmatpush1.bf16.msra.mxu0 %v995
    %1420 = vmatprep.subr.bf16.mxu0 %v980
    %1421 = vmatpush1.bf16.msra.mxu0 %v979
    %1422 = vmatprep.subr.bf16.mxu0 0
    %1423 = vmatpush2.bf16.msra.mxu0 0
    %1424 = vmatprep.subr.bf16.mxu0 0
    %1425 = vmatpush2.bf16.msra.mxu0 0
    %1426 = vmatprep.subr.bf16.mxu0 0
    %1427 = vmatpush2.bf16.msra.mxu0 0
    %1428 = vmatprep.subr.bf16.mxu0 0
    %1429 = vmatpush2.bf16.msra.mxu0 0
    %1430 = vmatprep.subr.bf16.mxu0 %v1156
    %1431 = vmatpush2.bf16.msra.mxu0 %v1155
    %1432 = vmatprep.subr.bf16.mxu0 %v1140
    %1433 = vmatpush2.bf16.msra.mxu0 %v1139
    %1434 = vmatprep.subr.bf16.mxu0 %v1124
    %1435 = vmatpush2.bf16.msra.mxu0 %v1123
    %1436 = vmatprep.subr.bf16.mxu0 %v1108
    %1437 = vmatpush2.bf16.msra.mxu0 %v1107
    %1438 = vmatprep.mubr.bf16.mxu0 %v1363
    %1439 = vmatmul.mubr.bf16.gmra.mxu0 %v392
    %v1440 = vpop.f32.mrf.mxu0
    %v1441 = vadd.f32 %v308, %v1440
    %v1442 = vpop.f32.mrf.mxu0
    %v1443 = vadd.f32 %v312, %v1442
    %v1444 = vpop.f32.mrf.mxu0
    %v1445 = vpop.f32.mrf.mxu0
    %1446 = vdwg.mxu0
    %1447 = vmatprep.subr.bf16.mxu0 %v1094
    %1448 = vmatpush1.bf16.msra.mxu0 %v1093
    %1449 = vmatprep.subr.bf16.mxu0 %v1078
    %1450 = vmatpush1.bf16.msra.mxu0 %v1077
    %1451 = vmatprep.subr.bf16.mxu0 %v1062
    %1452 = vmatpush1.bf16.msra.mxu0 %v1061
    %1453 = vmatprep.subr.bf16.mxu0 %v1046
    %1454 = vmatpush1.bf16.msra.mxu0 %v1045
    %1455 = vmatprep.subr.bf16.mxu0 %v1030
    %1456 = vmatpush1.bf16.msra.mxu0 %v1029
    %1457 = vmatprep.subr.bf16.mxu0 %v1014
    %1458 = vmatpush1.bf16.msra.mxu0 %v1013
    %1459 = vmatprep.subr.bf16.mxu0 %v998
    %1460 = vmatpush1.bf16.msra.mxu0 %v997
    %1461 = vmatprep.subr.bf16.mxu0 %v982
    %1462 = vmatpush1.bf16.msra.mxu0 %v981
    %1463 = vmatprep.subr.bf16.mxu0 0
    %1464 = vmatpush2.bf16.msra.mxu0 0
    %1465 = vmatprep.subr.bf16.mxu0 0
    %1466 = vmatpush2.bf16.msra.mxu0 0
    %1467 = vmatprep.subr.bf16.mxu0 0
    %1468 = vmatpush2.bf16.msra.mxu0 0
    %1469 = vmatprep.subr.bf16.mxu0 0
    %1470 = vmatpush2.bf16.msra.mxu0 0
    %1471 = vmatprep.subr.bf16.mxu0 %v1158
    %1472 = vmatpush2.bf16.msra.mxu0 %v1157
    %1473 = vmatprep.subr.bf16.mxu0 %v1142
    %1474 = vmatpush2.bf16.msra.mxu0 %v1141
    %1475 = vmatprep.subr.bf16.mxu0 %v1126
    %1476 = vmatpush2.bf16.msra.mxu0 %v1125
    %1477 = vmatprep.subr.bf16.mxu0 %v1110
    %1478 = vmatpush2.bf16.msra.mxu0 %v1109
    %1479 = vmatprep.mubr.bf16.mxu0 %v1363
    %1480 = vmatmul.mubr.bf16.gmra.mxu0 %v392
    %v1481 = vpop.f32.mrf.mxu0
    %v1482 = vadd.f32 %v316, %v1481
    %v1483 = vpop.f32.mrf.mxu0
    %v1484 = vadd.f32 %v320, %v1483
    %v1485 = vpop.f32.mrf.mxu0
    %v1486 = vpop.f32.mrf.mxu0
    %1487 = vdwg.mxu0
    %1488 = vmatprep.subr.bf16.mxu0 %v1096
    %1489 = vmatpush1.bf16.msra.mxu0 %v1095
    %1490 = vmatprep.subr.bf16.mxu0 %v1080
    %1491 = vmatpush1.bf16.msra.mxu0 %v1079
    %1492 = vmatprep.subr.bf16.mxu0 %v1064
    %1493 = vmatpush1.bf16.msra.mxu0 %v1063
    %1494 = vmatprep.subr.bf16.mxu0 %v1048
    %1495 = vmatpush1.bf16.msra.mxu0 %v1047
    %1496 = vmatprep.subr.bf16.mxu0 %v1032
    %1497 = vmatpush1.bf16.msra.mxu0 %v1031
    %1498 = vmatprep.subr.bf16.mxu0 %v1016
    %1499 = vmatpush1.bf16.msra.mxu0 %v1015
    %1500 = vmatprep.subr.bf16.mxu0 %v1000
    %1501 = vmatpush1.bf16.msra.mxu0 %v999
    %1502 = vmatprep.subr.bf16.mxu0 %v984
    %1503 = vmatpush1.bf16.msra.mxu0 %v983
    %1504 = vmatprep.subr.bf16.mxu0 0
    %1505 = vmatpush2.bf16.msra.mxu0 0
    %1506 = vmatprep.subr.bf16.mxu0 0
    %1507 = vmatpush2.bf16.msra.mxu0 0
    %1508 = vmatprep.subr.bf16.mxu0 0
    %1509 = vmatpush2.bf16.msra.mxu0 0
    %1510 = vmatprep.subr.bf16.mxu0 0
    %1511 = vmatpush2.bf16.msra.mxu0 0
    %1512 = vmatprep.subr.bf16.mxu0 %v1160
    %1513 = vmatpush2.bf16.msra.mxu0 %v1159
    %1514 = vmatprep.subr.bf16.mxu0 %v1144
    %1515 = vmatpush2.bf16.msra.mxu0 %v1143
    %1516 = vmatprep.subr.bf16.mxu0 %v1128
    %1517 = vmatpush2.bf16.msra.mxu0 %v1127
    %1518 = vmatprep.subr.bf16.mxu0 %v1112
    %1519 = vmatpush2.bf16.msra.mxu0 %v1111
    %1520 = vmatprep.mubr.bf16.mxu0 %v1363
    %1521 = vmatmul.mubr.bf16.gmra.mxu0 %v392
    %v1522 = vpop.f32.mrf.mxu0
    %v1523 = vadd.f32 %v324, %v1522
    %v1524 = vpop.f32.mrf.mxu0
    %v1525 = vadd.f32 %v328, %v1524
    %v1526 = vpop.f32.mrf.mxu0
    %v1527 = vpop.f32.mrf.mxu0
    %1528 = vdwg.mxu0
    %1529 = vmatprep.subr.bf16.mxu0 %v1098
    %1530 = vmatpush1.bf16.msra.mxu0 %v1097
    %1531 = vmatprep.subr.bf16.mxu0 %v1082
    %1532 = vmatpush1.bf16.msra.mxu0 %v1081
    %1533 = vmatprep.subr.bf16.mxu0 %v1066
    %1534 = vmatpush1.bf16.msra.mxu0 %v1065
    %1535 = vmatprep.subr.bf16.mxu0 %v1050
    %1536 = vmatpush1.bf16.msra.mxu0 %v1049
    %1537 = vmatprep.subr.bf16.mxu0 %v1034
    %1538 = vmatpush1.bf16.msra.mxu0 %v1033
    %1539 = vmatprep.subr.bf16.mxu0 %v1018
    %1540 = vmatpush1.bf16.msra.mxu0 %v1017
    %1541 = vmatprep.subr.bf16.mxu0 %v1002
    %1542 = vmatpush1.bf16.msra.mxu0 %v1001
    %1543 = vmatprep.subr.bf16.mxu0 %v986
    %1544 = vmatpush1.bf16.msra.mxu0 %v985
    %1545 = vmatprep.subr.bf16.mxu0 0
    %1546 = vmatpush2.bf16.msra.mxu0 0
    %1547 = vmatprep.subr.bf16.mxu0 0
    %1548 = vmatpush2.bf16.msra.mxu0 0
    %1549 = vmatprep.subr.bf16.mxu0 0
    %1550 = vmatpush2.bf16.msra.mxu0 0
    %1551 = vmatprep.subr.bf16.mxu0 0
    %1552 = vmatpush2.bf16.msra.mxu0 0
    %1553 = vmatprep.subr.bf16.mxu0 %v1162
    %1554 = vmatpush2.bf16.msra.mxu0 %v1161
    %1555 = vmatprep.subr.bf16.mxu0 %v1146
    %1556 = vmatpush2.bf16.msra.mxu0 %v1145
    %1557 = vmatprep.subr.bf16.mxu0 %v1130
    %1558 = vmatpush2.bf16.msra.mxu0 %v1129
    %1559 = vmatprep.subr.bf16.mxu0 %v1114
    %1560 = vmatpush2.bf16.msra.mxu0 %v1113
    %1561 = vmatprep.mubr.bf16.mxu0 %v1363
    %1562 = vmatmul.mubr.bf16.gmra.mxu0 %v392
    %v1563 = vpop.f32.mrf.mxu0
    %v1564 = vadd.f32 %v332, %v1563
    %v1565 = vpop.f32.mrf.mxu0
    %v1566 = vadd.f32 %v336, %v1565
    %v1567 = vpop.f32.mrf.mxu0
    %v1568 = vpop.f32.mrf.mxu0
    %1569 = vdwg.mxu0
    %1570 = vmatprep.subr.bf16.mxu0 %v1100
    %1571 = vmatpush1.bf16.msra.mxu0 %v1099
    %1572 = vmatprep.subr.bf16.mxu0 %v1084
    %1573 = vmatpush1.bf16.msra.mxu0 %v1083
    %1574 = vmatprep.subr.bf16.mxu0 %v1068
    %1575 = vmatpush1.bf16.msra.mxu0 %v1067
    %1576 = vmatprep.subr.bf16.mxu0 %v1052
    %1577 = vmatpush1.bf16.msra.mxu0 %v1051
    %1578 = vmatprep.subr.bf16.mxu0 %v1036
    %1579 = vmatpush1.bf16.msra.mxu0 %v1035
    %1580 = vmatprep.subr.bf16.mxu0 %v1020
    %1581 = vmatpush1.bf16.msra.mxu0 %v1019
    %1582 = vmatprep.subr.bf16.mxu0 %v1004
    %1583 = vmatpush1.bf16.msra.mxu0 %v1003
    %1584 = vmatprep.subr.bf16.mxu0 %v988
    %1585 = vmatpush1.bf16.msra.mxu0 %v987
    %1586 = vmatprep.subr.bf16.mxu0 0
    %1587 = vmatpush2.bf16.msra.mxu0 0
    %1588 = vmatprep.subr.bf16.mxu0 0
    %1589 = vmatpush2.bf16.msra.mxu0 0
    %1590 = vmatprep.subr.bf16.mxu0 0
    %1591 = vmatpush2.bf16.msra.mxu0 0
    %1592 = vmatprep.subr.bf16.mxu0 0
    %1593 = vmatpush2.bf16.msra.mxu0 0
    %1594 = vmatprep.subr.bf16.mxu0 %v1164
    %1595 = vmatpush2.bf16.msra.mxu0 %v1163
    %1596 = vmatprep.subr.bf16.mxu0 %v1148
    %1597 = vmatpush2.bf16.msra.mxu0 %v1147
    %1598 = vmatprep.subr.bf16.mxu0 %v1132
    %1599 = vmatpush2.bf16.msra.mxu0 %v1131
    %1600 = vmatprep.subr.bf16.mxu0 %v1116
    %1601 = vmatpush2.bf16.msra.mxu0 %v1115
    %1602 = vmatprep.mubr.bf16.mxu0 %v1363
    %1603 = vmatmul.mubr.bf16.gmra.mxu0 %v392
    %v1604 = vpop.f32.mrf.mxu0
    %v1605 = vadd.f32 %v340, %v1604
    %v1606 = vpop.f32.mrf.mxu0
    %v1607 = vadd.f32 %v344, %v1606
    %v1608 = vpop.f32.mrf.mxu0
    %v1609 = vpop.f32.mrf.mxu0
    %1610 = vdwg.mxu0
    %1611 = vmatprep.subr.bf16.mxu0 %v1102
    %1612 = vmatpush1.bf16.msra.mxu0 %v1101
    %1613 = vmatprep.subr.bf16.mxu0 %v1086
    %1614 = vmatpush1.bf16.msra.mxu0 %v1085
    %1615 = vmatprep.subr.bf16.mxu0 %v1070
    %1616 = vmatpush1.bf16.msra.mxu0 %v1069
    %1617 = vmatprep.subr.bf16.mxu0 %v1054
    %1618 = vmatpush1.bf16.msra.mxu0 %v1053
    %1619 = vmatprep.subr.bf16.mxu0 %v1038
    %1620 = vmatpush1.bf16.msra.mxu0 %v1037
    %1621 = vmatprep.subr.bf16.mxu0 %v1022
    %1622 = vmatpush1.bf16.msra.mxu0 %v1021
    %1623 = vmatprep.subr.bf16.mxu0 %v1006
    %1624 = vmatpush1.bf16.msra.mxu0 %v1005
    %1625 = vmatprep.subr.bf16.mxu0 %v990
    %1626 = vmatpush1.bf16.msra.mxu0 %v989
    %1627 = vmatprep.subr.bf16.mxu0 0
    %1628 = vmatpush2.bf16.msra.mxu0 0
    %1629 = vmatprep.subr.bf16.mxu0 0
    %1630 = vmatpush2.bf16.msra.mxu0 0
    %1631 = vmatprep.subr.bf16.mxu0 0
    %1632 = vmatpush2.bf16.msra.mxu0 0
    %1633 = vmatprep.subr.bf16.mxu0 0
    %1634 = vmatpush2.bf16.msra.mxu0 0
    %1635 = vmatprep.subr.bf16.mxu0 %v1166
    %1636 = vmatpush2.bf16.msra.mxu0 %v1165
    %1637 = vmatprep.subr.bf16.mxu0 %v1150
    %1638 = vmatpush2.bf16.msra.mxu0 %v1149
    %1639 = vmatprep.subr.bf16.mxu0 %v1134
    %1640 = vmatpush2.bf16.msra.mxu0 %v1133
    %1641 = vmatprep.subr.bf16.mxu0 %v1118
    %1642 = vmatpush2.bf16.msra.mxu0 %v1117
    %1643 = vmatprep.mubr.bf16.mxu0 %v1363
    %1644 = vmatmul.mubr.bf16.gmra.mxu0 %v392
    %v1645 = vpop.f32.mrf.mxu0
    %v1646 = vadd.f32 %v348, %v1645
    %v1647 = vpop.f32.mrf.mxu0
    %v1648 = vadd.f32 %v352, %v1647
    %v1649 = vpop.f32.mrf.mxu0
    %v1650 = vpop.f32.mrf.mxu0
    %1651 = vdwg.mxu0
    %1652 = vmatprep.subr.bf16.mxu0 %v1104
    %1653 = vmatpush1.bf16.msra.mxu0 %v1103
    %1654 = vmatprep.subr.bf16.mxu0 %v1088
    %1655 = vmatpush1.bf16.msra.mxu0 %v1087
    %1656 = vmatprep.subr.bf16.mxu0 %v1072
    %1657 = vmatpush1.bf16.msra.mxu0 %v1071
    %1658 = vmatprep.subr.bf16.mxu0 %v1056
    %1659 = vmatpush1.bf16.msra.mxu0 %v1055
    %1660 = vmatprep.subr.bf16.mxu0 %v1040
    %1661 = vmatpush1.bf16.msra.mxu0 %v1039
    %1662 = vmatprep.subr.bf16.mxu0 %v1024
    %1663 = vmatpush1.bf16.msra.mxu0 %v1023
    %1664 = vmatprep.subr.bf16.mxu0 %v1008
    %1665 = vmatpush1.bf16.msra.mxu0 %v1007
    %1666 = vmatprep.subr.bf16.mxu0 %v992
    %1667 = vmatpush1.bf16.msra.mxu0 %v991
    %1668 = vmatprep.subr.bf16.mxu0 0
    %1669 = vmatpush2.bf16.msra.mxu0 0
    %1670 = vmatprep.subr.bf16.mxu0 0
    %1671 = vmatpush2.bf16.msra.mxu0 0
    %1672 = vmatprep.subr.bf16.mxu0 0
    %1673 = vmatpush2.bf16.msra.mxu0 0
    %1674 = vmatprep.subr.bf16.mxu0 0
    %1675 = vmatpush2.bf16.msra.mxu0 0
    %1676 = vmatprep.subr.bf16.mxu0 %v1168
    %1677 = vmatpush2.bf16.msra.mxu0 %v1167
    %1678 = vmatprep.subr.bf16.mxu0 %v1152
    %1679 = vmatpush2.bf16.msra.mxu0 %v1151
    %1680 = vmatprep.subr.bf16.mxu0 %v1136
    %1681 = vmatpush2.bf16.msra.mxu0 %v1135
    %1682 = vmatprep.subr.bf16.mxu0 %v1120
    %1683 = vmatpush2.bf16.msra.mxu0 %v1119
    %1684 = vmatprep.mubr.bf16.mxu0 %v1363
    %1685 = vmatmul.mubr.bf16.gmra.mxu0 %v392
    %v1686 = vpop.f32.mrf.mxu0
    %v1687 = vadd.f32 %v356, %v1686
    %v1688 = vpop.f32.mrf.mxu0
    %v1689 = vadd.f32 %v360, %v1688
    %v1690 = vpop.f32.mrf.mxu0
    %v1691 = vpop.f32.mrf.mxu0
    %1692 = vdwg.mxu0
    %v1693 = vmul.f32 %v1400, 0.5
    %v1694 = vmul.f32 %v1402, 0.5
    %v1695 = vmul.f32 %v1441, 0.5
    %v1696 = vmul.f32 %v1443, 0.5
    %v1697 = vmul.f32 %v1482, 0.5
    %v1698 = vmul.f32 %v1484, 0.5
    %v1699 = vmul.f32 %v1523, 0.5
    %v1700 = vmul.f32 %v1525, 0.5
    %v1701 = vmul.f32 %v1564, 0.5
    %v1702 = vmul.f32 %v1566, 0.5
    %v1703 = vmul.f32 %v1605, 0.5
    %v1704 = vmul.f32 %v1607, 0.5
    %v1705 = vmul.f32 %v1646, 0.5
    %v1706 = vmul.f32 %v1648, 0.5
    %v1707 = vmul.f32 %v1687, 0.5
    %v1708 = vmul.f32 %v1689, 0.5
    %v1709 = vmul.f32 %v1400, %v1400
    %v1710 = vmul.f32 %v1402, %v1402
    %v1711 = vmul.f32 %v1441, %v1441
    %v1712 = vmul.f32 %v1443, %v1443
    %v1713 = vmul.f32 %v1482, %v1482
    %v1714 = vmul.f32 %v1484, %v1484
    %v1715 = vmul.f32 %v1523, %v1523
    %v1716 = vmul.f32 %v1525, %v1525
    %v1717 = vmul.f32 %v1564, %v1564
    %v1718 = vmul.f32 %v1566, %v1566
    %v1719 = vmul.f32 %v1605, %v1605
    %v1720 = vmul.f32 %v1607, %v1607
    %v1721 = vmul.f32 %v1646, %v1646
    %v1722 = vmul.f32 %v1648, %v1648
    %v1723 = vmul.f32 %v1687, %v1687
    %v1724 = vmul.f32 %v1689, %v1689
    %v1725 = vmul.f32 %v1709, %v1400
    %v1726 = vmul.f32 %v1710, %v1402
    %v1727 = vmul.f32 %v1711, %v1441
    %v1728 = vmul.f32 %v1712, %v1443
    %v1729 = vmul.f32 %v1713, %v1482
    %v1730 = vmul.f32 %v1714, %v1484
    %v1731 = vmul.f32 %v1715, %v1523
    %v1732 = vmul.f32 %v1716, %v1525
    %v1733 = vmul.f32 %v1717, %v1564
    %v1734 = vmul.f32 %v1718, %v1566
    %v1735 = vmul.f32 %v1719, %v1605
    %v1736 = vmul.f32 %v1720, %v1607
    %v1737 = vmul.f32 %v1721, %v1646
    %v1738 = vmul.f32 %v1722, %v1648
    %v1739 = vmul.f32 %v1723, %v1687
    %v1740 = vmul.f32 %v1724, %v1689
    %v1741 = vmul.f32 %v1725, 0.044715
    %v1742 = vmul.f32 %v1726, 0.044715
    %v1743 = vmul.f32 %v1727, 0.044715
    %v1744 = vmul.f32 %v1728, 0.044715
    %v1745 = vmul.f32 %v1729, 0.044715
    %v1746 = vmul.f32 %v1730, 0.044715
    %v1747 = vmul.f32 %v1731, 0.044715
    %v1748 = vmul.f32 %v1732, 0.044715
    %v1749 = vmul.f32 %v1733, 0.044715
    %v1750 = vmul.f32 %v1734, 0.044715
    %v1751 = vmul.f32 %v1735, 0.044715
    %v1752 = vmul.f32 %v1736, 0.044715
    %v1753 = vmul.f32 %v1737, 0.044715
    %v1754 = vmul.f32 %v1738, 0.044715
    %v1755 = vmul.f32 %v1739, 0.044715
    %v1756 = vmul.f32 %v1740, 0.044715
    %v1757 = vadd.f32 %v1400, %v1741
    %v1758 = vadd.f32 %v1402, %v1742
    %v1759 = vadd.f32 %v1441, %v1743
    %v1760 = vadd.f32 %v1443, %v1744
    %v1761 = vadd.f32 %v1482, %v1745
    %v1762 = vadd.f32 %v1484, %v1746
    %v1763 = vadd.f32 %v1523, %v1747
    %v1764 = vadd.f32 %v1525, %v1748
    %v1765 = vadd.f32 %v1564, %v1749
    %v1766 = vadd.f32 %v1566, %v1750
    %v1767 = vadd.f32 %v1605, %v1751
    %v1768 = vadd.f32 %v1607, %v1752
    %v1769 = vadd.f32 %v1646, %v1753
    %v1770 = vadd.f32 %v1648, %v1754
    %v1771 = vadd.f32 %v1687, %v1755
    %v1772 = vadd.f32 %v1689, %v1756
    %v1773 = vmul.f32 %v1757, 0.7978846
    %v1774 = vmul.f32 %v1758, 0.7978846
    %v1775 = vmul.f32 %v1759, 0.7978846
    %v1776 = vmul.f32 %v1760, 0.7978846
    %v1777 = vmul.f32 %v1761, 0.7978846
    %v1778 = vmul.f32 %v1762, 0.7978846
    %v1779 = vmul.f32 %v1763, 0.7978846
    %v1780 = vmul.f32 %v1764, 0.7978846
    %v1781 = vmul.f32 %v1765, 0.7978846
    %v1782 = vmul.f32 %v1766, 0.7978846
    %v1783 = vmul.f32 %v1767, 0.7978846
    %v1784 = vmul.f32 %v1768, 0.7978846
    %v1785 = vmul.f32 %v1769, 0.7978846
    %v1786 = vmul.f32 %v1770, 0.7978846
    %v1787 = vmul.f32 %v1771, 0.7978846
    %v1788 = vmul.f32 %v1772, 0.7978846
    %v1789 = vtanh.pop %v1773
    %v1790 = vtanh.pop %v1774
    %v1791 = vtanh.pop %v1775
    %v1792 = vtanh.pop %v1776
    %v1793 = vtanh.pop %v1777
    %v1794 = vtanh.pop %v1778
    %v1795 = vtanh.pop %v1779
    %v1796 = vtanh.pop %v1780
    %v1797 = vtanh.pop %v1781
    %v1798 = vtanh.pop %v1782
    %v1799 = vtanh.pop %v1783
    %v1800 = vtanh.pop %v1784
    %v1801 = vtanh.pop %v1785
    %v1802 = vtanh.pop %v1786
    %v1803 = vtanh.pop %v1787
    %v1804 = vtanh.pop %v1788
    %v1805 = vadd.f32 %v1789, 1.0
    %v1806 = vadd.f32 %v1790, 1.0
    %v1807 = vadd.f32 %v1791, 1.0
    %v1808 = vadd.f32 %v1792, 1.0
    %v1809 = vadd.f32 %v1793, 1.0
    %v1810 = vadd.f32 %v1794, 1.0
    %v1811 = vadd.f32 %v1795, 1.0
    %v1812 = vadd.f32 %v1796, 1.0
    %v1813 = vadd.f32 %v1797, 1.0
    %v1814 = vadd.f32 %v1798, 1.0
    %v1815 = vadd.f32 %v1799, 1.0
    %v1816 = vadd.f32 %v1800, 1.0
    %v1817 = vadd.f32 %v1801, 1.0
    %v1818 = vadd.f32 %v1802, 1.0
    %v1819 = vadd.f32 %v1803, 1.0
    %v1820 = vadd.f32 %v1804, 1.0
    %v1821 = vmul.f32 %v1693, %v1805
    %v1822 = vmul.f32 %v1694, %v1806
    %v1823 = vmul.f32 %v1695, %v1807
    %v1824 = vmul.f32 %v1696, %v1808
    %v1825 = vmul.f32 %v1697, %v1809
    %v1826 = vmul.f32 %v1698, %v1810
    %v1827 = vmul.f32 %v1699, %v1811
    %v1828 = vmul.f32 %v1700, %v1812
    %v1829 = vmul.f32 %v1701, %v1813
    %v1830 = vmul.f32 %v1702, %v1814
    %v1831 = vmul.f32 %v1703, %v1815
    %v1832 = vmul.f32 %v1704, %v1816
    %v1833 = vmul.f32 %v1705, %v1817
    %v1834 = vmul.f32 %v1706, %v1818
    %v1835 = vmul.f32 %v1707, %v1819
    %v1836 = vmul.f32 %v1708, %v1820
    %v1837 = vld [vmem:[#allocation2] sm:$0xff]
    %v1838 = vld [vmem:[#allocation2 + $0x8] sm:$0xff]
    %v1839 = vpack.c.bf16 %v1821, %v1821
    %v1840 = vpack.c.bf16 %v1822, %v1822
    %v1841 = vpack.c.bf16 %v1823, %v1823
    %v1842 = vpack.c.bf16 %v1824, %v1824
    %v1843 = vpack.c.bf16 %v1825, %v1825
    %v1844 = vpack.c.bf16 %v1826, %v1826
    %v1845 = vpack.c.bf16 %v1827, %v1827
    %v1846 = vpack.c.bf16 %v1828, %v1828
    %v1847 = vpack.c.bf16 %v1829, %v1829
    %v1848 = vpack.c.bf16 %v1830, %v1830
    %v1849 = vpack.c.bf16 %v1831, %v1831
    %v1850 = vpack.c.bf16 %v1832, %v1832
    %v1851 = vpack.c.bf16 %v1833, %v1833
    %v1852 = vpack.c.bf16 %v1834, %v1834
    %v1853 = vpack.c.bf16 %v1835, %v1835
    %v1854 = vpack.c.bf16 %v1836, %v1836
    %v1855 = vld [vmem:[#allocation8] sm:$0xff]
    %v1856 = vld [vmem:[#allocation8 + $0x8] sm:$0xff]
    %v1857 = vld [vmem:[#allocation8 + $0x10] sm:$0xff]
    %v1858 = vld [vmem:[#allocation8 + $0x18] sm:$0xff]
    %v1859 = vld [vmem:[#allocation8 + $0x20] sm:$0xff]
    %v1860 = vld [vmem:[#allocation8 + $0x28] sm:$0xff]
    %v1861 = vld [vmem:[#allocation8 + $0x30] sm:$0xff]
    %v1862 = vld [vmem:[#allocation8 + $0x38] sm:$0xff]
    %v1863 = vld [vmem:[#allocation8 + $0x40] sm:$0xff]
    %v1864 = vld [vmem:[#allocation8 + $0x48] sm:$0xff]
    %v1865 = vld [vmem:[#allocation8 + $0x50] sm:$0xff]
    %v1866 = vld [vmem:[#allocation8 + $0x58] sm:$0xff]
    %v1867 = vld [vmem:[#allocation8 + $0x60] sm:$0xff]
    %v1868 = vld [vmem:[#allocation8 + $0x68] sm:$0xff]
    %v1869 = vld [vmem:[#allocation8 + $0x70] sm:$0xff]
    %v1870 = vld [vmem:[#allocation8 + $0x78] sm:$0xff]
    %v1871 = vld [vmem:[#allocation8 + $0x80] sm:$0xff]
    %v1872 = vld [vmem:[#allocation8 + $0x88] sm:$0xff]
    %v1873 = vld [vmem:[#allocation8 + $0x90] sm:$0xff]
    %v1874 = vld [vmem:[#allocation8 + $0x98] sm:$0xff]
    %v1875 = vld [vmem:[#allocation8 + $0xa0] sm:$0xff]
    %v1876 = vld [vmem:[#allocation8 + $0xa8] sm:$0xff]
    %v1877 = vld [vmem:[#allocation8 + $0xb0] sm:$0xff]
    %v1878 = vld [vmem:[#allocation8 + $0xb8] sm:$0xff]
    %v1879 = vld [vmem:[#allocation8 + $0xc0] sm:$0xff]
    %v1880 = vld [vmem:[#allocation8 + $0xc8] sm:$0xff]
    %v1881 = vld [vmem:[#allocation8 + $0xd0] sm:$0xff]
    %v1882 = vld [vmem:[#allocation8 + $0xd8] sm:$0xff]
    %v1883 = vld [vmem:[#allocation8 + $0xe0] sm:$0xff]
    %v1884 = vld [vmem:[#allocation8 + $0xe8] sm:$0xff]
    %v1885 = vld [vmem:[#allocation8 + $0xf0] sm:$0xff]
    %v1886 = vld [vmem:[#allocation8 + $0xf8] sm:$0xff]
    %v1887 = vld [vmem:[#allocation8 + $0x100] sm:$0xff]
    %v1888 = vld [vmem:[#allocation8 + $0x108] sm:$0xff]
    %v1889 = vld [vmem:[#allocation8 + $0x110] sm:$0xff]
    %v1890 = vld [vmem:[#allocation8 + $0x118] sm:$0xff]
    %v1891 = vld [vmem:[#allocation8 + $0x120] sm:$0xff]
    %v1892 = vld [vmem:[#allocation8 + $0x128] sm:$0xff]
    %v1893 = vld [vmem:[#allocation8 + $0x130] sm:$0xff]
    %v1894 = vld [vmem:[#allocation8 + $0x138] sm:$0xff]
    %v1895 = vld [vmem:[#allocation8 + $0x140] sm:$0xff]
    %v1896 = vld [vmem:[#allocation8 + $0x148] sm:$0xff]
    %v1897 = vld [vmem:[#allocation8 + $0x150] sm:$0xff]
    %v1898 = vld [vmem:[#allocation8 + $0x158] sm:$0xff]
    %v1899 = vld [vmem:[#allocation8 + $0x160] sm:$0xff]
    %v1900 = vld [vmem:[#allocation8 + $0x168] sm:$0xff]
    %v1901 = vld [vmem:[#allocation8 + $0x170] sm:$0xff]
    %v1902 = vld [vmem:[#allocation8 + $0x178] sm:$0xff]
    %v1903 = vld [vmem:[#allocation8 + $0x180] sm:$0xff]
    %v1904 = vld [vmem:[#allocation8 + $0x188] sm:$0xff]
    %v1905 = vld [vmem:[#allocation8 + $0x190] sm:$0xff]
    %v1906 = vld [vmem:[#allocation8 + $0x198] sm:$0xff]
    %v1907 = vld [vmem:[#allocation8 + $0x1a0] sm:$0xff]
    %v1908 = vld [vmem:[#allocation8 + $0x1a8] sm:$0xff]
    %v1909 = vld [vmem:[#allocation8 + $0x1b0] sm:$0xff]
    %v1910 = vld [vmem:[#allocation8 + $0x1b8] sm:$0xff]
    %v1911 = vld [vmem:[#allocation8 + $0x1c0] sm:$0xff]
    %v1912 = vld [vmem:[#allocation8 + $0x1c8] sm:$0xff]
    %v1913 = vld [vmem:[#allocation8 + $0x1d0] sm:$0xff]
    %v1914 = vld [vmem:[#allocation8 + $0x1d8] sm:$0xff]
    %v1915 = vld [vmem:[#allocation8 + $0x1e0] sm:$0xff]
    %v1916 = vld [vmem:[#allocation8 + $0x1e8] sm:$0xff]
    %v1917 = vld [vmem:[#allocation8 + $0x1f0] sm:$0xff]
    %v1918 = vld [vmem:[#allocation8 + $0x1f8] sm:$0xff]
    %v1919 = vld [vmem:[#allocation8 + $0x200] sm:$0xff]
    %v1920 = vld [vmem:[#allocation8 + $0x208] sm:$0xff]
    %v1921 = vld [vmem:[#allocation8 + $0x210] sm:$0xff]
    %v1922 = vld [vmem:[#allocation8 + $0x218] sm:$0xff]
    %v1923 = vld [vmem:[#allocation8 + $0x220] sm:$0xff]
    %v1924 = vld [vmem:[#allocation8 + $0x228] sm:$0xff]
    %v1925 = vld [vmem:[#allocation8 + $0x230] sm:$0xff]
    %v1926 = vld [vmem:[#allocation8 + $0x238] sm:$0xff]
    %v1927 = vld [vmem:[#allocation8 + $0x240] sm:$0xff]
    %v1928 = vld [vmem:[#allocation8 + $0x248] sm:$0xff]
    %v1929 = vld [vmem:[#allocation8 + $0x250] sm:$0xff]
    %v1930 = vld [vmem:[#allocation8 + $0x258] sm:$0xff]
    %v1931 = vld [vmem:[#allocation8 + $0x260] sm:$0xff]
    %v1932 = vld [vmem:[#allocation8 + $0x268] sm:$0xff]
    %v1933 = vld [vmem:[#allocation8 + $0x270] sm:$0xff]
    %v1934 = vld [vmem:[#allocation8 + $0x278] sm:$0xff]
    %v1935 = vld [vmem:[#allocation8 + $0x280] sm:$0xff]
    %v1936 = vld [vmem:[#allocation8 + $0x288] sm:$0xff]
    %v1937 = vld [vmem:[#allocation8 + $0x290] sm:$0xff]
    %v1938 = vld [vmem:[#allocation8 + $0x298] sm:$0xff]
    %v1939 = vld [vmem:[#allocation8 + $0x2a0] sm:$0xff]
    %v1940 = vld [vmem:[#allocation8 + $0x2a8] sm:$0xff]
    %v1941 = vld [vmem:[#allocation8 + $0x2b0] sm:$0xff]
    %v1942 = vld [vmem:[#allocation8 + $0x2b8] sm:$0xff]
    %v1943 = vld [vmem:[#allocation8 + $0x2c0] sm:$0xff]
    %v1944 = vld [vmem:[#allocation8 + $0x2c8] sm:$0xff]
    %v1945 = vld [vmem:[#allocation8 + $0x2d0] sm:$0xff]
    %v1946 = vld [vmem:[#allocation8 + $0x2d8] sm:$0xff]
    %v1947 = vld [vmem:[#allocation8 + $0x2e0] sm:$0xff]
    %v1948 = vld [vmem:[#allocation8 + $0x2e8] sm:$0xff]
    %v1949 = vld [vmem:[#allocation8 + $0x2f0] sm:$0xff]
    %v1950 = vld [vmem:[#allocation8 + $0x2f8] sm:$0xff]
    %v1951 = vld [vmem:[#allocation8 + $0x300] sm:$0xff]
    %v1952 = vld [vmem:[#allocation8 + $0x308] sm:$0xff]
    %v1953 = vld [vmem:[#allocation8 + $0x310] sm:$0xff]
    %v1954 = vld [vmem:[#allocation8 + $0x318] sm:$0xff]
    %v1955 = vld [vmem:[#allocation8 + $0x320] sm:$0xff]
    %v1956 = vld [vmem:[#allocation8 + $0x328] sm:$0xff]
    %v1957 = vld [vmem:[#allocation8 + $0x330] sm:$0xff]
    %v1958 = vld [vmem:[#allocation8 + $0x338] sm:$0xff]
    %v1959 = vld [vmem:[#allocation8 + $0x340] sm:$0xff]
    %v1960 = vld [vmem:[#allocation8 + $0x348] sm:$0xff]
    %v1961 = vld [vmem:[#allocation8 + $0x350] sm:$0xff]
    %v1962 = vld [vmem:[#allocation8 + $0x358] sm:$0xff]
    %v1963 = vld [vmem:[#allocation8 + $0x360] sm:$0xff]
    %v1964 = vld [vmem:[#allocation8 + $0x368] sm:$0xff]
    %v1965 = vld [vmem:[#allocation8 + $0x370] sm:$0xff]
    %v1966 = vld [vmem:[#allocation8 + $0x378] sm:$0xff]
    %v1967 = vld [vmem:[#allocation8 + $0x380] sm:$0xff]
    %v1968 = vld [vmem:[#allocation8 + $0x388] sm:$0xff]
    %v1969 = vld [vmem:[#allocation8 + $0x390] sm:$0xff]
    %v1970 = vld [vmem:[#allocation8 + $0x398] sm:$0xff]
    %v1971 = vld [vmem:[#allocation8 + $0x3a0] sm:$0xff]
    %v1972 = vld [vmem:[#allocation8 + $0x3a8] sm:$0xff]
    %v1973 = vld [vmem:[#allocation8 + $0x3b0] sm:$0xff]
    %v1974 = vld [vmem:[#allocation8 + $0x3b8] sm:$0xff]
    %v1975 = vld [vmem:[#allocation8 + $0x3c0] sm:$0xff]
    %v1976 = vld [vmem:[#allocation8 + $0x3c8] sm:$0xff]
    %v1977 = vld [vmem:[#allocation8 + $0x3d0] sm:$0xff]
    %v1978 = vld [vmem:[#allocation8 + $0x3d8] sm:$0xff]
    %v1979 = vld [vmem:[#allocation8 + $0x3e0] sm:$0xff]
    %v1980 = vld [vmem:[#allocation8 + $0x3e8] sm:$0xff]
    %v1981 = vld [vmem:[#allocation8 + $0x3f0] sm:$0xff]
    %v1982 = vld [vmem:[#allocation8 + $0x3f8] sm:$0xff]
    %v1983 = vld [vmem:[#allocation8 + $0x400] sm:$0xff]
    %v1984 = vld [vmem:[#allocation8 + $0x408] sm:$0xff]
    %v1985 = vld [vmem:[#allocation8 + $0x410] sm:$0xff]
    %v1986 = vld [vmem:[#allocation8 + $0x418] sm:$0xff]
    %v1987 = vld [vmem:[#allocation8 + $0x420] sm:$0xff]
    %v1988 = vld [vmem:[#allocation8 + $0x428] sm:$0xff]
    %v1989 = vld [vmem:[#allocation8 + $0x430] sm:$0xff]
    %v1990 = vld [vmem:[#allocation8 + $0x438] sm:$0xff]
    %v1991 = vld [vmem:[#allocation8 + $0x440] sm:$0xff]
    %v1992 = vld [vmem:[#allocation8 + $0x448] sm:$0xff]
    %v1993 = vld [vmem:[#allocation8 + $0x450] sm:$0xff]
    %v1994 = vld [vmem:[#allocation8 + $0x458] sm:$0xff]
    %v1995 = vld [vmem:[#allocation8 + $0x460] sm:$0xff]
    %v1996 = vld [vmem:[#allocation8 + $0x468] sm:$0xff]
    %v1997 = vld [vmem:[#allocation8 + $0x470] sm:$0xff]
    %v1998 = vld [vmem:[#allocation8 + $0x478] sm:$0xff]
    %v1999 = vld [vmem:[#allocation8 + $0x480] sm:$0xff]
    %v2000 = vld [vmem:[#allocation8 + $0x488] sm:$0xff]
    %v2001 = vld [vmem:[#allocation8 + $0x490] sm:$0xff]
    %v2002 = vld [vmem:[#allocation8 + $0x498] sm:$0xff]
    %v2003 = vld [vmem:[#allocation8 + $0x4a0] sm:$0xff]
    %v2004 = vld [vmem:[#allocation8 + $0x4a8] sm:$0xff]
    %v2005 = vld [vmem:[#allocation8 + $0x4b0] sm:$0xff]
    %v2006 = vld [vmem:[#allocation8 + $0x4b8] sm:$0xff]
    %v2007 = vld [vmem:[#allocation8 + $0x4c0] sm:$0xff]
    %v2008 = vld [vmem:[#allocation8 + $0x4c8] sm:$0xff]
    %v2009 = vld [vmem:[#allocation8 + $0x4d0] sm:$0xff]
    %v2010 = vld [vmem:[#allocation8 + $0x4d8] sm:$0xff]
    %v2011 = vld [vmem:[#allocation8 + $0x4e0] sm:$0xff]
    %v2012 = vld [vmem:[#allocation8 + $0x4e8] sm:$0xff]
    %v2013 = vld [vmem:[#allocation8 + $0x4f0] sm:$0xff]
    %v2014 = vld [vmem:[#allocation8 + $0x4f8] sm:$0xff]
    %v2015 = vld [vmem:[#allocation8 + $0x500] sm:$0xff]
    %v2016 = vld [vmem:[#allocation8 + $0x508] sm:$0xff]
    %v2017 = vld [vmem:[#allocation8 + $0x510] sm:$0xff]
    %v2018 = vld [vmem:[#allocation8 + $0x518] sm:$0xff]
    %v2019 = vld [vmem:[#allocation8 + $0x520] sm:$0xff]
    %v2020 = vld [vmem:[#allocation8 + $0x528] sm:$0xff]
    %v2021 = vld [vmem:[#allocation8 + $0x530] sm:$0xff]
    %v2022 = vld [vmem:[#allocation8 + $0x538] sm:$0xff]
    %v2023 = vld [vmem:[#allocation8 + $0x540] sm:$0xff]
    %v2024 = vld [vmem:[#allocation8 + $0x548] sm:$0xff]
    %v2025 = vld [vmem:[#allocation8 + $0x550] sm:$0xff]
    %v2026 = vld [vmem:[#allocation8 + $0x558] sm:$0xff]
    %v2027 = vld [vmem:[#allocation8 + $0x560] sm:$0xff]
    %v2028 = vld [vmem:[#allocation8 + $0x568] sm:$0xff]
    %v2029 = vld [vmem:[#allocation8 + $0x570] sm:$0xff]
    %v2030 = vld [vmem:[#allocation8 + $0x578] sm:$0xff]
    %v2031 = vld [vmem:[#allocation8 + $0x580] sm:$0xff]
    %v2032 = vld [vmem:[#allocation8 + $0x588] sm:$0xff]
    %v2033 = vld [vmem:[#allocation8 + $0x590] sm:$0xff]
    %v2034 = vld [vmem:[#allocation8 + $0x598] sm:$0xff]
    %v2035 = vld [vmem:[#allocation8 + $0x5a0] sm:$0xff]
    %v2036 = vld [vmem:[#allocation8 + $0x5a8] sm:$0xff]
    %v2037 = vld [vmem:[#allocation8 + $0x5b0] sm:$0xff]
    %v2038 = vld [vmem:[#allocation8 + $0x5b8] sm:$0xff]
    %v2039 = vld [vmem:[#allocation8 + $0x5c0] sm:$0xff]
    %v2040 = vld [vmem:[#allocation8 + $0x5c8] sm:$0xff]
    %v2041 = vld [vmem:[#allocation8 + $0x5d0] sm:$0xff]
    %v2042 = vld [vmem:[#allocation8 + $0x5d8] sm:$0xff]
    %v2043 = vld [vmem:[#allocation8 + $0x5e0] sm:$0xff]
    %v2044 = vld [vmem:[#allocation8 + $0x5e8] sm:$0xff]
    %v2045 = vld [vmem:[#allocation8 + $0x5f0] sm:$0xff]
    %v2046 = vld [vmem:[#allocation8 + $0x5f8] sm:$0xff]
    %v2047 = vld [vmem:[#allocation8 + $0x600] sm:$0xff]
    %v2048 = vld [vmem:[#allocation8 + $0x608] sm:$0xff]
    %v2049 = vld [vmem:[#allocation8 + $0x610] sm:$0xff]
    %v2050 = vld [vmem:[#allocation8 + $0x618] sm:$0xff]
    %v2051 = vld [vmem:[#allocation8 + $0x620] sm:$0xff]
    %v2052 = vld [vmem:[#allocation8 + $0x628] sm:$0xff]
    %v2053 = vld [vmem:[#allocation8 + $0x630] sm:$0xff]
    %v2054 = vld [vmem:[#allocation8 + $0x638] sm:$0xff]
    %v2055 = vld [vmem:[#allocation8 + $0x640] sm:$0xff]
    %v2056 = vld [vmem:[#allocation8 + $0x648] sm:$0xff]
    %v2057 = vld [vmem:[#allocation8 + $0x650] sm:$0xff]
    %v2058 = vld [vmem:[#allocation8 + $0x658] sm:$0xff]
    %v2059 = vld [vmem:[#allocation8 + $0x660] sm:$0xff]
    %v2060 = vld [vmem:[#allocation8 + $0x668] sm:$0xff]
    %v2061 = vld [vmem:[#allocation8 + $0x670] sm:$0xff]
    %v2062 = vld [vmem:[#allocation8 + $0x678] sm:$0xff]
    %v2063 = vld [vmem:[#allocation8 + $0x680] sm:$0xff]
    %v2064 = vld [vmem:[#allocation8 + $0x688] sm:$0xff]
    %v2065 = vld [vmem:[#allocation8 + $0x690] sm:$0xff]
    %v2066 = vld [vmem:[#allocation8 + $0x698] sm:$0xff]
    %v2067 = vld [vmem:[#allocation8 + $0x6a0] sm:$0xff]
    %v2068 = vld [vmem:[#allocation8 + $0x6a8] sm:$0xff]
    %v2069 = vld [vmem:[#allocation8 + $0x6b0] sm:$0xff]
    %v2070 = vld [vmem:[#allocation8 + $0x6b8] sm:$0xff]
    %v2071 = vld [vmem:[#allocation8 + $0x6c0] sm:$0xff]
    %v2072 = vld [vmem:[#allocation8 + $0x6c8] sm:$0xff]
    %v2073 = vld [vmem:[#allocation8 + $0x6d0] sm:$0xff]
    %v2074 = vld [vmem:[#allocation8 + $0x6d8] sm:$0xff]
    %v2075 = vld [vmem:[#allocation8 + $0x6e0] sm:$0xff]
    %v2076 = vld [vmem:[#allocation8 + $0x6e8] sm:$0xff]
    %v2077 = vld [vmem:[#allocation8 + $0x6f0] sm:$0xff]
    %v2078 = vld [vmem:[#allocation8 + $0x6f8] sm:$0xff]
    %v2079 = vld [vmem:[#allocation8 + $0x700] sm:$0xff]
    %v2080 = vld [vmem:[#allocation8 + $0x708] sm:$0xff]
    %v2081 = vld [vmem:[#allocation8 + $0x710] sm:$0xff]
    %v2082 = vld [vmem:[#allocation8 + $0x718] sm:$0xff]
    %v2083 = vld [vmem:[#allocation8 + $0x720] sm:$0xff]
    %v2084 = vld [vmem:[#allocation8 + $0x728] sm:$0xff]
    %v2085 = vld [vmem:[#allocation8 + $0x730] sm:$0xff]
    %v2086 = vld [vmem:[#allocation8 + $0x738] sm:$0xff]
    %v2087 = vld [vmem:[#allocation8 + $0x740] sm:$0xff]
    %v2088 = vld [vmem:[#allocation8 + $0x748] sm:$0xff]
    %v2089 = vld [vmem:[#allocation8 + $0x750] sm:$0xff]
    %v2090 = vld [vmem:[#allocation8 + $0x758] sm:$0xff]
    %v2091 = vld [vmem:[#allocation8 + $0x760] sm:$0xff]
    %v2092 = vld [vmem:[#allocation8 + $0x768] sm:$0xff]
    %v2093 = vld [vmem:[#allocation8 + $0x770] sm:$0xff]
    %v2094 = vld [vmem:[#allocation8 + $0x778] sm:$0xff]
    %v2095 = vld [vmem:[#allocation8 + $0x780] sm:$0xff]
    %v2096 = vld [vmem:[#allocation8 + $0x788] sm:$0xff]
    %v2097 = vld [vmem:[#allocation8 + $0x790] sm:$0xff]
    %v2098 = vld [vmem:[#allocation8 + $0x798] sm:$0xff]
    %v2099 = vld [vmem:[#allocation8 + $0x7a0] sm:$0xff]
    %v2100 = vld [vmem:[#allocation8 + $0x7a8] sm:$0xff]
    %v2101 = vld [vmem:[#allocation8 + $0x7b0] sm:$0xff]
    %v2102 = vld [vmem:[#allocation8 + $0x7b8] sm:$0xff]
    %v2103 = vld [vmem:[#allocation8 + $0x7c0] sm:$0xff]
    %v2104 = vld [vmem:[#allocation8 + $0x7c8] sm:$0xff]
    %v2105 = vld [vmem:[#allocation8 + $0x7d0] sm:$0xff]
    %v2106 = vld [vmem:[#allocation8 + $0x7d8] sm:$0xff]
    %v2107 = vld [vmem:[#allocation8 + $0x7e0] sm:$0xff]
    %v2108 = vld [vmem:[#allocation8 + $0x7e8] sm:$0xff]
    %v2109 = vld [vmem:[#allocation8 + $0x7f0] sm:$0xff]
    %v2110 = vld [vmem:[#allocation8 + $0x7f8] sm:$0xff]
    %v2111 = vld [vmem:[#allocation8 + $0x800] sm:$0xff]
    %v2112 = vld [vmem:[#allocation8 + $0x808] sm:$0xff]
    %v2113 = vld [vmem:[#allocation8 + $0x810] sm:$0xff]
    %v2114 = vld [vmem:[#allocation8 + $0x818] sm:$0xff]
    %v2115 = vld [vmem:[#allocation8 + $0x820] sm:$0xff]
    %v2116 = vld [vmem:[#allocation8 + $0x828] sm:$0xff]
    %v2117 = vld [vmem:[#allocation8 + $0x830] sm:$0xff]
    %v2118 = vld [vmem:[#allocation8 + $0x838] sm:$0xff]
    %v2119 = vld [vmem:[#allocation8 + $0x840] sm:$0xff]
    %v2120 = vld [vmem:[#allocation8 + $0x848] sm:$0xff]
    %v2121 = vld [vmem:[#allocation8 + $0x850] sm:$0xff]
    %v2122 = vld [vmem:[#allocation8 + $0x858] sm:$0xff]
    %v2123 = vld [vmem:[#allocation8 + $0x860] sm:$0xff]
    %v2124 = vld [vmem:[#allocation8 + $0x868] sm:$0xff]
    %v2125 = vld [vmem:[#allocation8 + $0x870] sm:$0xff]
    %v2126 = vld [vmem:[#allocation8 + $0x878] sm:$0xff]
    %v2127 = vld [vmem:[#allocation8 + $0x880] sm:$0xff]
    %v2128 = vld [vmem:[#allocation8 + $0x888] sm:$0xff]
    %v2129 = vld [vmem:[#allocation8 + $0x890] sm:$0xff]
    %v2130 = vld [vmem:[#allocation8 + $0x898] sm:$0xff]
    %v2131 = vld [vmem:[#allocation8 + $0x8a0] sm:$0xff]
    %v2132 = vld [vmem:[#allocation8 + $0x8a8] sm:$0xff]
    %v2133 = vld [vmem:[#allocation8 + $0x8b0] sm:$0xff]
    %v2134 = vld [vmem:[#allocation8 + $0x8b8] sm:$0xff]
    %v2135 = vld [vmem:[#allocation8 + $0x8c0] sm:$0xff]
    %v2136 = vld [vmem:[#allocation8 + $0x8c8] sm:$0xff]
    %v2137 = vld [vmem:[#allocation8 + $0x8d0] sm:$0xff]
    %v2138 = vld [vmem:[#allocation8 + $0x8d8] sm:$0xff]
    %v2139 = vld [vmem:[#allocation8 + $0x8e0] sm:$0xff]
    %v2140 = vld [vmem:[#allocation8 + $0x8e8] sm:$0xff]
    %v2141 = vld [vmem:[#allocation8 + $0x8f0] sm:$0xff]
    %v2142 = vld [vmem:[#allocation8 + $0x8f8] sm:$0xff]
    %v2143 = vld [vmem:[#allocation8 + $0x900] sm:$0xff]
    %v2144 = vld [vmem:[#allocation8 + $0x908] sm:$0xff]
    %v2145 = vld [vmem:[#allocation8 + $0x910] sm:$0xff]
    %v2146 = vld [vmem:[#allocation8 + $0x918] sm:$0xff]
    %v2147 = vld [vmem:[#allocation8 + $0x920] sm:$0xff]
    %v2148 = vld [vmem:[#allocation8 + $0x928] sm:$0xff]
    %v2149 = vld [vmem:[#allocation8 + $0x930] sm:$0xff]
    %v2150 = vld [vmem:[#allocation8 + $0x938] sm:$0xff]
    %v2151 = vld [vmem:[#allocation8 + $0x940] sm:$0xff]
    %v2152 = vld [vmem:[#allocation8 + $0x948] sm:$0xff]
    %v2153 = vld [vmem:[#allocation8 + $0x950] sm:$0xff]
    %v2154 = vld [vmem:[#allocation8 + $0x958] sm:$0xff]
    %v2155 = vld [vmem:[#allocation8 + $0x960] sm:$0xff]
    %v2156 = vld [vmem:[#allocation8 + $0x968] sm:$0xff]
    %v2157 = vld [vmem:[#allocation8 + $0x970] sm:$0xff]
    %v2158 = vld [vmem:[#allocation8 + $0x978] sm:$0xff]
    %v2159 = vld [vmem:[#allocation8 + $0x980] sm:$0xff]
    %v2160 = vld [vmem:[#allocation8 + $0x988] sm:$0xff]
    %v2161 = vld [vmem:[#allocation8 + $0x990] sm:$0xff]
    %v2162 = vld [vmem:[#allocation8 + $0x998] sm:$0xff]
    %v2163 = vld [vmem:[#allocation8 + $0x9a0] sm:$0xff]
    %v2164 = vld [vmem:[#allocation8 + $0x9a8] sm:$0xff]
    %v2165 = vld [vmem:[#allocation8 + $0x9b0] sm:$0xff]
    %v2166 = vld [vmem:[#allocation8 + $0x9b8] sm:$0xff]
    %v2167 = vld [vmem:[#allocation8 + $0x9c0] sm:$0xff]
    %v2168 = vld [vmem:[#allocation8 + $0x9c8] sm:$0xff]
    %v2169 = vld [vmem:[#allocation8 + $0x9d0] sm:$0xff]
    %v2170 = vld [vmem:[#allocation8 + $0x9d8] sm:$0xff]
    %v2171 = vld [vmem:[#allocation8 + $0x9e0] sm:$0xff]
    %v2172 = vld [vmem:[#allocation8 + $0x9e8] sm:$0xff]
    %v2173 = vld [vmem:[#allocation8 + $0x9f0] sm:$0xff]
    %v2174 = vld [vmem:[#allocation8 + $0x9f8] sm:$0xff]
    %v2175 = vld [vmem:[#allocation8 + $0xa00] sm:$0xff]
    %v2176 = vld [vmem:[#allocation8 + $0xa08] sm:$0xff]
    %v2177 = vld [vmem:[#allocation8 + $0xa10] sm:$0xff]
    %v2178 = vld [vmem:[#allocation8 + $0xa18] sm:$0xff]
    %v2179 = vld [vmem:[#allocation8 + $0xa20] sm:$0xff]
    %v2180 = vld [vmem:[#allocation8 + $0xa28] sm:$0xff]
    %v2181 = vld [vmem:[#allocation8 + $0xa30] sm:$0xff]
    %v2182 = vld [vmem:[#allocation8 + $0xa38] sm:$0xff]
    %v2183 = vld [vmem:[#allocation8 + $0xa40] sm:$0xff]
    %v2184 = vld [vmem:[#allocation8 + $0xa48] sm:$0xff]
    %v2185 = vld [vmem:[#allocation8 + $0xa50] sm:$0xff]
    %v2186 = vld [vmem:[#allocation8 + $0xa58] sm:$0xff]
    %v2187 = vld [vmem:[#allocation8 + $0xa60] sm:$0xff]
    %v2188 = vld [vmem:[#allocation8 + $0xa68] sm:$0xff]
    %v2189 = vld [vmem:[#allocation8 + $0xa70] sm:$0xff]
    %v2190 = vld [vmem:[#allocation8 + $0xa78] sm:$0xff]
    %v2191 = vld [vmem:[#allocation8 + $0xa80] sm:$0xff]
    %v2192 = vld [vmem:[#allocation8 + $0xa88] sm:$0xff]
    %v2193 = vld [vmem:[#allocation8 + $0xa90] sm:$0xff]
    %v2194 = vld [vmem:[#allocation8 + $0xa98] sm:$0xff]
    %v2195 = vld [vmem:[#allocation8 + $0xaa0] sm:$0xff]
    %v2196 = vld [vmem:[#allocation8 + $0xaa8] sm:$0xff]
    %v2197 = vld [vmem:[#allocation8 + $0xab0] sm:$0xff]
    %v2198 = vld [vmem:[#allocation8 + $0xab8] sm:$0xff]
    %v2199 = vld [vmem:[#allocation8 + $0xac0] sm:$0xff]
    %v2200 = vld [vmem:[#allocation8 + $0xac8] sm:$0xff]
    %v2201 = vld [vmem:[#allocation8 + $0xad0] sm:$0xff]
    %v2202 = vld [vmem:[#allocation8 + $0xad8] sm:$0xff]
    %v2203 = vld [vmem:[#allocation8 + $0xae0] sm:$0xff]
    %v2204 = vld [vmem:[#allocation8 + $0xae8] sm:$0xff]
    %v2205 = vld [vmem:[#allocation8 + $0xaf0] sm:$0xff]
    %v2206 = vld [vmem:[#allocation8 + $0xaf8] sm:$0xff]
    %v2207 = vld [vmem:[#allocation8 + $0xb00] sm:$0xff]
    %v2208 = vld [vmem:[#allocation8 + $0xb08] sm:$0xff]
    %v2209 = vld [vmem:[#allocation8 + $0xb10] sm:$0xff]
    %v2210 = vld [vmem:[#allocation8 + $0xb18] sm:$0xff]
    %v2211 = vld [vmem:[#allocation8 + $0xb20] sm:$0xff]
    %v2212 = vld [vmem:[#allocation8 + $0xb28] sm:$0xff]
    %v2213 = vld [vmem:[#allocation8 + $0xb30] sm:$0xff]
    %v2214 = vld [vmem:[#allocation8 + $0xb38] sm:$0xff]
    %v2215 = vld [vmem:[#allocation8 + $0xb40] sm:$0xff]
    %v2216 = vld [vmem:[#allocation8 + $0xb48] sm:$0xff]
    %v2217 = vld [vmem:[#allocation8 + $0xb50] sm:$0xff]
    %v2218 = vld [vmem:[#allocation8 + $0xb58] sm:$0xff]
    %v2219 = vld [vmem:[#allocation8 + $0xb60] sm:$0xff]
    %v2220 = vld [vmem:[#allocation8 + $0xb68] sm:$0xff]
    %v2221 = vld [vmem:[#allocation8 + $0xb70] sm:$0xff]
    %v2222 = vld [vmem:[#allocation8 + $0xb78] sm:$0xff]
    %v2223 = vld [vmem:[#allocation8 + $0xb80] sm:$0xff]
    %v2224 = vld [vmem:[#allocation8 + $0xb88] sm:$0xff]
    %v2225 = vld [vmem:[#allocation8 + $0xb90] sm:$0xff]
    %v2226 = vld [vmem:[#allocation8 + $0xb98] sm:$0xff]
    %v2227 = vld [vmem:[#allocation8 + $0xba0] sm:$0xff]
    %v2228 = vld [vmem:[#allocation8 + $0xba8] sm:$0xff]
    %v2229 = vld [vmem:[#allocation8 + $0xbb0] sm:$0xff]
    %v2230 = vld [vmem:[#allocation8 + $0xbb8] sm:$0xff]
    %v2231 = vld [vmem:[#allocation8 + $0xbc0] sm:$0xff]
    %v2232 = vld [vmem:[#allocation8 + $0xbc8] sm:$0xff]
    %v2233 = vld [vmem:[#allocation8 + $0xbd0] sm:$0xff]
    %v2234 = vld [vmem:[#allocation8 + $0xbd8] sm:$0xff]
    %v2235 = vld [vmem:[#allocation8 + $0xbe0] sm:$0xff]
    %v2236 = vld [vmem:[#allocation8 + $0xbe8] sm:$0xff]
    %v2237 = vld [vmem:[#allocation8 + $0xbf0] sm:$0xff]
    %v2238 = vld [vmem:[#allocation8 + $0xbf8] sm:$0xff]
    %v2239 = vld [vmem:[#allocation8 + $0xc00] sm:$0xff]
    %v2240 = vld [vmem:[#allocation8 + $0xc08] sm:$0xff]
    %v2241 = vld [vmem:[#allocation8 + $0xc10] sm:$0xff]
    %v2242 = vld [vmem:[#allocation8 + $0xc18] sm:$0xff]
    %v2243 = vld [vmem:[#allocation8 + $0xc20] sm:$0xff]
    %v2244 = vld [vmem:[#allocation8 + $0xc28] sm:$0xff]
    %v2245 = vld [vmem:[#allocation8 + $0xc30] sm:$0xff]
    %v2246 = vld [vmem:[#allocation8 + $0xc38] sm:$0xff]
    %v2247 = vld [vmem:[#allocation8 + $0xc40] sm:$0xff]
    %v2248 = vld [vmem:[#allocation8 + $0xc48] sm:$0xff]
    %v2249 = vld [vmem:[#allocation8 + $0xc50] sm:$0xff]
    %v2250 = vld [vmem:[#allocation8 + $0xc58] sm:$0xff]
    %v2251 = vld [vmem:[#allocation8 + $0xc60] sm:$0xff]
    %v2252 = vld [vmem:[#allocation8 + $0xc68] sm:$0xff]
    %v2253 = vld [vmem:[#allocation8 + $0xc70] sm:$0xff]
    %v2254 = vld [vmem:[#allocation8 + $0xc78] sm:$0xff]
    %v2255 = vld [vmem:[#allocation8 + $0xc80] sm:$0xff]
    %v2256 = vld [vmem:[#allocation8 + $0xc88] sm:$0xff]
    %v2257 = vld [vmem:[#allocation8 + $0xc90] sm:$0xff]
    %v2258 = vld [vmem:[#allocation8 + $0xc98] sm:$0xff]
    %v2259 = vld [vmem:[#allocation8 + $0xca0] sm:$0xff]
    %v2260 = vld [vmem:[#allocation8 + $0xca8] sm:$0xff]
    %v2261 = vld [vmem:[#allocation8 + $0xcb0] sm:$0xff]
    %v2262 = vld [vmem:[#allocation8 + $0xcb8] sm:$0xff]
    %v2263 = vld [vmem:[#allocation8 + $0xcc0] sm:$0xff]
    %v2264 = vld [vmem:[#allocation8 + $0xcc8] sm:$0xff]
    %v2265 = vld [vmem:[#allocation8 + $0xcd0] sm:$0xff]
    %v2266 = vld [vmem:[#allocation8 + $0xcd8] sm:$0xff]
    %v2267 = vld [vmem:[#allocation8 + $0xce0] sm:$0xff]
    %v2268 = vld [vmem:[#allocation8 + $0xce8] sm:$0xff]
    %v2269 = vld [vmem:[#allocation8 + $0xcf0] sm:$0xff]
    %v2270 = vld [vmem:[#allocation8 + $0xcf8] sm:$0xff]
    %v2271 = vld [vmem:[#allocation8 + $0xd00] sm:$0xff]
    %v2272 = vld [vmem:[#allocation8 + $0xd08] sm:$0xff]
    %v2273 = vld [vmem:[#allocation8 + $0xd10] sm:$0xff]
    %v2274 = vld [vmem:[#allocation8 + $0xd18] sm:$0xff]
    %v2275 = vld [vmem:[#allocation8 + $0xd20] sm:$0xff]
    %v2276 = vld [vmem:[#allocation8 + $0xd28] sm:$0xff]
    %v2277 = vld [vmem:[#allocation8 + $0xd30] sm:$0xff]
    %v2278 = vld [vmem:[#allocation8 + $0xd38] sm:$0xff]
    %v2279 = vld [vmem:[#allocation8 + $0xd40] sm:$0xff]
    %v2280 = vld [vmem:[#allocation8 + $0xd48] sm:$0xff]
    %v2281 = vld [vmem:[#allocation8 + $0xd50] sm:$0xff]
    %v2282 = vld [vmem:[#allocation8 + $0xd58] sm:$0xff]
    %v2283 = vld [vmem:[#allocation8 + $0xd60] sm:$0xff]
    %v2284 = vld [vmem:[#allocation8 + $0xd68] sm:$0xff]
    %v2285 = vld [vmem:[#allocation8 + $0xd70] sm:$0xff]
    %v2286 = vld [vmem:[#allocation8 + $0xd78] sm:$0xff]
    %v2287 = vld [vmem:[#allocation8 + $0xd80] sm:$0xff]
    %v2288 = vld [vmem:[#allocation8 + $0xd88] sm:$0xff]
    %v2289 = vld [vmem:[#allocation8 + $0xd90] sm:$0xff]
    %v2290 = vld [vmem:[#allocation8 + $0xd98] sm:$0xff]
    %v2291 = vld [vmem:[#allocation8 + $0xda0] sm:$0xff]
    %v2292 = vld [vmem:[#allocation8 + $0xda8] sm:$0xff]
    %v2293 = vld [vmem:[#allocation8 + $0xdb0] sm:$0xff]
    %v2294 = vld [vmem:[#allocation8 + $0xdb8] sm:$0xff]
    %v2295 = vld [vmem:[#allocation8 + $0xdc0] sm:$0xff]
    %v2296 = vld [vmem:[#allocation8 + $0xdc8] sm:$0xff]
    %v2297 = vld [vmem:[#allocation8 + $0xdd0] sm:$0xff]
    %v2298 = vld [vmem:[#allocation8 + $0xdd8] sm:$0xff]
    %v2299 = vld [vmem:[#allocation8 + $0xde0] sm:$0xff]
    %v2300 = vld [vmem:[#allocation8 + $0xde8] sm:$0xff]
    %v2301 = vld [vmem:[#allocation8 + $0xdf0] sm:$0xff]
    %v2302 = vld [vmem:[#allocation8 + $0xdf8] sm:$0xff]
    %v2303 = vld [vmem:[#allocation8 + $0xe00] sm:$0xff]
    %v2304 = vld [vmem:[#allocation8 + $0xe08] sm:$0xff]
    %v2305 = vld [vmem:[#allocation8 + $0xe10] sm:$0xff]
    %v2306 = vld [vmem:[#allocation8 + $0xe18] sm:$0xff]
    %v2307 = vld [vmem:[#allocation8 + $0xe20] sm:$0xff]
    %v2308 = vld [vmem:[#allocation8 + $0xe28] sm:$0xff]
    %v2309 = vld [vmem:[#allocation8 + $0xe30] sm:$0xff]
    %v2310 = vld [vmem:[#allocation8 + $0xe38] sm:$0xff]
    %v2311 = vld [vmem:[#allocation8 + $0xe40] sm:$0xff]
    %v2312 = vld [vmem:[#allocation8 + $0xe48] sm:$0xff]
    %v2313 = vld [vmem:[#allocation8 + $0xe50] sm:$0xff]
    %v2314 = vld [vmem:[#allocation8 + $0xe58] sm:$0xff]
    %v2315 = vld [vmem:[#allocation8 + $0xe60] sm:$0xff]
    %v2316 = vld [vmem:[#allocation8 + $0xe68] sm:$0xff]
    %v2317 = vld [vmem:[#allocation8 + $0xe70] sm:$0xff]
    %v2318 = vld [vmem:[#allocation8 + $0xe78] sm:$0xff]
    %v2319 = vld [vmem:[#allocation8 + $0xe80] sm:$0xff]
    %v2320 = vld [vmem:[#allocation8 + $0xe88] sm:$0xff]
    %v2321 = vld [vmem:[#allocation8 + $0xe90] sm:$0xff]
    %v2322 = vld [vmem:[#allocation8 + $0xe98] sm:$0xff]
    %v2323 = vld [vmem:[#allocation8 + $0xea0] sm:$0xff]
    %v2324 = vld [vmem:[#allocation8 + $0xea8] sm:$0xff]
    %v2325 = vld [vmem:[#allocation8 + $0xeb0] sm:$0xff]
    %v2326 = vld [vmem:[#allocation8 + $0xeb8] sm:$0xff]
    %v2327 = vld [vmem:[#allocation8 + $0xec0] sm:$0xff]
    %v2328 = vld [vmem:[#allocation8 + $0xec8] sm:$0xff]
    %v2329 = vld [vmem:[#allocation8 + $0xed0] sm:$0xff]
    %v2330 = vld [vmem:[#allocation8 + $0xed8] sm:$0xff]
    %v2331 = vld [vmem:[#allocation8 + $0xee0] sm:$0xff]
    %v2332 = vld [vmem:[#allocation8 + $0xee8] sm:$0xff]
    %v2333 = vld [vmem:[#allocation8 + $0xef0] sm:$0xff]
    %v2334 = vld [vmem:[#allocation8 + $0xef8] sm:$0xff]
    %v2335 = vld [vmem:[#allocation8 + $0xf00] sm:$0xff]
    %v2336 = vld [vmem:[#allocation8 + $0xf08] sm:$0xff]
    %v2337 = vld [vmem:[#allocation8 + $0xf10] sm:$0xff]
    %v2338 = vld [vmem:[#allocation8 + $0xf18] sm:$0xff]
    %v2339 = vld [vmem:[#allocation8 + $0xf20] sm:$0xff]
    %v2340 = vld [vmem:[#allocation8 + $0xf28] sm:$0xff]
    %v2341 = vld [vmem:[#allocation8 + $0xf30] sm:$0xff]
    %v2342 = vld [vmem:[#allocation8 + $0xf38] sm:$0xff]
    %v2343 = vld [vmem:[#allocation8 + $0xf40] sm:$0xff]
    %v2344 = vld [vmem:[#allocation8 + $0xf48] sm:$0xff]
    %v2345 = vld [vmem:[#allocation8 + $0xf50] sm:$0xff]
    %v2346 = vld [vmem:[#allocation8 + $0xf58] sm:$0xff]
    %v2347 = vld [vmem:[#allocation8 + $0xf60] sm:$0xff]
    %v2348 = vld [vmem:[#allocation8 + $0xf68] sm:$0xff]
    %v2349 = vld [vmem:[#allocation8 + $0xf70] sm:$0xff]
    %v2350 = vld [vmem:[#allocation8 + $0xf78] sm:$0xff]
    %v2351 = vld [vmem:[#allocation8 + $0xf80] sm:$0xff]
    %v2352 = vld [vmem:[#allocation8 + $0xf88] sm:$0xff]
    %v2353 = vld [vmem:[#allocation8 + $0xf90] sm:$0xff]
    %v2354 = vld [vmem:[#allocation8 + $0xf98] sm:$0xff]
    %v2355 = vld [vmem:[#allocation8 + $0xfa0] sm:$0xff]
    %v2356 = vld [vmem:[#allocation8 + $0xfa8] sm:$0xff]
    %v2357 = vld [vmem:[#allocation8 + $0xfb0] sm:$0xff]
    %v2358 = vld [vmem:[#allocation8 + $0xfb8] sm:$0xff]
    %v2359 = vld [vmem:[#allocation8 + $0xfc0] sm:$0xff]
    %v2360 = vld [vmem:[#allocation8 + $0xfc8] sm:$0xff]
    %v2361 = vld [vmem:[#allocation8 + $0xfd0] sm:$0xff]
    %v2362 = vld [vmem:[#allocation8 + $0xfd8] sm:$0xff]
    %v2363 = vld [vmem:[#allocation8 + $0xfe0] sm:$0xff]
    %v2364 = vld [vmem:[#allocation8 + $0xfe8] sm:$0xff]
    %v2365 = vld [vmem:[#allocation8 + $0xff0] sm:$0xff]
    %v2366 = vld [vmem:[#allocation8 + $0xff8] sm:$0xff]
    %v2367 = vld [vmem:[#allocation8 + $0x1000] sm:$0xff]
    %v2368 = vld [vmem:[#allocation8 + $0x1008] sm:$0xff]
    %v2369 = vld [vmem:[#allocation8 + $0x1010] sm:$0xff]
    %v2370 = vld [vmem:[#allocation8 + $0x1018] sm:$0xff]
    %v2371 = vld [vmem:[#allocation8 + $0x1020] sm:$0xff]
    %v2372 = vld [vmem:[#allocation8 + $0x1028] sm:$0xff]
    %v2373 = vld [vmem:[#allocation8 + $0x1030] sm:$0xff]
    %v2374 = vld [vmem:[#allocation8 + $0x1038] sm:$0xff]
    %v2375 = vld [vmem:[#allocation8 + $0x1040] sm:$0xff]
    %v2376 = vld [vmem:[#allocation8 + $0x1048] sm:$0xff]
    %v2377 = vld [vmem:[#allocation8 + $0x1050] sm:$0xff]
    %v2378 = vld [vmem:[#allocation8 + $0x1058] sm:$0xff]
    %v2379 = vld [vmem:[#allocation8 + $0x1060] sm:$0xff]
    %v2380 = vld [vmem:[#allocation8 + $0x1068] sm:$0xff]
    %v2381 = vld [vmem:[#allocation8 + $0x1070] sm:$0xff]
    %v2382 = vld [vmem:[#allocation8 + $0x1078] sm:$0xff]
    %v2383 = vld [vmem:[#allocation8 + $0x1080] sm:$0xff]
    %v2384 = vld [vmem:[#allocation8 + $0x1088] sm:$0xff]
    %v2385 = vld [vmem:[#allocation8 + $0x1090] sm:$0xff]
    %v2386 = vld [vmem:[#allocation8 + $0x1098] sm:$0xff]
    %v2387 = vld [vmem:[#allocation8 + $0x10a0] sm:$0xff]
    %v2388 = vld [vmem:[#allocation8 + $0x10a8] sm:$0xff]
    %v2389 = vld [vmem:[#allocation8 + $0x10b0] sm:$0xff]
    %v2390 = vld [vmem:[#allocation8 + $0x10b8] sm:$0xff]
    %v2391 = vld [vmem:[#allocation8 + $0x10c0] sm:$0xff]
    %v2392 = vld [vmem:[#allocation8 + $0x10c8] sm:$0xff]
    %v2393 = vld [vmem:[#allocation8 + $0x10d0] sm:$0xff]
    %v2394 = vld [vmem:[#allocation8 + $0x10d8] sm:$0xff]
    %v2395 = vld [vmem:[#allocation8 + $0x10e0] sm:$0xff]
    %v2396 = vld [vmem:[#allocation8 + $0x10e8] sm:$0xff]
    %v2397 = vld [vmem:[#allocation8 + $0x10f0] sm:$0xff]
    %v2398 = vld [vmem:[#allocation8 + $0x10f8] sm:$0xff]
    %v2399 = vld [vmem:[#allocation8 + $0x1100] sm:$0xff]
    %v2400 = vld [vmem:[#allocation8 + $0x1108] sm:$0xff]
    %v2401 = vld [vmem:[#allocation8 + $0x1110] sm:$0xff]
    %v2402 = vld [vmem:[#allocation8 + $0x1118] sm:$0xff]
    %v2403 = vld [vmem:[#allocation8 + $0x1120] sm:$0xff]
    %v2404 = vld [vmem:[#allocation8 + $0x1128] sm:$0xff]
    %v2405 = vld [vmem:[#allocation8 + $0x1130] sm:$0xff]
    %v2406 = vld [vmem:[#allocation8 + $0x1138] sm:$0xff]
    %v2407 = vld [vmem:[#allocation8 + $0x1140] sm:$0xff]
    %v2408 = vld [vmem:[#allocation8 + $0x1148] sm:$0xff]
    %v2409 = vld [vmem:[#allocation8 + $0x1150] sm:$0xff]
    %v2410 = vld [vmem:[#allocation8 + $0x1158] sm:$0xff]
    %v2411 = vld [vmem:[#allocation8 + $0x1160] sm:$0xff]
    %v2412 = vld [vmem:[#allocation8 + $0x1168] sm:$0xff]
    %v2413 = vld [vmem:[#allocation8 + $0x1170] sm:$0xff]
    %v2414 = vld [vmem:[#allocation8 + $0x1178] sm:$0xff]
    %v2415 = vld [vmem:[#allocation8 + $0x1180] sm:$0xff]
    %v2416 = vld [vmem:[#allocation8 + $0x1188] sm:$0xff]
    %v2417 = vld [vmem:[#allocation8 + $0x1190] sm:$0xff]
    %v2418 = vld [vmem:[#allocation8 + $0x1198] sm:$0xff]
    %v2419 = vld [vmem:[#allocation8 + $0x11a0] sm:$0xff]
    %v2420 = vld [vmem:[#allocation8 + $0x11a8] sm:$0xff]
    %v2421 = vld [vmem:[#allocation8 + $0x11b0] sm:$0xff]
    %v2422 = vld [vmem:[#allocation8 + $0x11b8] sm:$0xff]
    %v2423 = vld [vmem:[#allocation8 + $0x11c0] sm:$0xff]
    %v2424 = vld [vmem:[#allocation8 + $0x11c8] sm:$0xff]
    %v2425 = vld [vmem:[#allocation8 + $0x11d0] sm:$0xff]
    %v2426 = vld [vmem:[#allocation8 + $0x11d8] sm:$0xff]
    %v2427 = vld [vmem:[#allocation8 + $0x11e0] sm:$0xff]
    %v2428 = vld [vmem:[#allocation8 + $0x11e8] sm:$0xff]
    %v2429 = vld [vmem:[#allocation8 + $0x11f0] sm:$0xff]
    %v2430 = vld [vmem:[#allocation8 + $0x11f8] sm:$0xff]
    %v2431 = vld [vmem:[#allocation8 + $0x1200] sm:$0xff]
    %v2432 = vld [vmem:[#allocation8 + $0x1208] sm:$0xff]
    %v2433 = vld [vmem:[#allocation8 + $0x1210] sm:$0xff]
    %v2434 = vld [vmem:[#allocation8 + $0x1218] sm:$0xff]
    %v2435 = vld [vmem:[#allocation8 + $0x1220] sm:$0xff]
    %v2436 = vld [vmem:[#allocation8 + $0x1228] sm:$0xff]
    %v2437 = vld [vmem:[#allocation8 + $0x1230] sm:$0xff]
    %v2438 = vld [vmem:[#allocation8 + $0x1238] sm:$0xff]
    %v2439 = vld [vmem:[#allocation8 + $0x1240] sm:$0xff]
    %v2440 = vld [vmem:[#allocation8 + $0x1248] sm:$0xff]
    %v2441 = vld [vmem:[#allocation8 + $0x1250] sm:$0xff]
    %v2442 = vld [vmem:[#allocation8 + $0x1258] sm:$0xff]
    %v2443 = vld [vmem:[#allocation8 + $0x1260] sm:$0xff]
    %v2444 = vld [vmem:[#allocation8 + $0x1268] sm:$0xff]
    %v2445 = vld [vmem:[#allocation8 + $0x1270] sm:$0xff]
    %v2446 = vld [vmem:[#allocation8 + $0x1278] sm:$0xff]
    %v2447 = vld [vmem:[#allocation8 + $0x1280] sm:$0xff]
    %v2448 = vld [vmem:[#allocation8 + $0x1288] sm:$0xff]
    %v2449 = vld [vmem:[#allocation8 + $0x1290] sm:$0xff]
    %v2450 = vld [vmem:[#allocation8 + $0x1298] sm:$0xff]
    %v2451 = vld [vmem:[#allocation8 + $0x12a0] sm:$0xff]
    %v2452 = vld [vmem:[#allocation8 + $0x12a8] sm:$0xff]
    %v2453 = vld [vmem:[#allocation8 + $0x12b0] sm:$0xff]
    %v2454 = vld [vmem:[#allocation8 + $0x12b8] sm:$0xff]
    %v2455 = vld [vmem:[#allocation8 + $0x12c0] sm:$0xff]
    %v2456 = vld [vmem:[#allocation8 + $0x12c8] sm:$0xff]
    %v2457 = vld [vmem:[#allocation8 + $0x12d0] sm:$0xff]
    %v2458 = vld [vmem:[#allocation8 + $0x12d8] sm:$0xff]
    %v2459 = vld [vmem:[#allocation8 + $0x12e0] sm:$0xff]
    %v2460 = vld [vmem:[#allocation8 + $0x12e8] sm:$0xff]
    %v2461 = vld [vmem:[#allocation8 + $0x12f0] sm:$0xff]
    %v2462 = vld [vmem:[#allocation8 + $0x12f8] sm:$0xff]
    %v2463 = vld [vmem:[#allocation8 + $0x1300] sm:$0xff]
    %v2464 = vld [vmem:[#allocation8 + $0x1308] sm:$0xff]
    %v2465 = vld [vmem:[#allocation8 + $0x1310] sm:$0xff]
    %v2466 = vld [vmem:[#allocation8 + $0x1318] sm:$0xff]
    %v2467 = vld [vmem:[#allocation8 + $0x1320] sm:$0xff]
    %v2468 = vld [vmem:[#allocation8 + $0x1328] sm:$0xff]
    %v2469 = vld [vmem:[#allocation8 + $0x1330] sm:$0xff]
    %v2470 = vld [vmem:[#allocation8 + $0x1338] sm:$0xff]
    %v2471 = vld [vmem:[#allocation8 + $0x1340] sm:$0xff]
    %v2472 = vld [vmem:[#allocation8 + $0x1348] sm:$0xff]
    %v2473 = vld [vmem:[#allocation8 + $0x1350] sm:$0xff]
    %v2474 = vld [vmem:[#allocation8 + $0x1358] sm:$0xff]
    %v2475 = vld [vmem:[#allocation8 + $0x1360] sm:$0xff]
    %v2476 = vld [vmem:[#allocation8 + $0x1368] sm:$0xff]
    %v2477 = vld [vmem:[#allocation8 + $0x1370] sm:$0xff]
    %v2478 = vld [vmem:[#allocation8 + $0x1378] sm:$0xff]
    %v2479 = vld [vmem:[#allocation8 + $0x1380] sm:$0xff]
    %v2480 = vld [vmem:[#allocation8 + $0x1388] sm:$0xff]
    %v2481 = vld [vmem:[#allocation8 + $0x1390] sm:$0xff]
    %v2482 = vld [vmem:[#allocation8 + $0x1398] sm:$0xff]
    %v2483 = vld [vmem:[#allocation8 + $0x13a0] sm:$0xff]
    %v2484 = vld [vmem:[#allocation8 + $0x13a8] sm:$0xff]
    %v2485 = vld [vmem:[#allocation8 + $0x13b0] sm:$0xff]
    %v2486 = vld [vmem:[#allocation8 + $0x13b8] sm:$0xff]
    %v2487 = vld [vmem:[#allocation8 + $0x13c0] sm:$0xff]
    %v2488 = vld [vmem:[#allocation8 + $0x13c8] sm:$0xff]
    %v2489 = vld [vmem:[#allocation8 + $0x13d0] sm:$0xff]
    %v2490 = vld [vmem:[#allocation8 + $0x13d8] sm:$0xff]
    %v2491 = vld [vmem:[#allocation8 + $0x13e0] sm:$0xff]
    %v2492 = vld [vmem:[#allocation8 + $0x13e8] sm:$0xff]
    %v2493 = vld [vmem:[#allocation8 + $0x13f0] sm:$0xff]
    %v2494 = vld [vmem:[#allocation8 + $0x13f8] sm:$0xff]
    %v2495 = vld [vmem:[#allocation8 + $0x1400] sm:$0xff]
    %v2496 = vld [vmem:[#allocation8 + $0x1408] sm:$0xff]
    %v2497 = vld [vmem:[#allocation8 + $0x1410] sm:$0xff]
    %v2498 = vld [vmem:[#allocation8 + $0x1418] sm:$0xff]
    %v2499 = vld [vmem:[#allocation8 + $0x1420] sm:$0xff]
    %v2500 = vld [vmem:[#allocation8 + $0x1428] sm:$0xff]
    %v2501 = vld [vmem:[#allocation8 + $0x1430] sm:$0xff]
    %v2502 = vld [vmem:[#allocation8 + $0x1438] sm:$0xff]
    %v2503 = vld [vmem:[#allocation8 + $0x1440] sm:$0xff]
    %v2504 = vld [vmem:[#allocation8 + $0x1448] sm:$0xff]
    %v2505 = vld [vmem:[#allocation8 + $0x1450] sm:$0xff]
    %v2506 = vld [vmem:[#allocation8 + $0x1458] sm:$0xff]
    %v2507 = vld [vmem:[#allocation8 + $0x1460] sm:$0xff]
    %v2508 = vld [vmem:[#allocation8 + $0x1468] sm:$0xff]
    %v2509 = vld [vmem:[#allocation8 + $0x1470] sm:$0xff]
    %v2510 = vld [vmem:[#allocation8 + $0x1478] sm:$0xff]
    %v2511 = vld [vmem:[#allocation8 + $0x1480] sm:$0xff]
    %v2512 = vld [vmem:[#allocation8 + $0x1488] sm:$0xff]
    %v2513 = vld [vmem:[#allocation8 + $0x1490] sm:$0xff]
    %v2514 = vld [vmem:[#allocation8 + $0x1498] sm:$0xff]
    %v2515 = vld [vmem:[#allocation8 + $0x14a0] sm:$0xff]
    %v2516 = vld [vmem:[#allocation8 + $0x14a8] sm:$0xff]
    %v2517 = vld [vmem:[#allocation8 + $0x14b0] sm:$0xff]
    %v2518 = vld [vmem:[#allocation8 + $0x14b8] sm:$0xff]
    %v2519 = vld [vmem:[#allocation8 + $0x14c0] sm:$0xff]
    %v2520 = vld [vmem:[#allocation8 + $0x14c8] sm:$0xff]
    %v2521 = vld [vmem:[#allocation8 + $0x14d0] sm:$0xff]
    %v2522 = vld [vmem:[#allocation8 + $0x14d8] sm:$0xff]
    %v2523 = vld [vmem:[#allocation8 + $0x14e0] sm:$0xff]
    %v2524 = vld [vmem:[#allocation8 + $0x14e8] sm:$0xff]
    %v2525 = vld [vmem:[#allocation8 + $0x14f0] sm:$0xff]
    %v2526 = vld [vmem:[#allocation8 + $0x14f8] sm:$0xff]
    %v2527 = vld [vmem:[#allocation8 + $0x1500] sm:$0xff]
    %v2528 = vld [vmem:[#allocation8 + $0x1508] sm:$0xff]
    %v2529 = vld [vmem:[#allocation8 + $0x1510] sm:$0xff]
    %v2530 = vld [vmem:[#allocation8 + $0x1518] sm:$0xff]
    %v2531 = vld [vmem:[#allocation8 + $0x1520] sm:$0xff]
    %v2532 = vld [vmem:[#allocation8 + $0x1528] sm:$0xff]
    %v2533 = vld [vmem:[#allocation8 + $0x1530] sm:$0xff]
    %v2534 = vld [vmem:[#allocation8 + $0x1538] sm:$0xff]
    %v2535 = vld [vmem:[#allocation8 + $0x1540] sm:$0xff]
    %v2536 = vld [vmem:[#allocation8 + $0x1548] sm:$0xff]
    %v2537 = vld [vmem:[#allocation8 + $0x1550] sm:$0xff]
    %v2538 = vld [vmem:[#allocation8 + $0x1558] sm:$0xff]
    %v2539 = vld [vmem:[#allocation8 + $0x1560] sm:$0xff]
    %v2540 = vld [vmem:[#allocation8 + $0x1568] sm:$0xff]
    %v2541 = vld [vmem:[#allocation8 + $0x1570] sm:$0xff]
    %v2542 = vld [vmem:[#allocation8 + $0x1578] sm:$0xff]
    %v2543 = vld [vmem:[#allocation8 + $0x1580] sm:$0xff]
    %v2544 = vld [vmem:[#allocation8 + $0x1588] sm:$0xff]
    %v2545 = vld [vmem:[#allocation8 + $0x1590] sm:$0xff]
    %v2546 = vld [vmem:[#allocation8 + $0x1598] sm:$0xff]
    %v2547 = vld [vmem:[#allocation8 + $0x15a0] sm:$0xff]
    %v2548 = vld [vmem:[#allocation8 + $0x15a8] sm:$0xff]
    %v2549 = vld [vmem:[#allocation8 + $0x15b0] sm:$0xff]
    %v2550 = vld [vmem:[#allocation8 + $0x15b8] sm:$0xff]
    %v2551 = vld [vmem:[#allocation8 + $0x15c0] sm:$0xff]
    %v2552 = vld [vmem:[#allocation8 + $0x15c8] sm:$0xff]
    %v2553 = vld [vmem:[#allocation8 + $0x15d0] sm:$0xff]
    %v2554 = vld [vmem:[#allocation8 + $0x15d8] sm:$0xff]
    %v2555 = vld [vmem:[#allocation8 + $0x15e0] sm:$0xff]
    %v2556 = vld [vmem:[#allocation8 + $0x15e8] sm:$0xff]
    %v2557 = vld [vmem:[#allocation8 + $0x15f0] sm:$0xff]
    %v2558 = vld [vmem:[#allocation8 + $0x15f8] sm:$0xff]
    %v2559 = vld [vmem:[#allocation8 + $0x1600] sm:$0xff]
    %v2560 = vld [vmem:[#allocation8 + $0x1608] sm:$0xff]
    %v2561 = vld [vmem:[#allocation8 + $0x1610] sm:$0xff]
    %v2562 = vld [vmem:[#allocation8 + $0x1618] sm:$0xff]
    %v2563 = vld [vmem:[#allocation8 + $0x1620] sm:$0xff]
    %v2564 = vld [vmem:[#allocation8 + $0x1628] sm:$0xff]
    %v2565 = vld [vmem:[#allocation8 + $0x1630] sm:$0xff]
    %v2566 = vld [vmem:[#allocation8 + $0x1638] sm:$0xff]
    %v2567 = vld [vmem:[#allocation8 + $0x1640] sm:$0xff]
    %v2568 = vld [vmem:[#allocation8 + $0x1648] sm:$0xff]
    %v2569 = vld [vmem:[#allocation8 + $0x1650] sm:$0xff]
    %v2570 = vld [vmem:[#allocation8 + $0x1658] sm:$0xff]
    %v2571 = vld [vmem:[#allocation8 + $0x1660] sm:$0xff]
    %v2572 = vld [vmem:[#allocation8 + $0x1668] sm:$0xff]
    %v2573 = vld [vmem:[#allocation8 + $0x1670] sm:$0xff]
    %v2574 = vld [vmem:[#allocation8 + $0x1678] sm:$0xff]
    %v2575 = vld [vmem:[#allocation8 + $0x1680] sm:$0xff]
    %v2576 = vld [vmem:[#allocation8 + $0x1688] sm:$0xff]
    %v2577 = vld [vmem:[#allocation8 + $0x1690] sm:$0xff]
    %v2578 = vld [vmem:[#allocation8 + $0x1698] sm:$0xff]
    %v2579 = vld [vmem:[#allocation8 + $0x16a0] sm:$0xff]
    %v2580 = vld [vmem:[#allocation8 + $0x16a8] sm:$0xff]
    %v2581 = vld [vmem:[#allocation8 + $0x16b0] sm:$0xff]
    %v2582 = vld [vmem:[#allocation8 + $0x16b8] sm:$0xff]
    %v2583 = vld [vmem:[#allocation8 + $0x16c0] sm:$0xff]
    %v2584 = vld [vmem:[#allocation8 + $0x16c8] sm:$0xff]
    %v2585 = vld [vmem:[#allocation8 + $0x16d0] sm:$0xff]
    %v2586 = vld [vmem:[#allocation8 + $0x16d8] sm:$0xff]
    %v2587 = vld [vmem:[#allocation8 + $0x16e0] sm:$0xff]
    %v2588 = vld [vmem:[#allocation8 + $0x16e8] sm:$0xff]
    %v2589 = vld [vmem:[#allocation8 + $0x16f0] sm:$0xff]
    %v2590 = vld [vmem:[#allocation8 + $0x16f8] sm:$0xff]
    %v2591 = vld [vmem:[#allocation8 + $0x1700] sm:$0xff]
    %v2592 = vld [vmem:[#allocation8 + $0x1708] sm:$0xff]
    %v2593 = vld [vmem:[#allocation8 + $0x1710] sm:$0xff]
    %v2594 = vld [vmem:[#allocation8 + $0x1718] sm:$0xff]
    %v2595 = vld [vmem:[#allocation8 + $0x1720] sm:$0xff]
    %v2596 = vld [vmem:[#allocation8 + $0x1728] sm:$0xff]
    %v2597 = vld [vmem:[#allocation8 + $0x1730] sm:$0xff]
    %v2598 = vld [vmem:[#allocation8 + $0x1738] sm:$0xff]
    %v2599 = vld [vmem:[#allocation8 + $0x1740] sm:$0xff]
    %v2600 = vld [vmem:[#allocation8 + $0x1748] sm:$0xff]
    %v2601 = vld [vmem:[#allocation8 + $0x1750] sm:$0xff]
    %v2602 = vld [vmem:[#allocation8 + $0x1758] sm:$0xff]
    %v2603 = vld [vmem:[#allocation8 + $0x1760] sm:$0xff]
    %v2604 = vld [vmem:[#allocation8 + $0x1768] sm:$0xff]
    %v2605 = vld [vmem:[#allocation8 + $0x1770] sm:$0xff]
    %v2606 = vld [vmem:[#allocation8 + $0x1778] sm:$0xff]
    %v2607 = vld [vmem:[#allocation8 + $0x1780] sm:$0xff]
    %v2608 = vld [vmem:[#allocation8 + $0x1788] sm:$0xff]
    %v2609 = vld [vmem:[#allocation8 + $0x1790] sm:$0xff]
    %v2610 = vld [vmem:[#allocation8 + $0x1798] sm:$0xff]
    %v2611 = vld [vmem:[#allocation8 + $0x17a0] sm:$0xff]
    %v2612 = vld [vmem:[#allocation8 + $0x17a8] sm:$0xff]
    %v2613 = vld [vmem:[#allocation8 + $0x17b0] sm:$0xff]
    %v2614 = vld [vmem:[#allocation8 + $0x17b8] sm:$0xff]
    %v2615 = vld [vmem:[#allocation8 + $0x17c0] sm:$0xff]
    %v2616 = vld [vmem:[#allocation8 + $0x17c8] sm:$0xff]
    %v2617 = vld [vmem:[#allocation8 + $0x17d0] sm:$0xff]
    %v2618 = vld [vmem:[#allocation8 + $0x17d8] sm:$0xff]
    %v2619 = vld [vmem:[#allocation8 + $0x17e0] sm:$0xff]
    %v2620 = vld [vmem:[#allocation8 + $0x17e8] sm:$0xff]
    %v2621 = vld [vmem:[#allocation8 + $0x17f0] sm:$0xff]
    %v2622 = vld [vmem:[#allocation8 + $0x17f8] sm:$0xff]
    %v2623 = vld [vmem:[#allocation8 + $0x1800] sm:$0xff]
    %v2624 = vld [vmem:[#allocation8 + $0x1808] sm:$0xff]
    %v2625 = vld [vmem:[#allocation8 + $0x1810] sm:$0xff]
    %v2626 = vld [vmem:[#allocation8 + $0x1818] sm:$0xff]
    %v2627 = vld [vmem:[#allocation8 + $0x1820] sm:$0xff]
    %v2628 = vld [vmem:[#allocation8 + $0x1828] sm:$0xff]
    %v2629 = vld [vmem:[#allocation8 + $0x1830] sm:$0xff]
    %v2630 = vld [vmem:[#allocation8 + $0x1838] sm:$0xff]
    %v2631 = vld [vmem:[#allocation8 + $0x1840] sm:$0xff]
    %v2632 = vld [vmem:[#allocation8 + $0x1848] sm:$0xff]
    %v2633 = vld [vmem:[#allocation8 + $0x1850] sm:$0xff]
    %v2634 = vld [vmem:[#allocation8 + $0x1858] sm:$0xff]
    %v2635 = vld [vmem:[#allocation8 + $0x1860] sm:$0xff]
    %v2636 = vld [vmem:[#allocation8 + $0x1868] sm:$0xff]
    %v2637 = vld [vmem:[#allocation8 + $0x1870] sm:$0xff]
    %v2638 = vld [vmem:[#allocation8 + $0x1878] sm:$0xff]
    %v2639 = vld [vmem:[#allocation8 + $0x1880] sm:$0xff]
    %v2640 = vld [vmem:[#allocation8 + $0x1888] sm:$0xff]
    %v2641 = vld [vmem:[#allocation8 + $0x1890] sm:$0xff]
    %v2642 = vld [vmem:[#allocation8 + $0x1898] sm:$0xff]
    %v2643 = vld [vmem:[#allocation8 + $0x18a0] sm:$0xff]
    %v2644 = vld [vmem:[#allocation8 + $0x18a8] sm:$0xff]
    %v2645 = vld [vmem:[#allocation8 + $0x18b0] sm:$0xff]
    %v2646 = vld [vmem:[#allocation8 + $0x18b8] sm:$0xff]
    %v2647 = vld [vmem:[#allocation8 + $0x18c0] sm:$0xff]
    %v2648 = vld [vmem:[#allocation8 + $0x18c8] sm:$0xff]
    %v2649 = vld [vmem:[#allocation8 + $0x18d0] sm:$0xff]
    %v2650 = vld [vmem:[#allocation8 + $0x18d8] sm:$0xff]
    %v2651 = vld [vmem:[#allocation8 + $0x18e0] sm:$0xff]
    %v2652 = vld [vmem:[#allocation8 + $0x18e8] sm:$0xff]
    %v2653 = vld [vmem:[#allocation8 + $0x18f0] sm:$0xff]
    %v2654 = vld [vmem:[#allocation8 + $0x18f8] sm:$0xff]
    %v2655 = vld [vmem:[#allocation8 + $0x1900] sm:$0xff]
    %v2656 = vld [vmem:[#allocation8 + $0x1908] sm:$0xff]
    %v2657 = vld [vmem:[#allocation8 + $0x1910] sm:$0xff]
    %v2658 = vld [vmem:[#allocation8 + $0x1918] sm:$0xff]
    %v2659 = vld [vmem:[#allocation8 + $0x1920] sm:$0xff]
    %v2660 = vld [vmem:[#allocation8 + $0x1928] sm:$0xff]
    %v2661 = vld [vmem:[#allocation8 + $0x1930] sm:$0xff]
    %v2662 = vld [vmem:[#allocation8 + $0x1938] sm:$0xff]
    %v2663 = vld [vmem:[#allocation8 + $0x1940] sm:$0xff]
    %v2664 = vld [vmem:[#allocation8 + $0x1948] sm:$0xff]
    %v2665 = vld [vmem:[#allocation8 + $0x1950] sm:$0xff]
    %v2666 = vld [vmem:[#allocation8 + $0x1958] sm:$0xff]
    %v2667 = vld [vmem:[#allocation8 + $0x1960] sm:$0xff]
    %v2668 = vld [vmem:[#allocation8 + $0x1968] sm:$0xff]
    %v2669 = vld [vmem:[#allocation8 + $0x1970] sm:$0xff]
    %v2670 = vld [vmem:[#allocation8 + $0x1978] sm:$0xff]
    %v2671 = vld [vmem:[#allocation8 + $0x1980] sm:$0xff]
    %v2672 = vld [vmem:[#allocation8 + $0x1988] sm:$0xff]
    %v2673 = vld [vmem:[#allocation8 + $0x1990] sm:$0xff]
    %v2674 = vld [vmem:[#allocation8 + $0x1998] sm:$0xff]
    %v2675 = vld [vmem:[#allocation8 + $0x19a0] sm:$0xff]
    %v2676 = vld [vmem:[#allocation8 + $0x19a8] sm:$0xff]
    %v2677 = vld [vmem:[#allocation8 + $0x19b0] sm:$0xff]
    %v2678 = vld [vmem:[#allocation8 + $0x19b8] sm:$0xff]
    %v2679 = vld [vmem:[#allocation8 + $0x19c0] sm:$0xff]
    %v2680 = vld [vmem:[#allocation8 + $0x19c8] sm:$0xff]
    %v2681 = vld [vmem:[#allocation8 + $0x19d0] sm:$0xff]
    %v2682 = vld [vmem:[#allocation8 + $0x19d8] sm:$0xff]
    %v2683 = vld [vmem:[#allocation8 + $0x19e0] sm:$0xff]
    %v2684 = vld [vmem:[#allocation8 + $0x19e8] sm:$0xff]
    %v2685 = vld [vmem:[#allocation8 + $0x19f0] sm:$0xff]
    %v2686 = vld [vmem:[#allocation8 + $0x19f8] sm:$0xff]
    %v2687 = vld [vmem:[#allocation8 + $0x1a00] sm:$0xff]
    %v2688 = vld [vmem:[#allocation8 + $0x1a08] sm:$0xff]
    %v2689 = vld [vmem:[#allocation8 + $0x1a10] sm:$0xff]
    %v2690 = vld [vmem:[#allocation8 + $0x1a18] sm:$0xff]
    %v2691 = vld [vmem:[#allocation8 + $0x1a20] sm:$0xff]
    %v2692 = vld [vmem:[#allocation8 + $0x1a28] sm:$0xff]
    %v2693 = vld [vmem:[#allocation8 + $0x1a30] sm:$0xff]
    %v2694 = vld [vmem:[#allocation8 + $0x1a38] sm:$0xff]
    %v2695 = vld [vmem:[#allocation8 + $0x1a40] sm:$0xff]
    %v2696 = vld [vmem:[#allocation8 + $0x1a48] sm:$0xff]
    %v2697 = vld [vmem:[#allocation8 + $0x1a50] sm:$0xff]
    %v2698 = vld [vmem:[#allocation8 + $0x1a58] sm:$0xff]
    %v2699 = vld [vmem:[#allocation8 + $0x1a60] sm:$0xff]
    %v2700 = vld [vmem:[#allocation8 + $0x1a68] sm:$0xff]
    %v2701 = vld [vmem:[#allocation8 + $0x1a70] sm:$0xff]
    %v2702 = vld [vmem:[#allocation8 + $0x1a78] sm:$0xff]
    %v2703 = vld [vmem:[#allocation8 + $0x1a80] sm:$0xff]
    %v2704 = vld [vmem:[#allocation8 + $0x1a88] sm:$0xff]
    %v2705 = vld [vmem:[#allocation8 + $0x1a90] sm:$0xff]
    %v2706 = vld [vmem:[#allocation8 + $0x1a98] sm:$0xff]
    %v2707 = vld [vmem:[#allocation8 + $0x1aa0] sm:$0xff]
    %v2708 = vld [vmem:[#allocation8 + $0x1aa8] sm:$0xff]
    %v2709 = vld [vmem:[#allocation8 + $0x1ab0] sm:$0xff]
    %v2710 = vld [vmem:[#allocation8 + $0x1ab8] sm:$0xff]
    %v2711 = vld [vmem:[#allocation8 + $0x1ac0] sm:$0xff]
    %v2712 = vld [vmem:[#allocation8 + $0x1ac8] sm:$0xff]
    %v2713 = vld [vmem:[#allocation8 + $0x1ad0] sm:$0xff]
    %v2714 = vld [vmem:[#allocation8 + $0x1ad8] sm:$0xff]
    %v2715 = vld [vmem:[#allocation8 + $0x1ae0] sm:$0xff]
    %v2716 = vld [vmem:[#allocation8 + $0x1ae8] sm:$0xff]
    %v2717 = vld [vmem:[#allocation8 + $0x1af0] sm:$0xff]
    %v2718 = vld [vmem:[#allocation8 + $0x1af8] sm:$0xff]
    %v2719 = vld [vmem:[#allocation8 + $0x1b00] sm:$0xff]
    %v2720 = vld [vmem:[#allocation8 + $0x1b08] sm:$0xff]
    %v2721 = vld [vmem:[#allocation8 + $0x1b10] sm:$0xff]
    %v2722 = vld [vmem:[#allocation8 + $0x1b18] sm:$0xff]
    %v2723 = vld [vmem:[#allocation8 + $0x1b20] sm:$0xff]
    %v2724 = vld [vmem:[#allocation8 + $0x1b28] sm:$0xff]
    %v2725 = vld [vmem:[#allocation8 + $0x1b30] sm:$0xff]
    %v2726 = vld [vmem:[#allocation8 + $0x1b38] sm:$0xff]
    %v2727 = vld [vmem:[#allocation8 + $0x1b40] sm:$0xff]
    %v2728 = vld [vmem:[#allocation8 + $0x1b48] sm:$0xff]
    %v2729 = vld [vmem:[#allocation8 + $0x1b50] sm:$0xff]
    %v2730 = vld [vmem:[#allocation8 + $0x1b58] sm:$0xff]
    %v2731 = vld [vmem:[#allocation8 + $0x1b60] sm:$0xff]
    %v2732 = vld [vmem:[#allocation8 + $0x1b68] sm:$0xff]
    %v2733 = vld [vmem:[#allocation8 + $0x1b70] sm:$0xff]
    %v2734 = vld [vmem:[#allocation8 + $0x1b78] sm:$0xff]
    %v2735 = vld [vmem:[#allocation8 + $0x1b80] sm:$0xff]
    %v2736 = vld [vmem:[#allocation8 + $0x1b88] sm:$0xff]
    %v2737 = vld [vmem:[#allocation8 + $0x1b90] sm:$0xff]
    %v2738 = vld [vmem:[#allocation8 + $0x1b98] sm:$0xff]
    %v2739 = vld [vmem:[#allocation8 + $0x1ba0] sm:$0xff]
    %v2740 = vld [vmem:[#allocation8 + $0x1ba8] sm:$0xff]
    %v2741 = vld [vmem:[#allocation8 + $0x1bb0] sm:$0xff]
    %v2742 = vld [vmem:[#allocation8 + $0x1bb8] sm:$0xff]
    %v2743 = vld [vmem:[#allocation8 + $0x1bc0] sm:$0xff]
    %v2744 = vld [vmem:[#allocation8 + $0x1bc8] sm:$0xff]
    %v2745 = vld [vmem:[#allocation8 + $0x1bd0] sm:$0xff]
    %v2746 = vld [vmem:[#allocation8 + $0x1bd8] sm:$0xff]
    %v2747 = vld [vmem:[#allocation8 + $0x1be0] sm:$0xff]
    %v2748 = vld [vmem:[#allocation8 + $0x1be8] sm:$0xff]
    %v2749 = vld [vmem:[#allocation8 + $0x1bf0] sm:$0xff]
    %v2750 = vld [vmem:[#allocation8 + $0x1bf8] sm:$0xff]
    %v2751 = vld [vmem:[#allocation8 + $0x1c00] sm:$0xff]
    %v2752 = vld [vmem:[#allocation8 + $0x1c08] sm:$0xff]
    %v2753 = vld [vmem:[#allocation8 + $0x1c10] sm:$0xff]
    %v2754 = vld [vmem:[#allocation8 + $0x1c18] sm:$0xff]
    %v2755 = vld [vmem:[#allocation8 + $0x1c20] sm:$0xff]
    %v2756 = vld [vmem:[#allocation8 + $0x1c28] sm:$0xff]
    %v2757 = vld [vmem:[#allocation8 + $0x1c30] sm:$0xff]
    %v2758 = vld [vmem:[#allocation8 + $0x1c38] sm:$0xff]
    %v2759 = vld [vmem:[#allocation8 + $0x1c40] sm:$0xff]
    %v2760 = vld [vmem:[#allocation8 + $0x1c48] sm:$0xff]
    %v2761 = vld [vmem:[#allocation8 + $0x1c50] sm:$0xff]
    %v2762 = vld [vmem:[#allocation8 + $0x1c58] sm:$0xff]
    %v2763 = vld [vmem:[#allocation8 + $0x1c60] sm:$0xff]
    %v2764 = vld [vmem:[#allocation8 + $0x1c68] sm:$0xff]
    %v2765 = vld [vmem:[#allocation8 + $0x1c70] sm:$0xff]
    %v2766 = vld [vmem:[#allocation8 + $0x1c78] sm:$0xff]
    %v2767 = vld [vmem:[#allocation8 + $0x1c80] sm:$0xff]
    %v2768 = vld [vmem:[#allocation8 + $0x1c88] sm:$0xff]
    %v2769 = vld [vmem:[#allocation8 + $0x1c90] sm:$0xff]
    %v2770 = vld [vmem:[#allocation8 + $0x1c98] sm:$0xff]
    %v2771 = vld [vmem:[#allocation8 + $0x1ca0] sm:$0xff]
    %v2772 = vld [vmem:[#allocation8 + $0x1ca8] sm:$0xff]
    %v2773 = vld [vmem:[#allocation8 + $0x1cb0] sm:$0xff]
    %v2774 = vld [vmem:[#allocation8 + $0x1cb8] sm:$0xff]
    %v2775 = vld [vmem:[#allocation8 + $0x1cc0] sm:$0xff]
    %v2776 = vld [vmem:[#allocation8 + $0x1cc8] sm:$0xff]
    %v2777 = vld [vmem:[#allocation8 + $0x1cd0] sm:$0xff]
    %v2778 = vld [vmem:[#allocation8 + $0x1cd8] sm:$0xff]
    %v2779 = vld [vmem:[#allocation8 + $0x1ce0] sm:$0xff]
    %v2780 = vld [vmem:[#allocation8 + $0x1ce8] sm:$0xff]
    %v2781 = vld [vmem:[#allocation8 + $0x1cf0] sm:$0xff]
    %v2782 = vld [vmem:[#allocation8 + $0x1cf8] sm:$0xff]
    %v2783 = vld [vmem:[#allocation8 + $0x1d00] sm:$0xff]
    %v2784 = vld [vmem:[#allocation8 + $0x1d08] sm:$0xff]
    %v2785 = vld [vmem:[#allocation8 + $0x1d10] sm:$0xff]
    %v2786 = vld [vmem:[#allocation8 + $0x1d18] sm:$0xff]
    %v2787 = vld [vmem:[#allocation8 + $0x1d20] sm:$0xff]
    %v2788 = vld [vmem:[#allocation8 + $0x1d28] sm:$0xff]
    %v2789 = vld [vmem:[#allocation8 + $0x1d30] sm:$0xff]
    %v2790 = vld [vmem:[#allocation8 + $0x1d38] sm:$0xff]
    %v2791 = vld [vmem:[#allocation8 + $0x1d40] sm:$0xff]
    %v2792 = vld [vmem:[#allocation8 + $0x1d48] sm:$0xff]
    %v2793 = vld [vmem:[#allocation8 + $0x1d50] sm:$0xff]
    %v2794 = vld [vmem:[#allocation8 + $0x1d58] sm:$0xff]
    %v2795 = vld [vmem:[#allocation8 + $0x1d60] sm:$0xff]
    %v2796 = vld [vmem:[#allocation8 + $0x1d68] sm:$0xff]
    %v2797 = vld [vmem:[#allocation8 + $0x1d70] sm:$0xff]
    %v2798 = vld [vmem:[#allocation8 + $0x1d78] sm:$0xff]
    %v2799 = vld [vmem:[#allocation8 + $0x1d80] sm:$0xff]
    %v2800 = vld [vmem:[#allocation8 + $0x1d88] sm:$0xff]
    %v2801 = vld [vmem:[#allocation8 + $0x1d90] sm:$0xff]
    %v2802 = vld [vmem:[#allocation8 + $0x1d98] sm:$0xff]
    %v2803 = vld [vmem:[#allocation8 + $0x1da0] sm:$0xff]
    %v2804 = vld [vmem:[#allocation8 + $0x1da8] sm:$0xff]
    %v2805 = vld [vmem:[#allocation8 + $0x1db0] sm:$0xff]
    %v2806 = vld [vmem:[#allocation8 + $0x1db8] sm:$0xff]
    %v2807 = vld [vmem:[#allocation8 + $0x1dc0] sm:$0xff]
    %v2808 = vld [vmem:[#allocation8 + $0x1dc8] sm:$0xff]
    %v2809 = vld [vmem:[#allocation8 + $0x1dd0] sm:$0xff]
    %v2810 = vld [vmem:[#allocation8 + $0x1dd8] sm:$0xff]
    %v2811 = vld [vmem:[#allocation8 + $0x1de0] sm:$0xff]
    %v2812 = vld [vmem:[#allocation8 + $0x1de8] sm:$0xff]
    %v2813 = vld [vmem:[#allocation8 + $0x1df0] sm:$0xff]
    %v2814 = vld [vmem:[#allocation8 + $0x1df8] sm:$0xff]
    %v2815 = vld [vmem:[#allocation8 + $0x1e00] sm:$0xff]
    %v2816 = vld [vmem:[#allocation8 + $0x1e08] sm:$0xff]
    %v2817 = vld [vmem:[#allocation8 + $0x1e10] sm:$0xff]
    %v2818 = vld [vmem:[#allocation8 + $0x1e18] sm:$0xff]
    %v2819 = vld [vmem:[#allocation8 + $0x1e20] sm:$0xff]
    %v2820 = vld [vmem:[#allocation8 + $0x1e28] sm:$0xff]
    %v2821 = vld [vmem:[#allocation8 + $0x1e30] sm:$0xff]
    %v2822 = vld [vmem:[#allocation8 + $0x1e38] sm:$0xff]
    %v2823 = vld [vmem:[#allocation8 + $0x1e40] sm:$0xff]
    %v2824 = vld [vmem:[#allocation8 + $0x1e48] sm:$0xff]
    %v2825 = vld [vmem:[#allocation8 + $0x1e50] sm:$0xff]
    %v2826 = vld [vmem:[#allocation8 + $0x1e58] sm:$0xff]
    %v2827 = vld [vmem:[#allocation8 + $0x1e60] sm:$0xff]
    %v2828 = vld [vmem:[#allocation8 + $0x1e68] sm:$0xff]
    %v2829 = vld [vmem:[#allocation8 + $0x1e70] sm:$0xff]
    %v2830 = vld [vmem:[#allocation8 + $0x1e78] sm:$0xff]
    %v2831 = vld [vmem:[#allocation8 + $0x1e80] sm:$0xff]
    %v2832 = vld [vmem:[#allocation8 + $0x1e88] sm:$0xff]
    %v2833 = vld [vmem:[#allocation8 + $0x1e90] sm:$0xff]
    %v2834 = vld [vmem:[#allocation8 + $0x1e98] sm:$0xff]
    %v2835 = vld [vmem:[#allocation8 + $0x1ea0] sm:$0xff]
    %v2836 = vld [vmem:[#allocation8 + $0x1ea8] sm:$0xff]
    %v2837 = vld [vmem:[#allocation8 + $0x1eb0] sm:$0xff]
    %v2838 = vld [vmem:[#allocation8 + $0x1eb8] sm:$0xff]
    %v2839 = vld [vmem:[#allocation8 + $0x1ec0] sm:$0xff]
    %v2840 = vld [vmem:[#allocation8 + $0x1ec8] sm:$0xff]
    %v2841 = vld [vmem:[#allocation8 + $0x1ed0] sm:$0xff]
    %v2842 = vld [vmem:[#allocation8 + $0x1ed8] sm:$0xff]
    %v2843 = vld [vmem:[#allocation8 + $0x1ee0] sm:$0xff]
    %v2844 = vld [vmem:[#allocation8 + $0x1ee8] sm:$0xff]
    %v2845 = vld [vmem:[#allocation8 + $0x1ef0] sm:$0xff]
    %v2846 = vld [vmem:[#allocation8 + $0x1ef8] sm:$0xff]
    %v2847 = vld [vmem:[#allocation8 + $0x1f00] sm:$0xff]
    %v2848 = vld [vmem:[#allocation8 + $0x1f08] sm:$0xff]
    %v2849 = vld [vmem:[#allocation8 + $0x1f10] sm:$0xff]
    %v2850 = vld [vmem:[#allocation8 + $0x1f18] sm:$0xff]
    %v2851 = vld [vmem:[#allocation8 + $0x1f20] sm:$0xff]
    %v2852 = vld [vmem:[#allocation8 + $0x1f28] sm:$0xff]
    %v2853 = vld [vmem:[#allocation8 + $0x1f30] sm:$0xff]
    %v2854 = vld [vmem:[#allocation8 + $0x1f38] sm:$0xff]
    %v2855 = vld [vmem:[#allocation8 + $0x1f40] sm:$0xff]
    %v2856 = vld [vmem:[#allocation8 + $0x1f48] sm:$0xff]
    %v2857 = vld [vmem:[#allocation8 + $0x1f50] sm:$0xff]
    %v2858 = vld [vmem:[#allocation8 + $0x1f58] sm:$0xff]
    %v2859 = vld [vmem:[#allocation8 + $0x1f60] sm:$0xff]
    %v2860 = vld [vmem:[#allocation8 + $0x1f68] sm:$0xff]
    %v2861 = vld [vmem:[#allocation8 + $0x1f70] sm:$0xff]
    %v2862 = vld [vmem:[#allocation8 + $0x1f78] sm:$0xff]
    %v2863 = vld [vmem:[#allocation8 + $0x1f80] sm:$0xff]
    %v2864 = vld [vmem:[#allocation8 + $0x1f88] sm:$0xff]
    %v2865 = vld [vmem:[#allocation8 + $0x1f90] sm:$0xff]
    %v2866 = vld [vmem:[#allocation8 + $0x1f98] sm:$0xff]
    %v2867 = vld [vmem:[#allocation8 + $0x1fa0] sm:$0xff]
    %v2868 = vld [vmem:[#allocation8 + $0x1fa8] sm:$0xff]
    %v2869 = vld [vmem:[#allocation8 + $0x1fb0] sm:$0xff]
    %v2870 = vld [vmem:[#allocation8 + $0x1fb8] sm:$0xff]
    %v2871 = vld [vmem:[#allocation8 + $0x1fc0] sm:$0xff]
    %v2872 = vld [vmem:[#allocation8 + $0x1fc8] sm:$0xff]
    %v2873 = vld [vmem:[#allocation8 + $0x1fd0] sm:$0xff]
    %v2874 = vld [vmem:[#allocation8 + $0x1fd8] sm:$0xff]
    %v2875 = vld [vmem:[#allocation8 + $0x1fe0] sm:$0xff]
    %v2876 = vld [vmem:[#allocation8 + $0x1fe8] sm:$0xff]
    %v2877 = vld [vmem:[#allocation8 + $0x1ff0] sm:$0xff]
    %v2878 = vld [vmem:[#allocation8 + $0x1ff8] sm:$0xff]
    %v3903 = vunpack.c.l.b16 %v1855
    %v3904 = vunpack.c.h.b16 %v1855
    %v3905 = vunpack.c.l.b16 %v1856
    %v3906 = vunpack.c.h.b16 %v1856
    %v3907 = vunpack.c.l.b16 %v1857
    %v3908 = vunpack.c.h.b16 %v1857
    %v3909 = vunpack.c.l.b16 %v1858
    %v3910 = vunpack.c.h.b16 %v1858
    %v3911 = vunpack.c.l.b16 %v1859
    %v3912 = vunpack.c.h.b16 %v1859
    %v3913 = vunpack.c.l.b16 %v1860
    %v3914 = vunpack.c.h.b16 %v1860
    %v3915 = vunpack.c.l.b16 %v1861
    %v3916 = vunpack.c.h.b16 %v1861
    %v3917 = vunpack.c.l.b16 %v1862
    %v3918 = vunpack.c.h.b16 %v1862
    %v3919 = vunpack.c.l.b16 %v1863
    %v3920 = vunpack.c.h.b16 %v1863
    %v3921 = vunpack.c.l.b16 %v1864
    %v3922 = vunpack.c.h.b16 %v1864
    %v3923 = vunpack.c.l.b16 %v1865
    %v3924 = vunpack.c.h.b16 %v1865
    %v3925 = vunpack.c.l.b16 %v1866
    %v3926 = vunpack.c.h.b16 %v1866
    %v3927 = vunpack.c.l.b16 %v1867
    %v3928 = vunpack.c.h.b16 %v1867
    %v3929 = vunpack.c.l.b16 %v1868
    %v3930 = vunpack.c.h.b16 %v1868
    %v3931 = vunpack.c.l.b16 %v1869
    %v3932 = vunpack.c.h.b16 %v1869
    %v3933 = vunpack.c.l.b16 %v1870
    %v3934 = vunpack.c.h.b16 %v1870
    %v3935 = vunpack.c.l.b16 %v1871
    %v3936 = vunpack.c.h.b16 %v1871
    %v3937 = vunpack.c.l.b16 %v1872
    %v3938 = vunpack.c.h.b16 %v1872
    %v3939 = vunpack.c.l.b16 %v1873
    %v3940 = vunpack.c.h.b16 %v1873
    %v3941 = vunpack.c.l.b16 %v1874
    %v3942 = vunpack.c.h.b16 %v1874
    %v3943 = vunpack.c.l.b16 %v1875
    %v3944 = vunpack.c.h.b16 %v1875
    %v3945 = vunpack.c.l.b16 %v1876
    %v3946 = vunpack.c.h.b16 %v1876
    %v3947 = vunpack.c.l.b16 %v1877
    %v3948 = vunpack.c.h.b16 %v1877
    %v3949 = vunpack.c.l.b16 %v1878
    %v3950 = vunpack.c.h.b16 %v1878
    %v3951 = vunpack.c.l.b16 %v1879
    %v3952 = vunpack.c.h.b16 %v1879
    %v3953 = vunpack.c.l.b16 %v1880
    %v3954 = vunpack.c.h.b16 %v1880
    %v3955 = vunpack.c.l.b16 %v1881
    %v3956 = vunpack.c.h.b16 %v1881
    %v3957 = vunpack.c.l.b16 %v1882
    %v3958 = vunpack.c.h.b16 %v1882
    %v3959 = vunpack.c.l.b16 %v1883
    %v3960 = vunpack.c.h.b16 %v1883
    %v3961 = vunpack.c.l.b16 %v1884
    %v3962 = vunpack.c.h.b16 %v1884
    %v3963 = vunpack.c.l.b16 %v1885
    %v3964 = vunpack.c.h.b16 %v1885
    %v3965 = vunpack.c.l.b16 %v1886
    %v3966 = vunpack.c.h.b16 %v1886
    %v3967 = vunpack.c.l.b16 %v1887
    %v3968 = vunpack.c.h.b16 %v1887
    %v3969 = vunpack.c.l.b16 %v1888
    %v3970 = vunpack.c.h.b16 %v1888
    %v3971 = vunpack.c.l.b16 %v1889
    %v3972 = vunpack.c.h.b16 %v1889
    %v3973 = vunpack.c.l.b16 %v1890
    %v3974 = vunpack.c.h.b16 %v1890
    %v3975 = vunpack.c.l.b16 %v1891
    %v3976 = vunpack.c.h.b16 %v1891
    %v3977 = vunpack.c.l.b16 %v1892
    %v3978 = vunpack.c.h.b16 %v1892
    %v3979 = vunpack.c.l.b16 %v1893
    %v3980 = vunpack.c.h.b16 %v1893
    %v3981 = vunpack.c.l.b16 %v1894
    %v3982 = vunpack.c.h.b16 %v1894
    %v3983 = vunpack.c.l.b16 %v1895
    %v3984 = vunpack.c.h.b16 %v1895
    %v3985 = vunpack.c.l.b16 %v1896
    %v3986 = vunpack.c.h.b16 %v1896
    %v3987 = vunpack.c.l.b16 %v1897
    %v3988 = vunpack.c.h.b16 %v1897
    %v3989 = vunpack.c.l.b16 %v1898
    %v3990 = vunpack.c.h.b16 %v1898
    %v3991 = vunpack.c.l.b16 %v1899
    %v3992 = vunpack.c.h.b16 %v1899
    %v3993 = vunpack.c.l.b16 %v1900
    %v3994 = vunpack.c.h.b16 %v1900
    %v3995 = vunpack.c.l.b16 %v1901
    %v3996 = vunpack.c.h.b16 %v1901
    %v3997 = vunpack.c.l.b16 %v1902
    %v3998 = vunpack.c.h.b16 %v1902
    %v3999 = vunpack.c.l.b16 %v1903
    %v4000 = vunpack.c.h.b16 %v1903
    %v4001 = vunpack.c.l.b16 %v1904
    %v4002 = vunpack.c.h.b16 %v1904
    %v4003 = vunpack.c.l.b16 %v1905
    %v4004 = vunpack.c.h.b16 %v1905
    %v4005 = vunpack.c.l.b16 %v1906
    %v4006 = vunpack.c.h.b16 %v1906
    %v4007 = vunpack.c.l.b16 %v1907
    %v4008 = vunpack.c.h.b16 %v1907
    %v4009 = vunpack.c.l.b16 %v1908
    %v4010 = vunpack.c.h.b16 %v1908
    %v4011 = vunpack.c.l.b16 %v1909
    %v4012 = vunpack.c.h.b16 %v1909
    %v4013 = vunpack.c.l.b16 %v1910
    %v4014 = vunpack.c.h.b16 %v1910
    %v4015 = vunpack.c.l.b16 %v1911
    %v4016 = vunpack.c.h.b16 %v1911
    %v4017 = vunpack.c.l.b16 %v1912
    %v4018 = vunpack.c.h.b16 %v1912
    %v4019 = vunpack.c.l.b16 %v1913
    %v4020 = vunpack.c.h.b16 %v1913
    %v4021 = vunpack.c.l.b16 %v1914
    %v4022 = vunpack.c.h.b16 %v1914
    %v4023 = vunpack.c.l.b16 %v1915
    %v4024 = vunpack.c.h.b16 %v1915
    %v4025 = vunpack.c.l.b16 %v1916
    %v4026 = vunpack.c.h.b16 %v1916
    %v4027 = vunpack.c.l.b16 %v1917
    %v4028 = vunpack.c.h.b16 %v1917
    %v4029 = vunpack.c.l.b16 %v1918
    %v4030 = vunpack.c.h.b16 %v1918
    %v4031 = vunpack.c.l.b16 %v1919
    %v4032 = vunpack.c.h.b16 %v1919
    %v4033 = vunpack.c.l.b16 %v1920
    %v4034 = vunpack.c.h.b16 %v1920
    %v4035 = vunpack.c.l.b16 %v1921
    %v4036 = vunpack.c.h.b16 %v1921
    %v4037 = vunpack.c.l.b16 %v1922
    %v4038 = vunpack.c.h.b16 %v1922
    %v4039 = vunpack.c.l.b16 %v1923
    %v4040 = vunpack.c.h.b16 %v1923
    %v4041 = vunpack.c.l.b16 %v1924
    %v4042 = vunpack.c.h.b16 %v1924
    %v4043 = vunpack.c.l.b16 %v1925
    %v4044 = vunpack.c.h.b16 %v1925
    %v4045 = vunpack.c.l.b16 %v1926
    %v4046 = vunpack.c.h.b16 %v1926
    %v4047 = vunpack.c.l.b16 %v1927
    %v4048 = vunpack.c.h.b16 %v1927
    %v4049 = vunpack.c.l.b16 %v1928
    %v4050 = vunpack.c.h.b16 %v1928
    %v4051 = vunpack.c.l.b16 %v1929
    %v4052 = vunpack.c.h.b16 %v1929
    %v4053 = vunpack.c.l.b16 %v1930
    %v4054 = vunpack.c.h.b16 %v1930
    %v4055 = vunpack.c.l.b16 %v1931
    %v4056 = vunpack.c.h.b16 %v1931
    %v4057 = vunpack.c.l.b16 %v1932
    %v4058 = vunpack.c.h.b16 %v1932
    %v4059 = vunpack.c.l.b16 %v1933
    %v4060 = vunpack.c.h.b16 %v1933
    %v4061 = vunpack.c.l.b16 %v1934
    %v4062 = vunpack.c.h.b16 %v1934
    %v4063 = vunpack.c.l.b16 %v1935
    %v4064 = vunpack.c.h.b16 %v1935
    %v4065 = vunpack.c.l.b16 %v1936
    %v4066 = vunpack.c.h.b16 %v1936
    %v4067 = vunpack.c.l.b16 %v1937
    %v4068 = vunpack.c.h.b16 %v1937
    %v4069 = vunpack.c.l.b16 %v1938
    %v4070 = vunpack.c.h.b16 %v1938
    %v4071 = vunpack.c.l.b16 %v1939
    %v4072 = vunpack.c.h.b16 %v1939
    %v4073 = vunpack.c.l.b16 %v1940
    %v4074 = vunpack.c.h.b16 %v1940
    %v4075 = vunpack.c.l.b16 %v1941
    %v4076 = vunpack.c.h.b16 %v1941
    %v4077 = vunpack.c.l.b16 %v1942
    %v4078 = vunpack.c.h.b16 %v1942
    %v4079 = vunpack.c.l.b16 %v1943
    %v4080 = vunpack.c.h.b16 %v1943
    %v4081 = vunpack.c.l.b16 %v1944
    %v4082 = vunpack.c.h.b16 %v1944
    %v4083 = vunpack.c.l.b16 %v1945
    %v4084 = vunpack.c.h.b16 %v1945
    %v4085 = vunpack.c.l.b16 %v1946
    %v4086 = vunpack.c.h.b16 %v1946
    %v4087 = vunpack.c.l.b16 %v1947
    %v4088 = vunpack.c.h.b16 %v1947
    %v4089 = vunpack.c.l.b16 %v1948
    %v4090 = vunpack.c.h.b16 %v1948
    %v4091 = vunpack.c.l.b16 %v1949
    %v4092 = vunpack.c.h.b16 %v1949
    %v4093 = vunpack.c.l.b16 %v1950
    %v4094 = vunpack.c.h.b16 %v1950
    %v4095 = vunpack.c.l.b16 %v1951
    %v4096 = vunpack.c.h.b16 %v1951
    %v4097 = vunpack.c.l.b16 %v1952
    %v4098 = vunpack.c.h.b16 %v1952
    %v4099 = vunpack.c.l.b16 %v1953
    %v4100 = vunpack.c.h.b16 %v1953
    %v4101 = vunpack.c.l.b16 %v1954
    %v4102 = vunpack.c.h.b16 %v1954
    %v4103 = vunpack.c.l.b16 %v1955
    %v4104 = vunpack.c.h.b16 %v1955
    %v4105 = vunpack.c.l.b16 %v1956
    %v4106 = vunpack.c.h.b16 %v1956
    %v4107 = vunpack.c.l.b16 %v1957
    %v4108 = vunpack.c.h.b16 %v1957
    %v4109 = vunpack.c.l.b16 %v1958
    %v4110 = vunpack.c.h.b16 %v1958
    %v4111 = vunpack.c.l.b16 %v1959
    %v4112 = vunpack.c.h.b16 %v1959
    %v4113 = vunpack.c.l.b16 %v1960
    %v4114 = vunpack.c.h.b16 %v1960
    %v4115 = vunpack.c.l.b16 %v1961
    %v4116 = vunpack.c.h.b16 %v1961
    %v4117 = vunpack.c.l.b16 %v1962
    %v4118 = vunpack.c.h.b16 %v1962
    %v4119 = vunpack.c.l.b16 %v1963
    %v4120 = vunpack.c.h.b16 %v1963
    %v4121 = vunpack.c.l.b16 %v1964
    %v4122 = vunpack.c.h.b16 %v1964
    %v4123 = vunpack.c.l.b16 %v1965
    %v4124 = vunpack.c.h.b16 %v1965
    %v4125 = vunpack.c.l.b16 %v1966
    %v4126 = vunpack.c.h.b16 %v1966
    %v4127 = vunpack.c.l.b16 %v1967
    %v4128 = vunpack.c.h.b16 %v1967
    %v4129 = vunpack.c.l.b16 %v1968
    %v4130 = vunpack.c.h.b16 %v1968
    %v4131 = vunpack.c.l.b16 %v1969
    %v4132 = vunpack.c.h.b16 %v1969
    %v4133 = vunpack.c.l.b16 %v1970
    %v4134 = vunpack.c.h.b16 %v1970
    %v4135 = vunpack.c.l.b16 %v1971
    %v4136 = vunpack.c.h.b16 %v1971
    %v4137 = vunpack.c.l.b16 %v1972
    %v4138 = vunpack.c.h.b16 %v1972
    %v4139 = vunpack.c.l.b16 %v1973
    %v4140 = vunpack.c.h.b16 %v1973
    %v4141 = vunpack.c.l.b16 %v1974
    %v4142 = vunpack.c.h.b16 %v1974
    %v4143 = vunpack.c.l.b16 %v1975
    %v4144 = vunpack.c.h.b16 %v1975
    %v4145 = vunpack.c.l.b16 %v1976
    %v4146 = vunpack.c.h.b16 %v1976
    %v4147 = vunpack.c.l.b16 %v1977
    %v4148 = vunpack.c.h.b16 %v1977
    %v4149 = vunpack.c.l.b16 %v1978
    %v4150 = vunpack.c.h.b16 %v1978
    %v4151 = vunpack.c.l.b16 %v1979
    %v4152 = vunpack.c.h.b16 %v1979
    %v4153 = vunpack.c.l.b16 %v1980
    %v4154 = vunpack.c.h.b16 %v1980
    %v4155 = vunpack.c.l.b16 %v1981
    %v4156 = vunpack.c.h.b16 %v1981
    %v4157 = vunpack.c.l.b16 %v1982
    %v4158 = vunpack.c.h.b16 %v1982
    %v4159 = vunpack.c.l.b16 %v1983
    %v4160 = vunpack.c.h.b16 %v1983
    %v4161 = vunpack.c.l.b16 %v1984
    %v4162 = vunpack.c.h.b16 %v1984
    %v4163 = vunpack.c.l.b16 %v1985
    %v4164 = vunpack.c.h.b16 %v1985
    %v4165 = vunpack.c.l.b16 %v1986
    %v4166 = vunpack.c.h.b16 %v1986
    %v4167 = vunpack.c.l.b16 %v1987
    %v4168 = vunpack.c.h.b16 %v1987
    %v4169 = vunpack.c.l.b16 %v1988
    %v4170 = vunpack.c.h.b16 %v1988
    %v4171 = vunpack.c.l.b16 %v1989
    %v4172 = vunpack.c.h.b16 %v1989
    %v4173 = vunpack.c.l.b16 %v1990
    %v4174 = vunpack.c.h.b16 %v1990
    %v4175 = vunpack.c.l.b16 %v1991
    %v4176 = vunpack.c.h.b16 %v1991
    %v4177 = vunpack.c.l.b16 %v1992
    %v4178 = vunpack.c.h.b16 %v1992
    %v4179 = vunpack.c.l.b16 %v1993
    %v4180 = vunpack.c.h.b16 %v1993
    %v4181 = vunpack.c.l.b16 %v1994
    %v4182 = vunpack.c.h.b16 %v1994
    %v4183 = vunpack.c.l.b16 %v1995
    %v4184 = vunpack.c.h.b16 %v1995
    %v4185 = vunpack.c.l.b16 %v1996
    %v4186 = vunpack.c.h.b16 %v1996
    %v4187 = vunpack.c.l.b16 %v1997
    %v4188 = vunpack.c.h.b16 %v1997
    %v4189 = vunpack.c.l.b16 %v1998
    %v4190 = vunpack.c.h.b16 %v1998
    %v4191 = vunpack.c.l.b16 %v1999
    %v4192 = vunpack.c.h.b16 %v1999
    %v4193 = vunpack.c.l.b16 %v2000
    %v4194 = vunpack.c.h.b16 %v2000
    %v4195 = vunpack.c.l.b16 %v2001
    %v4196 = vunpack.c.h.b16 %v2001
    %v4197 = vunpack.c.l.b16 %v2002
    %v4198 = vunpack.c.h.b16 %v2002
    %v4199 = vunpack.c.l.b16 %v2003
    %v4200 = vunpack.c.h.b16 %v2003
    %v4201 = vunpack.c.l.b16 %v2004
    %v4202 = vunpack.c.h.b16 %v2004
    %v4203 = vunpack.c.l.b16 %v2005
    %v4204 = vunpack.c.h.b16 %v2005
    %v4205 = vunpack.c.l.b16 %v2006
    %v4206 = vunpack.c.h.b16 %v2006
    %v4207 = vunpack.c.l.b16 %v2007
    %v4208 = vunpack.c.h.b16 %v2007
    %v4209 = vunpack.c.l.b16 %v2008
    %v4210 = vunpack.c.h.b16 %v2008
    %v4211 = vunpack.c.l.b16 %v2009
    %v4212 = vunpack.c.h.b16 %v2009
    %v4213 = vunpack.c.l.b16 %v2010
    %v4214 = vunpack.c.h.b16 %v2010
    %v4215 = vunpack.c.l.b16 %v2011
    %v4216 = vunpack.c.h.b16 %v2011
    %v4217 = vunpack.c.l.b16 %v2012
    %v4218 = vunpack.c.h.b16 %v2012
    %v4219 = vunpack.c.l.b16 %v2013
    %v4220 = vunpack.c.h.b16 %v2013
    %v4221 = vunpack.c.l.b16 %v2014
    %v4222 = vunpack.c.h.b16 %v2014
    %v4223 = vunpack.c.l.b16 %v2015
    %v4224 = vunpack.c.h.b16 %v2015
    %v4225 = vunpack.c.l.b16 %v2016
    %v4226 = vunpack.c.h.b16 %v2016
    %v4227 = vunpack.c.l.b16 %v2017
    %v4228 = vunpack.c.h.b16 %v2017
    %v4229 = vunpack.c.l.b16 %v2018
    %v4230 = vunpack.c.h.b16 %v2018
    %v4231 = vunpack.c.l.b16 %v2019
    %v4232 = vunpack.c.h.b16 %v2019
    %v4233 = vunpack.c.l.b16 %v2020
    %v4234 = vunpack.c.h.b16 %v2020
    %v4235 = vunpack.c.l.b16 %v2021
    %v4236 = vunpack.c.h.b16 %v2021
    %v4237 = vunpack.c.l.b16 %v2022
    %v4238 = vunpack.c.h.b16 %v2022
    %v4239 = vunpack.c.l.b16 %v2023
    %v4240 = vunpack.c.h.b16 %v2023
    %v4241 = vunpack.c.l.b16 %v2024
    %v4242 = vunpack.c.h.b16 %v2024
    %v4243 = vunpack.c.l.b16 %v2025
    %v4244 = vunpack.c.h.b16 %v2025
    %v4245 = vunpack.c.l.b16 %v2026
    %v4246 = vunpack.c.h.b16 %v2026
    %v4247 = vunpack.c.l.b16 %v2027
    %v4248 = vunpack.c.h.b16 %v2027
    %v4249 = vunpack.c.l.b16 %v2028
    %v4250 = vunpack.c.h.b16 %v2028
    %v4251 = vunpack.c.l.b16 %v2029
    %v4252 = vunpack.c.h.b16 %v2029
    %v4253 = vunpack.c.l.b16 %v2030
    %v4254 = vunpack.c.h.b16 %v2030
    %v4255 = vunpack.c.l.b16 %v2031
    %v4256 = vunpack.c.h.b16 %v2031
    %v4257 = vunpack.c.l.b16 %v2032
    %v4258 = vunpack.c.h.b16 %v2032
    %v4259 = vunpack.c.l.b16 %v2033
    %v4260 = vunpack.c.h.b16 %v2033
    %v4261 = vunpack.c.l.b16 %v2034
    %v4262 = vunpack.c.h.b16 %v2034
    %v4263 = vunpack.c.l.b16 %v2035
    %v4264 = vunpack.c.h.b16 %v2035
    %v4265 = vunpack.c.l.b16 %v2036
    %v4266 = vunpack.c.h.b16 %v2036
    %v4267 = vunpack.c.l.b16 %v2037
    %v4268 = vunpack.c.h.b16 %v2037
    %v4269 = vunpack.c.l.b16 %v2038
    %v4270 = vunpack.c.h.b16 %v2038
    %v4271 = vunpack.c.l.b16 %v2039
    %v4272 = vunpack.c.h.b16 %v2039
    %v4273 = vunpack.c.l.b16 %v2040
    %v4274 = vunpack.c.h.b16 %v2040
    %v4275 = vunpack.c.l.b16 %v2041
    %v4276 = vunpack.c.h.b16 %v2041
    %v4277 = vunpack.c.l.b16 %v2042
    %v4278 = vunpack.c.h.b16 %v2042
    %v4279 = vunpack.c.l.b16 %v2043
    %v4280 = vunpack.c.h.b16 %v2043
    %v4281 = vunpack.c.l.b16 %v2044
    %v4282 = vunpack.c.h.b16 %v2044
    %v4283 = vunpack.c.l.b16 %v2045
    %v4284 = vunpack.c.h.b16 %v2045
    %v4285 = vunpack.c.l.b16 %v2046
    %v4286 = vunpack.c.h.b16 %v2046
    %v4287 = vunpack.c.l.b16 %v2047
    %v4288 = vunpack.c.h.b16 %v2047
    %v4289 = vunpack.c.l.b16 %v2048
    %v4290 = vunpack.c.h.b16 %v2048
    %v4291 = vunpack.c.l.b16 %v2049
    %v4292 = vunpack.c.h.b16 %v2049
    %v4293 = vunpack.c.l.b16 %v2050
    %v4294 = vunpack.c.h.b16 %v2050
    %v4295 = vunpack.c.l.b16 %v2051
    %v4296 = vunpack.c.h.b16 %v2051
    %v4297 = vunpack.c.l.b16 %v2052
    %v4298 = vunpack.c.h.b16 %v2052
    %v4299 = vunpack.c.l.b16 %v2053
    %v4300 = vunpack.c.h.b16 %v2053
    %v4301 = vunpack.c.l.b16 %v2054
    %v4302 = vunpack.c.h.b16 %v2054
    %v4303 = vunpack.c.l.b16 %v2055
    %v4304 = vunpack.c.h.b16 %v2055
    %v4305 = vunpack.c.l.b16 %v2056
    %v4306 = vunpack.c.h.b16 %v2056
    %v4307 = vunpack.c.l.b16 %v2057
    %v4308 = vunpack.c.h.b16 %v2057
    %v4309 = vunpack.c.l.b16 %v2058
    %v4310 = vunpack.c.h.b16 %v2058
    %v4311 = vunpack.c.l.b16 %v2059
    %v4312 = vunpack.c.h.b16 %v2059
    %v4313 = vunpack.c.l.b16 %v2060
    %v4314 = vunpack.c.h.b16 %v2060
    %v4315 = vunpack.c.l.b16 %v2061
    %v4316 = vunpack.c.h.b16 %v2061
    %v4317 = vunpack.c.l.b16 %v2062
    %v4318 = vunpack.c.h.b16 %v2062
    %v4319 = vunpack.c.l.b16 %v2063
    %v4320 = vunpack.c.h.b16 %v2063
    %v4321 = vunpack.c.l.b16 %v2064
    %v4322 = vunpack.c.h.b16 %v2064
    %v4323 = vunpack.c.l.b16 %v2065
    %v4324 = vunpack.c.h.b16 %v2065
    %v4325 = vunpack.c.l.b16 %v2066
    %v4326 = vunpack.c.h.b16 %v2066
    %v4327 = vunpack.c.l.b16 %v2067
    %v4328 = vunpack.c.h.b16 %v2067
    %v4329 = vunpack.c.l.b16 %v2068
    %v4330 = vunpack.c.h.b16 %v2068
    %v4331 = vunpack.c.l.b16 %v2069
    %v4332 = vunpack.c.h.b16 %v2069
    %v4333 = vunpack.c.l.b16 %v2070
    %v4334 = vunpack.c.h.b16 %v2070
    %v4335 = vunpack.c.l.b16 %v2071
    %v4336 = vunpack.c.h.b16 %v2071
    %v4337 = vunpack.c.l.b16 %v2072
    %v4338 = vunpack.c.h.b16 %v2072
    %v4339 = vunpack.c.l.b16 %v2073
    %v4340 = vunpack.c.h.b16 %v2073
    %v4341 = vunpack.c.l.b16 %v2074
    %v4342 = vunpack.c.h.b16 %v2074
    %v4343 = vunpack.c.l.b16 %v2075
    %v4344 = vunpack.c.h.b16 %v2075
    %v4345 = vunpack.c.l.b16 %v2076
    %v4346 = vunpack.c.h.b16 %v2076
    %v4347 = vunpack.c.l.b16 %v2077
    %v4348 = vunpack.c.h.b16 %v2077
    %v4349 = vunpack.c.l.b16 %v2078
    %v4350 = vunpack.c.h.b16 %v2078
    %v4351 = vunpack.c.l.b16 %v2079
    %v4352 = vunpack.c.h.b16 %v2079
    %v4353 = vunpack.c.l.b16 %v2080
    %v4354 = vunpack.c.h.b16 %v2080
    %v4355 = vunpack.c.l.b16 %v2081
    %v4356 = vunpack.c.h.b16 %v2081
    %v4357 = vunpack.c.l.b16 %v2082
    %v4358 = vunpack.c.h.b16 %v2082
    %v4359 = vunpack.c.l.b16 %v2083
    %v4360 = vunpack.c.h.b16 %v2083
    %v4361 = vunpack.c.l.b16 %v2084
    %v4362 = vunpack.c.h.b16 %v2084
    %v4363 = vunpack.c.l.b16 %v2085
    %v4364 = vunpack.c.h.b16 %v2085
    %v4365 = vunpack.c.l.b16 %v2086
    %v4366 = vunpack.c.h.b16 %v2086
    %v4367 = vunpack.c.l.b16 %v2087
    %v4368 = vunpack.c.h.b16 %v2087
    %v4369 = vunpack.c.l.b16 %v2088
    %v4370 = vunpack.c.h.b16 %v2088
    %v4371 = vunpack.c.l.b16 %v2089
    %v4372 = vunpack.c.h.b16 %v2089
    %v4373 = vunpack.c.l.b16 %v2090
    %v4374 = vunpack.c.h.b16 %v2090
    %v4375 = vunpack.c.l.b16 %v2091
    %v4376 = vunpack.c.h.b16 %v2091
    %v4377 = vunpack.c.l.b16 %v2092
    %v4378 = vunpack.c.h.b16 %v2092
    %v4379 = vunpack.c.l.b16 %v2093
    %v4380 = vunpack.c.h.b16 %v2093
    %v4381 = vunpack.c.l.b16 %v2094
    %v4382 = vunpack.c.h.b16 %v2094
    %v4383 = vunpack.c.l.b16 %v2095
    %v4384 = vunpack.c.h.b16 %v2095
    %v4385 = vunpack.c.l.b16 %v2096
    %v4386 = vunpack.c.h.b16 %v2096
    %v4387 = vunpack.c.l.b16 %v2097
    %v4388 = vunpack.c.h.b16 %v2097
    %v4389 = vunpack.c.l.b16 %v2098
    %v4390 = vunpack.c.h.b16 %v2098
    %v4391 = vunpack.c.l.b16 %v2099
    %v4392 = vunpack.c.h.b16 %v2099
    %v4393 = vunpack.c.l.b16 %v2100
    %v4394 = vunpack.c.h.b16 %v2100
    %v4395 = vunpack.c.l.b16 %v2101
    %v4396 = vunpack.c.h.b16 %v2101
    %v4397 = vunpack.c.l.b16 %v2102
    %v4398 = vunpack.c.h.b16 %v2102
    %v4399 = vunpack.c.l.b16 %v2103
    %v4400 = vunpack.c.h.b16 %v2103
    %v4401 = vunpack.c.l.b16 %v2104
    %v4402 = vunpack.c.h.b16 %v2104
    %v4403 = vunpack.c.l.b16 %v2105
    %v4404 = vunpack.c.h.b16 %v2105
    %v4405 = vunpack.c.l.b16 %v2106
    %v4406 = vunpack.c.h.b16 %v2106
    %v4407 = vunpack.c.l.b16 %v2107
    %v4408 = vunpack.c.h.b16 %v2107
    %v4409 = vunpack.c.l.b16 %v2108
    %v4410 = vunpack.c.h.b16 %v2108
    %v4411 = vunpack.c.l.b16 %v2109
    %v4412 = vunpack.c.h.b16 %v2109
    %v4413 = vunpack.c.l.b16 %v2110
    %v4414 = vunpack.c.h.b16 %v2110
    %v4415 = vunpack.c.l.b16 %v2111
    %v4416 = vunpack.c.h.b16 %v2111
    %v4417 = vunpack.c.l.b16 %v2112
    %v4418 = vunpack.c.h.b16 %v2112
    %v4419 = vunpack.c.l.b16 %v2113
    %v4420 = vunpack.c.h.b16 %v2113
    %v4421 = vunpack.c.l.b16 %v2114
    %v4422 = vunpack.c.h.b16 %v2114
    %v4423 = vunpack.c.l.b16 %v2115
    %v4424 = vunpack.c.h.b16 %v2115
    %v4425 = vunpack.c.l.b16 %v2116
    %v4426 = vunpack.c.h.b16 %v2116
    %v4427 = vunpack.c.l.b16 %v2117
    %v4428 = vunpack.c.h.b16 %v2117
    %v4429 = vunpack.c.l.b16 %v2118
    %v4430 = vunpack.c.h.b16 %v2118
    %v4431 = vunpack.c.l.b16 %v2119
    %v4432 = vunpack.c.h.b16 %v2119
    %v4433 = vunpack.c.l.b16 %v2120
    %v4434 = vunpack.c.h.b16 %v2120
    %v4435 = vunpack.c.l.b16 %v2121
    %v4436 = vunpack.c.h.b16 %v2121
    %v4437 = vunpack.c.l.b16 %v2122
    %v4438 = vunpack.c.h.b16 %v2122
    %v4439 = vunpack.c.l.b16 %v2123
    %v4440 = vunpack.c.h.b16 %v2123
    %v4441 = vunpack.c.l.b16 %v2124
    %v4442 = vunpack.c.h.b16 %v2124
    %v4443 = vunpack.c.l.b16 %v2125
    %v4444 = vunpack.c.h.b16 %v2125
    %v4445 = vunpack.c.l.b16 %v2126
    %v4446 = vunpack.c.h.b16 %v2126
    %v4447 = vunpack.c.l.b16 %v2127
    %v4448 = vunpack.c.h.b16 %v2127
    %v4449 = vunpack.c.l.b16 %v2128
    %v4450 = vunpack.c.h.b16 %v2128
    %v4451 = vunpack.c.l.b16 %v2129
    %v4452 = vunpack.c.h.b16 %v2129
    %v4453 = vunpack.c.l.b16 %v2130
    %v4454 = vunpack.c.h.b16 %v2130
    %v4455 = vunpack.c.l.b16 %v2131
    %v4456 = vunpack.c.h.b16 %v2131
    %v4457 = vunpack.c.l.b16 %v2132
    %v4458 = vunpack.c.h.b16 %v2132
    %v4459 = vunpack.c.l.b16 %v2133
    %v4460 = vunpack.c.h.b16 %v2133
    %v4461 = vunpack.c.l.b16 %v2134
    %v4462 = vunpack.c.h.b16 %v2134
    %v4463 = vunpack.c.l.b16 %v2135
    %v4464 = vunpack.c.h.b16 %v2135
    %v4465 = vunpack.c.l.b16 %v2136
    %v4466 = vunpack.c.h.b16 %v2136
    %v4467 = vunpack.c.l.b16 %v2137
    %v4468 = vunpack.c.h.b16 %v2137
    %v4469 = vunpack.c.l.b16 %v2138
    %v4470 = vunpack.c.h.b16 %v2138
    %v4471 = vunpack.c.l.b16 %v2139
    %v4472 = vunpack.c.h.b16 %v2139
    %v4473 = vunpack.c.l.b16 %v2140
    %v4474 = vunpack.c.h.b16 %v2140
    %v4475 = vunpack.c.l.b16 %v2141
    %v4476 = vunpack.c.h.b16 %v2141
    %v4477 = vunpack.c.l.b16 %v2142
    %v4478 = vunpack.c.h.b16 %v2142
    %v4479 = vunpack.c.l.b16 %v2143
    %v4480 = vunpack.c.h.b16 %v2143
    %v4481 = vunpack.c.l.b16 %v2144
    %v4482 = vunpack.c.h.b16 %v2144
    %v4483 = vunpack.c.l.b16 %v2145
    %v4484 = vunpack.c.h.b16 %v2145
    %v4485 = vunpack.c.l.b16 %v2146
    %v4486 = vunpack.c.h.b16 %v2146
    %v4487 = vunpack.c.l.b16 %v2147
    %v4488 = vunpack.c.h.b16 %v2147
    %v4489 = vunpack.c.l.b16 %v2148
    %v4490 = vunpack.c.h.b16 %v2148
    %v4491 = vunpack.c.l.b16 %v2149
    %v4492 = vunpack.c.h.b16 %v2149
    %v4493 = vunpack.c.l.b16 %v2150
    %v4494 = vunpack.c.h.b16 %v2150
    %v4495 = vunpack.c.l.b16 %v2151
    %v4496 = vunpack.c.h.b16 %v2151
    %v4497 = vunpack.c.l.b16 %v2152
    %v4498 = vunpack.c.h.b16 %v2152
    %v4499 = vunpack.c.l.b16 %v2153
    %v4500 = vunpack.c.h.b16 %v2153
    %v4501 = vunpack.c.l.b16 %v2154
    %v4502 = vunpack.c.h.b16 %v2154
    %v4503 = vunpack.c.l.b16 %v2155
    %v4504 = vunpack.c.h.b16 %v2155
    %v4505 = vunpack.c.l.b16 %v2156
    %v4506 = vunpack.c.h.b16 %v2156
    %v4507 = vunpack.c.l.b16 %v2157
    %v4508 = vunpack.c.h.b16 %v2157
    %v4509 = vunpack.c.l.b16 %v2158
    %v4510 = vunpack.c.h.b16 %v2158
    %v4511 = vunpack.c.l.b16 %v2159
    %v4512 = vunpack.c.h.b16 %v2159
    %v4513 = vunpack.c.l.b16 %v2160
    %v4514 = vunpack.c.h.b16 %v2160
    %v4515 = vunpack.c.l.b16 %v2161
    %v4516 = vunpack.c.h.b16 %v2161
    %v4517 = vunpack.c.l.b16 %v2162
    %v4518 = vunpack.c.h.b16 %v2162
    %v4519 = vunpack.c.l.b16 %v2163
    %v4520 = vunpack.c.h.b16 %v2163
    %v4521 = vunpack.c.l.b16 %v2164
    %v4522 = vunpack.c.h.b16 %v2164
    %v4523 = vunpack.c.l.b16 %v2165
    %v4524 = vunpack.c.h.b16 %v2165
    %v4525 = vunpack.c.l.b16 %v2166
    %v4526 = vunpack.c.h.b16 %v2166
    %v4527 = vunpack.c.l.b16 %v2167
    %v4528 = vunpack.c.h.b16 %v2167
    %v4529 = vunpack.c.l.b16 %v2168
    %v4530 = vunpack.c.h.b16 %v2168
    %v4531 = vunpack.c.l.b16 %v2169
    %v4532 = vunpack.c.h.b16 %v2169
    %v4533 = vunpack.c.l.b16 %v2170
    %v4534 = vunpack.c.h.b16 %v2170
    %v4535 = vunpack.c.l.b16 %v2171
    %v4536 = vunpack.c.h.b16 %v2171
    %v4537 = vunpack.c.l.b16 %v2172
    %v4538 = vunpack.c.h.b16 %v2172
    %v4539 = vunpack.c.l.b16 %v2173
    %v4540 = vunpack.c.h.b16 %v2173
    %v4541 = vunpack.c.l.b16 %v2174
    %v4542 = vunpack.c.h.b16 %v2174
    %v4543 = vunpack.c.l.b16 %v2175
    %v4544 = vunpack.c.h.b16 %v2175
    %v4545 = vunpack.c.l.b16 %v2176
    %v4546 = vunpack.c.h.b16 %v2176
    %v4547 = vunpack.c.l.b16 %v2177
    %v4548 = vunpack.c.h.b16 %v2177
    %v4549 = vunpack.c.l.b16 %v2178
    %v4550 = vunpack.c.h.b16 %v2178
    %v4551 = vunpack.c.l.b16 %v2179
    %v4552 = vunpack.c.h.b16 %v2179
    %v4553 = vunpack.c.l.b16 %v2180
    %v4554 = vunpack.c.h.b16 %v2180
    %v4555 = vunpack.c.l.b16 %v2181
    %v4556 = vunpack.c.h.b16 %v2181
    %v4557 = vunpack.c.l.b16 %v2182
    %v4558 = vunpack.c.h.b16 %v2182
    %v4559 = vunpack.c.l.b16 %v2183
    %v4560 = vunpack.c.h.b16 %v2183
    %v4561 = vunpack.c.l.b16 %v2184
    %v4562 = vunpack.c.h.b16 %v2184
    %v4563 = vunpack.c.l.b16 %v2185
    %v4564 = vunpack.c.h.b16 %v2185
    %v4565 = vunpack.c.l.b16 %v2186
    %v4566 = vunpack.c.h.b16 %v2186
    %v4567 = vunpack.c.l.b16 %v2187
    %v4568 = vunpack.c.h.b16 %v2187
    %v4569 = vunpack.c.l.b16 %v2188
    %v4570 = vunpack.c.h.b16 %v2188
    %v4571 = vunpack.c.l.b16 %v2189
    %v4572 = vunpack.c.h.b16 %v2189
    %v4573 = vunpack.c.l.b16 %v2190
    %v4574 = vunpack.c.h.b16 %v2190
    %v4575 = vunpack.c.l.b16 %v2191
    %v4576 = vunpack.c.h.b16 %v2191
    %v4577 = vunpack.c.l.b16 %v2192
    %v4578 = vunpack.c.h.b16 %v2192
    %v4579 = vunpack.c.l.b16 %v2193
    %v4580 = vunpack.c.h.b16 %v2193
    %v4581 = vunpack.c.l.b16 %v2194
    %v4582 = vunpack.c.h.b16 %v2194
    %v4583 = vunpack.c.l.b16 %v2195
    %v4584 = vunpack.c.h.b16 %v2195
    %v4585 = vunpack.c.l.b16 %v2196
    %v4586 = vunpack.c.h.b16 %v2196
    %v4587 = vunpack.c.l.b16 %v2197
    %v4588 = vunpack.c.h.b16 %v2197
    %v4589 = vunpack.c.l.b16 %v2198
    %v4590 = vunpack.c.h.b16 %v2198
    %v4591 = vunpack.c.l.b16 %v2199
    %v4592 = vunpack.c.h.b16 %v2199
    %v4593 = vunpack.c.l.b16 %v2200
    %v4594 = vunpack.c.h.b16 %v2200
    %v4595 = vunpack.c.l.b16 %v2201
    %v4596 = vunpack.c.h.b16 %v2201
    %v4597 = vunpack.c.l.b16 %v2202
    %v4598 = vunpack.c.h.b16 %v2202
    %v4599 = vunpack.c.l.b16 %v2203
    %v4600 = vunpack.c.h.b16 %v2203
    %v4601 = vunpack.c.l.b16 %v2204
    %v4602 = vunpack.c.h.b16 %v2204
    %v4603 = vunpack.c.l.b16 %v2205
    %v4604 = vunpack.c.h.b16 %v2205
    %v4605 = vunpack.c.l.b16 %v2206
    %v4606 = vunpack.c.h.b16 %v2206
    %v4607 = vunpack.c.l.b16 %v2207
    %v4608 = vunpack.c.h.b16 %v2207
    %v4609 = vunpack.c.l.b16 %v2208
    %v4610 = vunpack.c.h.b16 %v2208
    %v4611 = vunpack.c.l.b16 %v2209
    %v4612 = vunpack.c.h.b16 %v2209
    %v4613 = vunpack.c.l.b16 %v2210
    %v4614 = vunpack.c.h.b16 %v2210
    %v4615 = vunpack.c.l.b16 %v2211
    %v4616 = vunpack.c.h.b16 %v2211
    %v4617 = vunpack.c.l.b16 %v2212
    %v4618 = vunpack.c.h.b16 %v2212
    %v4619 = vunpack.c.l.b16 %v2213
    %v4620 = vunpack.c.h.b16 %v2213
    %v4621 = vunpack.c.l.b16 %v2214
    %v4622 = vunpack.c.h.b16 %v2214
    %v4623 = vunpack.c.l.b16 %v2215
    %v4624 = vunpack.c.h.b16 %v2215
    %v4625 = vunpack.c.l.b16 %v2216
    %v4626 = vunpack.c.h.b16 %v2216
    %v4627 = vunpack.c.l.b16 %v2217
    %v4628 = vunpack.c.h.b16 %v2217
    %v4629 = vunpack.c.l.b16 %v2218
    %v4630 = vunpack.c.h.b16 %v2218
    %v4631 = vunpack.c.l.b16 %v2219
    %v4632 = vunpack.c.h.b16 %v2219
    %v4633 = vunpack.c.l.b16 %v2220
    %v4634 = vunpack.c.h.b16 %v2220
    %v4635 = vunpack.c.l.b16 %v2221
    %v4636 = vunpack.c.h.b16 %v2221
    %v4637 = vunpack.c.l.b16 %v2222
    %v4638 = vunpack.c.h.b16 %v2222
    %v4639 = vunpack.c.l.b16 %v2223
    %v4640 = vunpack.c.h.b16 %v2223
    %v4641 = vunpack.c.l.b16 %v2224
    %v4642 = vunpack.c.h.b16 %v2224
    %v4643 = vunpack.c.l.b16 %v2225
    %v4644 = vunpack.c.h.b16 %v2225
    %v4645 = vunpack.c.l.b16 %v2226
    %v4646 = vunpack.c.h.b16 %v2226
    %v4647 = vunpack.c.l.b16 %v2227
    %v4648 = vunpack.c.h.b16 %v2227
    %v4649 = vunpack.c.l.b16 %v2228
    %v4650 = vunpack.c.h.b16 %v2228
    %v4651 = vunpack.c.l.b16 %v2229
    %v4652 = vunpack.c.h.b16 %v2229
    %v4653 = vunpack.c.l.b16 %v2230
    %v4654 = vunpack.c.h.b16 %v2230
    %v4655 = vunpack.c.l.b16 %v2231
    %v4656 = vunpack.c.h.b16 %v2231
    %v4657 = vunpack.c.l.b16 %v2232
    %v4658 = vunpack.c.h.b16 %v2232
    %v4659 = vunpack.c.l.b16 %v2233
    %v4660 = vunpack.c.h.b16 %v2233
    %v4661 = vunpack.c.l.b16 %v2234
    %v4662 = vunpack.c.h.b16 %v2234
    %v4663 = vunpack.c.l.b16 %v2235
    %v4664 = vunpack.c.h.b16 %v2235
    %v4665 = vunpack.c.l.b16 %v2236
    %v4666 = vunpack.c.h.b16 %v2236
    %v4667 = vunpack.c.l.b16 %v2237
    %v4668 = vunpack.c.h.b16 %v2237
    %v4669 = vunpack.c.l.b16 %v2238
    %v4670 = vunpack.c.h.b16 %v2238
    %v4671 = vunpack.c.l.b16 %v2239
    %v4672 = vunpack.c.h.b16 %v2239
    %v4673 = vunpack.c.l.b16 %v2240
    %v4674 = vunpack.c.h.b16 %v2240
    %v4675 = vunpack.c.l.b16 %v2241
    %v4676 = vunpack.c.h.b16 %v2241
    %v4677 = vunpack.c.l.b16 %v2242
    %v4678 = vunpack.c.h.b16 %v2242
    %v4679 = vunpack.c.l.b16 %v2243
    %v4680 = vunpack.c.h.b16 %v2243
    %v4681 = vunpack.c.l.b16 %v2244
    %v4682 = vunpack.c.h.b16 %v2244
    %v4683 = vunpack.c.l.b16 %v2245
    %v4684 = vunpack.c.h.b16 %v2245
    %v4685 = vunpack.c.l.b16 %v2246
    %v4686 = vunpack.c.h.b16 %v2246
    %v4687 = vunpack.c.l.b16 %v2247
    %v4688 = vunpack.c.h.b16 %v2247
    %v4689 = vunpack.c.l.b16 %v2248
    %v4690 = vunpack.c.h.b16 %v2248
    %v4691 = vunpack.c.l.b16 %v2249
    %v4692 = vunpack.c.h.b16 %v2249
    %v4693 = vunpack.c.l.b16 %v2250
    %v4694 = vunpack.c.h.b16 %v2250
    %v4695 = vunpack.c.l.b16 %v2251
    %v4696 = vunpack.c.h.b16 %v2251
    %v4697 = vunpack.c.l.b16 %v2252
    %v4698 = vunpack.c.h.b16 %v2252
    %v4699 = vunpack.c.l.b16 %v2253
    %v4700 = vunpack.c.h.b16 %v2253
    %v4701 = vunpack.c.l.b16 %v2254
    %v4702 = vunpack.c.h.b16 %v2254
    %v4703 = vunpack.c.l.b16 %v2255
    %v4704 = vunpack.c.h.b16 %v2255
    %v4705 = vunpack.c.l.b16 %v2256
    %v4706 = vunpack.c.h.b16 %v2256
    %v4707 = vunpack.c.l.b16 %v2257
    %v4708 = vunpack.c.h.b16 %v2257
    %v4709 = vunpack.c.l.b16 %v2258
    %v4710 = vunpack.c.h.b16 %v2258
    %v4711 = vunpack.c.l.b16 %v2259
    %v4712 = vunpack.c.h.b16 %v2259
    %v4713 = vunpack.c.l.b16 %v2260
    %v4714 = vunpack.c.h.b16 %v2260
    %v4715 = vunpack.c.l.b16 %v2261
    %v4716 = vunpack.c.h.b16 %v2261
    %v4717 = vunpack.c.l.b16 %v2262
    %v4718 = vunpack.c.h.b16 %v2262
    %v4719 = vunpack.c.l.b16 %v2263
    %v4720 = vunpack.c.h.b16 %v2263
    %v4721 = vunpack.c.l.b16 %v2264
    %v4722 = vunpack.c.h.b16 %v2264
    %v4723 = vunpack.c.l.b16 %v2265
    %v4724 = vunpack.c.h.b16 %v2265
    %v4725 = vunpack.c.l.b16 %v2266
    %v4726 = vunpack.c.h.b16 %v2266
    %v4727 = vunpack.c.l.b16 %v2267
    %v4728 = vunpack.c.h.b16 %v2267
    %v4729 = vunpack.c.l.b16 %v2268
    %v4730 = vunpack.c.h.b16 %v2268
    %v4731 = vunpack.c.l.b16 %v2269
    %v4732 = vunpack.c.h.b16 %v2269
    %v4733 = vunpack.c.l.b16 %v2270
    %v4734 = vunpack.c.h.b16 %v2270
    %v4735 = vunpack.c.l.b16 %v2271
    %v4736 = vunpack.c.h.b16 %v2271
    %v4737 = vunpack.c.l.b16 %v2272
    %v4738 = vunpack.c.h.b16 %v2272
    %v4739 = vunpack.c.l.b16 %v2273
    %v4740 = vunpack.c.h.b16 %v2273
    %v4741 = vunpack.c.l.b16 %v2274
    %v4742 = vunpack.c.h.b16 %v2274
    %v4743 = vunpack.c.l.b16 %v2275
    %v4744 = vunpack.c.h.b16 %v2275
    %v4745 = vunpack.c.l.b16 %v2276
    %v4746 = vunpack.c.h.b16 %v2276
    %v4747 = vunpack.c.l.b16 %v2277
    %v4748 = vunpack.c.h.b16 %v2277
    %v4749 = vunpack.c.l.b16 %v2278
    %v4750 = vunpack.c.h.b16 %v2278
    %v4751 = vunpack.c.l.b16 %v2279
    %v4752 = vunpack.c.h.b16 %v2279
    %v4753 = vunpack.c.l.b16 %v2280
    %v4754 = vunpack.c.h.b16 %v2280
    %v4755 = vunpack.c.l.b16 %v2281
    %v4756 = vunpack.c.h.b16 %v2281
    %v4757 = vunpack.c.l.b16 %v2282
    %v4758 = vunpack.c.h.b16 %v2282
    %v4759 = vunpack.c.l.b16 %v2283
    %v4760 = vunpack.c.h.b16 %v2283
    %v4761 = vunpack.c.l.b16 %v2284
    %v4762 = vunpack.c.h.b16 %v2284
    %v4763 = vunpack.c.l.b16 %v2285
    %v4764 = vunpack.c.h.b16 %v2285
    %v4765 = vunpack.c.l.b16 %v2286
    %v4766 = vunpack.c.h.b16 %v2286
    %v4767 = vunpack.c.l.b16 %v2287
    %v4768 = vunpack.c.h.b16 %v2287
    %v4769 = vunpack.c.l.b16 %v2288
    %v4770 = vunpack.c.h.b16 %v2288
    %v4771 = vunpack.c.l.b16 %v2289
    %v4772 = vunpack.c.h.b16 %v2289
    %v4773 = vunpack.c.l.b16 %v2290
    %v4774 = vunpack.c.h.b16 %v2290
    %v4775 = vunpack.c.l.b16 %v2291
    %v4776 = vunpack.c.h.b16 %v2291
    %v4777 = vunpack.c.l.b16 %v2292
    %v4778 = vunpack.c.h.b16 %v2292
    %v4779 = vunpack.c.l.b16 %v2293
    %v4780 = vunpack.c.h.b16 %v2293
    %v4781 = vunpack.c.l.b16 %v2294
    %v4782 = vunpack.c.h.b16 %v2294
    %v4783 = vunpack.c.l.b16 %v2295
    %v4784 = vunpack.c.h.b16 %v2295
    %v4785 = vunpack.c.l.b16 %v2296
    %v4786 = vunpack.c.h.b16 %v2296
    %v4787 = vunpack.c.l.b16 %v2297
    %v4788 = vunpack.c.h.b16 %v2297
    %v4789 = vunpack.c.l.b16 %v2298
    %v4790 = vunpack.c.h.b16 %v2298
    %v4791 = vunpack.c.l.b16 %v2299
    %v4792 = vunpack.c.h.b16 %v2299
    %v4793 = vunpack.c.l.b16 %v2300
    %v4794 = vunpack.c.h.b16 %v2300
    %v4795 = vunpack.c.l.b16 %v2301
    %v4796 = vunpack.c.h.b16 %v2301
    %v4797 = vunpack.c.l.b16 %v2302
    %v4798 = vunpack.c.h.b16 %v2302
    %v4799 = vunpack.c.l.b16 %v2303
    %v4800 = vunpack.c.h.b16 %v2303
    %v4801 = vunpack.c.l.b16 %v2304
    %v4802 = vunpack.c.h.b16 %v2304
    %v4803 = vunpack.c.l.b16 %v2305
    %v4804 = vunpack.c.h.b16 %v2305
    %v4805 = vunpack.c.l.b16 %v2306
    %v4806 = vunpack.c.h.b16 %v2306
    %v4807 = vunpack.c.l.b16 %v2307
    %v4808 = vunpack.c.h.b16 %v2307
    %v4809 = vunpack.c.l.b16 %v2308
    %v4810 = vunpack.c.h.b16 %v2308
    %v4811 = vunpack.c.l.b16 %v2309
    %v4812 = vunpack.c.h.b16 %v2309
    %v4813 = vunpack.c.l.b16 %v2310
    %v4814 = vunpack.c.h.b16 %v2310
    %v4815 = vunpack.c.l.b16 %v2311
    %v4816 = vunpack.c.h.b16 %v2311
    %v4817 = vunpack.c.l.b16 %v2312
    %v4818 = vunpack.c.h.b16 %v2312
    %v4819 = vunpack.c.l.b16 %v2313
    %v4820 = vunpack.c.h.b16 %v2313
    %v4821 = vunpack.c.l.b16 %v2314
    %v4822 = vunpack.c.h.b16 %v2314
    %v4823 = vunpack.c.l.b16 %v2315
    %v4824 = vunpack.c.h.b16 %v2315
    %v4825 = vunpack.c.l.b16 %v2316
    %v4826 = vunpack.c.h.b16 %v2316
    %v4827 = vunpack.c.l.b16 %v2317
    %v4828 = vunpack.c.h.b16 %v2317
    %v4829 = vunpack.c.l.b16 %v2318
    %v4830 = vunpack.c.h.b16 %v2318
    %v4831 = vunpack.c.l.b16 %v2319
    %v4832 = vunpack.c.h.b16 %v2319
    %v4833 = vunpack.c.l.b16 %v2320
    %v4834 = vunpack.c.h.b16 %v2320
    %v4835 = vunpack.c.l.b16 %v2321
    %v4836 = vunpack.c.h.b16 %v2321
    %v4837 = vunpack.c.l.b16 %v2322
    %v4838 = vunpack.c.h.b16 %v2322
    %v4839 = vunpack.c.l.b16 %v2323
    %v4840 = vunpack.c.h.b16 %v2323
    %v4841 = vunpack.c.l.b16 %v2324
    %v4842 = vunpack.c.h.b16 %v2324
    %v4843 = vunpack.c.l.b16 %v2325
    %v4844 = vunpack.c.h.b16 %v2325
    %v4845 = vunpack.c.l.b16 %v2326
    %v4846 = vunpack.c.h.b16 %v2326
    %v4847 = vunpack.c.l.b16 %v2327
    %v4848 = vunpack.c.h.b16 %v2327
    %v4849 = vunpack.c.l.b16 %v2328
    %v4850 = vunpack.c.h.b16 %v2328
    %v4851 = vunpack.c.l.b16 %v2329
    %v4852 = vunpack.c.h.b16 %v2329
    %v4853 = vunpack.c.l.b16 %v2330
    %v4854 = vunpack.c.h.b16 %v2330
    %v4855 = vunpack.c.l.b16 %v2331
    %v4856 = vunpack.c.h.b16 %v2331
    %v4857 = vunpack.c.l.b16 %v2332
    %v4858 = vunpack.c.h.b16 %v2332
    %v4859 = vunpack.c.l.b16 %v2333
    %v4860 = vunpack.c.h.b16 %v2333
    %v4861 = vunpack.c.l.b16 %v2334
    %v4862 = vunpack.c.h.b16 %v2334
    %v4863 = vunpack.c.l.b16 %v2335
    %v4864 = vunpack.c.h.b16 %v2335
    %v4865 = vunpack.c.l.b16 %v2336
    %v4866 = vunpack.c.h.b16 %v2336
    %v4867 = vunpack.c.l.b16 %v2337
    %v4868 = vunpack.c.h.b16 %v2337
    %v4869 = vunpack.c.l.b16 %v2338
    %v4870 = vunpack.c.h.b16 %v2338
    %v4871 = vunpack.c.l.b16 %v2339
    %v4872 = vunpack.c.h.b16 %v2339
    %v4873 = vunpack.c.l.b16 %v2340
    %v4874 = vunpack.c.h.b16 %v2340
    %v4875 = vunpack.c.l.b16 %v2341
    %v4876 = vunpack.c.h.b16 %v2341
    %v4877 = vunpack.c.l.b16 %v2342
    %v4878 = vunpack.c.h.b16 %v2342
    %v4879 = vunpack.c.l.b16 %v2343
    %v4880 = vunpack.c.h.b16 %v2343
    %v4881 = vunpack.c.l.b16 %v2344
    %v4882 = vunpack.c.h.b16 %v2344
    %v4883 = vunpack.c.l.b16 %v2345
    %v4884 = vunpack.c.h.b16 %v2345
    %v4885 = vunpack.c.l.b16 %v2346
    %v4886 = vunpack.c.h.b16 %v2346
    %v4887 = vunpack.c.l.b16 %v2347
    %v4888 = vunpack.c.h.b16 %v2347
    %v4889 = vunpack.c.l.b16 %v2348
    %v4890 = vunpack.c.h.b16 %v2348
    %v4891 = vunpack.c.l.b16 %v2349
    %v4892 = vunpack.c.h.b16 %v2349
    %v4893 = vunpack.c.l.b16 %v2350
    %v4894 = vunpack.c.h.b16 %v2350
    %v4895 = vunpack.c.l.b16 %v2351
    %v4896 = vunpack.c.h.b16 %v2351
    %v4897 = vunpack.c.l.b16 %v2352
    %v4898 = vunpack.c.h.b16 %v2352
    %v4899 = vunpack.c.l.b16 %v2353
    %v4900 = vunpack.c.h.b16 %v2353
    %v4901 = vunpack.c.l.b16 %v2354
    %v4902 = vunpack.c.h.b16 %v2354
    %v4903 = vunpack.c.l.b16 %v2355
    %v4904 = vunpack.c.h.b16 %v2355
    %v4905 = vunpack.c.l.b16 %v2356
    %v4906 = vunpack.c.h.b16 %v2356
    %v4907 = vunpack.c.l.b16 %v2357
    %v4908 = vunpack.c.h.b16 %v2357
    %v4909 = vunpack.c.l.b16 %v2358
    %v4910 = vunpack.c.h.b16 %v2358
    %v4911 = vunpack.c.l.b16 %v2359
    %v4912 = vunpack.c.h.b16 %v2359
    %v4913 = vunpack.c.l.b16 %v2360
    %v4914 = vunpack.c.h.b16 %v2360
    %v4915 = vunpack.c.l.b16 %v2361
    %v4916 = vunpack.c.h.b16 %v2361
    %v4917 = vunpack.c.l.b16 %v2362
    %v4918 = vunpack.c.h.b16 %v2362
    %v4919 = vunpack.c.l.b16 %v2363
    %v4920 = vunpack.c.h.b16 %v2363
    %v4921 = vunpack.c.l.b16 %v2364
    %v4922 = vunpack.c.h.b16 %v2364
    %v4923 = vunpack.c.l.b16 %v2365
    %v4924 = vunpack.c.h.b16 %v2365
    %v4925 = vunpack.c.l.b16 %v2366
    %v4926 = vunpack.c.h.b16 %v2366
    %v4927 = vunpack.c.l.b16 %v2367
    %v4928 = vunpack.c.h.b16 %v2367
    %v4929 = vunpack.c.l.b16 %v2368
    %v4930 = vunpack.c.h.b16 %v2368
    %v4931 = vunpack.c.l.b16 %v2369
    %v4932 = vunpack.c.h.b16 %v2369
    %v4933 = vunpack.c.l.b16 %v2370
    %v4934 = vunpack.c.h.b16 %v2370
    %v4935 = vunpack.c.l.b16 %v2371
    %v4936 = vunpack.c.h.b16 %v2371
    %v4937 = vunpack.c.l.b16 %v2372
    %v4938 = vunpack.c.h.b16 %v2372
    %v4939 = vunpack.c.l.b16 %v2373
    %v4940 = vunpack.c.h.b16 %v2373
    %v4941 = vunpack.c.l.b16 %v2374
    %v4942 = vunpack.c.h.b16 %v2374
    %v4943 = vunpack.c.l.b16 %v2375
    %v4944 = vunpack.c.h.b16 %v2375
    %v4945 = vunpack.c.l.b16 %v2376
    %v4946 = vunpack.c.h.b16 %v2376
    %v4947 = vunpack.c.l.b16 %v2377
    %v4948 = vunpack.c.h.b16 %v2377
    %v4949 = vunpack.c.l.b16 %v2378
    %v4950 = vunpack.c.h.b16 %v2378
    %v4951 = vunpack.c.l.b16 %v2379
    %v4952 = vunpack.c.h.b16 %v2379
    %v4953 = vunpack.c.l.b16 %v2380
    %v4954 = vunpack.c.h.b16 %v2380
    %v4955 = vunpack.c.l.b16 %v2381
    %v4956 = vunpack.c.h.b16 %v2381
    %v4957 = vunpack.c.l.b16 %v2382
    %v4958 = vunpack.c.h.b16 %v2382
    %v4959 = vunpack.c.l.b16 %v2383
    %v4960 = vunpack.c.h.b16 %v2383
    %v4961 = vunpack.c.l.b16 %v2384
    %v4962 = vunpack.c.h.b16 %v2384
    %v4963 = vunpack.c.l.b16 %v2385
    %v4964 = vunpack.c.h.b16 %v2385
    %v4965 = vunpack.c.l.b16 %v2386
    %v4966 = vunpack.c.h.b16 %v2386
    %v4967 = vunpack.c.l.b16 %v2387
    %v4968 = vunpack.c.h.b16 %v2387
    %v4969 = vunpack.c.l.b16 %v2388
    %v4970 = vunpack.c.h.b16 %v2388
    %v4971 = vunpack.c.l.b16 %v2389
    %v4972 = vunpack.c.h.b16 %v2389
    %v4973 = vunpack.c.l.b16 %v2390
    %v4974 = vunpack.c.h.b16 %v2390
    %v4975 = vunpack.c.l.b16 %v2391
    %v4976 = vunpack.c.h.b16 %v2391
    %v4977 = vunpack.c.l.b16 %v2392
    %v4978 = vunpack.c.h.b16 %v2392
    %v4979 = vunpack.c.l.b16 %v2393
    %v4980 = vunpack.c.h.b16 %v2393
    %v4981 = vunpack.c.l.b16 %v2394
    %v4982 = vunpack.c.h.b16 %v2394
    %v4983 = vunpack.c.l.b16 %v2395
    %v4984 = vunpack.c.h.b16 %v2395
    %v4985 = vunpack.c.l.b16 %v2396
    %v4986 = vunpack.c.h.b16 %v2396
    %v4987 = vunpack.c.l.b16 %v2397
    %v4988 = vunpack.c.h.b16 %v2397
    %v4989 = vunpack.c.l.b16 %v2398
    %v4990 = vunpack.c.h.b16 %v2398
    %v4991 = vunpack.c.l.b16 %v2399
    %v4992 = vunpack.c.h.b16 %v2399
    %v4993 = vunpack.c.l.b16 %v2400
    %v4994 = vunpack.c.h.b16 %v2400
    %v4995 = vunpack.c.l.b16 %v2401
    %v4996 = vunpack.c.h.b16 %v2401
    %v4997 = vunpack.c.l.b16 %v2402
    %v4998 = vunpack.c.h.b16 %v2402
    %v4999 = vunpack.c.l.b16 %v2403
    %v5000 = vunpack.c.h.b16 %v2403
    %v5001 = vunpack.c.l.b16 %v2404
    %v5002 = vunpack.c.h.b16 %v2404
    %v5003 = vunpack.c.l.b16 %v2405
    %v5004 = vunpack.c.h.b16 %v2405
    %v5005 = vunpack.c.l.b16 %v2406
    %v5006 = vunpack.c.h.b16 %v2406
    %v5007 = vunpack.c.l.b16 %v2407
    %v5008 = vunpack.c.h.b16 %v2407
    %v5009 = vunpack.c.l.b16 %v2408
    %v5010 = vunpack.c.h.b16 %v2408
    %v5011 = vunpack.c.l.b16 %v2409
    %v5012 = vunpack.c.h.b16 %v2409
    %v5013 = vunpack.c.l.b16 %v2410
    %v5014 = vunpack.c.h.b16 %v2410
    %v5015 = vunpack.c.l.b16 %v2411
    %v5016 = vunpack.c.h.b16 %v2411
    %v5017 = vunpack.c.l.b16 %v2412
    %v5018 = vunpack.c.h.b16 %v2412
    %v5019 = vunpack.c.l.b16 %v2413
    %v5020 = vunpack.c.h.b16 %v2413
    %v5021 = vunpack.c.l.b16 %v2414
    %v5022 = vunpack.c.h.b16 %v2414
    %v5023 = vunpack.c.l.b16 %v2415
    %v5024 = vunpack.c.h.b16 %v2415
    %v5025 = vunpack.c.l.b16 %v2416
    %v5026 = vunpack.c.h.b16 %v2416
    %v5027 = vunpack.c.l.b16 %v2417
    %v5028 = vunpack.c.h.b16 %v2417
    %v5029 = vunpack.c.l.b16 %v2418
    %v5030 = vunpack.c.h.b16 %v2418
    %v5031 = vunpack.c.l.b16 %v2419
    %v5032 = vunpack.c.h.b16 %v2419
    %v5033 = vunpack.c.l.b16 %v2420
    %v5034 = vunpack.c.h.b16 %v2420
    %v5035 = vunpack.c.l.b16 %v2421
    %v5036 = vunpack.c.h.b16 %v2421
    %v5037 = vunpack.c.l.b16 %v2422
    %v5038 = vunpack.c.h.b16 %v2422
    %v5039 = vunpack.c.l.b16 %v2423
    %v5040 = vunpack.c.h.b16 %v2423
    %v5041 = vunpack.c.l.b16 %v2424
    %v5042 = vunpack.c.h.b16 %v2424
    %v5043 = vunpack.c.l.b16 %v2425
    %v5044 = vunpack.c.h.b16 %v2425
    %v5045 = vunpack.c.l.b16 %v2426
    %v5046 = vunpack.c.h.b16 %v2426
    %v5047 = vunpack.c.l.b16 %v2427
    %v5048 = vunpack.c.h.b16 %v2427
    %v5049 = vunpack.c.l.b16 %v2428
    %v5050 = vunpack.c.h.b16 %v2428
    %v5051 = vunpack.c.l.b16 %v2429
    %v5052 = vunpack.c.h.b16 %v2429
    %v5053 = vunpack.c.l.b16 %v2430
    %v5054 = vunpack.c.h.b16 %v2430
    %v5055 = vunpack.c.l.b16 %v2431
    %v5056 = vunpack.c.h.b16 %v2431
    %v5057 = vunpack.c.l.b16 %v2432
    %v5058 = vunpack.c.h.b16 %v2432
    %v5059 = vunpack.c.l.b16 %v2433
    %v5060 = vunpack.c.h.b16 %v2433
    %v5061 = vunpack.c.l.b16 %v2434
    %v5062 = vunpack.c.h.b16 %v2434
    %v5063 = vunpack.c.l.b16 %v2435
    %v5064 = vunpack.c.h.b16 %v2435
    %v5065 = vunpack.c.l.b16 %v2436
    %v5066 = vunpack.c.h.b16 %v2436
    %v5067 = vunpack.c.l.b16 %v2437
    %v5068 = vunpack.c.h.b16 %v2437
    %v5069 = vunpack.c.l.b16 %v2438
    %v5070 = vunpack.c.h.b16 %v2438
    %v5071 = vunpack.c.l.b16 %v2439
    %v5072 = vunpack.c.h.b16 %v2439
    %v5073 = vunpack.c.l.b16 %v2440
    %v5074 = vunpack.c.h.b16 %v2440
    %v5075 = vunpack.c.l.b16 %v2441
    %v5076 = vunpack.c.h.b16 %v2441
    %v5077 = vunpack.c.l.b16 %v2442
    %v5078 = vunpack.c.h.b16 %v2442
    %v5079 = vunpack.c.l.b16 %v2443
    %v5080 = vunpack.c.h.b16 %v2443
    %v5081 = vunpack.c.l.b16 %v2444
    %v5082 = vunpack.c.h.b16 %v2444
    %v5083 = vunpack.c.l.b16 %v2445
    %v5084 = vunpack.c.h.b16 %v2445
    %v5085 = vunpack.c.l.b16 %v2446
    %v5086 = vunpack.c.h.b16 %v2446
    %v5087 = vunpack.c.l.b16 %v2447
    %v5088 = vunpack.c.h.b16 %v2447
    %v5089 = vunpack.c.l.b16 %v2448
    %v5090 = vunpack.c.h.b16 %v2448
    %v5091 = vunpack.c.l.b16 %v2449
    %v5092 = vunpack.c.h.b16 %v2449
    %v5093 = vunpack.c.l.b16 %v2450
    %v5094 = vunpack.c.h.b16 %v2450
    %v5095 = vunpack.c.l.b16 %v2451
    %v5096 = vunpack.c.h.b16 %v2451
    %v5097 = vunpack.c.l.b16 %v2452
    %v5098 = vunpack.c.h.b16 %v2452
    %v5099 = vunpack.c.l.b16 %v2453
    %v5100 = vunpack.c.h.b16 %v2453
    %v5101 = vunpack.c.l.b16 %v2454
    %v5102 = vunpack.c.h.b16 %v2454
    %v5103 = vunpack.c.l.b16 %v2455
    %v5104 = vunpack.c.h.b16 %v2455
    %v5105 = vunpack.c.l.b16 %v2456
    %v5106 = vunpack.c.h.b16 %v2456
    %v5107 = vunpack.c.l.b16 %v2457
    %v5108 = vunpack.c.h.b16 %v2457
    %v5109 = vunpack.c.l.b16 %v2458
    %v5110 = vunpack.c.h.b16 %v2458
    %v5111 = vunpack.c.l.b16 %v2459
    %v5112 = vunpack.c.h.b16 %v2459
    %v5113 = vunpack.c.l.b16 %v2460
    %v5114 = vunpack.c.h.b16 %v2460
    %v5115 = vunpack.c.l.b16 %v2461
    %v5116 = vunpack.c.h.b16 %v2461
    %v5117 = vunpack.c.l.b16 %v2462
    %v5118 = vunpack.c.h.b16 %v2462
    %v5119 = vunpack.c.l.b16 %v2463
    %v5120 = vunpack.c.h.b16 %v2463
    %v5121 = vunpack.c.l.b16 %v2464
    %v5122 = vunpack.c.h.b16 %v2464
    %v5123 = vunpack.c.l.b16 %v2465
    %v5124 = vunpack.c.h.b16 %v2465
    %v5125 = vunpack.c.l.b16 %v2466
    %v5126 = vunpack.c.h.b16 %v2466
    %v5127 = vunpack.c.l.b16 %v2467
    %v5128 = vunpack.c.h.b16 %v2467
    %v5129 = vunpack.c.l.b16 %v2468
    %v5130 = vunpack.c.h.b16 %v2468
    %v5131 = vunpack.c.l.b16 %v2469
    %v5132 = vunpack.c.h.b16 %v2469
    %v5133 = vunpack.c.l.b16 %v2470
    %v5134 = vunpack.c.h.b16 %v2470
    %v5135 = vunpack.c.l.b16 %v2471
    %v5136 = vunpack.c.h.b16 %v2471
    %v5137 = vunpack.c.l.b16 %v2472
    %v5138 = vunpack.c.h.b16 %v2472
    %v5139 = vunpack.c.l.b16 %v2473
    %v5140 = vunpack.c.h.b16 %v2473
    %v5141 = vunpack.c.l.b16 %v2474
    %v5142 = vunpack.c.h.b16 %v2474
    %v5143 = vunpack.c.l.b16 %v2475
    %v5144 = vunpack.c.h.b16 %v2475
    %v5145 = vunpack.c.l.b16 %v2476
    %v5146 = vunpack.c.h.b16 %v2476
    %v5147 = vunpack.c.l.b16 %v2477
    %v5148 = vunpack.c.h.b16 %v2477
    %v5149 = vunpack.c.l.b16 %v2478
    %v5150 = vunpack.c.h.b16 %v2478
    %v5151 = vunpack.c.l.b16 %v2479
    %v5152 = vunpack.c.h.b16 %v2479
    %v5153 = vunpack.c.l.b16 %v2480
    %v5154 = vunpack.c.h.b16 %v2480
    %v5155 = vunpack.c.l.b16 %v2481
    %v5156 = vunpack.c.h.b16 %v2481
    %v5157 = vunpack.c.l.b16 %v2482
    %v5158 = vunpack.c.h.b16 %v2482
    %v5159 = vunpack.c.l.b16 %v2483
    %v5160 = vunpack.c.h.b16 %v2483
    %v5161 = vunpack.c.l.b16 %v2484
    %v5162 = vunpack.c.h.b16 %v2484
    %v5163 = vunpack.c.l.b16 %v2485
    %v5164 = vunpack.c.h.b16 %v2485
    %v5165 = vunpack.c.l.b16 %v2486
    %v5166 = vunpack.c.h.b16 %v2486
    %v5167 = vunpack.c.l.b16 %v2487
    %v5168 = vunpack.c.h.b16 %v2487
    %v5169 = vunpack.c.l.b16 %v2488
    %v5170 = vunpack.c.h.b16 %v2488
    %v5171 = vunpack.c.l.b16 %v2489
    %v5172 = vunpack.c.h.b16 %v2489
    %v5173 = vunpack.c.l.b16 %v2490
    %v5174 = vunpack.c.h.b16 %v2490
    %v5175 = vunpack.c.l.b16 %v2491
    %v5176 = vunpack.c.h.b16 %v2491
    %v5177 = vunpack.c.l.b16 %v2492
    %v5178 = vunpack.c.h.b16 %v2492
    %v5179 = vunpack.c.l.b16 %v2493
    %v5180 = vunpack.c.h.b16 %v2493
    %v5181 = vunpack.c.l.b16 %v2494
    %v5182 = vunpack.c.h.b16 %v2494
    %v5183 = vunpack.c.l.b16 %v2495
    %v5184 = vunpack.c.h.b16 %v2495
    %v5185 = vunpack.c.l.b16 %v2496
    %v5186 = vunpack.c.h.b16 %v2496
    %v5187 = vunpack.c.l.b16 %v2497
    %v5188 = vunpack.c.h.b16 %v2497
    %v5189 = vunpack.c.l.b16 %v2498
    %v5190 = vunpack.c.h.b16 %v2498
    %v5191 = vunpack.c.l.b16 %v2499
    %v5192 = vunpack.c.h.b16 %v2499
    %v5193 = vunpack.c.l.b16 %v2500
    %v5194 = vunpack.c.h.b16 %v2500
    %v5195 = vunpack.c.l.b16 %v2501
    %v5196 = vunpack.c.h.b16 %v2501
    %v5197 = vunpack.c.l.b16 %v2502
    %v5198 = vunpack.c.h.b16 %v2502
    %v5199 = vunpack.c.l.b16 %v2503
    %v5200 = vunpack.c.h.b16 %v2503
    %v5201 = vunpack.c.l.b16 %v2504
    %v5202 = vunpack.c.h.b16 %v2504
    %v5203 = vunpack.c.l.b16 %v2505
    %v5204 = vunpack.c.h.b16 %v2505
    %v5205 = vunpack.c.l.b16 %v2506
    %v5206 = vunpack.c.h.b16 %v2506
    %v5207 = vunpack.c.l.b16 %v2507
    %v5208 = vunpack.c.h.b16 %v2507
    %v5209 = vunpack.c.l.b16 %v2508
    %v5210 = vunpack.c.h.b16 %v2508
    %v5211 = vunpack.c.l.b16 %v2509
    %v5212 = vunpack.c.h.b16 %v2509
    %v5213 = vunpack.c.l.b16 %v2510
    %v5214 = vunpack.c.h.b16 %v2510
    %v5215 = vunpack.c.l.b16 %v2511
    %v5216 = vunpack.c.h.b16 %v2511
    %v5217 = vunpack.c.l.b16 %v2512
    %v5218 = vunpack.c.h.b16 %v2512
    %v5219 = vunpack.c.l.b16 %v2513
    %v5220 = vunpack.c.h.b16 %v2513
    %v5221 = vunpack.c.l.b16 %v2514
    %v5222 = vunpack.c.h.b16 %v2514
    %v5223 = vunpack.c.l.b16 %v2515
    %v5224 = vunpack.c.h.b16 %v2515
    %v5225 = vunpack.c.l.b16 %v2516
    %v5226 = vunpack.c.h.b16 %v2516
    %v5227 = vunpack.c.l.b16 %v2517
    %v5228 = vunpack.c.h.b16 %v2517
    %v5229 = vunpack.c.l.b16 %v2518
    %v5230 = vunpack.c.h.b16 %v2518
    %v5231 = vunpack.c.l.b16 %v2519
    %v5232 = vunpack.c.h.b16 %v2519
    %v5233 = vunpack.c.l.b16 %v2520
    %v5234 = vunpack.c.h.b16 %v2520
    %v5235 = vunpack.c.l.b16 %v2521
    %v5236 = vunpack.c.h.b16 %v2521
    %v5237 = vunpack.c.l.b16 %v2522
    %v5238 = vunpack.c.h.b16 %v2522
    %v5239 = vunpack.c.l.b16 %v2523
    %v5240 = vunpack.c.h.b16 %v2523
    %v5241 = vunpack.c.l.b16 %v2524
    %v5242 = vunpack.c.h.b16 %v2524
    %v5243 = vunpack.c.l.b16 %v2525
    %v5244 = vunpack.c.h.b16 %v2525
    %v5245 = vunpack.c.l.b16 %v2526
    %v5246 = vunpack.c.h.b16 %v2526
    %v5247 = vunpack.c.l.b16 %v2527
    %v5248 = vunpack.c.h.b16 %v2527
    %v5249 = vunpack.c.l.b16 %v2528
    %v5250 = vunpack.c.h.b16 %v2528
    %v5251 = vunpack.c.l.b16 %v2529
    %v5252 = vunpack.c.h.b16 %v2529
    %v5253 = vunpack.c.l.b16 %v2530
    %v5254 = vunpack.c.h.b16 %v2530
    %v5255 = vunpack.c.l.b16 %v2531
    %v5256 = vunpack.c.h.b16 %v2531
    %v5257 = vunpack.c.l.b16 %v2532
    %v5258 = vunpack.c.h.b16 %v2532
    %v5259 = vunpack.c.l.b16 %v2533
    %v5260 = vunpack.c.h.b16 %v2533
    %v5261 = vunpack.c.l.b16 %v2534
    %v5262 = vunpack.c.h.b16 %v2534
    %v5263 = vunpack.c.l.b16 %v2535
    %v5264 = vunpack.c.h.b16 %v2535
    %v5265 = vunpack.c.l.b16 %v2536
    %v5266 = vunpack.c.h.b16 %v2536
    %v5267 = vunpack.c.l.b16 %v2537
    %v5268 = vunpack.c.h.b16 %v2537
    %v5269 = vunpack.c.l.b16 %v2538
    %v5270 = vunpack.c.h.b16 %v2538
    %v5271 = vunpack.c.l.b16 %v2539
    %v5272 = vunpack.c.h.b16 %v2539
    %v5273 = vunpack.c.l.b16 %v2540
    %v5274 = vunpack.c.h.b16 %v2540
    %v5275 = vunpack.c.l.b16 %v2541
    %v5276 = vunpack.c.h.b16 %v2541
    %v5277 = vunpack.c.l.b16 %v2542
    %v5278 = vunpack.c.h.b16 %v2542
    %v5279 = vunpack.c.l.b16 %v2543
    %v5280 = vunpack.c.h.b16 %v2543
    %v5281 = vunpack.c.l.b16 %v2544
    %v5282 = vunpack.c.h.b16 %v2544
    %v5283 = vunpack.c.l.b16 %v2545
    %v5284 = vunpack.c.h.b16 %v2545
    %v5285 = vunpack.c.l.b16 %v2546
    %v5286 = vunpack.c.h.b16 %v2546
    %v5287 = vunpack.c.l.b16 %v2547
    %v5288 = vunpack.c.h.b16 %v2547
    %v5289 = vunpack.c.l.b16 %v2548
    %v5290 = vunpack.c.h.b16 %v2548
    %v5291 = vunpack.c.l.b16 %v2549
    %v5292 = vunpack.c.h.b16 %v2549
    %v5293 = vunpack.c.l.b16 %v2550
    %v5294 = vunpack.c.h.b16 %v2550
    %v5295 = vunpack.c.l.b16 %v2551
    %v5296 = vunpack.c.h.b16 %v2551
    %v5297 = vunpack.c.l.b16 %v2552
    %v5298 = vunpack.c.h.b16 %v2552
    %v5299 = vunpack.c.l.b16 %v2553
    %v5300 = vunpack.c.h.b16 %v2553
    %v5301 = vunpack.c.l.b16 %v2554
    %v5302 = vunpack.c.h.b16 %v2554
    %v5303 = vunpack.c.l.b16 %v2555
    %v5304 = vunpack.c.h.b16 %v2555
    %v5305 = vunpack.c.l.b16 %v2556
    %v5306 = vunpack.c.h.b16 %v2556
    %v5307 = vunpack.c.l.b16 %v2557
    %v5308 = vunpack.c.h.b16 %v2557
    %v5309 = vunpack.c.l.b16 %v2558
    %v5310 = vunpack.c.h.b16 %v2558
    %v5311 = vunpack.c.l.b16 %v2559
    %v5312 = vunpack.c.h.b16 %v2559
    %v5313 = vunpack.c.l.b16 %v2560
    %v5314 = vunpack.c.h.b16 %v2560
    %v5315 = vunpack.c.l.b16 %v2561
    %v5316 = vunpack.c.h.b16 %v2561
    %v5317 = vunpack.c.l.b16 %v2562
    %v5318 = vunpack.c.h.b16 %v2562
    %v5319 = vunpack.c.l.b16 %v2563
    %v5320 = vunpack.c.h.b16 %v2563
    %v5321 = vunpack.c.l.b16 %v2564
    %v5322 = vunpack.c.h.b16 %v2564
    %v5323 = vunpack.c.l.b16 %v2565
    %v5324 = vunpack.c.h.b16 %v2565
    %v5325 = vunpack.c.l.b16 %v2566
    %v5326 = vunpack.c.h.b16 %v2566
    %v5327 = vunpack.c.l.b16 %v2567
    %v5328 = vunpack.c.h.b16 %v2567
    %v5329 = vunpack.c.l.b16 %v2568
    %v5330 = vunpack.c.h.b16 %v2568
    %v5331 = vunpack.c.l.b16 %v2569
    %v5332 = vunpack.c.h.b16 %v2569
    %v5333 = vunpack.c.l.b16 %v2570
    %v5334 = vunpack.c.h.b16 %v2570
    %v5335 = vunpack.c.l.b16 %v2571
    %v5336 = vunpack.c.h.b16 %v2571
    %v5337 = vunpack.c.l.b16 %v2572
    %v5338 = vunpack.c.h.b16 %v2572
    %v5339 = vunpack.c.l.b16 %v2573
    %v5340 = vunpack.c.h.b16 %v2573
    %v5341 = vunpack.c.l.b16 %v2574
    %v5342 = vunpack.c.h.b16 %v2574
    %v5343 = vunpack.c.l.b16 %v2575
    %v5344 = vunpack.c.h.b16 %v2575
    %v5345 = vunpack.c.l.b16 %v2576
    %v5346 = vunpack.c.h.b16 %v2576
    %v5347 = vunpack.c.l.b16 %v2577
    %v5348 = vunpack.c.h.b16 %v2577
    %v5349 = vunpack.c.l.b16 %v2578
    %v5350 = vunpack.c.h.b16 %v2578
    %v5351 = vunpack.c.l.b16 %v2579
    %v5352 = vunpack.c.h.b16 %v2579
    %v5353 = vunpack.c.l.b16 %v2580
    %v5354 = vunpack.c.h.b16 %v2580
    %v5355 = vunpack.c.l.b16 %v2581
    %v5356 = vunpack.c.h.b16 %v2581
    %v5357 = vunpack.c.l.b16 %v2582
    %v5358 = vunpack.c.h.b16 %v2582
    %v5359 = vunpack.c.l.b16 %v2583
    %v5360 = vunpack.c.h.b16 %v2583
    %v5361 = vunpack.c.l.b16 %v2584
    %v5362 = vunpack.c.h.b16 %v2584
    %v5363 = vunpack.c.l.b16 %v2585
    %v5364 = vunpack.c.h.b16 %v2585
    %v5365 = vunpack.c.l.b16 %v2586
    %v5366 = vunpack.c.h.b16 %v2586
    %v5367 = vunpack.c.l.b16 %v2587
    %v5368 = vunpack.c.h.b16 %v2587
    %v5369 = vunpack.c.l.b16 %v2588
    %v5370 = vunpack.c.h.b16 %v2588
    %v5371 = vunpack.c.l.b16 %v2589
    %v5372 = vunpack.c.h.b16 %v2589
    %v5373 = vunpack.c.l.b16 %v2590
    %v5374 = vunpack.c.h.b16 %v2590
    %v5375 = vunpack.c.l.b16 %v2591
    %v5376 = vunpack.c.h.b16 %v2591
    %v5377 = vunpack.c.l.b16 %v2592
    %v5378 = vunpack.c.h.b16 %v2592
    %v5379 = vunpack.c.l.b16 %v2593
    %v5380 = vunpack.c.h.b16 %v2593
    %v5381 = vunpack.c.l.b16 %v2594
    %v5382 = vunpack.c.h.b16 %v2594
    %v5383 = vunpack.c.l.b16 %v2595
    %v5384 = vunpack.c.h.b16 %v2595
    %v5385 = vunpack.c.l.b16 %v2596
    %v5386 = vunpack.c.h.b16 %v2596
    %v5387 = vunpack.c.l.b16 %v2597
    %v5388 = vunpack.c.h.b16 %v2597
    %v5389 = vunpack.c.l.b16 %v2598
    %v5390 = vunpack.c.h.b16 %v2598
    %v5391 = vunpack.c.l.b16 %v2599
    %v5392 = vunpack.c.h.b16 %v2599
    %v5393 = vunpack.c.l.b16 %v2600
    %v5394 = vunpack.c.h.b16 %v2600
    %v5395 = vunpack.c.l.b16 %v2601
    %v5396 = vunpack.c.h.b16 %v2601
    %v5397 = vunpack.c.l.b16 %v2602
    %v5398 = vunpack.c.h.b16 %v2602
    %v5399 = vunpack.c.l.b16 %v2603
    %v5400 = vunpack.c.h.b16 %v2603
    %v5401 = vunpack.c.l.b16 %v2604
    %v5402 = vunpack.c.h.b16 %v2604
    %v5403 = vunpack.c.l.b16 %v2605
    %v5404 = vunpack.c.h.b16 %v2605
    %v5405 = vunpack.c.l.b16 %v2606
    %v5406 = vunpack.c.h.b16 %v2606
    %v5407 = vunpack.c.l.b16 %v2607
    %v5408 = vunpack.c.h.b16 %v2607
    %v5409 = vunpack.c.l.b16 %v2608
    %v5410 = vunpack.c.h.b16 %v2608
    %v5411 = vunpack.c.l.b16 %v2609
    %v5412 = vunpack.c.h.b16 %v2609
    %v5413 = vunpack.c.l.b16 %v2610
    %v5414 = vunpack.c.h.b16 %v2610
    %v5415 = vunpack.c.l.b16 %v2611
    %v5416 = vunpack.c.h.b16 %v2611
    %v5417 = vunpack.c.l.b16 %v2612
    %v5418 = vunpack.c.h.b16 %v2612
    %v5419 = vunpack.c.l.b16 %v2613
    %v5420 = vunpack.c.h.b16 %v2613
    %v5421 = vunpack.c.l.b16 %v2614
    %v5422 = vunpack.c.h.b16 %v2614
    %v5423 = vunpack.c.l.b16 %v2615
    %v5424 = vunpack.c.h.b16 %v2615
    %v5425 = vunpack.c.l.b16 %v2616
    %v5426 = vunpack.c.h.b16 %v2616
    %v5427 = vunpack.c.l.b16 %v2617
    %v5428 = vunpack.c.h.b16 %v2617
    %v5429 = vunpack.c.l.b16 %v2618
    %v5430 = vunpack.c.h.b16 %v2618
    %v5431 = vunpack.c.l.b16 %v2619
    %v5432 = vunpack.c.h.b16 %v2619
    %v5433 = vunpack.c.l.b16 %v2620
    %v5434 = vunpack.c.h.b16 %v2620
    %v5435 = vunpack.c.l.b16 %v2621
    %v5436 = vunpack.c.h.b16 %v2621
    %v5437 = vunpack.c.l.b16 %v2622
    %v5438 = vunpack.c.h.b16 %v2622
    %v5439 = vunpack.c.l.b16 %v2623
    %v5440 = vunpack.c.h.b16 %v2623
    %v5441 = vunpack.c.l.b16 %v2624
    %v5442 = vunpack.c.h.b16 %v2624
    %v5443 = vunpack.c.l.b16 %v2625
    %v5444 = vunpack.c.h.b16 %v2625
    %v5445 = vunpack.c.l.b16 %v2626
    %v5446 = vunpack.c.h.b16 %v2626
    %v5447 = vunpack.c.l.b16 %v2627
    %v5448 = vunpack.c.h.b16 %v2627
    %v5449 = vunpack.c.l.b16 %v2628
    %v5450 = vunpack.c.h.b16 %v2628
    %v5451 = vunpack.c.l.b16 %v2629
    %v5452 = vunpack.c.h.b16 %v2629
    %v5453 = vunpack.c.l.b16 %v2630
    %v5454 = vunpack.c.h.b16 %v2630
    %v5455 = vunpack.c.l.b16 %v2631
    %v5456 = vunpack.c.h.b16 %v2631
    %v5457 = vunpack.c.l.b16 %v2632
    %v5458 = vunpack.c.h.b16 %v2632
    %v5459 = vunpack.c.l.b16 %v2633
    %v5460 = vunpack.c.h.b16 %v2633
    %v5461 = vunpack.c.l.b16 %v2634
    %v5462 = vunpack.c.h.b16 %v2634
    %v5463 = vunpack.c.l.b16 %v2635
    %v5464 = vunpack.c.h.b16 %v2635
    %v5465 = vunpack.c.l.b16 %v2636
    %v5466 = vunpack.c.h.b16 %v2636
    %v5467 = vunpack.c.l.b16 %v2637
    %v5468 = vunpack.c.h.b16 %v2637
    %v5469 = vunpack.c.l.b16 %v2638
    %v5470 = vunpack.c.h.b16 %v2638
    %v5471 = vunpack.c.l.b16 %v2639
    %v5472 = vunpack.c.h.b16 %v2639
    %v5473 = vunpack.c.l.b16 %v2640
    %v5474 = vunpack.c.h.b16 %v2640
    %v5475 = vunpack.c.l.b16 %v2641
    %v5476 = vunpack.c.h.b16 %v2641
    %v5477 = vunpack.c.l.b16 %v2642
    %v5478 = vunpack.c.h.b16 %v2642
    %v5479 = vunpack.c.l.b16 %v2643
    %v5480 = vunpack.c.h.b16 %v2643
    %v5481 = vunpack.c.l.b16 %v2644
    %v5482 = vunpack.c.h.b16 %v2644
    %v5483 = vunpack.c.l.b16 %v2645
    %v5484 = vunpack.c.h.b16 %v2645
    %v5485 = vunpack.c.l.b16 %v2646
    %v5486 = vunpack.c.h.b16 %v2646
    %v5487 = vunpack.c.l.b16 %v2647
    %v5488 = vunpack.c.h.b16 %v2647
    %v5489 = vunpack.c.l.b16 %v2648
    %v5490 = vunpack.c.h.b16 %v2648
    %v5491 = vunpack.c.l.b16 %v2649
    %v5492 = vunpack.c.h.b16 %v2649
    %v5493 = vunpack.c.l.b16 %v2650
    %v5494 = vunpack.c.h.b16 %v2650
    %v5495 = vunpack.c.l.b16 %v2651
    %v5496 = vunpack.c.h.b16 %v2651
    %v5497 = vunpack.c.l.b16 %v2652
    %v5498 = vunpack.c.h.b16 %v2652
    %v5499 = vunpack.c.l.b16 %v2653
    %v5500 = vunpack.c.h.b16 %v2653
    %v5501 = vunpack.c.l.b16 %v2654
    %v5502 = vunpack.c.h.b16 %v2654
    %v5503 = vunpack.c.l.b16 %v2655
    %v5504 = vunpack.c.h.b16 %v2655
    %v5505 = vunpack.c.l.b16 %v2656
    %v5506 = vunpack.c.h.b16 %v2656
    %v5507 = vunpack.c.l.b16 %v2657
    %v5508 = vunpack.c.h.b16 %v2657
    %v5509 = vunpack.c.l.b16 %v2658
    %v5510 = vunpack.c.h.b16 %v2658
    %v5511 = vunpack.c.l.b16 %v2659
    %v5512 = vunpack.c.h.b16 %v2659
    %v5513 = vunpack.c.l.b16 %v2660
    %v5514 = vunpack.c.h.b16 %v2660
    %v5515 = vunpack.c.l.b16 %v2661
    %v5516 = vunpack.c.h.b16 %v2661
    %v5517 = vunpack.c.l.b16 %v2662
    %v5518 = vunpack.c.h.b16 %v2662
    %v5519 = vunpack.c.l.b16 %v2663
    %v5520 = vunpack.c.h.b16 %v2663
    %v5521 = vunpack.c.l.b16 %v2664
    %v5522 = vunpack.c.h.b16 %v2664
    %v5523 = vunpack.c.l.b16 %v2665
    %v5524 = vunpack.c.h.b16 %v2665
    %v5525 = vunpack.c.l.b16 %v2666
    %v5526 = vunpack.c.h.b16 %v2666
    %v5527 = vunpack.c.l.b16 %v2667
    %v5528 = vunpack.c.h.b16 %v2667
    %v5529 = vunpack.c.l.b16 %v2668
    %v5530 = vunpack.c.h.b16 %v2668
    %v5531 = vunpack.c.l.b16 %v2669
    %v5532 = vunpack.c.h.b16 %v2669
    %v5533 = vunpack.c.l.b16 %v2670
    %v5534 = vunpack.c.h.b16 %v2670
    %v5535 = vunpack.c.l.b16 %v2671
    %v5536 = vunpack.c.h.b16 %v2671
    %v5537 = vunpack.c.l.b16 %v2672
    %v5538 = vunpack.c.h.b16 %v2672
    %v5539 = vunpack.c.l.b16 %v2673
    %v5540 = vunpack.c.h.b16 %v2673
    %v5541 = vunpack.c.l.b16 %v2674
    %v5542 = vunpack.c.h.b16 %v2674
    %v5543 = vunpack.c.l.b16 %v2675
    %v5544 = vunpack.c.h.b16 %v2675
    %v5545 = vunpack.c.l.b16 %v2676
    %v5546 = vunpack.c.h.b16 %v2676
    %v5547 = vunpack.c.l.b16 %v2677
    %v5548 = vunpack.c.h.b16 %v2677
    %v5549 = vunpack.c.l.b16 %v2678
    %v5550 = vunpack.c.h.b16 %v2678
    %v5551 = vunpack.c.l.b16 %v2679
    %v5552 = vunpack.c.h.b16 %v2679
    %v5553 = vunpack.c.l.b16 %v2680
    %v5554 = vunpack.c.h.b16 %v2680
    %v5555 = vunpack.c.l.b16 %v2681
    %v5556 = vunpack.c.h.b16 %v2681
    %v5557 = vunpack.c.l.b16 %v2682
    %v5558 = vunpack.c.h.b16 %v2682
    %v5559 = vunpack.c.l.b16 %v2683
    %v5560 = vunpack.c.h.b16 %v2683
    %v5561 = vunpack.c.l.b16 %v2684
    %v5562 = vunpack.c.h.b16 %v2684
    %v5563 = vunpack.c.l.b16 %v2685
    %v5564 = vunpack.c.h.b16 %v2685
    %v5565 = vunpack.c.l.b16 %v2686
    %v5566 = vunpack.c.h.b16 %v2686
    %v5567 = vunpack.c.l.b16 %v2687
    %v5568 = vunpack.c.h.b16 %v2687
    %v5569 = vunpack.c.l.b16 %v2688
    %v5570 = vunpack.c.h.b16 %v2688
    %v5571 = vunpack.c.l.b16 %v2689
    %v5572 = vunpack.c.h.b16 %v2689
    %v5573 = vunpack.c.l.b16 %v2690
    %v5574 = vunpack.c.h.b16 %v2690
    %v5575 = vunpack.c.l.b16 %v2691
    %v5576 = vunpack.c.h.b16 %v2691
    %v5577 = vunpack.c.l.b16 %v2692
    %v5578 = vunpack.c.h.b16 %v2692
    %v5579 = vunpack.c.l.b16 %v2693
    %v5580 = vunpack.c.h.b16 %v2693
    %v5581 = vunpack.c.l.b16 %v2694
    %v5582 = vunpack.c.h.b16 %v2694
    %v5583 = vunpack.c.l.b16 %v2695
    %v5584 = vunpack.c.h.b16 %v2695
    %v5585 = vunpack.c.l.b16 %v2696
    %v5586 = vunpack.c.h.b16 %v2696
    %v5587 = vunpack.c.l.b16 %v2697
    %v5588 = vunpack.c.h.b16 %v2697
    %v5589 = vunpack.c.l.b16 %v2698
    %v5590 = vunpack.c.h.b16 %v2698
    %v5591 = vunpack.c.l.b16 %v2699
    %v5592 = vunpack.c.h.b16 %v2699
    %v5593 = vunpack.c.l.b16 %v2700
    %v5594 = vunpack.c.h.b16 %v2700
    %v5595 = vunpack.c.l.b16 %v2701
    %v5596 = vunpack.c.h.b16 %v2701
    %v5597 = vunpack.c.l.b16 %v2702
    %v5598 = vunpack.c.h.b16 %v2702
    %v5599 = vunpack.c.l.b16 %v2703
    %v5600 = vunpack.c.h.b16 %v2703
    %v5601 = vunpack.c.l.b16 %v2704
    %v5602 = vunpack.c.h.b16 %v2704
    %v5603 = vunpack.c.l.b16 %v2705
    %v5604 = vunpack.c.h.b16 %v2705
    %v5605 = vunpack.c.l.b16 %v2706
    %v5606 = vunpack.c.h.b16 %v2706
    %v5607 = vunpack.c.l.b16 %v2707
    %v5608 = vunpack.c.h.b16 %v2707
    %v5609 = vunpack.c.l.b16 %v2708
    %v5610 = vunpack.c.h.b16 %v2708
    %v5611 = vunpack.c.l.b16 %v2709
    %v5612 = vunpack.c.h.b16 %v2709
    %v5613 = vunpack.c.l.b16 %v2710
    %v5614 = vunpack.c.h.b16 %v2710
    %v5615 = vunpack.c.l.b16 %v2711
    %v5616 = vunpack.c.h.b16 %v2711
    %v5617 = vunpack.c.l.b16 %v2712
    %v5618 = vunpack.c.h.b16 %v2712
    %v5619 = vunpack.c.l.b16 %v2713
    %v5620 = vunpack.c.h.b16 %v2713
    %v5621 = vunpack.c.l.b16 %v2714
    %v5622 = vunpack.c.h.b16 %v2714
    %v5623 = vunpack.c.l.b16 %v2715
    %v5624 = vunpack.c.h.b16 %v2715
    %v5625 = vunpack.c.l.b16 %v2716
    %v5626 = vunpack.c.h.b16 %v2716
    %v5627 = vunpack.c.l.b16 %v2717
    %v5628 = vunpack.c.h.b16 %v2717
    %v5629 = vunpack.c.l.b16 %v2718
    %v5630 = vunpack.c.h.b16 %v2718
    %v5631 = vunpack.c.l.b16 %v2719
    %v5632 = vunpack.c.h.b16 %v2719
    %v5633 = vunpack.c.l.b16 %v2720
    %v5634 = vunpack.c.h.b16 %v2720
    %v5635 = vunpack.c.l.b16 %v2721
    %v5636 = vunpack.c.h.b16 %v2721
    %v5637 = vunpack.c.l.b16 %v2722
    %v5638 = vunpack.c.h.b16 %v2722
    %v5639 = vunpack.c.l.b16 %v2723
    %v5640 = vunpack.c.h.b16 %v2723
    %v5641 = vunpack.c.l.b16 %v2724
    %v5642 = vunpack.c.h.b16 %v2724
    %v5643 = vunpack.c.l.b16 %v2725
    %v5644 = vunpack.c.h.b16 %v2725
    %v5645 = vunpack.c.l.b16 %v2726
    %v5646 = vunpack.c.h.b16 %v2726
    %v5647 = vunpack.c.l.b16 %v2727
    %v5648 = vunpack.c.h.b16 %v2727
    %v5649 = vunpack.c.l.b16 %v2728
    %v5650 = vunpack.c.h.b16 %v2728
    %v5651 = vunpack.c.l.b16 %v2729
    %v5652 = vunpack.c.h.b16 %v2729
    %v5653 = vunpack.c.l.b16 %v2730
    %v5654 = vunpack.c.h.b16 %v2730
    %v5655 = vunpack.c.l.b16 %v2731
    %v5656 = vunpack.c.h.b16 %v2731
    %v5657 = vunpack.c.l.b16 %v2732
    %v5658 = vunpack.c.h.b16 %v2732
    %v5659 = vunpack.c.l.b16 %v2733
    %v5660 = vunpack.c.h.b16 %v2733
    %v5661 = vunpack.c.l.b16 %v2734
    %v5662 = vunpack.c.h.b16 %v2734
    %v5663 = vunpack.c.l.b16 %v2735
    %v5664 = vunpack.c.h.b16 %v2735
    %v5665 = vunpack.c.l.b16 %v2736
    %v5666 = vunpack.c.h.b16 %v2736
    %v5667 = vunpack.c.l.b16 %v2737
    %v5668 = vunpack.c.h.b16 %v2737
    %v5669 = vunpack.c.l.b16 %v2738
    %v5670 = vunpack.c.h.b16 %v2738
    %v5671 = vunpack.c.l.b16 %v2739
    %v5672 = vunpack.c.h.b16 %v2739
    %v5673 = vunpack.c.l.b16 %v2740
    %v5674 = vunpack.c.h.b16 %v2740
    %v5675 = vunpack.c.l.b16 %v2741
    %v5676 = vunpack.c.h.b16 %v2741
    %v5677 = vunpack.c.l.b16 %v2742
    %v5678 = vunpack.c.h.b16 %v2742
    %v5679 = vunpack.c.l.b16 %v2743
    %v5680 = vunpack.c.h.b16 %v2743
    %v5681 = vunpack.c.l.b16 %v2744
    %v5682 = vunpack.c.h.b16 %v2744
    %v5683 = vunpack.c.l.b16 %v2745
    %v5684 = vunpack.c.h.b16 %v2745
    %v5685 = vunpack.c.l.b16 %v2746
    %v5686 = vunpack.c.h.b16 %v2746
    %v5687 = vunpack.c.l.b16 %v2747
    %v5688 = vunpack.c.h.b16 %v2747
    %v5689 = vunpack.c.l.b16 %v2748
    %v5690 = vunpack.c.h.b16 %v2748
    %v5691 = vunpack.c.l.b16 %v2749
    %v5692 = vunpack.c.h.b16 %v2749
    %v5693 = vunpack.c.l.b16 %v2750
    %v5694 = vunpack.c.h.b16 %v2750
    %v5695 = vunpack.c.l.b16 %v2751
    %v5696 = vunpack.c.h.b16 %v2751
    %v5697 = vunpack.c.l.b16 %v2752
    %v5698 = vunpack.c.h.b16 %v2752
    %v5699 = vunpack.c.l.b16 %v2753
    %v5700 = vunpack.c.h.b16 %v2753
    %v5701 = vunpack.c.l.b16 %v2754
    %v5702 = vunpack.c.h.b16 %v2754
    %v5703 = vunpack.c.l.b16 %v2755
    %v5704 = vunpack.c.h.b16 %v2755
    %v5705 = vunpack.c.l.b16 %v2756
    %v5706 = vunpack.c.h.b16 %v2756
    %v5707 = vunpack.c.l.b16 %v2757
    %v5708 = vunpack.c.h.b16 %v2757
    %v5709 = vunpack.c.l.b16 %v2758
    %v5710 = vunpack.c.h.b16 %v2758
    %v5711 = vunpack.c.l.b16 %v2759
    %v5712 = vunpack.c.h.b16 %v2759
    %v5713 = vunpack.c.l.b16 %v2760
    %v5714 = vunpack.c.h.b16 %v2760
    %v5715 = vunpack.c.l.b16 %v2761
    %v5716 = vunpack.c.h.b16 %v2761
    %v5717 = vunpack.c.l.b16 %v2762
    %v5718 = vunpack.c.h.b16 %v2762
    %v5719 = vunpack.c.l.b16 %v2763
    %v5720 = vunpack.c.h.b16 %v2763
    %v5721 = vunpack.c.l.b16 %v2764
    %v5722 = vunpack.c.h.b16 %v2764
    %v5723 = vunpack.c.l.b16 %v2765
    %v5724 = vunpack.c.h.b16 %v2765
    %v5725 = vunpack.c.l.b16 %v2766
    %v5726 = vunpack.c.h.b16 %v2766
    %v5727 = vunpack.c.l.b16 %v2767
    %v5728 = vunpack.c.h.b16 %v2767
    %v5729 = vunpack.c.l.b16 %v2768
    %v5730 = vunpack.c.h.b16 %v2768
    %v5731 = vunpack.c.l.b16 %v2769
    %v5732 = vunpack.c.h.b16 %v2769
    %v5733 = vunpack.c.l.b16 %v2770
    %v5734 = vunpack.c.h.b16 %v2770
    %v5735 = vunpack.c.l.b16 %v2771
    %v5736 = vunpack.c.h.b16 %v2771
    %v5737 = vunpack.c.l.b16 %v2772
    %v5738 = vunpack.c.h.b16 %v2772
    %v5739 = vunpack.c.l.b16 %v2773
    %v5740 = vunpack.c.h.b16 %v2773
    %v5741 = vunpack.c.l.b16 %v2774
    %v5742 = vunpack.c.h.b16 %v2774
    %v5743 = vunpack.c.l.b16 %v2775
    %v5744 = vunpack.c.h.b16 %v2775
    %v5745 = vunpack.c.l.b16 %v2776
    %v5746 = vunpack.c.h.b16 %v2776
    %v5747 = vunpack.c.l.b16 %v2777
    %v5748 = vunpack.c.h.b16 %v2777
    %v5749 = vunpack.c.l.b16 %v2778
    %v5750 = vunpack.c.h.b16 %v2778
    %v5751 = vunpack.c.l.b16 %v2779
    %v5752 = vunpack.c.h.b16 %v2779
    %v5753 = vunpack.c.l.b16 %v2780
    %v5754 = vunpack.c.h.b16 %v2780
    %v5755 = vunpack.c.l.b16 %v2781
    %v5756 = vunpack.c.h.b16 %v2781
    %v5757 = vunpack.c.l.b16 %v2782
    %v5758 = vunpack.c.h.b16 %v2782
    %v5759 = vunpack.c.l.b16 %v2783
    %v5760 = vunpack.c.h.b16 %v2783
    %v5761 = vunpack.c.l.b16 %v2784
    %v5762 = vunpack.c.h.b16 %v2784
    %v5763 = vunpack.c.l.b16 %v2785
    %v5764 = vunpack.c.h.b16 %v2785
    %v5765 = vunpack.c.l.b16 %v2786
    %v5766 = vunpack.c.h.b16 %v2786
    %v5767 = vunpack.c.l.b16 %v2787
    %v5768 = vunpack.c.h.b16 %v2787
    %v5769 = vunpack.c.l.b16 %v2788
    %v5770 = vunpack.c.h.b16 %v2788
    %v5771 = vunpack.c.l.b16 %v2789
    %v5772 = vunpack.c.h.b16 %v2789
    %v5773 = vunpack.c.l.b16 %v2790
    %v5774 = vunpack.c.h.b16 %v2790
    %v5775 = vunpack.c.l.b16 %v2791
    %v5776 = vunpack.c.h.b16 %v2791
    %v5777 = vunpack.c.l.b16 %v2792
    %v5778 = vunpack.c.h.b16 %v2792
    %v5779 = vunpack.c.l.b16 %v2793
    %v5780 = vunpack.c.h.b16 %v2793
    %v5781 = vunpack.c.l.b16 %v2794
    %v5782 = vunpack.c.h.b16 %v2794
    %v5783 = vunpack.c.l.b16 %v2795
    %v5784 = vunpack.c.h.b16 %v2795
    %v5785 = vunpack.c.l.b16 %v2796
    %v5786 = vunpack.c.h.b16 %v2796
    %v5787 = vunpack.c.l.b16 %v2797
    %v5788 = vunpack.c.h.b16 %v2797
    %v5789 = vunpack.c.l.b16 %v2798
    %v5790 = vunpack.c.h.b16 %v2798
    %v5791 = vunpack.c.l.b16 %v2799
    %v5792 = vunpack.c.h.b16 %v2799
    %v5793 = vunpack.c.l.b16 %v2800
    %v5794 = vunpack.c.h.b16 %v2800
    %v5795 = vunpack.c.l.b16 %v2801
    %v5796 = vunpack.c.h.b16 %v2801
    %v5797 = vunpack.c.l.b16 %v2802
    %v5798 = vunpack.c.h.b16 %v2802
    %v5799 = vunpack.c.l.b16 %v2803
    %v5800 = vunpack.c.h.b16 %v2803
    %v5801 = vunpack.c.l.b16 %v2804
    %v5802 = vunpack.c.h.b16 %v2804
    %v5803 = vunpack.c.l.b16 %v2805
    %v5804 = vunpack.c.h.b16 %v2805
    %v5805 = vunpack.c.l.b16 %v2806
    %v5806 = vunpack.c.h.b16 %v2806
    %v5807 = vunpack.c.l.b16 %v2807
    %v5808 = vunpack.c.h.b16 %v2807
    %v5809 = vunpack.c.l.b16 %v2808
    %v5810 = vunpack.c.h.b16 %v2808
    %v5811 = vunpack.c.l.b16 %v2809
    %v5812 = vunpack.c.h.b16 %v2809
    %v5813 = vunpack.c.l.b16 %v2810
    %v5814 = vunpack.c.h.b16 %v2810
    %v5815 = vunpack.c.l.b16 %v2811
    %v5816 = vunpack.c.h.b16 %v2811
    %v5817 = vunpack.c.l.b16 %v2812
    %v5818 = vunpack.c.h.b16 %v2812
    %v5819 = vunpack.c.l.b16 %v2813
    %v5820 = vunpack.c.h.b16 %v2813
    %v5821 = vunpack.c.l.b16 %v2814
    %v5822 = vunpack.c.h.b16 %v2814
    %v5823 = vunpack.c.l.b16 %v2815
    %v5824 = vunpack.c.h.b16 %v2815
    %v5825 = vunpack.c.l.b16 %v2816
    %v5826 = vunpack.c.h.b16 %v2816
    %v5827 = vunpack.c.l.b16 %v2817
    %v5828 = vunpack.c.h.b16 %v2817
    %v5829 = vunpack.c.l.b16 %v2818
    %v5830 = vunpack.c.h.b16 %v2818
    %v5831 = vunpack.c.l.b16 %v2819
    %v5832 = vunpack.c.h.b16 %v2819
    %v5833 = vunpack.c.l.b16 %v2820
    %v5834 = vunpack.c.h.b16 %v2820
    %v5835 = vunpack.c.l.b16 %v2821
    %v5836 = vunpack.c.h.b16 %v2821
    %v5837 = vunpack.c.l.b16 %v2822
    %v5838 = vunpack.c.h.b16 %v2822
    %v5839 = vunpack.c.l.b16 %v2823
    %v5840 = vunpack.c.h.b16 %v2823
    %v5841 = vunpack.c.l.b16 %v2824
    %v5842 = vunpack.c.h.b16 %v2824
    %v5843 = vunpack.c.l.b16 %v2825
    %v5844 = vunpack.c.h.b16 %v2825
    %v5845 = vunpack.c.l.b16 %v2826
    %v5846 = vunpack.c.h.b16 %v2826
    %v5847 = vunpack.c.l.b16 %v2827
    %v5848 = vunpack.c.h.b16 %v2827
    %v5849 = vunpack.c.l.b16 %v2828
    %v5850 = vunpack.c.h.b16 %v2828
    %v5851 = vunpack.c.l.b16 %v2829
    %v5852 = vunpack.c.h.b16 %v2829
    %v5853 = vunpack.c.l.b16 %v2830
    %v5854 = vunpack.c.h.b16 %v2830
    %v5855 = vunpack.c.l.b16 %v2831
    %v5856 = vunpack.c.h.b16 %v2831
    %v5857 = vunpack.c.l.b16 %v2832
    %v5858 = vunpack.c.h.b16 %v2832
    %v5859 = vunpack.c.l.b16 %v2833
    %v5860 = vunpack.c.h.b16 %v2833
    %v5861 = vunpack.c.l.b16 %v2834
    %v5862 = vunpack.c.h.b16 %v2834
    %v5863 = vunpack.c.l.b16 %v2835
    %v5864 = vunpack.c.h.b16 %v2835
    %v5865 = vunpack.c.l.b16 %v2836
    %v5866 = vunpack.c.h.b16 %v2836
    %v5867 = vunpack.c.l.b16 %v2837
    %v5868 = vunpack.c.h.b16 %v2837
    %v5869 = vunpack.c.l.b16 %v2838
    %v5870 = vunpack.c.h.b16 %v2838
    %v5871 = vunpack.c.l.b16 %v2839
    %v5872 = vunpack.c.h.b16 %v2839
    %v5873 = vunpack.c.l.b16 %v2840
    %v5874 = vunpack.c.h.b16 %v2840
    %v5875 = vunpack.c.l.b16 %v2841
    %v5876 = vunpack.c.h.b16 %v2841
    %v5877 = vunpack.c.l.b16 %v2842
    %v5878 = vunpack.c.h.b16 %v2842
    %v5879 = vunpack.c.l.b16 %v2843
    %v5880 = vunpack.c.h.b16 %v2843
    %v5881 = vunpack.c.l.b16 %v2844
    %v5882 = vunpack.c.h.b16 %v2844
    %v5883 = vunpack.c.l.b16 %v2845
    %v5884 = vunpack.c.h.b16 %v2845
    %v5885 = vunpack.c.l.b16 %v2846
    %v5886 = vunpack.c.h.b16 %v2846
    %v5887 = vunpack.c.l.b16 %v2847
    %v5888 = vunpack.c.h.b16 %v2847
    %v5889 = vunpack.c.l.b16 %v2848
    %v5890 = vunpack.c.h.b16 %v2848
    %v5891 = vunpack.c.l.b16 %v2849
    %v5892 = vunpack.c.h.b16 %v2849
    %v5893 = vunpack.c.l.b16 %v2850
    %v5894 = vunpack.c.h.b16 %v2850
    %v5895 = vunpack.c.l.b16 %v2851
    %v5896 = vunpack.c.h.b16 %v2851
    %v5897 = vunpack.c.l.b16 %v2852
    %v5898 = vunpack.c.h.b16 %v2852
    %v5899 = vunpack.c.l.b16 %v2853
    %v5900 = vunpack.c.h.b16 %v2853
    %v5901 = vunpack.c.l.b16 %v2854
    %v5902 = vunpack.c.h.b16 %v2854
    %v5903 = vunpack.c.l.b16 %v2855
    %v5904 = vunpack.c.h.b16 %v2855
    %v5905 = vunpack.c.l.b16 %v2856
    %v5906 = vunpack.c.h.b16 %v2856
    %v5907 = vunpack.c.l.b16 %v2857
    %v5908 = vunpack.c.h.b16 %v2857
    %v5909 = vunpack.c.l.b16 %v2858
    %v5910 = vunpack.c.h.b16 %v2858
    %v5911 = vunpack.c.l.b16 %v2859
    %v5912 = vunpack.c.h.b16 %v2859
    %v5913 = vunpack.c.l.b16 %v2860
    %v5914 = vunpack.c.h.b16 %v2860
    %v5915 = vunpack.c.l.b16 %v2861
    %v5916 = vunpack.c.h.b16 %v2861
    %v5917 = vunpack.c.l.b16 %v2862
    %v5918 = vunpack.c.h.b16 %v2862
    %v5919 = vunpack.c.l.b16 %v2863
    %v5920 = vunpack.c.h.b16 %v2863
    %v5921 = vunpack.c.l.b16 %v2864
    %v5922 = vunpack.c.h.b16 %v2864
    %v5923 = vunpack.c.l.b16 %v2865
    %v5924 = vunpack.c.h.b16 %v2865
    %v5925 = vunpack.c.l.b16 %v2866
    %v5926 = vunpack.c.h.b16 %v2866
    %v5927 = vunpack.c.l.b16 %v2867
    %v5928 = vunpack.c.h.b16 %v2867
    %v5929 = vunpack.c.l.b16 %v2868
    %v5930 = vunpack.c.h.b16 %v2868
    %v5931 = vunpack.c.l.b16 %v2869
    %v5932 = vunpack.c.h.b16 %v2869
    %v5933 = vunpack.c.l.b16 %v2870
    %v5934 = vunpack.c.h.b16 %v2870
    %v5935 = vunpack.c.l.b16 %v2871
    %v5936 = vunpack.c.h.b16 %v2871
    %v5937 = vunpack.c.l.b16 %v2872
    %v5938 = vunpack.c.h.b16 %v2872
    %v5939 = vunpack.c.l.b16 %v2873
    %v5940 = vunpack.c.h.b16 %v2873
    %v5941 = vunpack.c.l.b16 %v2874
    %v5942 = vunpack.c.h.b16 %v2874
    %v5943 = vunpack.c.l.b16 %v2875
    %v5944 = vunpack.c.h.b16 %v2875
    %v5945 = vunpack.c.l.b16 %v2876
    %v5946 = vunpack.c.h.b16 %v2876
    %v5947 = vunpack.c.l.b16 %v2877
    %v5948 = vunpack.c.h.b16 %v2877
    %v5949 = vunpack.c.l.b16 %v2878
    %v5950 = vunpack.c.h.b16 %v2878
    %v5951 = vpack.c.b16 %v3911, %v3903
    %v5952 = vpack.c.b16 %v3912, %v3904
    %v5953 = vpack.c.b16 %v3913, %v3905
    %v5954 = vpack.c.b16 %v3914, %v3906
    %v5955 = vpack.c.b16 %v3915, %v3907
    %v5956 = vpack.c.b16 %v3916, %v3908
    %v5957 = vpack.c.b16 %v3917, %v3909
    %v5958 = vpack.c.b16 %v3918, %v3910
    %v5959 = vpack.c.b16 %v3927, %v3919
    %v5960 = vpack.c.b16 %v3928, %v3920
    %v5961 = vpack.c.b16 %v3929, %v3921
    %v5962 = vpack.c.b16 %v3930, %v3922
    %v5963 = vpack.c.b16 %v3931, %v3923
    %v5964 = vpack.c.b16 %v3932, %v3924
    %v5965 = vpack.c.b16 %v3933, %v3925
    %v5966 = vpack.c.b16 %v3934, %v3926
    %v5967 = vpack.c.b16 %v3943, %v3935
    %v5968 = vpack.c.b16 %v3944, %v3936
    %v5969 = vpack.c.b16 %v3945, %v3937
    %v5970 = vpack.c.b16 %v3946, %v3938
    %v5971 = vpack.c.b16 %v3947, %v3939
    %v5972 = vpack.c.b16 %v3948, %v3940
    %v5973 = vpack.c.b16 %v3949, %v3941
    %v5974 = vpack.c.b16 %v3950, %v3942
    %v5975 = vpack.c.b16 %v3959, %v3951
    %v5976 = vpack.c.b16 %v3960, %v3952
    %v5977 = vpack.c.b16 %v3961, %v3953
    %v5978 = vpack.c.b16 %v3962, %v3954
    %v5979 = vpack.c.b16 %v3963, %v3955
    %v5980 = vpack.c.b16 %v3964, %v3956
    %v5981 = vpack.c.b16 %v3965, %v3957
    %v5982 = vpack.c.b16 %v3966, %v3958
    %v5983 = vpack.c.b16 %v3975, %v3967
    %v5984 = vpack.c.b16 %v3976, %v3968
    %v5985 = vpack.c.b16 %v3977, %v3969
    %v5986 = vpack.c.b16 %v3978, %v3970
    %v5987 = vpack.c.b16 %v3979, %v3971
    %v5988 = vpack.c.b16 %v3980, %v3972
    %v5989 = vpack.c.b16 %v3981, %v3973
    %v5990 = vpack.c.b16 %v3982, %v3974
    %v5991 = vpack.c.b16 %v3991, %v3983
    %v5992 = vpack.c.b16 %v3992, %v3984
    %v5993 = vpack.c.b16 %v3993, %v3985
    %v5994 = vpack.c.b16 %v3994, %v3986
    %v5995 = vpack.c.b16 %v3995, %v3987
    %v5996 = vpack.c.b16 %v3996, %v3988
    %v5997 = vpack.c.b16 %v3997, %v3989
    %v5998 = vpack.c.b16 %v3998, %v3990
    %v5999 = vpack.c.b16 %v4007, %v3999
    %v6000 = vpack.c.b16 %v4008, %v4000
    %v6001 = vpack.c.b16 %v4009, %v4001
    %v6002 = vpack.c.b16 %v4010, %v4002
    %v6003 = vpack.c.b16 %v4011, %v4003
    %v6004 = vpack.c.b16 %v4012, %v4004
    %v6005 = vpack.c.b16 %v4013, %v4005
    %v6006 = vpack.c.b16 %v4014, %v4006
    %v6007 = vpack.c.b16 %v4023, %v4015
    %v6008 = vpack.c.b16 %v4024, %v4016
    %v6009 = vpack.c.b16 %v4025, %v4017
    %v6010 = vpack.c.b16 %v4026, %v4018
    %v6011 = vpack.c.b16 %v4027, %v4019
    %v6012 = vpack.c.b16 %v4028, %v4020
    %v6013 = vpack.c.b16 %v4029, %v4021
    %v6014 = vpack.c.b16 %v4030, %v4022
    %v6015 = vpack.c.b16 %v4039, %v4031
    %v6016 = vpack.c.b16 %v4040, %v4032
    %v6017 = vpack.c.b16 %v4041, %v4033
    %v6018 = vpack.c.b16 %v4042, %v4034
    %v6019 = vpack.c.b16 %v4043, %v4035
    %v6020 = vpack.c.b16 %v4044, %v4036
    %v6021 = vpack.c.b16 %v4045, %v4037
    %v6022 = vpack.c.b16 %v4046, %v4038
    %v6023 = vpack.c.b16 %v4055, %v4047
    %v6024 = vpack.c.b16 %v4056, %v4048
    %v6025 = vpack.c.b16 %v4057, %v4049
    %v6026 = vpack.c.b16 %v4058, %v4050
    %v6027 = vpack.c.b16 %v4059, %v4051
    %v6028 = vpack.c.b16 %v4060, %v4052
    %v6029 = vpack.c.b16 %v4061, %v4053
    %v6030 = vpack.c.b16 %v4062, %v4054
    %v6031 = vpack.c.b16 %v4071, %v4063
    %v6032 = vpack.c.b16 %v4072, %v4064
    %v6033 = vpack.c.b16 %v4073, %v4065
    %v6034 = vpack.c.b16 %v4074, %v4066
    %v6035 = vpack.c.b16 %v4075, %v4067
    %v6036 = vpack.c.b16 %v4076, %v4068
    %v6037 = vpack.c.b16 %v4077, %v4069
    %v6038 = vpack.c.b16 %v4078, %v4070
    %v6039 = vpack.c.b16 %v4087, %v4079
    %v6040 = vpack.c.b16 %v4088, %v4080
    %v6041 = vpack.c.b16 %v4089, %v4081
    %v6042 = vpack.c.b16 %v4090, %v4082
    %v6043 = vpack.c.b16 %v4091, %v4083
    %v6044 = vpack.c.b16 %v4092, %v4084
    %v6045 = vpack.c.b16 %v4093, %v4085
    %v6046 = vpack.c.b16 %v4094, %v4086
    %v6047 = vpack.c.b16 %v4103, %v4095
    %v6048 = vpack.c.b16 %v4104, %v4096
    %v6049 = vpack.c.b16 %v4105, %v4097
    %v6050 = vpack.c.b16 %v4106, %v4098
    %v6051 = vpack.c.b16 %v4107, %v4099
    %v6052 = vpack.c.b16 %v4108, %v4100
    %v6053 = vpack.c.b16 %v4109, %v4101
    %v6054 = vpack.c.b16 %v4110, %v4102
    %v6055 = vpack.c.b16 %v4119, %v4111
    %v6056 = vpack.c.b16 %v4120, %v4112
    %v6057 = vpack.c.b16 %v4121, %v4113
    %v6058 = vpack.c.b16 %v4122, %v4114
    %v6059 = vpack.c.b16 %v4123, %v4115
    %v6060 = vpack.c.b16 %v4124, %v4116
    %v6061 = vpack.c.b16 %v4125, %v4117
    %v6062 = vpack.c.b16 %v4126, %v4118
    %v6063 = vpack.c.b16 %v4135, %v4127
    %v6064 = vpack.c.b16 %v4136, %v4128
    %v6065 = vpack.c.b16 %v4137, %v4129
    %v6066 = vpack.c.b16 %v4138, %v4130
    %v6067 = vpack.c.b16 %v4139, %v4131
    %v6068 = vpack.c.b16 %v4140, %v4132
    %v6069 = vpack.c.b16 %v4141, %v4133
    %v6070 = vpack.c.b16 %v4142, %v4134
    %v6071 = vpack.c.b16 %v4151, %v4143
    %v6072 = vpack.c.b16 %v4152, %v4144
    %v6073 = vpack.c.b16 %v4153, %v4145
    %v6074 = vpack.c.b16 %v4154, %v4146
    %v6075 = vpack.c.b16 %v4155, %v4147
    %v6076 = vpack.c.b16 %v4156, %v4148
    %v6077 = vpack.c.b16 %v4157, %v4149
    %v6078 = vpack.c.b16 %v4158, %v4150
    %v6079 = vpack.c.b16 %v4167, %v4159
    %v6080 = vpack.c.b16 %v4168, %v4160
    %v6081 = vpack.c.b16 %v4169, %v4161
    %v6082 = vpack.c.b16 %v4170, %v4162
    %v6083 = vpack.c.b16 %v4171, %v4163
    %v6084 = vpack.c.b16 %v4172, %v4164
    %v6085 = vpack.c.b16 %v4173, %v4165
    %v6086 = vpack.c.b16 %v4174, %v4166
    %v6087 = vpack.c.b16 %v4183, %v4175
    %v6088 = vpack.c.b16 %v4184, %v4176
    %v6089 = vpack.c.b16 %v4185, %v4177
    %v6090 = vpack.c.b16 %v4186, %v4178
    %v6091 = vpack.c.b16 %v4187, %v4179
    %v6092 = vpack.c.b16 %v4188, %v4180
    %v6093 = vpack.c.b16 %v4189, %v4181
    %v6094 = vpack.c.b16 %v4190, %v4182
    %v6095 = vpack.c.b16 %v4199, %v4191
    %v6096 = vpack.c.b16 %v4200, %v4192
    %v6097 = vpack.c.b16 %v4201, %v4193
    %v6098 = vpack.c.b16 %v4202, %v4194
    %v6099 = vpack.c.b16 %v4203, %v4195
    %v6100 = vpack.c.b16 %v4204, %v4196
    %v6101 = vpack.c.b16 %v4205, %v4197
    %v6102 = vpack.c.b16 %v4206, %v4198
    %v6103 = vpack.c.b16 %v4215, %v4207
    %v6104 = vpack.c.b16 %v4216, %v4208
    %v6105 = vpack.c.b16 %v4217, %v4209
    %v6106 = vpack.c.b16 %v4218, %v4210
    %v6107 = vpack.c.b16 %v4219, %v4211
    %v6108 = vpack.c.b16 %v4220, %v4212
    %v6109 = vpack.c.b16 %v4221, %v4213
    %v6110 = vpack.c.b16 %v4222, %v4214
    %v6111 = vpack.c.b16 %v4231, %v4223
    %v6112 = vpack.c.b16 %v4232, %v4224
    %v6113 = vpack.c.b16 %v4233, %v4225
    %v6114 = vpack.c.b16 %v4234, %v4226
    %v6115 = vpack.c.b16 %v4235, %v4227
    %v6116 = vpack.c.b16 %v4236, %v4228
    %v6117 = vpack.c.b16 %v4237, %v4229
    %v6118 = vpack.c.b16 %v4238, %v4230
    %v6119 = vpack.c.b16 %v4247, %v4239
    %v6120 = vpack.c.b16 %v4248, %v4240
    %v6121 = vpack.c.b16 %v4249, %v4241
    %v6122 = vpack.c.b16 %v4250, %v4242
    %v6123 = vpack.c.b16 %v4251, %v4243
    %v6124 = vpack.c.b16 %v4252, %v4244
    %v6125 = vpack.c.b16 %v4253, %v4245
    %v6126 = vpack.c.b16 %v4254, %v4246
    %v6127 = vpack.c.b16 %v4263, %v4255
    %v6128 = vpack.c.b16 %v4264, %v4256
    %v6129 = vpack.c.b16 %v4265, %v4257
    %v6130 = vpack.c.b16 %v4266, %v4258
    %v6131 = vpack.c.b16 %v4267, %v4259
    %v6132 = vpack.c.b16 %v4268, %v4260
    %v6133 = vpack.c.b16 %v4269, %v4261
    %v6134 = vpack.c.b16 %v4270, %v4262
    %v6135 = vpack.c.b16 %v4279, %v4271
    %v6136 = vpack.c.b16 %v4280, %v4272
    %v6137 = vpack.c.b16 %v4281, %v4273
    %v6138 = vpack.c.b16 %v4282, %v4274
    %v6139 = vpack.c.b16 %v4283, %v4275
    %v6140 = vpack.c.b16 %v4284, %v4276
    %v6141 = vpack.c.b16 %v4285, %v4277
    %v6142 = vpack.c.b16 %v4286, %v4278
    %v6143 = vpack.c.b16 %v4295, %v4287
    %v6144 = vpack.c.b16 %v4296, %v4288
    %v6145 = vpack.c.b16 %v4297, %v4289
    %v6146 = vpack.c.b16 %v4298, %v4290
    %v6147 = vpack.c.b16 %v4299, %v4291
    %v6148 = vpack.c.b16 %v4300, %v4292
    %v6149 = vpack.c.b16 %v4301, %v4293
    %v6150 = vpack.c.b16 %v4302, %v4294
    %v6151 = vpack.c.b16 %v4311, %v4303
    %v6152 = vpack.c.b16 %v4312, %v4304
    %v6153 = vpack.c.b16 %v4313, %v4305
    %v6154 = vpack.c.b16 %v4314, %v4306
    %v6155 = vpack.c.b16 %v4315, %v4307
    %v6156 = vpack.c.b16 %v4316, %v4308
    %v6157 = vpack.c.b16 %v4317, %v4309
    %v6158 = vpack.c.b16 %v4318, %v4310
    %v6159 = vpack.c.b16 %v4327, %v4319
    %v6160 = vpack.c.b16 %v4328, %v4320
    %v6161 = vpack.c.b16 %v4329, %v4321
    %v6162 = vpack.c.b16 %v4330, %v4322
    %v6163 = vpack.c.b16 %v4331, %v4323
    %v6164 = vpack.c.b16 %v4332, %v4324
    %v6165 = vpack.c.b16 %v4333, %v4325
    %v6166 = vpack.c.b16 %v4334, %v4326
    %v6167 = vpack.c.b16 %v4343, %v4335
    %v6168 = vpack.c.b16 %v4344, %v4336
    %v6169 = vpack.c.b16 %v4345, %v4337
    %v6170 = vpack.c.b16 %v4346, %v4338
    %v6171 = vpack.c.b16 %v4347, %v4339
    %v6172 = vpack.c.b16 %v4348, %v4340
    %v6173 = vpack.c.b16 %v4349, %v4341
    %v6174 = vpack.c.b16 %v4350, %v4342
    %v6175 = vpack.c.b16 %v4359, %v4351
    %v6176 = vpack.c.b16 %v4360, %v4352
    %v6177 = vpack.c.b16 %v4361, %v4353
    %v6178 = vpack.c.b16 %v4362, %v4354
    %v6179 = vpack.c.b16 %v4363, %v4355
    %v6180 = vpack.c.b16 %v4364, %v4356
    %v6181 = vpack.c.b16 %v4365, %v4357
    %v6182 = vpack.c.b16 %v4366, %v4358
    %v6183 = vpack.c.b16 %v4375, %v4367
    %v6184 = vpack.c.b16 %v4376, %v4368
    %v6185 = vpack.c.b16 %v4377, %v4369
    %v6186 = vpack.c.b16 %v4378, %v4370
    %v6187 = vpack.c.b16 %v4379, %v4371
    %v6188 = vpack.c.b16 %v4380, %v4372
    %v6189 = vpack.c.b16 %v4381, %v4373
    %v6190 = vpack.c.b16 %v4382, %v4374
    %v6191 = vpack.c.b16 %v4391, %v4383
    %v6192 = vpack.c.b16 %v4392, %v4384
    %v6193 = vpack.c.b16 %v4393, %v4385
    %v6194 = vpack.c.b16 %v4394, %v4386
    %v6195 = vpack.c.b16 %v4395, %v4387
    %v6196 = vpack.c.b16 %v4396, %v4388
    %v6197 = vpack.c.b16 %v4397, %v4389
    %v6198 = vpack.c.b16 %v4398, %v4390
    %v6199 = vpack.c.b16 %v4407, %v4399
    %v6200 = vpack.c.b16 %v4408, %v4400
    %v6201 = vpack.c.b16 %v4409, %v4401
    %v6202 = vpack.c.b16 %v4410, %v4402
    %v6203 = vpack.c.b16 %v4411, %v4403
    %v6204 = vpack.c.b16 %v4412, %v4404
    %v6205 = vpack.c.b16 %v4413, %v4405
    %v6206 = vpack.c.b16 %v4414, %v4406
    %v6207 = vpack.c.b16 %v4423, %v4415
    %v6208 = vpack.c.b16 %v4424, %v4416
    %v6209 = vpack.c.b16 %v4425, %v4417
    %v6210 = vpack.c.b16 %v4426, %v4418
    %v6211 = vpack.c.b16 %v4427, %v4419
    %v6212 = vpack.c.b16 %v4428, %v4420
    %v6213 = vpack.c.b16 %v4429, %v4421
    %v6214 = vpack.c.b16 %v4430, %v4422
    %v6215 = vpack.c.b16 %v4439, %v4431
    %v6216 = vpack.c.b16 %v4440, %v4432
    %v6217 = vpack.c.b16 %v4441, %v4433
    %v6218 = vpack.c.b16 %v4442, %v4434
    %v6219 = vpack.c.b16 %v4443, %v4435
    %v6220 = vpack.c.b16 %v4444, %v4436
    %v6221 = vpack.c.b16 %v4445, %v4437
    %v6222 = vpack.c.b16 %v4446, %v4438
    %v6223 = vpack.c.b16 %v4455, %v4447
    %v6224 = vpack.c.b16 %v4456, %v4448
    %v6225 = vpack.c.b16 %v4457, %v4449
    %v6226 = vpack.c.b16 %v4458, %v4450
    %v6227 = vpack.c.b16 %v4459, %v4451
    %v6228 = vpack.c.b16 %v4460, %v4452
    %v6229 = vpack.c.b16 %v4461, %v4453
    %v6230 = vpack.c.b16 %v4462, %v4454
    %v6231 = vpack.c.b16 %v4471, %v4463
    %v6232 = vpack.c.b16 %v4472, %v4464
    %v6233 = vpack.c.b16 %v4473, %v4465
    %v6234 = vpack.c.b16 %v4474, %v4466
    %v6235 = vpack.c.b16 %v4475, %v4467
    %v6236 = vpack.c.b16 %v4476, %v4468
    %v6237 = vpack.c.b16 %v4477, %v4469
    %v6238 = vpack.c.b16 %v4478, %v4470
    %v6239 = vpack.c.b16 %v4487, %v4479
    %v6240 = vpack.c.b16 %v4488, %v4480
    %v6241 = vpack.c.b16 %v4489, %v4481
    %v6242 = vpack.c.b16 %v4490, %v4482
    %v6243 = vpack.c.b16 %v4491, %v4483
    %v6244 = vpack.c.b16 %v4492, %v4484
    %v6245 = vpack.c.b16 %v4493, %v4485
    %v6246 = vpack.c.b16 %v4494, %v4486
    %v6247 = vpack.c.b16 %v4503, %v4495
    %v6248 = vpack.c.b16 %v4504, %v4496
    %v6249 = vpack.c.b16 %v4505, %v4497
    %v6250 = vpack.c.b16 %v4506, %v4498
    %v6251 = vpack.c.b16 %v4507, %v4499
    %v6252 = vpack.c.b16 %v4508, %v4500
    %v6253 = vpack.c.b16 %v4509, %v4501
    %v6254 = vpack.c.b16 %v4510, %v4502
    %v6255 = vpack.c.b16 %v4519, %v4511
    %v6256 = vpack.c.b16 %v4520, %v4512
    %v6257 = vpack.c.b16 %v4521, %v4513
    %v6258 = vpack.c.b16 %v4522, %v4514
    %v6259 = vpack.c.b16 %v4523, %v4515
    %v6260 = vpack.c.b16 %v4524, %v4516
    %v6261 = vpack.c.b16 %v4525, %v4517
    %v6262 = vpack.c.b16 %v4526, %v4518
    %v6263 = vpack.c.b16 %v4535, %v4527
    %v6264 = vpack.c.b16 %v4536, %v4528
    %v6265 = vpack.c.b16 %v4537, %v4529
    %v6266 = vpack.c.b16 %v4538, %v4530
    %v6267 = vpack.c.b16 %v4539, %v4531
    %v6268 = vpack.c.b16 %v4540, %v4532
    %v6269 = vpack.c.b16 %v4541, %v4533
    %v6270 = vpack.c.b16 %v4542, %v4534
    %v6271 = vpack.c.b16 %v4551, %v4543
    %v6272 = vpack.c.b16 %v4552, %v4544
    %v6273 = vpack.c.b16 %v4553, %v4545
    %v6274 = vpack.c.b16 %v4554, %v4546
    %v6275 = vpack.c.b16 %v4555, %v4547
    %v6276 = vpack.c.b16 %v4556, %v4548
    %v6277 = vpack.c.b16 %v4557, %v4549
    %v6278 = vpack.c.b16 %v4558, %v4550
    %v6279 = vpack.c.b16 %v4567, %v4559
    %v6280 = vpack.c.b16 %v4568, %v4560
    %v6281 = vpack.c.b16 %v4569, %v4561
    %v6282 = vpack.c.b16 %v4570, %v4562
    %v6283 = vpack.c.b16 %v4571, %v4563
    %v6284 = vpack.c.b16 %v4572, %v4564
    %v6285 = vpack.c.b16 %v4573, %v4565
    %v6286 = vpack.c.b16 %v4574, %v4566
    %v6287 = vpack.c.b16 %v4583, %v4575
    %v6288 = vpack.c.b16 %v4584, %v4576
    %v6289 = vpack.c.b16 %v4585, %v4577
    %v6290 = vpack.c.b16 %v4586, %v4578
    %v6291 = vpack.c.b16 %v4587, %v4579
    %v6292 = vpack.c.b16 %v4588, %v4580
    %v6293 = vpack.c.b16 %v4589, %v4581
    %v6294 = vpack.c.b16 %v4590, %v4582
    %v6295 = vpack.c.b16 %v4599, %v4591
    %v6296 = vpack.c.b16 %v4600, %v4592
    %v6297 = vpack.c.b16 %v4601, %v4593
    %v6298 = vpack.c.b16 %v4602, %v4594
    %v6299 = vpack.c.b16 %v4603, %v4595
    %v6300 = vpack.c.b16 %v4604, %v4596
    %v6301 = vpack.c.b16 %v4605, %v4597
    %v6302 = vpack.c.b16 %v4606, %v4598
    %v6303 = vpack.c.b16 %v4615, %v4607
    %v6304 = vpack.c.b16 %v4616, %v4608
    %v6305 = vpack.c.b16 %v4617, %v4609
    %v6306 = vpack.c.b16 %v4618, %v4610
    %v6307 = vpack.c.b16 %v4619, %v4611
    %v6308 = vpack.c.b16 %v4620, %v4612
    %v6309 = vpack.c.b16 %v4621, %v4613
    %v6310 = vpack.c.b16 %v4622, %v4614
    %v6311 = vpack.c.b16 %v4631, %v4623
    %v6312 = vpack.c.b16 %v4632, %v4624
    %v6313 = vpack.c.b16 %v4633, %v4625
    %v6314 = vpack.c.b16 %v4634, %v4626
    %v6315 = vpack.c.b16 %v4635, %v4627
    %v6316 = vpack.c.b16 %v4636, %v4628
    %v6317 = vpack.c.b16 %v4637, %v4629
    %v6318 = vpack.c.b16 %v4638, %v4630
    %v6319 = vpack.c.b16 %v4647, %v4639
    %v6320 = vpack.c.b16 %v4648, %v4640
    %v6321 = vpack.c.b16 %v4649, %v4641
    %v6322 = vpack.c.b16 %v4650, %v4642
    %v6323 = vpack.c.b16 %v4651, %v4643
    %v6324 = vpack.c.b16 %v4652, %v4644
    %v6325 = vpack.c.b16 %v4653, %v4645
    %v6326 = vpack.c.b16 %v4654, %v4646
    %v6327 = vpack.c.b16 %v4663, %v4655
    %v6328 = vpack.c.b16 %v4664, %v4656
    %v6329 = vpack.c.b16 %v4665, %v4657
    %v6330 = vpack.c.b16 %v4666, %v4658
    %v6331 = vpack.c.b16 %v4667, %v4659
    %v6332 = vpack.c.b16 %v4668, %v4660
    %v6333 = vpack.c.b16 %v4669, %v4661
    %v6334 = vpack.c.b16 %v4670, %v4662
    %v6335 = vpack.c.b16 %v4679, %v4671
    %v6336 = vpack.c.b16 %v4680, %v4672
    %v6337 = vpack.c.b16 %v4681, %v4673
    %v6338 = vpack.c.b16 %v4682, %v4674
    %v6339 = vpack.c.b16 %v4683, %v4675
    %v6340 = vpack.c.b16 %v4684, %v4676
    %v6341 = vpack.c.b16 %v4685, %v4677
    %v6342 = vpack.c.b16 %v4686, %v4678
    %v6343 = vpack.c.b16 %v4695, %v4687
    %v6344 = vpack.c.b16 %v4696, %v4688
    %v6345 = vpack.c.b16 %v4697, %v4689
    %v6346 = vpack.c.b16 %v4698, %v4690
    %v6347 = vpack.c.b16 %v4699, %v4691
    %v6348 = vpack.c.b16 %v4700, %v4692
    %v6349 = vpack.c.b16 %v4701, %v4693
    %v6350 = vpack.c.b16 %v4702, %v4694
    %v6351 = vpack.c.b16 %v4711, %v4703
    %v6352 = vpack.c.b16 %v4712, %v4704
    %v6353 = vpack.c.b16 %v4713, %v4705
    %v6354 = vpack.c.b16 %v4714, %v4706
    %v6355 = vpack.c.b16 %v4715, %v4707
    %v6356 = vpack.c.b16 %v4716, %v4708
    %v6357 = vpack.c.b16 %v4717, %v4709
    %v6358 = vpack.c.b16 %v4718, %v4710
    %v6359 = vpack.c.b16 %v4727, %v4719
    %v6360 = vpack.c.b16 %v4728, %v4720
    %v6361 = vpack.c.b16 %v4729, %v4721
    %v6362 = vpack.c.b16 %v4730, %v4722
    %v6363 = vpack.c.b16 %v4731, %v4723
    %v6364 = vpack.c.b16 %v4732, %v4724
    %v6365 = vpack.c.b16 %v4733, %v4725
    %v6366 = vpack.c.b16 %v4734, %v4726
    %v6367 = vpack.c.b16 %v4743, %v4735
    %v6368 = vpack.c.b16 %v4744, %v4736
    %v6369 = vpack.c.b16 %v4745, %v4737
    %v6370 = vpack.c.b16 %v4746, %v4738
    %v6371 = vpack.c.b16 %v4747, %v4739
    %v6372 = vpack.c.b16 %v4748, %v4740
    %v6373 = vpack.c.b16 %v4749, %v4741
    %v6374 = vpack.c.b16 %v4750, %v4742
    %v6375 = vpack.c.b16 %v4759, %v4751
    %v6376 = vpack.c.b16 %v4760, %v4752
    %v6377 = vpack.c.b16 %v4761, %v4753
    %v6378 = vpack.c.b16 %v4762, %v4754
    %v6379 = vpack.c.b16 %v4763, %v4755
    %v6380 = vpack.c.b16 %v4764, %v4756
    %v6381 = vpack.c.b16 %v4765, %v4757
    %v6382 = vpack.c.b16 %v4766, %v4758
    %v6383 = vpack.c.b16 %v4775, %v4767
    %v6384 = vpack.c.b16 %v4776, %v4768
    %v6385 = vpack.c.b16 %v4777, %v4769
    %v6386 = vpack.c.b16 %v4778, %v4770
    %v6387 = vpack.c.b16 %v4779, %v4771
    %v6388 = vpack.c.b16 %v4780, %v4772
    %v6389 = vpack.c.b16 %v4781, %v4773
    %v6390 = vpack.c.b16 %v4782, %v4774
    %v6391 = vpack.c.b16 %v4791, %v4783
    %v6392 = vpack.c.b16 %v4792, %v4784
    %v6393 = vpack.c.b16 %v4793, %v4785
    %v6394 = vpack.c.b16 %v4794, %v4786
    %v6395 = vpack.c.b16 %v4795, %v4787
    %v6396 = vpack.c.b16 %v4796, %v4788
    %v6397 = vpack.c.b16 %v4797, %v4789
    %v6398 = vpack.c.b16 %v4798, %v4790
    %v6399 = vpack.c.b16 %v4807, %v4799
    %v6400 = vpack.c.b16 %v4808, %v4800
    %v6401 = vpack.c.b16 %v4809, %v4801
    %v6402 = vpack.c.b16 %v4810, %v4802
    %v6403 = vpack.c.b16 %v4811, %v4803
    %v6404 = vpack.c.b16 %v4812, %v4804
    %v6405 = vpack.c.b16 %v4813, %v4805
    %v6406 = vpack.c.b16 %v4814, %v4806
    %v6407 = vpack.c.b16 %v4823, %v4815
    %v6408 = vpack.c.b16 %v4824, %v4816
    %v6409 = vpack.c.b16 %v4825, %v4817
    %v6410 = vpack.c.b16 %v4826, %v4818
    %v6411 = vpack.c.b16 %v4827, %v4819
    %v6412 = vpack.c.b16 %v4828, %v4820
    %v6413 = vpack.c.b16 %v4829, %v4821
    %v6414 = vpack.c.b16 %v4830, %v4822
    %v6415 = vpack.c.b16 %v4839, %v4831
    %v6416 = vpack.c.b16 %v4840, %v4832
    %v6417 = vpack.c.b16 %v4841, %v4833
    %v6418 = vpack.c.b16 %v4842, %v4834
    %v6419 = vpack.c.b16 %v4843, %v4835
    %v6420 = vpack.c.b16 %v4844, %v4836
    %v6421 = vpack.c.b16 %v4845, %v4837
    %v6422 = vpack.c.b16 %v4846, %v4838
    %v6423 = vpack.c.b16 %v4855, %v4847
    %v6424 = vpack.c.b16 %v4856, %v4848
    %v6425 = vpack.c.b16 %v4857, %v4849
    %v6426 = vpack.c.b16 %v4858, %v4850
    %v6427 = vpack.c.b16 %v4859, %v4851
    %v6428 = vpack.c.b16 %v4860, %v4852
    %v6429 = vpack.c.b16 %v4861, %v4853
    %v6430 = vpack.c.b16 %v4862, %v4854
    %v6431 = vpack.c.b16 %v4871, %v4863
    %v6432 = vpack.c.b16 %v4872, %v4864
    %v6433 = vpack.c.b16 %v4873, %v4865
    %v6434 = vpack.c.b16 %v4874, %v4866
    %v6435 = vpack.c.b16 %v4875, %v4867
    %v6436 = vpack.c.b16 %v4876, %v4868
    %v6437 = vpack.c.b16 %v4877, %v4869
    %v6438 = vpack.c.b16 %v4878, %v4870
    %v6439 = vpack.c.b16 %v4887, %v4879
    %v6440 = vpack.c.b16 %v4888, %v4880
    %v6441 = vpack.c.b16 %v4889, %v4881
    %v6442 = vpack.c.b16 %v4890, %v4882
    %v6443 = vpack.c.b16 %v4891, %v4883
    %v6444 = vpack.c.b16 %v4892, %v4884
    %v6445 = vpack.c.b16 %v4893, %v4885
    %v6446 = vpack.c.b16 %v4894, %v4886
    %v6447 = vpack.c.b16 %v4903, %v4895
    %v6448 = vpack.c.b16 %v4904, %v4896
    %v6449 = vpack.c.b16 %v4905, %v4897
    %v6450 = vpack.c.b16 %v4906, %v4898
    %v6451 = vpack.c.b16 %v4907, %v4899
    %v6452 = vpack.c.b16 %v4908, %v4900
    %v6453 = vpack.c.b16 %v4909, %v4901
    %v6454 = vpack.c.b16 %v4910, %v4902
    %v6455 = vpack.c.b16 %v4919, %v4911
    %v6456 = vpack.c.b16 %v4920, %v4912
    %v6457 = vpack.c.b16 %v4921, %v4913
    %v6458 = vpack.c.b16 %v4922, %v4914
    %v6459 = vpack.c.b16 %v4923, %v4915
    %v6460 = vpack.c.b16 %v4924, %v4916
    %v6461 = vpack.c.b16 %v4925, %v4917
    %v6462 = vpack.c.b16 %v4926, %v4918
    %v6463 = vpack.c.b16 %v4935, %v4927
    %v6464 = vpack.c.b16 %v4936, %v4928
    %v6465 = vpack.c.b16 %v4937, %v4929
    %v6466 = vpack.c.b16 %v4938, %v4930
    %v6467 = vpack.c.b16 %v4939, %v4931
    %v6468 = vpack.c.b16 %v4940, %v4932
    %v6469 = vpack.c.b16 %v4941, %v4933
    %v6470 = vpack.c.b16 %v4942, %v4934
    %v6471 = vpack.c.b16 %v4951, %v4943
    %v6472 = vpack.c.b16 %v4952, %v4944
    %v6473 = vpack.c.b16 %v4953, %v4945
    %v6474 = vpack.c.b16 %v4954, %v4946
    %v6475 = vpack.c.b16 %v4955, %v4947
    %v6476 = vpack.c.b16 %v4956, %v4948
    %v6477 = vpack.c.b16 %v4957, %v4949
    %v6478 = vpack.c.b16 %v4958, %v4950
    %v6479 = vpack.c.b16 %v4967, %v4959
    %v6480 = vpack.c.b16 %v4968, %v4960
    %v6481 = vpack.c.b16 %v4969, %v4961
    %v6482 = vpack.c.b16 %v4970, %v4962
    %v6483 = vpack.c.b16 %v4971, %v4963
    %v6484 = vpack.c.b16 %v4972, %v4964
    %v6485 = vpack.c.b16 %v4973, %v4965
    %v6486 = vpack.c.b16 %v4974, %v4966
    %v6487 = vpack.c.b16 %v4983, %v4975
    %v6488 = vpack.c.b16 %v4984, %v4976
    %v6489 = vpack.c.b16 %v4985, %v4977
    %v6490 = vpack.c.b16 %v4986, %v4978
    %v6491 = vpack.c.b16 %v4987, %v4979
    %v6492 = vpack.c.b16 %v4988, %v4980
    %v6493 = vpack.c.b16 %v4989, %v4981
    %v6494 = vpack.c.b16 %v4990, %v4982
    %v6495 = vpack.c.b16 %v4999, %v4991
    %v6496 = vpack.c.b16 %v5000, %v4992
    %v6497 = vpack.c.b16 %v5001, %v4993
    %v6498 = vpack.c.b16 %v5002, %v4994
    %v6499 = vpack.c.b16 %v5003, %v4995
    %v6500 = vpack.c.b16 %v5004, %v4996
    %v6501 = vpack.c.b16 %v5005, %v4997
    %v6502 = vpack.c.b16 %v5006, %v4998
    %v6503 = vpack.c.b16 %v5015, %v5007
    %v6504 = vpack.c.b16 %v5016, %v5008
    %v6505 = vpack.c.b16 %v5017, %v5009
    %v6506 = vpack.c.b16 %v5018, %v5010
    %v6507 = vpack.c.b16 %v5019, %v5011
    %v6508 = vpack.c.b16 %v5020, %v5012
    %v6509 = vpack.c.b16 %v5021, %v5013
    %v6510 = vpack.c.b16 %v5022, %v5014
    %v6511 = vpack.c.b16 %v5031, %v5023
    %v6512 = vpack.c.b16 %v5032, %v5024
    %v6513 = vpack.c.b16 %v5033, %v5025
    %v6514 = vpack.c.b16 %v5034, %v5026
    %v6515 = vpack.c.b16 %v5035, %v5027
    %v6516 = vpack.c.b16 %v5036, %v5028
    %v6517 = vpack.c.b16 %v5037, %v5029
    %v6518 = vpack.c.b16 %v5038, %v5030
    %v6519 = vpack.c.b16 %v5047, %v5039
    %v6520 = vpack.c.b16 %v5048, %v5040
    %v6521 = vpack.c.b16 %v5049, %v5041
    %v6522 = vpack.c.b16 %v5050, %v5042
    %v6523 = vpack.c.b16 %v5051, %v5043
    %v6524 = vpack.c.b16 %v5052, %v5044
    %v6525 = vpack.c.b16 %v5053, %v5045
    %v6526 = vpack.c.b16 %v5054, %v5046
    %v6527 = vpack.c.b16 %v5063, %v5055
    %v6528 = vpack.c.b16 %v5064, %v5056
    %v6529 = vpack.c.b16 %v5065, %v5057
    %v6530 = vpack.c.b16 %v5066, %v5058
    %v6531 = vpack.c.b16 %v5067, %v5059
    %v6532 = vpack.c.b16 %v5068, %v5060
    %v6533 = vpack.c.b16 %v5069, %v5061
    %v6534 = vpack.c.b16 %v5070, %v5062
    %v6535 = vpack.c.b16 %v5079, %v5071
    %v6536 = vpack.c.b16 %v5080, %v5072
    %v6537 = vpack.c.b16 %v5081, %v5073
    %v6538 = vpack.c.b16 %v5082, %v5074
    %v6539 = vpack.c.b16 %v5083, %v5075
    %v6540 = vpack.c.b16 %v5084, %v5076
    %v6541 = vpack.c.b16 %v5085, %v5077
    %v6542 = vpack.c.b16 %v5086, %v5078
    %v6543 = vpack.c.b16 %v5095, %v5087
    %v6544 = vpack.c.b16 %v5096, %v5088
    %v6545 = vpack.c.b16 %v5097, %v5089
    %v6546 = vpack.c.b16 %v5098, %v5090
    %v6547 = vpack.c.b16 %v5099, %v5091
    %v6548 = vpack.c.b16 %v5100, %v5092
    %v6549 = vpack.c.b16 %v5101, %v5093
    %v6550 = vpack.c.b16 %v5102, %v5094
    %v6551 = vpack.c.b16 %v5111, %v5103
    %v6552 = vpack.c.b16 %v5112, %v5104
    %v6553 = vpack.c.b16 %v5113, %v5105
    %v6554 = vpack.c.b16 %v5114, %v5106
    %v6555 = vpack.c.b16 %v5115, %v5107
    %v6556 = vpack.c.b16 %v5116, %v5108
    %v6557 = vpack.c.b16 %v5117, %v5109
    %v6558 = vpack.c.b16 %v5118, %v5110
    %v6559 = vpack.c.b16 %v5127, %v5119
    %v6560 = vpack.c.b16 %v5128, %v5120
    %v6561 = vpack.c.b16 %v5129, %v5121
    %v6562 = vpack.c.b16 %v5130, %v5122
    %v6563 = vpack.c.b16 %v5131, %v5123
    %v6564 = vpack.c.b16 %v5132, %v5124
    %v6565 = vpack.c.b16 %v5133, %v5125
    %v6566 = vpack.c.b16 %v5134, %v5126
    %v6567 = vpack.c.b16 %v5143, %v5135
    %v6568 = vpack.c.b16 %v5144, %v5136
    %v6569 = vpack.c.b16 %v5145, %v5137
    %v6570 = vpack.c.b16 %v5146, %v5138
    %v6571 = vpack.c.b16 %v5147, %v5139
    %v6572 = vpack.c.b16 %v5148, %v5140
    %v6573 = vpack.c.b16 %v5149, %v5141
    %v6574 = vpack.c.b16 %v5150, %v5142
    %v6575 = vpack.c.b16 %v5159, %v5151
    %v6576 = vpack.c.b16 %v5160, %v5152
    %v6577 = vpack.c.b16 %v5161, %v5153
    %v6578 = vpack.c.b16 %v5162, %v5154
    %v6579 = vpack.c.b16 %v5163, %v5155
    %v6580 = vpack.c.b16 %v5164, %v5156
    %v6581 = vpack.c.b16 %v5165, %v5157
    %v6582 = vpack.c.b16 %v5166, %v5158
    %v6583 = vpack.c.b16 %v5175, %v5167
    %v6584 = vpack.c.b16 %v5176, %v5168
    %v6585 = vpack.c.b16 %v5177, %v5169
    %v6586 = vpack.c.b16 %v5178, %v5170
    %v6587 = vpack.c.b16 %v5179, %v5171
    %v6588 = vpack.c.b16 %v5180, %v5172
    %v6589 = vpack.c.b16 %v5181, %v5173
    %v6590 = vpack.c.b16 %v5182, %v5174
    %v6591 = vpack.c.b16 %v5191, %v5183
    %v6592 = vpack.c.b16 %v5192, %v5184
    %v6593 = vpack.c.b16 %v5193, %v5185
    %v6594 = vpack.c.b16 %v5194, %v5186
    %v6595 = vpack.c.b16 %v5195, %v5187
    %v6596 = vpack.c.b16 %v5196, %v5188
    %v6597 = vpack.c.b16 %v5197, %v5189
    %v6598 = vpack.c.b16 %v5198, %v5190
    %v6599 = vpack.c.b16 %v5207, %v5199
    %v6600 = vpack.c.b16 %v5208, %v5200
    %v6601 = vpack.c.b16 %v5209, %v5201
    %v6602 = vpack.c.b16 %v5210, %v5202
    %v6603 = vpack.c.b16 %v5211, %v5203
    %v6604 = vpack.c.b16 %v5212, %v5204
    %v6605 = vpack.c.b16 %v5213, %v5205
    %v6606 = vpack.c.b16 %v5214, %v5206
    %v6607 = vpack.c.b16 %v5223, %v5215
    %v6608 = vpack.c.b16 %v5224, %v5216
    %v6609 = vpack.c.b16 %v5225, %v5217
    %v6610 = vpack.c.b16 %v5226, %v5218
    %v6611 = vpack.c.b16 %v5227, %v5219
    %v6612 = vpack.c.b16 %v5228, %v5220
    %v6613 = vpack.c.b16 %v5229, %v5221
    %v6614 = vpack.c.b16 %v5230, %v5222
    %v6615 = vpack.c.b16 %v5239, %v5231
    %v6616 = vpack.c.b16 %v5240, %v5232
    %v6617 = vpack.c.b16 %v5241, %v5233
    %v6618 = vpack.c.b16 %v5242, %v5234
    %v6619 = vpack.c.b16 %v5243, %v5235
    %v6620 = vpack.c.b16 %v5244, %v5236
    %v6621 = vpack.c.b16 %v5245, %v5237
    %v6622 = vpack.c.b16 %v5246, %v5238
    %v6623 = vpack.c.b16 %v5255, %v5247
    %v6624 = vpack.c.b16 %v5256, %v5248
    %v6625 = vpack.c.b16 %v5257, %v5249
    %v6626 = vpack.c.b16 %v5258, %v5250
    %v6627 = vpack.c.b16 %v5259, %v5251
    %v6628 = vpack.c.b16 %v5260, %v5252
    %v6629 = vpack.c.b16 %v5261, %v5253
    %v6630 = vpack.c.b16 %v5262, %v5254
    %v6631 = vpack.c.b16 %v5271, %v5263
    %v6632 = vpack.c.b16 %v5272, %v5264
    %v6633 = vpack.c.b16 %v5273, %v5265
    %v6634 = vpack.c.b16 %v5274, %v5266
    %v6635 = vpack.c.b16 %v5275, %v5267
    %v6636 = vpack.c.b16 %v5276, %v5268
    %v6637 = vpack.c.b16 %v5277, %v5269
    %v6638 = vpack.c.b16 %v5278, %v5270
    %v6639 = vpack.c.b16 %v5287, %v5279
    %v6640 = vpack.c.b16 %v5288, %v5280
    %v6641 = vpack.c.b16 %v5289, %v5281
    %v6642 = vpack.c.b16 %v5290, %v5282
    %v6643 = vpack.c.b16 %v5291, %v5283
    %v6644 = vpack.c.b16 %v5292, %v5284
    %v6645 = vpack.c.b16 %v5293, %v5285
    %v6646 = vpack.c.b16 %v5294, %v5286
    %v6647 = vpack.c.b16 %v5303, %v5295
    %v6648 = vpack.c.b16 %v5304, %v5296
    %v6649 = vpack.c.b16 %v5305, %v5297
    %v6650 = vpack.c.b16 %v5306, %v5298
    %v6651 = vpack.c.b16 %v5307, %v5299
    %v6652 = vpack.c.b16 %v5308, %v5300
    %v6653 = vpack.c.b16 %v5309, %v5301
    %v6654 = vpack.c.b16 %v5310, %v5302
    %v6655 = vpack.c.b16 %v5319, %v5311
    %v6656 = vpack.c.b16 %v5320, %v5312
    %v6657 = vpack.c.b16 %v5321, %v5313
    %v6658 = vpack.c.b16 %v5322, %v5314
    %v6659 = vpack.c.b16 %v5323, %v5315
    %v6660 = vpack.c.b16 %v5324, %v5316
    %v6661 = vpack.c.b16 %v5325, %v5317
    %v6662 = vpack.c.b16 %v5326, %v5318
    %v6663 = vpack.c.b16 %v5335, %v5327
    %v6664 = vpack.c.b16 %v5336, %v5328
    %v6665 = vpack.c.b16 %v5337, %v5329
    %v6666 = vpack.c.b16 %v5338, %v5330
    %v6667 = vpack.c.b16 %v5339, %v5331
    %v6668 = vpack.c.b16 %v5340, %v5332
    %v6669 = vpack.c.b16 %v5341, %v5333
    %v6670 = vpack.c.b16 %v5342, %v5334
    %v6671 = vpack.c.b16 %v5351, %v5343
    %v6672 = vpack.c.b16 %v5352, %v5344
    %v6673 = vpack.c.b16 %v5353, %v5345
    %v6674 = vpack.c.b16 %v5354, %v5346
    %v6675 = vpack.c.b16 %v5355, %v5347
    %v6676 = vpack.c.b16 %v5356, %v5348
    %v6677 = vpack.c.b16 %v5357, %v5349
    %v6678 = vpack.c.b16 %v5358, %v5350
    %v6679 = vpack.c.b16 %v5367, %v5359
    %v6680 = vpack.c.b16 %v5368, %v5360
    %v6681 = vpack.c.b16 %v5369, %v5361
    %v6682 = vpack.c.b16 %v5370, %v5362
    %v6683 = vpack.c.b16 %v5371, %v5363
    %v6684 = vpack.c.b16 %v5372, %v5364
    %v6685 = vpack.c.b16 %v5373, %v5365
    %v6686 = vpack.c.b16 %v5374, %v5366
    %v6687 = vpack.c.b16 %v5383, %v5375
    %v6688 = vpack.c.b16 %v5384, %v5376
    %v6689 = vpack.c.b16 %v5385, %v5377
    %v6690 = vpack.c.b16 %v5386, %v5378
    %v6691 = vpack.c.b16 %v5387, %v5379
    %v6692 = vpack.c.b16 %v5388, %v5380
    %v6693 = vpack.c.b16 %v5389, %v5381
    %v6694 = vpack.c.b16 %v5390, %v5382
    %v6695 = vpack.c.b16 %v5399, %v5391
    %v6696 = vpack.c.b16 %v5400, %v5392
    %v6697 = vpack.c.b16 %v5401, %v5393
    %v6698 = vpack.c.b16 %v5402, %v5394
    %v6699 = vpack.c.b16 %v5403, %v5395
    %v6700 = vpack.c.b16 %v5404, %v5396
    %v6701 = vpack.c.b16 %v5405, %v5397
    %v6702 = vpack.c.b16 %v5406, %v5398
    %v6703 = vpack.c.b16 %v5415, %v5407
    %v6704 = vpack.c.b16 %v5416, %v5408
    %v6705 = vpack.c.b16 %v5417, %v5409
    %v6706 = vpack.c.b16 %v5418, %v5410
    %v6707 = vpack.c.b16 %v5419, %v5411
    %v6708 = vpack.c.b16 %v5420, %v5412
    %v6709 = vpack.c.b16 %v5421, %v5413
    %v6710 = vpack.c.b16 %v5422, %v5414
    %v6711 = vpack.c.b16 %v5431, %v5423
    %v6712 = vpack.c.b16 %v5432, %v5424
    %v6713 = vpack.c.b16 %v5433, %v5425
    %v6714 = vpack.c.b16 %v5434, %v5426
    %v6715 = vpack.c.b16 %v5435, %v5427
    %v6716 = vpack.c.b16 %v5436, %v5428
    %v6717 = vpack.c.b16 %v5437, %v5429
    %v6718 = vpack.c.b16 %v5438, %v5430
    %v6719 = vpack.c.b16 %v5447, %v5439
    %v6720 = vpack.c.b16 %v5448, %v5440
    %v6721 = vpack.c.b16 %v5449, %v5441
    %v6722 = vpack.c.b16 %v5450, %v5442
    %v6723 = vpack.c.b16 %v5451, %v5443
    %v6724 = vpack.c.b16 %v5452, %v5444
    %v6725 = vpack.c.b16 %v5453, %v5445
    %v6726 = vpack.c.b16 %v5454, %v5446
    %v6727 = vpack.c.b16 %v5463, %v5455
    %v6728 = vpack.c.b16 %v5464, %v5456
    %v6729 = vpack.c.b16 %v5465, %v5457
    %v6730 = vpack.c.b16 %v5466, %v5458
    %v6731 = vpack.c.b16 %v5467, %v5459
    %v6732 = vpack.c.b16 %v5468, %v5460
    %v6733 = vpack.c.b16 %v5469, %v5461
    %v6734 = vpack.c.b16 %v5470, %v5462
    %v6735 = vpack.c.b16 %v5479, %v5471
    %v6736 = vpack.c.b16 %v5480, %v5472
    %v6737 = vpack.c.b16 %v5481, %v5473
    %v6738 = vpack.c.b16 %v5482, %v5474
    %v6739 = vpack.c.b16 %v5483, %v5475
    %v6740 = vpack.c.b16 %v5484, %v5476
    %v6741 = vpack.c.b16 %v5485, %v5477
    %v6742 = vpack.c.b16 %v5486, %v5478
    %v6743 = vpack.c.b16 %v5495, %v5487
    %v6744 = vpack.c.b16 %v5496, %v5488
    %v6745 = vpack.c.b16 %v5497, %v5489
    %v6746 = vpack.c.b16 %v5498, %v5490
    %v6747 = vpack.c.b16 %v5499, %v5491
    %v6748 = vpack.c.b16 %v5500, %v5492
    %v6749 = vpack.c.b16 %v5501, %v5493
    %v6750 = vpack.c.b16 %v5502, %v5494
    %v6751 = vpack.c.b16 %v5511, %v5503
    %v6752 = vpack.c.b16 %v5512, %v5504
    %v6753 = vpack.c.b16 %v5513, %v5505
    %v6754 = vpack.c.b16 %v5514, %v5506
    %v6755 = vpack.c.b16 %v5515, %v5507
    %v6756 = vpack.c.b16 %v5516, %v5508
    %v6757 = vpack.c.b16 %v5517, %v5509
    %v6758 = vpack.c.b16 %v5518, %v5510
    %v6759 = vpack.c.b16 %v5527, %v5519
    %v6760 = vpack.c.b16 %v5528, %v5520
    %v6761 = vpack.c.b16 %v5529, %v5521
    %v6762 = vpack.c.b16 %v5530, %v5522
    %v6763 = vpack.c.b16 %v5531, %v5523
    %v6764 = vpack.c.b16 %v5532, %v5524
    %v6765 = vpack.c.b16 %v5533, %v5525
    %v6766 = vpack.c.b16 %v5534, %v5526
    %v6767 = vpack.c.b16 %v5543, %v5535
    %v6768 = vpack.c.b16 %v5544, %v5536
    %v6769 = vpack.c.b16 %v5545, %v5537
    %v6770 = vpack.c.b16 %v5546, %v5538
    %v6771 = vpack.c.b16 %v5547, %v5539
    %v6772 = vpack.c.b16 %v5548, %v5540
    %v6773 = vpack.c.b16 %v5549, %v5541
    %v6774 = vpack.c.b16 %v5550, %v5542
    %v6775 = vpack.c.b16 %v5559, %v5551
    %v6776 = vpack.c.b16 %v5560, %v5552
    %v6777 = vpack.c.b16 %v5561, %v5553
    %v6778 = vpack.c.b16 %v5562, %v5554
    %v6779 = vpack.c.b16 %v5563, %v5555
    %v6780 = vpack.c.b16 %v5564, %v5556
    %v6781 = vpack.c.b16 %v5565, %v5557
    %v6782 = vpack.c.b16 %v5566, %v5558
    %v6783 = vpack.c.b16 %v5575, %v5567
    %v6784 = vpack.c.b16 %v5576, %v5568
    %v6785 = vpack.c.b16 %v5577, %v5569
    %v6786 = vpack.c.b16 %v5578, %v5570
    %v6787 = vpack.c.b16 %v5579, %v5571
    %v6788 = vpack.c.b16 %v5580, %v5572
    %v6789 = vpack.c.b16 %v5581, %v5573
    %v6790 = vpack.c.b16 %v5582, %v5574
    %v6791 = vpack.c.b16 %v5591, %v5583
    %v6792 = vpack.c.b16 %v5592, %v5584
    %v6793 = vpack.c.b16 %v5593, %v5585
    %v6794 = vpack.c.b16 %v5594, %v5586
    %v6795 = vpack.c.b16 %v5595, %v5587
    %v6796 = vpack.c.b16 %v5596, %v5588
    %v6797 = vpack.c.b16 %v5597, %v5589
    %v6798 = vpack.c.b16 %v5598, %v5590
    %v6799 = vpack.c.b16 %v5607, %v5599
    %v6800 = vpack.c.b16 %v5608, %v5600
    %v6801 = vpack.c.b16 %v5609, %v5601
    %v6802 = vpack.c.b16 %v5610, %v5602
    %v6803 = vpack.c.b16 %v5611, %v5603
    %v6804 = vpack.c.b16 %v5612, %v5604
    %v6805 = vpack.c.b16 %v5613, %v5605
    %v6806 = vpack.c.b16 %v5614, %v5606
    %v6807 = vpack.c.b16 %v5623, %v5615
    %v6808 = vpack.c.b16 %v5624, %v5616
    %v6809 = vpack.c.b16 %v5625, %v5617
    %v6810 = vpack.c.b16 %v5626, %v5618
    %v6811 = vpack.c.b16 %v5627, %v5619
    %v6812 = vpack.c.b16 %v5628, %v5620
    %v6813 = vpack.c.b16 %v5629, %v5621
    %v6814 = vpack.c.b16 %v5630, %v5622
    %v6815 = vpack.c.b16 %v5639, %v5631
    %v6816 = vpack.c.b16 %v5640, %v5632
    %v6817 = vpack.c.b16 %v5641, %v5633
    %v6818 = vpack.c.b16 %v5642, %v5634
    %v6819 = vpack.c.b16 %v5643, %v5635
    %v6820 = vpack.c.b16 %v5644, %v5636
    %v6821 = vpack.c.b16 %v5645, %v5637
    %v6822 = vpack.c.b16 %v5646, %v5638
    %v6823 = vpack.c.b16 %v5655, %v5647
    %v6824 = vpack.c.b16 %v5656, %v5648
    %v6825 = vpack.c.b16 %v5657, %v5649
    %v6826 = vpack.c.b16 %v5658, %v5650
    %v6827 = vpack.c.b16 %v5659, %v5651
    %v6828 = vpack.c.b16 %v5660, %v5652
    %v6829 = vpack.c.b16 %v5661, %v5653
    %v6830 = vpack.c.b16 %v5662, %v5654
    %v6831 = vpack.c.b16 %v5671, %v5663
    %v6832 = vpack.c.b16 %v5672, %v5664
    %v6833 = vpack.c.b16 %v5673, %v5665
    %v6834 = vpack.c.b16 %v5674, %v5666
    %v6835 = vpack.c.b16 %v5675, %v5667
    %v6836 = vpack.c.b16 %v5676, %v5668
    %v6837 = vpack.c.b16 %v5677, %v5669
    %v6838 = vpack.c.b16 %v5678, %v5670
    %v6839 = vpack.c.b16 %v5687, %v5679
    %v6840 = vpack.c.b16 %v5688, %v5680
    %v6841 = vpack.c.b16 %v5689, %v5681
    %v6842 = vpack.c.b16 %v5690, %v5682
    %v6843 = vpack.c.b16 %v5691, %v5683
    %v6844 = vpack.c.b16 %v5692, %v5684
    %v6845 = vpack.c.b16 %v5693, %v5685
    %v6846 = vpack.c.b16 %v5694, %v5686
    %v6847 = vpack.c.b16 %v5703, %v5695
    %v6848 = vpack.c.b16 %v5704, %v5696
    %v6849 = vpack.c.b16 %v5705, %v5697
    %v6850 = vpack.c.b16 %v5706, %v5698
    %v6851 = vpack.c.b16 %v5707, %v5699
    %v6852 = vpack.c.b16 %v5708, %v5700
    %v6853 = vpack.c.b16 %v5709, %v5701
    %v6854 = vpack.c.b16 %v5710, %v5702
    %v6855 = vpack.c.b16 %v5719, %v5711
    %v6856 = vpack.c.b16 %v5720, %v5712
    %v6857 = vpack.c.b16 %v5721, %v5713
    %v6858 = vpack.c.b16 %v5722, %v5714
    %v6859 = vpack.c.b16 %v5723, %v5715
    %v6860 = vpack.c.b16 %v5724, %v5716
    %v6861 = vpack.c.b16 %v5725, %v5717
    %v6862 = vpack.c.b16 %v5726, %v5718
    %v6863 = vpack.c.b16 %v5735, %v5727
    %v6864 = vpack.c.b16 %v5736, %v5728
    %v6865 = vpack.c.b16 %v5737, %v5729
    %v6866 = vpack.c.b16 %v5738, %v5730
    %v6867 = vpack.c.b16 %v5739, %v5731
    %v6868 = vpack.c.b16 %v5740, %v5732
    %v6869 = vpack.c.b16 %v5741, %v5733
    %v6870 = vpack.c.b16 %v5742, %v5734
    %v6871 = vpack.c.b16 %v5751, %v5743
    %v6872 = vpack.c.b16 %v5752, %v5744
    %v6873 = vpack.c.b16 %v5753, %v5745
    %v6874 = vpack.c.b16 %v5754, %v5746
    %v6875 = vpack.c.b16 %v5755, %v5747
    %v6876 = vpack.c.b16 %v5756, %v5748
    %v6877 = vpack.c.b16 %v5757, %v5749
    %v6878 = vpack.c.b16 %v5758, %v5750
    %v6879 = vpack.c.b16 %v5767, %v5759
    %v6880 = vpack.c.b16 %v5768, %v5760
    %v6881 = vpack.c.b16 %v5769, %v5761
    %v6882 = vpack.c.b16 %v5770, %v5762
    %v6883 = vpack.c.b16 %v5771, %v5763
    %v6884 = vpack.c.b16 %v5772, %v5764
    %v6885 = vpack.c.b16 %v5773, %v5765
    %v6886 = vpack.c.b16 %v5774, %v5766
    %v6887 = vpack.c.b16 %v5783, %v5775
    %v6888 = vpack.c.b16 %v5784, %v5776
    %v6889 = vpack.c.b16 %v5785, %v5777
    %v6890 = vpack.c.b16 %v5786, %v5778
    %v6891 = vpack.c.b16 %v5787, %v5779
    %v6892 = vpack.c.b16 %v5788, %v5780
    %v6893 = vpack.c.b16 %v5789, %v5781
    %v6894 = vpack.c.b16 %v5790, %v5782
    %v6895 = vpack.c.b16 %v5799, %v5791
    %v6896 = vpack.c.b16 %v5800, %v5792
    %v6897 = vpack.c.b16 %v5801, %v5793
    %v6898 = vpack.c.b16 %v5802, %v5794
    %v6899 = vpack.c.b16 %v5803, %v5795
    %v6900 = vpack.c.b16 %v5804, %v5796
    %v6901 = vpack.c.b16 %v5805, %v5797
    %v6902 = vpack.c.b16 %v5806, %v5798
    %v6903 = vpack.c.b16 %v5815, %v5807
    %v6904 = vpack.c.b16 %v5816, %v5808
    %v6905 = vpack.c.b16 %v5817, %v5809
    %v6906 = vpack.c.b16 %v5818, %v5810
    %v6907 = vpack.c.b16 %v5819, %v5811
    %v6908 = vpack.c.b16 %v5820, %v5812
    %v6909 = vpack.c.b16 %v5821, %v5813
    %v6910 = vpack.c.b16 %v5822, %v5814
    %v6911 = vpack.c.b16 %v5831, %v5823
    %v6912 = vpack.c.b16 %v5832, %v5824
    %v6913 = vpack.c.b16 %v5833, %v5825
    %v6914 = vpack.c.b16 %v5834, %v5826
    %v6915 = vpack.c.b16 %v5835, %v5827
    %v6916 = vpack.c.b16 %v5836, %v5828
    %v6917 = vpack.c.b16 %v5837, %v5829
    %v6918 = vpack.c.b16 %v5838, %v5830
    %v6919 = vpack.c.b16 %v5847, %v5839
    %v6920 = vpack.c.b16 %v5848, %v5840
    %v6921 = vpack.c.b16 %v5849, %v5841
    %v6922 = vpack.c.b16 %v5850, %v5842
    %v6923 = vpack.c.b16 %v5851, %v5843
    %v6924 = vpack.c.b16 %v5852, %v5844
    %v6925 = vpack.c.b16 %v5853, %v5845
    %v6926 = vpack.c.b16 %v5854, %v5846
    %v6927 = vpack.c.b16 %v5863, %v5855
    %v6928 = vpack.c.b16 %v5864, %v5856
    %v6929 = vpack.c.b16 %v5865, %v5857
    %v6930 = vpack.c.b16 %v5866, %v5858
    %v6931 = vpack.c.b16 %v5867, %v5859
    %v6932 = vpack.c.b16 %v5868, %v5860
    %v6933 = vpack.c.b16 %v5869, %v5861
    %v6934 = vpack.c.b16 %v5870, %v5862
    %v6935 = vpack.c.b16 %v5879, %v5871
    %v6936 = vpack.c.b16 %v5880, %v5872
    %v6937 = vpack.c.b16 %v5881, %v5873
    %v6938 = vpack.c.b16 %v5882, %v5874
    %v6939 = vpack.c.b16 %v5883, %v5875
    %v6940 = vpack.c.b16 %v5884, %v5876
    %v6941 = vpack.c.b16 %v5885, %v5877
    %v6942 = vpack.c.b16 %v5886, %v5878
    %v6943 = vpack.c.b16 %v5895, %v5887
    %v6944 = vpack.c.b16 %v5896, %v5888
    %v6945 = vpack.c.b16 %v5897, %v5889
    %v6946 = vpack.c.b16 %v5898, %v5890
    %v6947 = vpack.c.b16 %v5899, %v5891
    %v6948 = vpack.c.b16 %v5900, %v5892
    %v6949 = vpack.c.b16 %v5901, %v5893
    %v6950 = vpack.c.b16 %v5902, %v5894
    %v6951 = vpack.c.b16 %v5911, %v5903
    %v6952 = vpack.c.b16 %v5912, %v5904
    %v6953 = vpack.c.b16 %v5913, %v5905
    %v6954 = vpack.c.b16 %v5914, %v5906
    %v6955 = vpack.c.b16 %v5915, %v5907
    %v6956 = vpack.c.b16 %v5916, %v5908
    %v6957 = vpack.c.b16 %v5917, %v5909
    %v6958 = vpack.c.b16 %v5918, %v5910
    %v6959 = vpack.c.b16 %v5927, %v5919
    %v6960 = vpack.c.b16 %v5928, %v5920
    %v6961 = vpack.c.b16 %v5929, %v5921
    %v6962 = vpack.c.b16 %v5930, %v5922
    %v6963 = vpack.c.b16 %v5931, %v5923
    %v6964 = vpack.c.b16 %v5932, %v5924
    %v6965 = vpack.c.b16 %v5933, %v5925
    %v6966 = vpack.c.b16 %v5934, %v5926
    %v6967 = vpack.c.b16 %v5943, %v5935
    %v6968 = vpack.c.b16 %v5944, %v5936
    %v6969 = vpack.c.b16 %v5945, %v5937
    %v6970 = vpack.c.b16 %v5946, %v5938
    %v6971 = vpack.c.b16 %v5947, %v5939
    %v6972 = vpack.c.b16 %v5948, %v5940
    %v6973 = vpack.c.b16 %v5949, %v5941
    %v6974 = vpack.c.b16 %v5950, %v5942
    %7999 = vmatprep.subr.bf16.mxu0 %v6008
    %8000 = vmatpush1.bf16.msra.mxu0 %v6007
    %8001 = vmatprep.subr.bf16.mxu0 %v6000
    %8002 = vmatpush1.bf16.msra.mxu0 %v5999
    %8003 = vmatprep.subr.bf16.mxu0 %v5992
    %8004 = vmatpush1.bf16.msra.mxu0 %v5991
    %8005 = vmatprep.subr.bf16.mxu0 %v5984
    %8006 = vmatpush1.bf16.msra.mxu0 %v5983
    %8007 = vmatprep.subr.bf16.mxu0 %v5976
    %8008 = vmatpush1.bf16.msra.mxu0 %v5975
    %8009 = vmatprep.subr.bf16.mxu0 %v5968
    %8010 = vmatpush1.bf16.msra.mxu0 %v5967
    %8011 = vmatprep.subr.bf16.mxu0 %v5960
    %8012 = vmatpush1.bf16.msra.mxu0 %v5959
    %8013 = vmatprep.subr.bf16.mxu0 %v5952
    %8014 = vmatpush1.bf16.msra.mxu0 %v5951
    %8015 = vmatprep.subr.bf16.mxu0 %v6072
    %8016 = vmatpush2.bf16.msra.mxu0 %v6071
    %8017 = vmatprep.subr.bf16.mxu0 %v6064
    %8018 = vmatpush2.bf16.msra.mxu0 %v6063
    %8019 = vmatprep.subr.bf16.mxu0 %v6056
    %8020 = vmatpush2.bf16.msra.mxu0 %v6055
    %8021 = vmatprep.subr.bf16.mxu0 %v6048
    %8022 = vmatpush2.bf16.msra.mxu0 %v6047
    %8023 = vmatprep.subr.bf16.mxu0 %v6040
    %8024 = vmatpush2.bf16.msra.mxu0 %v6039
    %8025 = vmatprep.subr.bf16.mxu0 %v6032
    %8026 = vmatpush2.bf16.msra.mxu0 %v6031
    %8027 = vmatprep.subr.bf16.mxu0 %v6024
    %8028 = vmatpush2.bf16.msra.mxu0 %v6023
    %8029 = vmatprep.subr.bf16.mxu0 %v6016
    %8030 = vmatpush2.bf16.msra.mxu0 %v6015
    %8031 = vmatprep.mubr.bf16.mxu0 %v1840
    %8032 = vmatmul.mubr.bf16.gmra.mxu0 %v1839
    %v8033 = vpop.f32.mrf.mxu0
    %v8034 = vadd.f32 0.0, %v8033
    %v8035 = vpop.f32.mrf.mxu0
    %v8036 = vadd.f32 0.0, %v8035
    %v8037 = vpop.f32.mrf.mxu0
    %v8038 = vpop.f32.mrf.mxu0
    %8039 = vdwg.mxu0
    %8040 = vmatprep.subr.bf16.mxu0 %v6136
    %8041 = vmatpush1.bf16.msra.mxu0 %v6135
    %8042 = vmatprep.subr.bf16.mxu0 %v6128
    %8043 = vmatpush1.bf16.msra.mxu0 %v6127
    %8044 = vmatprep.subr.bf16.mxu0 %v6120
    %8045 = vmatpush1.bf16.msra.mxu0 %v6119
    %8046 = vmatprep.subr.bf16.mxu0 %v6112
    %8047 = vmatpush1.bf16.msra.mxu0 %v6111
    %8048 = vmatprep.subr.bf16.mxu0 %v6104
    %8049 = vmatpush1.bf16.msra.mxu0 %v6103
    %8050 = vmatprep.subr.bf16.mxu0 %v6096
    %8051 = vmatpush1.bf16.msra.mxu0 %v6095
    %8052 = vmatprep.subr.bf16.mxu0 %v6088
    %8053 = vmatpush1.bf16.msra.mxu0 %v6087
    %8054 = vmatprep.subr.bf16.mxu0 %v6080
    %8055 = vmatpush1.bf16.msra.mxu0 %v6079
    %8056 = vmatprep.subr.bf16.mxu0 %v6200
    %8057 = vmatpush2.bf16.msra.mxu0 %v6199
    %8058 = vmatprep.subr.bf16.mxu0 %v6192
    %8059 = vmatpush2.bf16.msra.mxu0 %v6191
    %8060 = vmatprep.subr.bf16.mxu0 %v6184
    %8061 = vmatpush2.bf16.msra.mxu0 %v6183
    %8062 = vmatprep.subr.bf16.mxu0 %v6176
    %8063 = vmatpush2.bf16.msra.mxu0 %v6175
    %8064 = vmatprep.subr.bf16.mxu0 %v6168
    %8065 = vmatpush2.bf16.msra.mxu0 %v6167
    %8066 = vmatprep.subr.bf16.mxu0 %v6160
    %8067 = vmatpush2.bf16.msra.mxu0 %v6159
    %8068 = vmatprep.subr.bf16.mxu0 %v6152
    %8069 = vmatpush2.bf16.msra.mxu0 %v6151
    %8070 = vmatprep.subr.bf16.mxu0 %v6144
    %8071 = vmatpush2.bf16.msra.mxu0 %v6143
    %8072 = vmatprep.mubr.bf16.mxu0 %v1842
    %8073 = vmatmul.mubr.bf16.gmra.mxu0 %v1841
    %v8074 = vpop.f32.mrf.mxu0
    %v8075 = vadd.f32 %v8034, %v8074
    %v8076 = vpop.f32.mrf.mxu0
    %v8077 = vadd.f32 %v8036, %v8076
    %v8078 = vpop.f32.mrf.mxu0
    %v8079 = vpop.f32.mrf.mxu0
    %8080 = vdwg.mxu0
    %8081 = vmatprep.subr.bf16.mxu0 %v6264
    %8082 = vmatpush1.bf16.msra.mxu0 %v6263
    %8083 = vmatprep.subr.bf16.mxu0 %v6256
    %8084 = vmatpush1.bf16.msra.mxu0 %v6255
    %8085 = vmatprep.subr.bf16.mxu0 %v6248
    %8086 = vmatpush1.bf16.msra.mxu0 %v6247
    %8087 = vmatprep.subr.bf16.mxu0 %v6240
    %8088 = vmatpush1.bf16.msra.mxu0 %v6239
    %8089 = vmatprep.subr.bf16.mxu0 %v6232
    %8090 = vmatpush1.bf16.msra.mxu0 %v6231
    %8091 = vmatprep.subr.bf16.mxu0 %v6224
    %8092 = vmatpush1.bf16.msra.mxu0 %v6223
    %8093 = vmatprep.subr.bf16.mxu0 %v6216
    %8094 = vmatpush1.bf16.msra.mxu0 %v6215
    %8095 = vmatprep.subr.bf16.mxu0 %v6208
    %8096 = vmatpush1.bf16.msra.mxu0 %v6207
    %8097 = vmatprep.subr.bf16.mxu0 %v6328
    %8098 = vmatpush2.bf16.msra.mxu0 %v6327
    %8099 = vmatprep.subr.bf16.mxu0 %v6320
    %8100 = vmatpush2.bf16.msra.mxu0 %v6319
    %8101 = vmatprep.subr.bf16.mxu0 %v6312
    %8102 = vmatpush2.bf16.msra.mxu0 %v6311
    %8103 = vmatprep.subr.bf16.mxu0 %v6304
    %8104 = vmatpush2.bf16.msra.mxu0 %v6303
    %8105 = vmatprep.subr.bf16.mxu0 %v6296
    %8106 = vmatpush2.bf16.msra.mxu0 %v6295
    %8107 = vmatprep.subr.bf16.mxu0 %v6288
    %8108 = vmatpush2.bf16.msra.mxu0 %v6287
    %8109 = vmatprep.subr.bf16.mxu0 %v6280
    %8110 = vmatpush2.bf16.msra.mxu0 %v6279
    %8111 = vmatprep.subr.bf16.mxu0 %v6272
    %8112 = vmatpush2.bf16.msra.mxu0 %v6271
    %8113 = vmatprep.mubr.bf16.mxu0 %v1844
    %8114 = vmatmul.mubr.bf16.gmra.mxu0 %v1843
    %v8115 = vpop.f32.mrf.mxu0
    %v8116 = vadd.f32 %v8075, %v8115
    %v8117 = vpop.f32.mrf.mxu0
    %v8118 = vadd.f32 %v8077, %v8117
    %v8119 = vpop.f32.mrf.mxu0
    %v8120 = vpop.f32.mrf.mxu0
    %8121 = vdwg.mxu0
    %8122 = vmatprep.subr.bf16.mxu0 %v6392
    %8123 = vmatpush1.bf16.msra.mxu0 %v6391
    %8124 = vmatprep.subr.bf16.mxu0 %v6384
    %8125 = vmatpush1.bf16.msra.mxu0 %v6383
    %8126 = vmatprep.subr.bf16.mxu0 %v6376
    %8127 = vmatpush1.bf16.msra.mxu0 %v6375
    %8128 = vmatprep.subr.bf16.mxu0 %v6368
    %8129 = vmatpush1.bf16.msra.mxu0 %v6367
    %8130 = vmatprep.subr.bf16.mxu0 %v6360
    %8131 = vmatpush1.bf16.msra.mxu0 %v6359
    %8132 = vmatprep.subr.bf16.mxu0 %v6352
    %8133 = vmatpush1.bf16.msra.mxu0 %v6351
    %8134 = vmatprep.subr.bf16.mxu0 %v6344
    %8135 = vmatpush1.bf16.msra.mxu0 %v6343
    %8136 = vmatprep.subr.bf16.mxu0 %v6336
    %8137 = vmatpush1.bf16.msra.mxu0 %v6335
    %8138 = vmatprep.subr.bf16.mxu0 %v6456
    %8139 = vmatpush2.bf16.msra.mxu0 %v6455
    %8140 = vmatprep.subr.bf16.mxu0 %v6448
    %8141 = vmatpush2.bf16.msra.mxu0 %v6447
    %8142 = vmatprep.subr.bf16.mxu0 %v6440
    %8143 = vmatpush2.bf16.msra.mxu0 %v6439
    %8144 = vmatprep.subr.bf16.mxu0 %v6432
    %8145 = vmatpush2.bf16.msra.mxu0 %v6431
    %8146 = vmatprep.subr.bf16.mxu0 %v6424
    %8147 = vmatpush2.bf16.msra.mxu0 %v6423
    %8148 = vmatprep.subr.bf16.mxu0 %v6416
    %8149 = vmatpush2.bf16.msra.mxu0 %v6415
    %8150 = vmatprep.subr.bf16.mxu0 %v6408
    %8151 = vmatpush2.bf16.msra.mxu0 %v6407
    %8152 = vmatprep.subr.bf16.mxu0 %v6400
    %8153 = vmatpush2.bf16.msra.mxu0 %v6399
    %8154 = vmatprep.mubr.bf16.mxu0 %v1846
    %8155 = vmatmul.mubr.bf16.gmra.mxu0 %v1845
    %v8156 = vpop.f32.mrf.mxu0
    %v8157 = vadd.f32 %v8116, %v8156
    %v8158 = vpop.f32.mrf.mxu0
    %v8159 = vadd.f32 %v8118, %v8158
    %v8160 = vpop.f32.mrf.mxu0
    %v8161 = vpop.f32.mrf.mxu0
    %8162 = vdwg.mxu0
    %8163 = vmatprep.subr.bf16.mxu0 %v6520
    %8164 = vmatpush1.bf16.msra.mxu0 %v6519
    %8165 = vmatprep.subr.bf16.mxu0 %v6512
    %8166 = vmatpush1.bf16.msra.mxu0 %v6511
    %8167 = vmatprep.subr.bf16.mxu0 %v6504
    %8168 = vmatpush1.bf16.msra.mxu0 %v6503
    %8169 = vmatprep.subr.bf16.mxu0 %v6496
    %8170 = vmatpush1.bf16.msra.mxu0 %v6495
    %8171 = vmatprep.subr.bf16.mxu0 %v6488
    %8172 = vmatpush1.bf16.msra.mxu0 %v6487
    %8173 = vmatprep.subr.bf16.mxu0 %v6480
    %8174 = vmatpush1.bf16.msra.mxu0 %v6479
    %8175 = vmatprep.subr.bf16.mxu0 %v6472
    %8176 = vmatpush1.bf16.msra.mxu0 %v6471
    %8177 = vmatprep.subr.bf16.mxu0 %v6464
    %8178 = vmatpush1.bf16.msra.mxu0 %v6463
    %8179 = vmatprep.subr.bf16.mxu0 %v6584
    %8180 = vmatpush2.bf16.msra.mxu0 %v6583
    %8181 = vmatprep.subr.bf16.mxu0 %v6576
    %8182 = vmatpush2.bf16.msra.mxu0 %v6575
    %8183 = vmatprep.subr.bf16.mxu0 %v6568
    %8184 = vmatpush2.bf16.msra.mxu0 %v6567
    %8185 = vmatprep.subr.bf16.mxu0 %v6560
    %8186 = vmatpush2.bf16.msra.mxu0 %v6559
    %8187 = vmatprep.subr.bf16.mxu0 %v6552
    %8188 = vmatpush2.bf16.msra.mxu0 %v6551
    %8189 = vmatprep.subr.bf16.mxu0 %v6544
    %8190 = vmatpush2.bf16.msra.mxu0 %v6543
    %8191 = vmatprep.subr.bf16.mxu0 %v6536
    %8192 = vmatpush2.bf16.msra.mxu0 %v6535
    %8193 = vmatprep.subr.bf16.mxu0 %v6528
    %8194 = vmatpush2.bf16.msra.mxu0 %v6527
    %8195 = vmatprep.mubr.bf16.mxu0 %v1848
    %8196 = vmatmul.mubr.bf16.gmra.mxu0 %v1847
    %v8197 = vpop.f32.mrf.mxu0
    %v8198 = vadd.f32 %v8157, %v8197
    %v8199 = vpop.f32.mrf.mxu0
    %v8200 = vadd.f32 %v8159, %v8199
    %v8201 = vpop.f32.mrf.mxu0
    %v8202 = vpop.f32.mrf.mxu0
    %8203 = vdwg.mxu0
    %8204 = vmatprep.subr.bf16.mxu0 %v6648
    %8205 = vmatpush1.bf16.msra.mxu0 %v6647
    %8206 = vmatprep.subr.bf16.mxu0 %v6640
    %8207 = vmatpush1.bf16.msra.mxu0 %v6639
    %8208 = vmatprep.subr.bf16.mxu0 %v6632
    %8209 = vmatpush1.bf16.msra.mxu0 %v6631
    %8210 = vmatprep.subr.bf16.mxu0 %v6624
    %8211 = vmatpush1.bf16.msra.mxu0 %v6623
    %8212 = vmatprep.subr.bf16.mxu0 %v6616
    %8213 = vmatpush1.bf16.msra.mxu0 %v6615
    %8214 = vmatprep.subr.bf16.mxu0 %v6608
    %8215 = vmatpush1.bf16.msra.mxu0 %v6607
    %8216 = vmatprep.subr.bf16.mxu0 %v6600
    %8217 = vmatpush1.bf16.msra.mxu0 %v6599
    %8218 = vmatprep.subr.bf16.mxu0 %v6592
    %8219 = vmatpush1.bf16.msra.mxu0 %v6591
    %8220 = vmatprep.subr.bf16.mxu0 %v6712
    %8221 = vmatpush2.bf16.msra.mxu0 %v6711
    %8222 = vmatprep.subr.bf16.mxu0 %v6704
    %8223 = vmatpush2.bf16.msra.mxu0 %v6703
    %8224 = vmatprep.subr.bf16.mxu0 %v6696
    %8225 = vmatpush2.bf16.msra.mxu0 %v6695
    %8226 = vmatprep.subr.bf16.mxu0 %v6688
    %8227 = vmatpush2.bf16.msra.mxu0 %v6687
    %8228 = vmatprep.subr.bf16.mxu0 %v6680
    %8229 = vmatpush2.bf16.msra.mxu0 %v6679
    %8230 = vmatprep.subr.bf16.mxu0 %v6672
    %8231 = vmatpush2.bf16.msra.mxu0 %v6671
    %8232 = vmatprep.subr.bf16.mxu0 %v6664
    %8233 = vmatpush2.bf16.msra.mxu0 %v6663
    %8234 = vmatprep.subr.bf16.mxu0 %v6656
    %8235 = vmatpush2.bf16.msra.mxu0 %v6655
    %8236 = vmatprep.mubr.bf16.mxu0 %v1850
    %8237 = vmatmul.mubr.bf16.gmra.mxu0 %v1849
    %v8238 = vpop.f32.mrf.mxu0
    %v8239 = vadd.f32 %v8198, %v8238
    %v8240 = vpop.f32.mrf.mxu0
    %v8241 = vadd.f32 %v8200, %v8240
    %v8242 = vpop.f32.mrf.mxu0
    %v8243 = vpop.f32.mrf.mxu0
    %8244 = vdwg.mxu0
    %8245 = vmatprep.subr.bf16.mxu0 %v6776
    %8246 = vmatpush1.bf16.msra.mxu0 %v6775
    %8247 = vmatprep.subr.bf16.mxu0 %v6768
    %8248 = vmatpush1.bf16.msra.mxu0 %v6767
    %8249 = vmatprep.subr.bf16.mxu0 %v6760
    %8250 = vmatpush1.bf16.msra.mxu0 %v6759
    %8251 = vmatprep.subr.bf16.mxu0 %v6752
    %8252 = vmatpush1.bf16.msra.mxu0 %v6751
    %8253 = vmatprep.subr.bf16.mxu0 %v6744
    %8254 = vmatpush1.bf16.msra.mxu0 %v6743
    %8255 = vmatprep.subr.bf16.mxu0 %v6736
    %8256 = vmatpush1.bf16.msra.mxu0 %v6735
    %8257 = vmatprep.subr.bf16.mxu0 %v6728
    %8258 = vmatpush1.bf16.msra.mxu0 %v6727
    %8259 = vmatprep.subr.bf16.mxu0 %v6720
    %8260 = vmatpush1.bf16.msra.mxu0 %v6719
    %8261 = vmatprep.subr.bf16.mxu0 %v6840
    %8262 = vmatpush2.bf16.msra.mxu0 %v6839
    %8263 = vmatprep.subr.bf16.mxu0 %v6832
    %8264 = vmatpush2.bf16.msra.mxu0 %v6831
    %8265 = vmatprep.subr.bf16.mxu0 %v6824
    %8266 = vmatpush2.bf16.msra.mxu0 %v6823
    %8267 = vmatprep.subr.bf16.mxu0 %v6816
    %8268 = vmatpush2.bf16.msra.mxu0 %v6815
    %8269 = vmatprep.subr.bf16.mxu0 %v6808
    %8270 = vmatpush2.bf16.msra.mxu0 %v6807
    %8271 = vmatprep.subr.bf16.mxu0 %v6800
    %8272 = vmatpush2.bf16.msra.mxu0 %v6799
    %8273 = vmatprep.subr.bf16.mxu0 %v6792
    %8274 = vmatpush2.bf16.msra.mxu0 %v6791
    %8275 = vmatprep.subr.bf16.mxu0 %v6784
    %8276 = vmatpush2.bf16.msra.mxu0 %v6783
    %8277 = vmatprep.mubr.bf16.mxu0 %v1852
    %8278 = vmatmul.mubr.bf16.gmra.mxu0 %v1851
    %v8279 = vpop.f32.mrf.mxu0
    %v8280 = vadd.f32 %v8239, %v8279
    %v8281 = vpop.f32.mrf.mxu0
    %v8282 = vadd.f32 %v8241, %v8281
    %v8283 = vpop.f32.mrf.mxu0
    %v8284 = vpop.f32.mrf.mxu0
    %8285 = vdwg.mxu0
    %8286 = vmatprep.subr.bf16.mxu0 %v6904
    %8287 = vmatpush1.bf16.msra.mxu0 %v6903
    %8288 = vmatprep.subr.bf16.mxu0 %v6896
    %8289 = vmatpush1.bf16.msra.mxu0 %v6895
    %8290 = vmatprep.subr.bf16.mxu0 %v6888
    %8291 = vmatpush1.bf16.msra.mxu0 %v6887
    %8292 = vmatprep.subr.bf16.mxu0 %v6880
    %8293 = vmatpush1.bf16.msra.mxu0 %v6879
    %8294 = vmatprep.subr.bf16.mxu0 %v6872
    %8295 = vmatpush1.bf16.msra.mxu0 %v6871
    %8296 = vmatprep.subr.bf16.mxu0 %v6864
    %8297 = vmatpush1.bf16.msra.mxu0 %v6863
    %8298 = vmatprep.subr.bf16.mxu0 %v6856
    %8299 = vmatpush1.bf16.msra.mxu0 %v6855
    %8300 = vmatprep.subr.bf16.mxu0 %v6848
    %8301 = vmatpush1.bf16.msra.mxu0 %v6847
    %8302 = vmatprep.subr.bf16.mxu0 %v6968
    %8303 = vmatpush2.bf16.msra.mxu0 %v6967
    %8304 = vmatprep.subr.bf16.mxu0 %v6960
    %8305 = vmatpush2.bf16.msra.mxu0 %v6959
    %8306 = vmatprep.subr.bf16.mxu0 %v6952
    %8307 = vmatpush2.bf16.msra.mxu0 %v6951
    %8308 = vmatprep.subr.bf16.mxu0 %v6944
    %8309 = vmatpush2.bf16.msra.mxu0 %v6943
    %8310 = vmatprep.subr.bf16.mxu0 %v6936
    %8311 = vmatpush2.bf16.msra.mxu0 %v6935
    %8312 = vmatprep.subr.bf16.mxu0 %v6928
    %8313 = vmatpush2.bf16.msra.mxu0 %v6927
    %8314 = vmatprep.subr.bf16.mxu0 %v6920
    %8315 = vmatpush2.bf16.msra.mxu0 %v6919
    %8316 = vmatprep.subr.bf16.mxu0 %v6912
    %8317 = vmatpush2.bf16.msra.mxu0 %v6911
    %8318 = vmatprep.mubr.bf16.mxu0 %v1854
    %8319 = vmatmul.mubr.bf16.gmra.mxu0 %v1853
    %v8320 = vpop.f32.mrf.mxu0
    %v8321 = vadd.f32 %v8280, %v8320
    %v8322 = vpop.f32.mrf.mxu0
    %v8323 = vadd.f32 %v8282, %v8322
    %v8324 = vpop.f32.mrf.mxu0
    %v8325 = vpop.f32.mrf.mxu0
    %8326 = vdwg.mxu0
    %8327 = vmatprep.subr.bf16.mxu0 %v6010
    %8328 = vmatpush1.bf16.msra.mxu0 %v6009
    %8329 = vmatprep.subr.bf16.mxu0 %v6002
    %8330 = vmatpush1.bf16.msra.mxu0 %v6001
    %8331 = vmatprep.subr.bf16.mxu0 %v5994
    %8332 = vmatpush1.bf16.msra.mxu0 %v5993
    %8333 = vmatprep.subr.bf16.mxu0 %v5986
    %8334 = vmatpush1.bf16.msra.mxu0 %v5985
    %8335 = vmatprep.subr.bf16.mxu0 %v5978
    %8336 = vmatpush1.bf16.msra.mxu0 %v5977
    %8337 = vmatprep.subr.bf16.mxu0 %v5970
    %8338 = vmatpush1.bf16.msra.mxu0 %v5969
    %8339 = vmatprep.subr.bf16.mxu0 %v5962
    %8340 = vmatpush1.bf16.msra.mxu0 %v5961
    %8341 = vmatprep.subr.bf16.mxu0 %v5954
    %8342 = vmatpush1.bf16.msra.mxu0 %v5953
    %8343 = vmatprep.subr.bf16.mxu0 %v6074
    %8344 = vmatpush2.bf16.msra.mxu0 %v6073
    %8345 = vmatprep.subr.bf16.mxu0 %v6066
    %8346 = vmatpush2.bf16.msra.mxu0 %v6065
    %8347 = vmatprep.subr.bf16.mxu0 %v6058
    %8348 = vmatpush2.bf16.msra.mxu0 %v6057
    %8349 = vmatprep.subr.bf16.mxu0 %v6050
    %8350 = vmatpush2.bf16.msra.mxu0 %v6049
    %8351 = vmatprep.subr.bf16.mxu0 %v6042
    %8352 = vmatpush2.bf16.msra.mxu0 %v6041
    %8353 = vmatprep.subr.bf16.mxu0 %v6034
    %8354 = vmatpush2.bf16.msra.mxu0 %v6033
    %8355 = vmatprep.subr.bf16.mxu0 %v6026
    %8356 = vmatpush2.bf16.msra.mxu0 %v6025
    %8357 = vmatprep.subr.bf16.mxu0 %v6018
    %8358 = vmatpush2.bf16.msra.mxu0 %v6017
    %8359 = vmatprep.mubr.bf16.mxu0 %v1840
    %8360 = vmatmul.mubr.bf16.gmra.mxu0 %v1839
    %v8361 = vpop.f32.mrf.mxu0
    %v8362 = vadd.f32 0.0, %v8361
    %v8363 = vpop.f32.mrf.mxu0
    %v8364 = vadd.f32 0.0, %v8363
    %v8365 = vpop.f32.mrf.mxu0
    %v8366 = vpop.f32.mrf.mxu0
    %8367 = vdwg.mxu0
    %8368 = vmatprep.subr.bf16.mxu0 %v6138
    %8369 = vmatpush1.bf16.msra.mxu0 %v6137
    %8370 = vmatprep.subr.bf16.mxu0 %v6130
    %8371 = vmatpush1.bf16.msra.mxu0 %v6129
    %8372 = vmatprep.subr.bf16.mxu0 %v6122
    %8373 = vmatpush1.bf16.msra.mxu0 %v6121
    %8374 = vmatprep.subr.bf16.mxu0 %v6114
    %8375 = vmatpush1.bf16.msra.mxu0 %v6113
    %8376 = vmatprep.subr.bf16.mxu0 %v6106
    %8377 = vmatpush1.bf16.msra.mxu0 %v6105
    %8378 = vmatprep.subr.bf16.mxu0 %v6098
    %8379 = vmatpush1.bf16.msra.mxu0 %v6097
    %8380 = vmatprep.subr.bf16.mxu0 %v6090
    %8381 = vmatpush1.bf16.msra.mxu0 %v6089
    %8382 = vmatprep.subr.bf16.mxu0 %v6082
    %8383 = vmatpush1.bf16.msra.mxu0 %v6081
    %8384 = vmatprep.subr.bf16.mxu0 %v6202
    %8385 = vmatpush2.bf16.msra.mxu0 %v6201
    %8386 = vmatprep.subr.bf16.mxu0 %v6194
    %8387 = vmatpush2.bf16.msra.mxu0 %v6193
    %8388 = vmatprep.subr.bf16.mxu0 %v6186
    %8389 = vmatpush2.bf16.msra.mxu0 %v6185
    %8390 = vmatprep.subr.bf16.mxu0 %v6178
    %8391 = vmatpush2.bf16.msra.mxu0 %v6177
    %8392 = vmatprep.subr.bf16.mxu0 %v6170
    %8393 = vmatpush2.bf16.msra.mxu0 %v6169
    %8394 = vmatprep.subr.bf16.mxu0 %v6162
    %8395 = vmatpush2.bf16.msra.mxu0 %v6161
    %8396 = vmatprep.subr.bf16.mxu0 %v6154
    %8397 = vmatpush2.bf16.msra.mxu0 %v6153
    %8398 = vmatprep.subr.bf16.mxu0 %v6146
    %8399 = vmatpush2.bf16.msra.mxu0 %v6145
    %8400 = vmatprep.mubr.bf16.mxu0 %v1842
    %8401 = vmatmul.mubr.bf16.gmra.mxu0 %v1841
    %v8402 = vpop.f32.mrf.mxu0
    %v8403 = vadd.f32 %v8362, %v8402
    %v8404 = vpop.f32.mrf.mxu0
    %v8405 = vadd.f32 %v8364, %v8404
    %v8406 = vpop.f32.mrf.mxu0
    %v8407 = vpop.f32.mrf.mxu0
    %8408 = vdwg.mxu0
    %8409 = vmatprep.subr.bf16.mxu0 %v6266
    %8410 = vmatpush1.bf16.msra.mxu0 %v6265
    %8411 = vmatprep.subr.bf16.mxu0 %v6258
    %8412 = vmatpush1.bf16.msra.mxu0 %v6257
    %8413 = vmatprep.subr.bf16.mxu0 %v6250
    %8414 = vmatpush1.bf16.msra.mxu0 %v6249
    %8415 = vmatprep.subr.bf16.mxu0 %v6242
    %8416 = vmatpush1.bf16.msra.mxu0 %v6241
    %8417 = vmatprep.subr.bf16.mxu0 %v6234
    %8418 = vmatpush1.bf16.msra.mxu0 %v6233
    %8419 = vmatprep.subr.bf16.mxu0 %v6226
    %8420 = vmatpush1.bf16.msra.mxu0 %v6225
    %8421 = vmatprep.subr.bf16.mxu0 %v6218
    %8422 = vmatpush1.bf16.msra.mxu0 %v6217
    %8423 = vmatprep.subr.bf16.mxu0 %v6210
    %8424 = vmatpush1.bf16.msra.mxu0 %v6209
    %8425 = vmatprep.subr.bf16.mxu0 %v6330
    %8426 = vmatpush2.bf16.msra.mxu0 %v6329
    %8427 = vmatprep.subr.bf16.mxu0 %v6322
    %8428 = vmatpush2.bf16.msra.mxu0 %v6321
    %8429 = vmatprep.subr.bf16.mxu0 %v6314
    %8430 = vmatpush2.bf16.msra.mxu0 %v6313
    %8431 = vmatprep.subr.bf16.mxu0 %v6306
    %8432 = vmatpush2.bf16.msra.mxu0 %v6305
    %8433 = vmatprep.subr.bf16.mxu0 %v6298
    %8434 = vmatpush2.bf16.msra.mxu0 %v6297
    %8435 = vmatprep.subr.bf16.mxu0 %v6290
    %8436 = vmatpush2.bf16.msra.mxu0 %v6289
    %8437 = vmatprep.subr.bf16.mxu0 %v6282
    %8438 = vmatpush2.bf16.msra.mxu0 %v6281
    %8439 = vmatprep.subr.bf16.mxu0 %v6274
    %8440 = vmatpush2.bf16.msra.mxu0 %v6273
    %8441 = vmatprep.mubr.bf16.mxu0 %v1844
    %8442 = vmatmul.mubr.bf16.gmra.mxu0 %v1843
    %v8443 = vpop.f32.mrf.mxu0
    %v8444 = vadd.f32 %v8403, %v8443
    %v8445 = vpop.f32.mrf.mxu0
    %v8446 = vadd.f32 %v8405, %v8445
    %v8447 = vpop.f32.mrf.mxu0
    %v8448 = vpop.f32.mrf.mxu0
    %8449 = vdwg.mxu0
    %8450 = vmatprep.subr.bf16.mxu0 %v6394
    %8451 = vmatpush1.bf16.msra.mxu0 %v6393
    %8452 = vmatprep.subr.bf16.mxu0 %v6386
    %8453 = vmatpush1.bf16.msra.mxu0 %v6385
    %8454 = vmatprep.subr.bf16.mxu0 %v6378
    %8455 = vmatpush1.bf16.msra.mxu0 %v6377
    %8456 = vmatprep.subr.bf16.mxu0 %v6370
    %8457 = vmatpush1.bf16.msra.mxu0 %v6369
    %8458 = vmatprep.subr.bf16.mxu0 %v6362
    %8459 = vmatpush1.bf16.msra.mxu0 %v6361
    %8460 = vmatprep.subr.bf16.mxu0 %v6354
    %8461 = vmatpush1.bf16.msra.mxu0 %v6353
    %8462 = vmatprep.subr.bf16.mxu0 %v6346
    %8463 = vmatpush1.bf16.msra.mxu0 %v6345
    %8464 = vmatprep.subr.bf16.mxu0 %v6338
    %8465 = vmatpush1.bf16.msra.mxu0 %v6337
    %8466 = vmatprep.subr.bf16.mxu0 %v6458
    %8467 = vmatpush2.bf16.msra.mxu0 %v6457
    %8468 = vmatprep.subr.bf16.mxu0 %v6450
    %8469 = vmatpush2.bf16.msra.mxu0 %v6449
    %8470 = vmatprep.subr.bf16.mxu0 %v6442
    %8471 = vmatpush2.bf16.msra.mxu0 %v6441
    %8472 = vmatprep.subr.bf16.mxu0 %v6434
    %8473 = vmatpush2.bf16.msra.mxu0 %v6433
    %8474 = vmatprep.subr.bf16.mxu0 %v6426
    %8475 = vmatpush2.bf16.msra.mxu0 %v6425
    %8476 = vmatprep.subr.bf16.mxu0 %v6418
    %8477 = vmatpush2.bf16.msra.mxu0 %v6417
    %8478 = vmatprep.subr.bf16.mxu0 %v6410
    %8479 = vmatpush2.bf16.msra.mxu0 %v6409
    %8480 = vmatprep.subr.bf16.mxu0 %v6402
    %8481 = vmatpush2.bf16.msra.mxu0 %v6401
    %8482 = vmatprep.mubr.bf16.mxu0 %v1846
    %8483 = vmatmul.mubr.bf16.gmra.mxu0 %v1845
    %v8484 = vpop.f32.mrf.mxu0
    %v8485 = vadd.f32 %v8444, %v8484
    %v8486 = vpop.f32.mrf.mxu0
    %v8487 = vadd.f32 %v8446, %v8486
    %v8488 = vpop.f32.mrf.mxu0
    %v8489 = vpop.f32.mrf.mxu0
    %8490 = vdwg.mxu0
    %8491 = vmatprep.subr.bf16.mxu0 %v6522
    %8492 = vmatpush1.bf16.msra.mxu0 %v6521
    %8493 = vmatprep.subr.bf16.mxu0 %v6514
    %8494 = vmatpush1.bf16.msra.mxu0 %v6513
    %8495 = vmatprep.subr.bf16.mxu0 %v6506
    %8496 = vmatpush1.bf16.msra.mxu0 %v6505
    %8497 = vmatprep.subr.bf16.mxu0 %v6498
    %8498 = vmatpush1.bf16.msra.mxu0 %v6497
    %8499 = vmatprep.subr.bf16.mxu0 %v6490
    %8500 = vmatpush1.bf16.msra.mxu0 %v6489
    %8501 = vmatprep.subr.bf16.mxu0 %v6482
    %8502 = vmatpush1.bf16.msra.mxu0 %v6481
    %8503 = vmatprep.subr.bf16.mxu0 %v6474
    %8504 = vmatpush1.bf16.msra.mxu0 %v6473
    %8505 = vmatprep.subr.bf16.mxu0 %v6466
    %8506 = vmatpush1.bf16.msra.mxu0 %v6465
    %8507 = vmatprep.subr.bf16.mxu0 %v6586
    %8508 = vmatpush2.bf16.msra.mxu0 %v6585
    %8509 = vmatprep.subr.bf16.mxu0 %v6578
    %8510 = vmatpush2.bf16.msra.mxu0 %v6577
    %8511 = vmatprep.subr.bf16.mxu0 %v6570
    %8512 = vmatpush2.bf16.msra.mxu0 %v6569
    %8513 = vmatprep.subr.bf16.mxu0 %v6562
    %8514 = vmatpush2.bf16.msra.mxu0 %v6561
    %8515 = vmatprep.subr.bf16.mxu0 %v6554
    %8516 = vmatpush2.bf16.msra.mxu0 %v6553
    %8517 = vmatprep.subr.bf16.mxu0 %v6546
    %8518 = vmatpush2.bf16.msra.mxu0 %v6545
    %8519 = vmatprep.subr.bf16.mxu0 %v6538
    %8520 = vmatpush2.bf16.msra.mxu0 %v6537
    %8521 = vmatprep.subr.bf16.mxu0 %v6530
    %8522 = vmatpush2.bf16.msra.mxu0 %v6529
    %8523 = vmatprep.mubr.bf16.mxu0 %v1848
    %8524 = vmatmul.mubr.bf16.gmra.mxu0 %v1847
    %v8525 = vpop.f32.mrf.mxu0
    %v8526 = vadd.f32 %v8485, %v8525
    %v8527 = vpop.f32.mrf.mxu0
    %v8528 = vadd.f32 %v8487, %v8527
    %v8529 = vpop.f32.mrf.mxu0
    %v8530 = vpop.f32.mrf.mxu0
    %8531 = vdwg.mxu0
    %8532 = vmatprep.subr.bf16.mxu0 %v6650
    %8533 = vmatpush1.bf16.msra.mxu0 %v6649
    %8534 = vmatprep.subr.bf16.mxu0 %v6642
    %8535 = vmatpush1.bf16.msra.mxu0 %v6641
    %8536 = vmatprep.subr.bf16.mxu0 %v6634
    %8537 = vmatpush1.bf16.msra.mxu0 %v6633
    %8538 = vmatprep.subr.bf16.mxu0 %v6626
    %8539 = vmatpush1.bf16.msra.mxu0 %v6625
    %8540 = vmatprep.subr.bf16.mxu0 %v6618
    %8541 = vmatpush1.bf16.msra.mxu0 %v6617
    %8542 = vmatprep.subr.bf16.mxu0 %v6610
    %8543 = vmatpush1.bf16.msra.mxu0 %v6609
    %8544 = vmatprep.subr.bf16.mxu0 %v6602
    %8545 = vmatpush1.bf16.msra.mxu0 %v6601
    %8546 = vmatprep.subr.bf16.mxu0 %v6594
    %8547 = vmatpush1.bf16.msra.mxu0 %v6593
    %8548 = vmatprep.subr.bf16.mxu0 %v6714
    %8549 = vmatpush2.bf16.msra.mxu0 %v6713
    %8550 = vmatprep.subr.bf16.mxu0 %v6706
    %8551 = vmatpush2.bf16.msra.mxu0 %v6705
    %8552 = vmatprep.subr.bf16.mxu0 %v6698
    %8553 = vmatpush2.bf16.msra.mxu0 %v6697
    %8554 = vmatprep.subr.bf16.mxu0 %v6690
    %8555 = vmatpush2.bf16.msra.mxu0 %v6689
    %8556 = vmatprep.subr.bf16.mxu0 %v6682
    %8557 = vmatpush2.bf16.msra.mxu0 %v6681
    %8558 = vmatprep.subr.bf16.mxu0 %v6674
    %8559 = vmatpush2.bf16.msra.mxu0 %v6673
    %8560 = vmatprep.subr.bf16.mxu0 %v6666
    %8561 = vmatpush2.bf16.msra.mxu0 %v6665
    %8562 = vmatprep.subr.bf16.mxu0 %v6658
    %8563 = vmatpush2.bf16.msra.mxu0 %v6657
    %8564 = vmatprep.mubr.bf16.mxu0 %v1850
    %8565 = vmatmul.mubr.bf16.gmra.mxu0 %v1849
    %v8566 = vpop.f32.mrf.mxu0
    %v8567 = vadd.f32 %v8526, %v8566
    %v8568 = vpop.f32.mrf.mxu0
    %v8569 = vadd.f32 %v8528, %v8568
    %v8570 = vpop.f32.mrf.mxu0
    %v8571 = vpop.f32.mrf.mxu0
    %8572 = vdwg.mxu0
    %8573 = vmatprep.subr.bf16.mxu0 %v6778
    %8574 = vmatpush1.bf16.msra.mxu0 %v6777
    %8575 = vmatprep.subr.bf16.mxu0 %v6770
    %8576 = vmatpush1.bf16.msra.mxu0 %v6769
    %8577 = vmatprep.subr.bf16.mxu0 %v6762
    %8578 = vmatpush1.bf16.msra.mxu0 %v6761
    %8579 = vmatprep.subr.bf16.mxu0 %v6754
    %8580 = vmatpush1.bf16.msra.mxu0 %v6753
    %8581 = vmatprep.subr.bf16.mxu0 %v6746
    %8582 = vmatpush1.bf16.msra.mxu0 %v6745
    %8583 = vmatprep.subr.bf16.mxu0 %v6738
    %8584 = vmatpush1.bf16.msra.mxu0 %v6737
    %8585 = vmatprep.subr.bf16.mxu0 %v6730
    %8586 = vmatpush1.bf16.msra.mxu0 %v6729
    %8587 = vmatprep.subr.bf16.mxu0 %v6722
    %8588 = vmatpush1.bf16.msra.mxu0 %v6721
    %8589 = vmatprep.subr.bf16.mxu0 %v6842
    %8590 = vmatpush2.bf16.msra.mxu0 %v6841
    %8591 = vmatprep.subr.bf16.mxu0 %v6834
    %8592 = vmatpush2.bf16.msra.mxu0 %v6833
    %8593 = vmatprep.subr.bf16.mxu0 %v6826
    %8594 = vmatpush2.bf16.msra.mxu0 %v6825
    %8595 = vmatprep.subr.bf16.mxu0 %v6818
    %8596 = vmatpush2.bf16.msra.mxu0 %v6817
    %8597 = vmatprep.subr.bf16.mxu0 %v6810
    %8598 = vmatpush2.bf16.msra.mxu0 %v6809
    %8599 = vmatprep.subr.bf16.mxu0 %v6802
    %8600 = vmatpush2.bf16.msra.mxu0 %v6801
    %8601 = vmatprep.subr.bf16.mxu0 %v6794
    %8602 = vmatpush2.bf16.msra.mxu0 %v6793
    %8603 = vmatprep.subr.bf16.mxu0 %v6786
    %8604 = vmatpush2.bf16.msra.mxu0 %v6785
    %8605 = vmatprep.mubr.bf16.mxu0 %v1852
    %8606 = vmatmul.mubr.bf16.gmra.mxu0 %v1851
    %v8607 = vpop.f32.mrf.mxu0
    %v8608 = vadd.f32 %v8567, %v8607
    %v8609 = vpop.f32.mrf.mxu0
    %v8610 = vadd.f32 %v8569, %v8609
    %v8611 = vpop.f32.mrf.mxu0
    %v8612 = vpop.f32.mrf.mxu0
    %8613 = vdwg.mxu0
    %8614 = vmatprep.subr.bf16.mxu0 %v6906
    %8615 = vmatpush1.bf16.msra.mxu0 %v6905
    %8616 = vmatprep.subr.bf16.mxu0 %v6898
    %8617 = vmatpush1.bf16.msra.mxu0 %v6897
    %8618 = vmatprep.subr.bf16.mxu0 %v6890
    %8619 = vmatpush1.bf16.msra.mxu0 %v6889
    %8620 = vmatprep.subr.bf16.mxu0 %v6882
    %8621 = vmatpush1.bf16.msra.mxu0 %v6881
    %8622 = vmatprep.subr.bf16.mxu0 %v6874
    %8623 = vmatpush1.bf16.msra.mxu0 %v6873
    %8624 = vmatprep.subr.bf16.mxu0 %v6866
    %8625 = vmatpush1.bf16.msra.mxu0 %v6865
    %8626 = vmatprep.subr.bf16.mxu0 %v6858
    %8627 = vmatpush1.bf16.msra.mxu0 %v6857
    %8628 = vmatprep.subr.bf16.mxu0 %v6850
    %8629 = vmatpush1.bf16.msra.mxu0 %v6849
    %8630 = vmatprep.subr.bf16.mxu0 %v6970
    %8631 = vmatpush2.bf16.msra.mxu0 %v6969
    %8632 = vmatprep.subr.bf16.mxu0 %v6962
    %8633 = vmatpush2.bf16.msra.mxu0 %v6961
    %8634 = vmatprep.subr.bf16.mxu0 %v6954
    %8635 = vmatpush2.bf16.msra.mxu0 %v6953
    %8636 = vmatprep.subr.bf16.mxu0 %v6946
    %8637 = vmatpush2.bf16.msra.mxu0 %v6945
    %8638 = vmatprep.subr.bf16.mxu0 %v6938
    %8639 = vmatpush2.bf16.msra.mxu0 %v6937
    %8640 = vmatprep.subr.bf16.mxu0 %v6930
    %8641 = vmatpush2.bf16.msra.mxu0 %v6929
    %8642 = vmatprep.subr.bf16.mxu0 %v6922
    %8643 = vmatpush2.bf16.msra.mxu0 %v6921
    %8644 = vmatprep.subr.bf16.mxu0 %v6914
    %8645 = vmatpush2.bf16.msra.mxu0 %v6913
    %8646 = vmatprep.mubr.bf16.mxu0 %v1854
    %8647 = vmatmul.mubr.bf16.gmra.mxu0 %v1853
    %v8648 = vpop.f32.mrf.mxu0
    %v8649 = vadd.f32 %v8608, %v8648
    %v8650 = vpop.f32.mrf.mxu0
    %v8651 = vadd.f32 %v8610, %v8650
    %v8652 = vpop.f32.mrf.mxu0
    %v8653 = vpop.f32.mrf.mxu0
    %8654 = vdwg.mxu0
    %8655 = vmatprep.subr.bf16.mxu0 %v6012
    %8656 = vmatpush1.bf16.msra.mxu0 %v6011
    %8657 = vmatprep.subr.bf16.mxu0 %v6004
    %8658 = vmatpush1.bf16.msra.mxu0 %v6003
    %8659 = vmatprep.subr.bf16.mxu0 %v5996
    %8660 = vmatpush1.bf16.msra.mxu0 %v5995
    %8661 = vmatprep.subr.bf16.mxu0 %v5988
    %8662 = vmatpush1.bf16.msra.mxu0 %v5987
    %8663 = vmatprep.subr.bf16.mxu0 %v5980
    %8664 = vmatpush1.bf16.msra.mxu0 %v5979
    %8665 = vmatprep.subr.bf16.mxu0 %v5972
    %8666 = vmatpush1.bf16.msra.mxu0 %v5971
    %8667 = vmatprep.subr.bf16.mxu0 %v5964
    %8668 = vmatpush1.bf16.msra.mxu0 %v5963
    %8669 = vmatprep.subr.bf16.mxu0 %v5956
    %8670 = vmatpush1.bf16.msra.mxu0 %v5955
    %8671 = vmatprep.subr.bf16.mxu0 %v6076
    %8672 = vmatpush2.bf16.msra.mxu0 %v6075
    %8673 = vmatprep.subr.bf16.mxu0 %v6068
    %8674 = vmatpush2.bf16.msra.mxu0 %v6067
    %8675 = vmatprep.subr.bf16.mxu0 %v6060
    %8676 = vmatpush2.bf16.msra.mxu0 %v6059
    %8677 = vmatprep.subr.bf16.mxu0 %v6052
    %8678 = vmatpush2.bf16.msra.mxu0 %v6051
    %8679 = vmatprep.subr.bf16.mxu0 %v6044
    %8680 = vmatpush2.bf16.msra.mxu0 %v6043
    %8681 = vmatprep.subr.bf16.mxu0 %v6036
    %8682 = vmatpush2.bf16.msra.mxu0 %v6035
    %8683 = vmatprep.subr.bf16.mxu0 %v6028
    %8684 = vmatpush2.bf16.msra.mxu0 %v6027
    %8685 = vmatprep.subr.bf16.mxu0 %v6020
    %8686 = vmatpush2.bf16.msra.mxu0 %v6019
    %8687 = vmatprep.mubr.bf16.mxu0 %v1840
    %8688 = vmatmul.mubr.bf16.gmra.mxu0 %v1839
    %v8689 = vpop.f32.mrf.mxu0
    %v8690 = vadd.f32 0.0, %v8689
    %v8691 = vpop.f32.mrf.mxu0
    %v8692 = vadd.f32 0.0, %v8691
    %v8693 = vpop.f32.mrf.mxu0
    %v8694 = vpop.f32.mrf.mxu0
    %8695 = vdwg.mxu0
    %8696 = vmatprep.subr.bf16.mxu0 %v6140
    %8697 = vmatpush1.bf16.msra.mxu0 %v6139
    %8698 = vmatprep.subr.bf16.mxu0 %v6132
    %8699 = vmatpush1.bf16.msra.mxu0 %v6131
    %8700 = vmatprep.subr.bf16.mxu0 %v6124
    %8701 = vmatpush1.bf16.msra.mxu0 %v6123
    %8702 = vmatprep.subr.bf16.mxu0 %v6116
    %8703 = vmatpush1.bf16.msra.mxu0 %v6115
    %8704 = vmatprep.subr.bf16.mxu0 %v6108
    %8705 = vmatpush1.bf16.msra.mxu0 %v6107
    %8706 = vmatprep.subr.bf16.mxu0 %v6100
    %8707 = vmatpush1.bf16.msra.mxu0 %v6099
    %8708 = vmatprep.subr.bf16.mxu0 %v6092
    %8709 = vmatpush1.bf16.msra.mxu0 %v6091
    %8710 = vmatprep.subr.bf16.mxu0 %v6084
    %8711 = vmatpush1.bf16.msra.mxu0 %v6083
    %8712 = vmatprep.subr.bf16.mxu0 %v6204
    %8713 = vmatpush2.bf16.msra.mxu0 %v6203
    %8714 = vmatprep.subr.bf16.mxu0 %v6196
    %8715 = vmatpush2.bf16.msra.mxu0 %v6195
    %8716 = vmatprep.subr.bf16.mxu0 %v6188
    %8717 = vmatpush2.bf16.msra.mxu0 %v6187
    %8718 = vmatprep.subr.bf16.mxu0 %v6180
    %8719 = vmatpush2.bf16.msra.mxu0 %v6179
    %8720 = vmatprep.subr.bf16.mxu0 %v6172
    %8721 = vmatpush2.bf16.msra.mxu0 %v6171
    %8722 = vmatprep.subr.bf16.mxu0 %v6164
    %8723 = vmatpush2.bf16.msra.mxu0 %v6163
    %8724 = vmatprep.subr.bf16.mxu0 %v6156
    %8725 = vmatpush2.bf16.msra.mxu0 %v6155
    %8726 = vmatprep.subr.bf16.mxu0 %v6148
    %8727 = vmatpush2.bf16.msra.mxu0 %v6147
    %8728 = vmatprep.mubr.bf16.mxu0 %v1842
    %8729 = vmatmul.mubr.bf16.gmra.mxu0 %v1841
    %v8730 = vpop.f32.mrf.mxu0
    %v8731 = vadd.f32 %v8690, %v8730
    %v8732 = vpop.f32.mrf.mxu0
    %v8733 = vadd.f32 %v8692, %v8732
    %v8734 = vpop.f32.mrf.mxu0
    %v8735 = vpop.f32.mrf.mxu0
    %8736 = vdwg.mxu0
    %8737 = vmatprep.subr.bf16.mxu0 %v6268
    %8738 = vmatpush1.bf16.msra.mxu0 %v6267
    %8739 = vmatprep.subr.bf16.mxu0 %v6260
    %8740 = vmatpush1.bf16.msra.mxu0 %v6259
    %8741 = vmatprep.subr.bf16.mxu0 %v6252
    %8742 = vmatpush1.bf16.msra.mxu0 %v6251
    %8743 = vmatprep.subr.bf16.mxu0 %v6244
    %8744 = vmatpush1.bf16.msra.mxu0 %v6243
    %8745 = vmatprep.subr.bf16.mxu0 %v6236
    %8746 = vmatpush1.bf16.msra.mxu0 %v6235
    %8747 = vmatprep.subr.bf16.mxu0 %v6228
    %8748 = vmatpush1.bf16.msra.mxu0 %v6227
    %8749 = vmatprep.subr.bf16.mxu0 %v6220
    %8750 = vmatpush1.bf16.msra.mxu0 %v6219
    %8751 = vmatprep.subr.bf16.mxu0 %v6212
    %8752 = vmatpush1.bf16.msra.mxu0 %v6211
    %8753 = vmatprep.subr.bf16.mxu0 %v6332
    %8754 = vmatpush2.bf16.msra.mxu0 %v6331
    %8755 = vmatprep.subr.bf16.mxu0 %v6324
    %8756 = vmatpush2.bf16.msra.mxu0 %v6323
    %8757 = vmatprep.subr.bf16.mxu0 %v6316
    %8758 = vmatpush2.bf16.msra.mxu0 %v6315
    %8759 = vmatprep.subr.bf16.mxu0 %v6308
    %8760 = vmatpush2.bf16.msra.mxu0 %v6307
    %8761 = vmatprep.subr.bf16.mxu0 %v6300
    %8762 = vmatpush2.bf16.msra.mxu0 %v6299
    %8763 = vmatprep.subr.bf16.mxu0 %v6292
    %8764 = vmatpush2.bf16.msra.mxu0 %v6291
    %8765 = vmatprep.subr.bf16.mxu0 %v6284
    %8766 = vmatpush2.bf16.msra.mxu0 %v6283
    %8767 = vmatprep.subr.bf16.mxu0 %v6276
    %8768 = vmatpush2.bf16.msra.mxu0 %v6275
    %8769 = vmatprep.mubr.bf16.mxu0 %v1844
    %8770 = vmatmul.mubr.bf16.gmra.mxu0 %v1843
    %v8771 = vpop.f32.mrf.mxu0
    %v8772 = vadd.f32 %v8731, %v8771
    %v8773 = vpop.f32.mrf.mxu0
    %v8774 = vadd.f32 %v8733, %v8773
    %v8775 = vpop.f32.mrf.mxu0
    %v8776 = vpop.f32.mrf.mxu0
    %8777 = vdwg.mxu0
    %8778 = vmatprep.subr.bf16.mxu0 %v6396
    %8779 = vmatpush1.bf16.msra.mxu0 %v6395
    %8780 = vmatprep.subr.bf16.mxu0 %v6388
    %8781 = vmatpush1.bf16.msra.mxu0 %v6387
    %8782 = vmatprep.subr.bf16.mxu0 %v6380
    %8783 = vmatpush1.bf16.msra.mxu0 %v6379
    %8784 = vmatprep.subr.bf16.mxu0 %v6372
    %8785 = vmatpush1.bf16.msra.mxu0 %v6371
    %8786 = vmatprep.subr.bf16.mxu0 %v6364
    %8787 = vmatpush1.bf16.msra.mxu0 %v6363
    %8788 = vmatprep.subr.bf16.mxu0 %v6356
    %8789 = vmatpush1.bf16.msra.mxu0 %v6355
    %8790 = vmatprep.subr.bf16.mxu0 %v6348
    %8791 = vmatpush1.bf16.msra.mxu0 %v6347
    %8792 = vmatprep.subr.bf16.mxu0 %v6340
    %8793 = vmatpush1.bf16.msra.mxu0 %v6339
    %8794 = vmatprep.subr.bf16.mxu0 %v6460
    %8795 = vmatpush2.bf16.msra.mxu0 %v6459
    %8796 = vmatprep.subr.bf16.mxu0 %v6452
    %8797 = vmatpush2.bf16.msra.mxu0 %v6451
    %8798 = vmatprep.subr.bf16.mxu0 %v6444
    %8799 = vmatpush2.bf16.msra.mxu0 %v6443
    %8800 = vmatprep.subr.bf16.mxu0 %v6436
    %8801 = vmatpush2.bf16.msra.mxu0 %v6435
    %8802 = vmatprep.subr.bf16.mxu0 %v6428
    %8803 = vmatpush2.bf16.msra.mxu0 %v6427
    %8804 = vmatprep.subr.bf16.mxu0 %v6420
    %8805 = vmatpush2.bf16.msra.mxu0 %v6419
    %8806 = vmatprep.subr.bf16.mxu0 %v6412
    %8807 = vmatpush2.bf16.msra.mxu0 %v6411
    %8808 = vmatprep.subr.bf16.mxu0 %v6404
    %8809 = vmatpush2.bf16.msra.mxu0 %v6403
    %8810 = vmatprep.mubr.bf16.mxu0 %v1846
    %8811 = vmatmul.mubr.bf16.gmra.mxu0 %v1845
    %v8812 = vpop.f32.mrf.mxu0
    %v8813 = vadd.f32 %v8772, %v8812
    %v8814 = vpop.f32.mrf.mxu0
    %v8815 = vadd.f32 %v8774, %v8814
    %v8816 = vpop.f32.mrf.mxu0
    %v8817 = vpop.f32.mrf.mxu0
    %8818 = vdwg.mxu0
    %8819 = vmatprep.subr.bf16.mxu0 %v6524
    %8820 = vmatpush1.bf16.msra.mxu0 %v6523
    %8821 = vmatprep.subr.bf16.mxu0 %v6516
    %8822 = vmatpush1.bf16.msra.mxu0 %v6515
    %8823 = vmatprep.subr.bf16.mxu0 %v6508
    %8824 = vmatpush1.bf16.msra.mxu0 %v6507
    %8825 = vmatprep.subr.bf16.mxu0 %v6500
    %8826 = vmatpush1.bf16.msra.mxu0 %v6499
    %8827 = vmatprep.subr.bf16.mxu0 %v6492
    %8828 = vmatpush1.bf16.msra.mxu0 %v6491
    %8829 = vmatprep.subr.bf16.mxu0 %v6484
    %8830 = vmatpush1.bf16.msra.mxu0 %v6483
    %8831 = vmatprep.subr.bf16.mxu0 %v6476
    %8832 = vmatpush1.bf16.msra.mxu0 %v6475
    %8833 = vmatprep.subr.bf16.mxu0 %v6468
    %8834 = vmatpush1.bf16.msra.mxu0 %v6467
    %8835 = vmatprep.subr.bf16.mxu0 %v6588
    %8836 = vmatpush2.bf16.msra.mxu0 %v6587
    %8837 = vmatprep.subr.bf16.mxu0 %v6580
    %8838 = vmatpush2.bf16.msra.mxu0 %v6579
    %8839 = vmatprep.subr.bf16.mxu0 %v6572
    %8840 = vmatpush2.bf16.msra.mxu0 %v6571
    %8841 = vmatprep.subr.bf16.mxu0 %v6564
    %8842 = vmatpush2.bf16.msra.mxu0 %v6563
    %8843 = vmatprep.subr.bf16.mxu0 %v6556
    %8844 = vmatpush2.bf16.msra.mxu0 %v6555
    %8845 = vmatprep.subr.bf16.mxu0 %v6548
    %8846 = vmatpush2.bf16.msra.mxu0 %v6547
    %8847 = vmatprep.subr.bf16.mxu0 %v6540
    %8848 = vmatpush2.bf16.msra.mxu0 %v6539
    %8849 = vmatprep.subr.bf16.mxu0 %v6532
    %8850 = vmatpush2.bf16.msra.mxu0 %v6531
    %8851 = vmatprep.mubr.bf16.mxu0 %v1848
    %8852 = vmatmul.mubr.bf16.gmra.mxu0 %v1847
    %v8853 = vpop.f32.mrf.mxu0
    %v8854 = vadd.f32 %v8813, %v8853
    %v8855 = vpop.f32.mrf.mxu0
    %v8856 = vadd.f32 %v8815, %v8855
    %v8857 = vpop.f32.mrf.mxu0
    %v8858 = vpop.f32.mrf.mxu0
    %8859 = vdwg.mxu0
    %8860 = vmatprep.subr.bf16.mxu0 %v6652
    %8861 = vmatpush1.bf16.msra.mxu0 %v6651
    %8862 = vmatprep.subr.bf16.mxu0 %v6644
    %8863 = vmatpush1.bf16.msra.mxu0 %v6643
    %8864 = vmatprep.subr.bf16.mxu0 %v6636
    %8865 = vmatpush1.bf16.msra.mxu0 %v6635
    %8866 = vmatprep.subr.bf16.mxu0 %v6628
    %8867 = vmatpush1.bf16.msra.mxu0 %v6627
    %8868 = vmatprep.subr.bf16.mxu0 %v6620
    %8869 = vmatpush1.bf16.msra.mxu0 %v6619
    %8870 = vmatprep.subr.bf16.mxu0 %v6612
    %8871 = vmatpush1.bf16.msra.mxu0 %v6611
    %8872 = vmatprep.subr.bf16.mxu0 %v6604
    %8873 = vmatpush1.bf16.msra.mxu0 %v6603
    %8874 = vmatprep.subr.bf16.mxu0 %v6596
    %8875 = vmatpush1.bf16.msra.mxu0 %v6595
    %8876 = vmatprep.subr.bf16.mxu0 %v6716
    %8877 = vmatpush2.bf16.msra.mxu0 %v6715
    %8878 = vmatprep.subr.bf16.mxu0 %v6708
    %8879 = vmatpush2.bf16.msra.mxu0 %v6707
    %8880 = vmatprep.subr.bf16.mxu0 %v6700
    %8881 = vmatpush2.bf16.msra.mxu0 %v6699
    %8882 = vmatprep.subr.bf16.mxu0 %v6692
    %8883 = vmatpush2.bf16.msra.mxu0 %v6691
    %8884 = vmatprep.subr.bf16.mxu0 %v6684
    %8885 = vmatpush2.bf16.msra.mxu0 %v6683
    %8886 = vmatprep.subr.bf16.mxu0 %v6676
    %8887 = vmatpush2.bf16.msra.mxu0 %v6675
    %8888 = vmatprep.subr.bf16.mxu0 %v6668
    %8889 = vmatpush2.bf16.msra.mxu0 %v6667
    %8890 = vmatprep.subr.bf16.mxu0 %v6660
    %8891 = vmatpush2.bf16.msra.mxu0 %v6659
    %8892 = vmatprep.mubr.bf16.mxu0 %v1850
    %8893 = vmatmul.mubr.bf16.gmra.mxu0 %v1849
    %v8894 = vpop.f32.mrf.mxu0
    %v8895 = vadd.f32 %v8854, %v8894
    %v8896 = vpop.f32.mrf.mxu0
    %v8897 = vadd.f32 %v8856, %v8896
    %v8898 = vpop.f32.mrf.mxu0
    %v8899 = vpop.f32.mrf.mxu0
    %8900 = vdwg.mxu0
    %8901 = vmatprep.subr.bf16.mxu0 %v6780
    %8902 = vmatpush1.bf16.msra.mxu0 %v6779
    %8903 = vmatprep.subr.bf16.mxu0 %v6772
    %8904 = vmatpush1.bf16.msra.mxu0 %v6771
    %8905 = vmatprep.subr.bf16.mxu0 %v6764
    %8906 = vmatpush1.bf16.msra.mxu0 %v6763
    %8907 = vmatprep.subr.bf16.mxu0 %v6756
    %8908 = vmatpush1.bf16.msra.mxu0 %v6755
    %8909 = vmatprep.subr.bf16.mxu0 %v6748
    %8910 = vmatpush1.bf16.msra.mxu0 %v6747
    %8911 = vmatprep.subr.bf16.mxu0 %v6740
    %8912 = vmatpush1.bf16.msra.mxu0 %v6739
    %8913 = vmatprep.subr.bf16.mxu0 %v6732
    %8914 = vmatpush1.bf16.msra.mxu0 %v6731
    %8915 = vmatprep.subr.bf16.mxu0 %v6724
    %8916 = vmatpush1.bf16.msra.mxu0 %v6723
    %8917 = vmatprep.subr.bf16.mxu0 %v6844
    %8918 = vmatpush2.bf16.msra.mxu0 %v6843
    %8919 = vmatprep.subr.bf16.mxu0 %v6836
    %8920 = vmatpush2.bf16.msra.mxu0 %v6835
    %8921 = vmatprep.subr.bf16.mxu0 %v6828
    %8922 = vmatpush2.bf16.msra.mxu0 %v6827
    %8923 = vmatprep.subr.bf16.mxu0 %v6820
    %8924 = vmatpush2.bf16.msra.mxu0 %v6819
    %8925 = vmatprep.subr.bf16.mxu0 %v6812
    %8926 = vmatpush2.bf16.msra.mxu0 %v6811
    %8927 = vmatprep.subr.bf16.mxu0 %v6804
    %8928 = vmatpush2.bf16.msra.mxu0 %v6803
    %8929 = vmatprep.subr.bf16.mxu0 %v6796
    %8930 = vmatpush2.bf16.msra.mxu0 %v6795
    %8931 = vmatprep.subr.bf16.mxu0 %v6788
    %8932 = vmatpush2.bf16.msra.mxu0 %v6787
    %8933 = vmatprep.mubr.bf16.mxu0 %v1852
    %8934 = vmatmul.mubr.bf16.gmra.mxu0 %v1851
    %v8935 = vpop.f32.mrf.mxu0
    %v8936 = vadd.f32 %v8895, %v8935
    %v8937 = vpop.f32.mrf.mxu0
    %v8938 = vadd.f32 %v8897, %v8937
    %v8939 = vpop.f32.mrf.mxu0
    %v8940 = vpop.f32.mrf.mxu0
    %8941 = vdwg.mxu0
    %8942 = vmatprep.subr.bf16.mxu0 %v6908
    %8943 = vmatpush1.bf16.msra.mxu0 %v6907
    %8944 = vmatprep.subr.bf16.mxu0 %v6900
    %8945 = vmatpush1.bf16.msra.mxu0 %v6899
    %8946 = vmatprep.subr.bf16.mxu0 %v6892
    %8947 = vmatpush1.bf16.msra.mxu0 %v6891
    %8948 = vmatprep.subr.bf16.mxu0 %v6884
    %8949 = vmatpush1.bf16.msra.mxu0 %v6883
    %8950 = vmatprep.subr.bf16.mxu0 %v6876
    %8951 = vmatpush1.bf16.msra.mxu0 %v6875
    %8952 = vmatprep.subr.bf16.mxu0 %v6868
    %8953 = vmatpush1.bf16.msra.mxu0 %v6867
    %8954 = vmatprep.subr.bf16.mxu0 %v6860
    %8955 = vmatpush1.bf16.msra.mxu0 %v6859
    %8956 = vmatprep.subr.bf16.mxu0 %v6852
    %8957 = vmatpush1.bf16.msra.mxu0 %v6851
    %8958 = vmatprep.subr.bf16.mxu0 %v6972
    %8959 = vmatpush2.bf16.msra.mxu0 %v6971
    %8960 = vmatprep.subr.bf16.mxu0 %v6964
    %8961 = vmatpush2.bf16.msra.mxu0 %v6963
    %8962 = vmatprep.subr.bf16.mxu0 %v6956
    %8963 = vmatpush2.bf16.msra.mxu0 %v6955
    %8964 = vmatprep.subr.bf16.mxu0 %v6948
    %8965 = vmatpush2.bf16.msra.mxu0 %v6947
    %8966 = vmatprep.subr.bf16.mxu0 %v6940
    %8967 = vmatpush2.bf16.msra.mxu0 %v6939
    %8968 = vmatprep.subr.bf16.mxu0 %v6932
    %8969 = vmatpush2.bf16.msra.mxu0 %v6931
    %8970 = vmatprep.subr.bf16.mxu0 %v6924
    %8971 = vmatpush2.bf16.msra.mxu0 %v6923
    %8972 = vmatprep.subr.bf16.mxu0 %v6916
    %8973 = vmatpush2.bf16.msra.mxu0 %v6915
    %8974 = vmatprep.mubr.bf16.mxu0 %v1854
    %8975 = vmatmul.mubr.bf16.gmra.mxu0 %v1853
    %v8976 = vpop.f32.mrf.mxu0
    %v8977 = vadd.f32 %v8936, %v8976
    %v8978 = vpop.f32.mrf.mxu0
    %v8979 = vadd.f32 %v8938, %v8978
    %v8980 = vpop.f32.mrf.mxu0
    %v8981 = vpop.f32.mrf.mxu0
    %8982 = vdwg.mxu0
    %8983 = vmatprep.subr.bf16.mxu0 %v6014
    %8984 = vmatpush1.bf16.msra.mxu0 %v6013
    %8985 = vmatprep.subr.bf16.mxu0 %v6006
    %8986 = vmatpush1.bf16.msra.mxu0 %v6005
    %8987 = vmatprep.subr.bf16.mxu0 %v5998
    %8988 = vmatpush1.bf16.msra.mxu0 %v5997
    %8989 = vmatprep.subr.bf16.mxu0 %v5990
    %8990 = vmatpush1.bf16.msra.mxu0 %v5989
    %8991 = vmatprep.subr.bf16.mxu0 %v5982
    %8992 = vmatpush1.bf16.msra.mxu0 %v5981
    %8993 = vmatprep.subr.bf16.mxu0 %v5974
    %8994 = vmatpush1.bf16.msra.mxu0 %v5973
    %8995 = vmatprep.subr.bf16.mxu0 %v5966
    %8996 = vmatpush1.bf16.msra.mxu0 %v5965
    %8997 = vmatprep.subr.bf16.mxu0 %v5958
    %8998 = vmatpush1.bf16.msra.mxu0 %v5957
    %8999 = vmatprep.subr.bf16.mxu0 %v6078
    %9000 = vmatpush2.bf16.msra.mxu0 %v6077
    %9001 = vmatprep.subr.bf16.mxu0 %v6070
    %9002 = vmatpush2.bf16.msra.mxu0 %v6069
    %9003 = vmatprep.subr.bf16.mxu0 %v6062
    %9004 = vmatpush2.bf16.msra.mxu0 %v6061
    %9005 = vmatprep.subr.bf16.mxu0 %v6054
    %9006 = vmatpush2.bf16.msra.mxu0 %v6053
    %9007 = vmatprep.subr.bf16.mxu0 %v6046
    %9008 = vmatpush2.bf16.msra.mxu0 %v6045
    %9009 = vmatprep.subr.bf16.mxu0 %v6038
    %9010 = vmatpush2.bf16.msra.mxu0 %v6037
    %9011 = vmatprep.subr.bf16.mxu0 %v6030
    %9012 = vmatpush2.bf16.msra.mxu0 %v6029
    %9013 = vmatprep.subr.bf16.mxu0 %v6022
    %9014 = vmatpush2.bf16.msra.mxu0 %v6021
    %9015 = vmatprep.mubr.bf16.mxu0 %v1840
    %9016 = vmatmul.mubr.bf16.gmra.mxu0 %v1839
    %v9017 = vpop.f32.mrf.mxu0
    %v9018 = vadd.f32 0.0, %v9017
    %v9019 = vpop.f32.mrf.mxu0
    %v9020 = vadd.f32 0.0, %v9019
    %v9021 = vpop.f32.mrf.mxu0
    %v9022 = vpop.f32.mrf.mxu0
    %9023 = vdwg.mxu0
    %9024 = vmatprep.subr.bf16.mxu0 %v6142
    %9025 = vmatpush1.bf16.msra.mxu0 %v6141
    %9026 = vmatprep.subr.bf16.mxu0 %v6134
    %9027 = vmatpush1.bf16.msra.mxu0 %v6133
    %9028 = vmatprep.subr.bf16.mxu0 %v6126
    %9029 = vmatpush1.bf16.msra.mxu0 %v6125
    %9030 = vmatprep.subr.bf16.mxu0 %v6118
    %9031 = vmatpush1.bf16.msra.mxu0 %v6117
    %9032 = vmatprep.subr.bf16.mxu0 %v6110
    %9033 = vmatpush1.bf16.msra.mxu0 %v6109
    %9034 = vmatprep.subr.bf16.mxu0 %v6102
    %9035 = vmatpush1.bf16.msra.mxu0 %v6101
    %9036 = vmatprep.subr.bf16.mxu0 %v6094
    %9037 = vmatpush1.bf16.msra.mxu0 %v6093
    %9038 = vmatprep.subr.bf16.mxu0 %v6086
    %9039 = vmatpush1.bf16.msra.mxu0 %v6085
    %9040 = vmatprep.subr.bf16.mxu0 %v6206
    %9041 = vmatpush2.bf16.msra.mxu0 %v6205
    %9042 = vmatprep.subr.bf16.mxu0 %v6198
    %9043 = vmatpush2.bf16.msra.mxu0 %v6197
    %9044 = vmatprep.subr.bf16.mxu0 %v6190
    %9045 = vmatpush2.bf16.msra.mxu0 %v6189
    %9046 = vmatprep.subr.bf16.mxu0 %v6182
    %9047 = vmatpush2.bf16.msra.mxu0 %v6181
    %9048 = vmatprep.subr.bf16.mxu0 %v6174
    %9049 = vmatpush2.bf16.msra.mxu0 %v6173
    %9050 = vmatprep.subr.bf16.mxu0 %v6166
    %9051 = vmatpush2.bf16.msra.mxu0 %v6165
    %9052 = vmatprep.subr.bf16.mxu0 %v6158
    %9053 = vmatpush2.bf16.msra.mxu0 %v6157
    %9054 = vmatprep.subr.bf16.mxu0 %v6150
    %9055 = vmatpush2.bf16.msra.mxu0 %v6149
    %9056 = vmatprep.mubr.bf16.mxu0 %v1842
    %9057 = vmatmul.mubr.bf16.gmra.mxu0 %v1841
    %v9058 = vpop.f32.mrf.mxu0
    %v9059 = vadd.f32 %v9018, %v9058
    %v9060 = vpop.f32.mrf.mxu0
    %v9061 = vadd.f32 %v9020, %v9060
    %v9062 = vpop.f32.mrf.mxu0
    %v9063 = vpop.f32.mrf.mxu0
    %9064 = vdwg.mxu0
    %9065 = vmatprep.subr.bf16.mxu0 %v6270
    %9066 = vmatpush1.bf16.msra.mxu0 %v6269
    %9067 = vmatprep.subr.bf16.mxu0 %v6262
    %9068 = vmatpush1.bf16.msra.mxu0 %v6261
    %9069 = vmatprep.subr.bf16.mxu0 %v6254
    %9070 = vmatpush1.bf16.msra.mxu0 %v6253
    %9071 = vmatprep.subr.bf16.mxu0 %v6246
    %9072 = vmatpush1.bf16.msra.mxu0 %v6245
    %9073 = vmatprep.subr.bf16.mxu0 %v6238
    %9074 = vmatpush1.bf16.msra.mxu0 %v6237
    %9075 = vmatprep.subr.bf16.mxu0 %v6230
    %9076 = vmatpush1.bf16.msra.mxu0 %v6229
    %9077 = vmatprep.subr.bf16.mxu0 %v6222
    %9078 = vmatpush1.bf16.msra.mxu0 %v6221
    %9079 = vmatprep.subr.bf16.mxu0 %v6214
    %9080 = vmatpush1.bf16.msra.mxu0 %v6213
    %9081 = vmatprep.subr.bf16.mxu0 %v6334
    %9082 = vmatpush2.bf16.msra.mxu0 %v6333
    %9083 = vmatprep.subr.bf16.mxu0 %v6326
    %9084 = vmatpush2.bf16.msra.mxu0 %v6325
    %9085 = vmatprep.subr.bf16.mxu0 %v6318
    %9086 = vmatpush2.bf16.msra.mxu0 %v6317
    %9087 = vmatprep.subr.bf16.mxu0 %v6310
    %9088 = vmatpush2.bf16.msra.mxu0 %v6309
    %9089 = vmatprep.subr.bf16.mxu0 %v6302
    %9090 = vmatpush2.bf16.msra.mxu0 %v6301
    %9091 = vmatprep.subr.bf16.mxu0 %v6294
    %9092 = vmatpush2.bf16.msra.mxu0 %v6293
    %9093 = vmatprep.subr.bf16.mxu0 %v6286
    %9094 = vmatpush2.bf16.msra.mxu0 %v6285
    %9095 = vmatprep.subr.bf16.mxu0 %v6278
    %9096 = vmatpush2.bf16.msra.mxu0 %v6277
    %9097 = vmatprep.mubr.bf16.mxu0 %v1844
    %9098 = vmatmul.mubr.bf16.gmra.mxu0 %v1843
    %v9099 = vpop.f32.mrf.mxu0
    %v9100 = vadd.f32 %v9059, %v9099
    %v9101 = vpop.f32.mrf.mxu0
    %v9102 = vadd.f32 %v9061, %v9101
    %v9103 = vpop.f32.mrf.mxu0
    %v9104 = vpop.f32.mrf.mxu0
    %9105 = vdwg.mxu0
    %9106 = vmatprep.subr.bf16.mxu0 %v6398
    %9107 = vmatpush1.bf16.msra.mxu0 %v6397
    %9108 = vmatprep.subr.bf16.mxu0 %v6390
    %9109 = vmatpush1.bf16.msra.mxu0 %v6389
    %9110 = vmatprep.subr.bf16.mxu0 %v6382
    %9111 = vmatpush1.bf16.msra.mxu0 %v6381
    %9112 = vmatprep.subr.bf16.mxu0 %v6374
    %9113 = vmatpush1.bf16.msra.mxu0 %v6373
    %9114 = vmatprep.subr.bf16.mxu0 %v6366
    %9115 = vmatpush1.bf16.msra.mxu0 %v6365
    %9116 = vmatprep.subr.bf16.mxu0 %v6358
    %9117 = vmatpush1.bf16.msra.mxu0 %v6357
    %9118 = vmatprep.subr.bf16.mxu0 %v6350
    %9119 = vmatpush1.bf16.msra.mxu0 %v6349
    %9120 = vmatprep.subr.bf16.mxu0 %v6342
    %9121 = vmatpush1.bf16.msra.mxu0 %v6341
    %9122 = vmatprep.subr.bf16.mxu0 %v6462
    %9123 = vmatpush2.bf16.msra.mxu0 %v6461
    %9124 = vmatprep.subr.bf16.mxu0 %v6454
    %9125 = vmatpush2.bf16.msra.mxu0 %v6453
    %9126 = vmatprep.subr.bf16.mxu0 %v6446
    %9127 = vmatpush2.bf16.msra.mxu0 %v6445
    %9128 = vmatprep.subr.bf16.mxu0 %v6438
    %9129 = vmatpush2.bf16.msra.mxu0 %v6437
    %9130 = vmatprep.subr.bf16.mxu0 %v6430
    %9131 = vmatpush2.bf16.msra.mxu0 %v6429
    %9132 = vmatprep.subr.bf16.mxu0 %v6422
    %9133 = vmatpush2.bf16.msra.mxu0 %v6421
    %9134 = vmatprep.subr.bf16.mxu0 %v6414
    %9135 = vmatpush2.bf16.msra.mxu0 %v6413
    %9136 = vmatprep.subr.bf16.mxu0 %v6406
    %9137 = vmatpush2.bf16.msra.mxu0 %v6405
    %9138 = vmatprep.mubr.bf16.mxu0 %v1846
    %9139 = vmatmul.mubr.bf16.gmra.mxu0 %v1845
    %v9140 = vpop.f32.mrf.mxu0
    %v9141 = vadd.f32 %v9100, %v9140
    %v9142 = vpop.f32.mrf.mxu0
    %v9143 = vadd.f32 %v9102, %v9142
    %v9144 = vpop.f32.mrf.mxu0
    %v9145 = vpop.f32.mrf.mxu0
    %9146 = vdwg.mxu0
    %9147 = vmatprep.subr.bf16.mxu0 %v6526
    %9148 = vmatpush1.bf16.msra.mxu0 %v6525
    %9149 = vmatprep.subr.bf16.mxu0 %v6518
    %9150 = vmatpush1.bf16.msra.mxu0 %v6517
    %9151 = vmatprep.subr.bf16.mxu0 %v6510
    %9152 = vmatpush1.bf16.msra.mxu0 %v6509
    %9153 = vmatprep.subr.bf16.mxu0 %v6502
    %9154 = vmatpush1.bf16.msra.mxu0 %v6501
    %9155 = vmatprep.subr.bf16.mxu0 %v6494
    %9156 = vmatpush1.bf16.msra.mxu0 %v6493
    %9157 = vmatprep.subr.bf16.mxu0 %v6486
    %9158 = vmatpush1.bf16.msra.mxu0 %v6485
    %9159 = vmatprep.subr.bf16.mxu0 %v6478
    %9160 = vmatpush1.bf16.msra.mxu0 %v6477
    %9161 = vmatprep.subr.bf16.mxu0 %v6470
    %9162 = vmatpush1.bf16.msra.mxu0 %v6469
    %9163 = vmatprep.subr.bf16.mxu0 %v6590
    %9164 = vmatpush2.bf16.msra.mxu0 %v6589
    %9165 = vmatprep.subr.bf16.mxu0 %v6582
    %9166 = vmatpush2.bf16.msra.mxu0 %v6581
    %9167 = vmatprep.subr.bf16.mxu0 %v6574
    %9168 = vmatpush2.bf16.msra.mxu0 %v6573
    %9169 = vmatprep.subr.bf16.mxu0 %v6566
    %9170 = vmatpush2.bf16.msra.mxu0 %v6565
    %9171 = vmatprep.subr.bf16.mxu0 %v6558
    %9172 = vmatpush2.bf16.msra.mxu0 %v6557
    %9173 = vmatprep.subr.bf16.mxu0 %v6550
    %9174 = vmatpush2.bf16.msra.mxu0 %v6549
    %9175 = vmatprep.subr.bf16.mxu0 %v6542
    %9176 = vmatpush2.bf16.msra.mxu0 %v6541
    %9177 = vmatprep.subr.bf16.mxu0 %v6534
    %9178 = vmatpush2.bf16.msra.mxu0 %v6533
    %9179 = vmatprep.mubr.bf16.mxu0 %v1848
    %9180 = vmatmul.mubr.bf16.gmra.mxu0 %v1847
    %v9181 = vpop.f32.mrf.mxu0
    %v9182 = vadd.f32 %v9141, %v9181
    %v9183 = vpop.f32.mrf.mxu0
    %v9184 = vadd.f32 %v9143, %v9183
    %v9185 = vpop.f32.mrf.mxu0
    %v9186 = vpop.f32.mrf.mxu0
    %9187 = vdwg.mxu0
    %9188 = vmatprep.subr.bf16.mxu0 %v6654
    %9189 = vmatpush1.bf16.msra.mxu0 %v6653
    %9190 = vmatprep.subr.bf16.mxu0 %v6646
    %9191 = vmatpush1.bf16.msra.mxu0 %v6645
    %9192 = vmatprep.subr.bf16.mxu0 %v6638
    %9193 = vmatpush1.bf16.msra.mxu0 %v6637
    %9194 = vmatprep.subr.bf16.mxu0 %v6630
    %9195 = vmatpush1.bf16.msra.mxu0 %v6629
    %9196 = vmatprep.subr.bf16.mxu0 %v6622
    %9197 = vmatpush1.bf16.msra.mxu0 %v6621
    %9198 = vmatprep.subr.bf16.mxu0 %v6614
    %9199 = vmatpush1.bf16.msra.mxu0 %v6613
    %9200 = vmatprep.subr.bf16.mxu0 %v6606
    %9201 = vmatpush1.bf16.msra.mxu0 %v6605
    %9202 = vmatprep.subr.bf16.mxu0 %v6598
    %9203 = vmatpush1.bf16.msra.mxu0 %v6597
    %9204 = vmatprep.subr.bf16.mxu0 %v6718
    %9205 = vmatpush2.bf16.msra.mxu0 %v6717
    %9206 = vmatprep.subr.bf16.mxu0 %v6710
    %9207 = vmatpush2.bf16.msra.mxu0 %v6709
    %9208 = vmatprep.subr.bf16.mxu0 %v6702
    %9209 = vmatpush2.bf16.msra.mxu0 %v6701
    %9210 = vmatprep.subr.bf16.mxu0 %v6694
    %9211 = vmatpush2.bf16.msra.mxu0 %v6693
    %9212 = vmatprep.subr.bf16.mxu0 %v6686
    %9213 = vmatpush2.bf16.msra.mxu0 %v6685
    %9214 = vmatprep.subr.bf16.mxu0 %v6678
    %9215 = vmatpush2.bf16.msra.mxu0 %v6677
    %9216 = vmatprep.subr.bf16.mxu0 %v6670
    %9217 = vmatpush2.bf16.msra.mxu0 %v6669
    %9218 = vmatprep.subr.bf16.mxu0 %v6662
    %9219 = vmatpush2.bf16.msra.mxu0 %v6661
    %9220 = vmatprep.mubr.bf16.mxu0 %v1850
    %9221 = vmatmul.mubr.bf16.gmra.mxu0 %v1849
    %v9222 = vpop.f32.mrf.mxu0
    %v9223 = vadd.f32 %v9182, %v9222
    %v9224 = vpop.f32.mrf.mxu0
    %v9225 = vadd.f32 %v9184, %v9224
    %v9226 = vpop.f32.mrf.mxu0
    %v9227 = vpop.f32.mrf.mxu0
    %9228 = vdwg.mxu0
    %9229 = vmatprep.subr.bf16.mxu0 %v6782
    %9230 = vmatpush1.bf16.msra.mxu0 %v6781
    %9231 = vmatprep.subr.bf16.mxu0 %v6774
    %9232 = vmatpush1.bf16.msra.mxu0 %v6773
    %9233 = vmatprep.subr.bf16.mxu0 %v6766
    %9234 = vmatpush1.bf16.msra.mxu0 %v6765
    %9235 = vmatprep.subr.bf16.mxu0 %v6758
    %9236 = vmatpush1.bf16.msra.mxu0 %v6757
    %9237 = vmatprep.subr.bf16.mxu0 %v6750
    %9238 = vmatpush1.bf16.msra.mxu0 %v6749
    %9239 = vmatprep.subr.bf16.mxu0 %v6742
    %9240 = vmatpush1.bf16.msra.mxu0 %v6741
    %9241 = vmatprep.subr.bf16.mxu0 %v6734
    %9242 = vmatpush1.bf16.msra.mxu0 %v6733
    %9243 = vmatprep.subr.bf16.mxu0 %v6726
    %9244 = vmatpush1.bf16.msra.mxu0 %v6725
    %9245 = vmatprep.subr.bf16.mxu0 %v6846
    %9246 = vmatpush2.bf16.msra.mxu0 %v6845
    %9247 = vmatprep.subr.bf16.mxu0 %v6838
    %9248 = vmatpush2.bf16.msra.mxu0 %v6837
    %9249 = vmatprep.subr.bf16.mxu0 %v6830
    %9250 = vmatpush2.bf16.msra.mxu0 %v6829
    %9251 = vmatprep.subr.bf16.mxu0 %v6822
    %9252 = vmatpush2.bf16.msra.mxu0 %v6821
    %9253 = vmatprep.subr.bf16.mxu0 %v6814
    %9254 = vmatpush2.bf16.msra.mxu0 %v6813
    %9255 = vmatprep.subr.bf16.mxu0 %v6806
    %9256 = vmatpush2.bf16.msra.mxu0 %v6805
    %9257 = vmatprep.subr.bf16.mxu0 %v6798
    %9258 = vmatpush2.bf16.msra.mxu0 %v6797
    %9259 = vmatprep.subr.bf16.mxu0 %v6790
    %9260 = vmatpush2.bf16.msra.mxu0 %v6789
    %9261 = vmatprep.mubr.bf16.mxu0 %v1852
    %9262 = vmatmul.mubr.bf16.gmra.mxu0 %v1851
    %v9263 = vpop.f32.mrf.mxu0
    %v9264 = vadd.f32 %v9223, %v9263
    %v9265 = vpop.f32.mrf.mxu0
    %v9266 = vadd.f32 %v9225, %v9265
    %v9267 = vpop.f32.mrf.mxu0
    %v9268 = vpop.f32.mrf.mxu0
    %9269 = vdwg.mxu0
    %9270 = vmatprep.subr.bf16.mxu0 %v6910
    %9271 = vmatpush1.bf16.msra.mxu0 %v6909
    %9272 = vmatprep.subr.bf16.mxu0 %v6902
    %9273 = vmatpush1.bf16.msra.mxu0 %v6901
    %9274 = vmatprep.subr.bf16.mxu0 %v6894
    %9275 = vmatpush1.bf16.msra.mxu0 %v6893
    %9276 = vmatprep.subr.bf16.mxu0 %v6886
    %9277 = vmatpush1.bf16.msra.mxu0 %v6885
    %9278 = vmatprep.subr.bf16.mxu0 %v6878
    %9279 = vmatpush1.bf16.msra.mxu0 %v6877
    %9280 = vmatprep.subr.bf16.mxu0 %v6870
    %9281 = vmatpush1.bf16.msra.mxu0 %v6869
    %9282 = vmatprep.subr.bf16.mxu0 %v6862
    %9283 = vmatpush1.bf16.msra.mxu0 %v6861
    %9284 = vmatprep.subr.bf16.mxu0 %v6854
    %9285 = vmatpush1.bf16.msra.mxu0 %v6853
    %9286 = vmatprep.subr.bf16.mxu0 %v6974
    %9287 = vmatpush2.bf16.msra.mxu0 %v6973
    %9288 = vmatprep.subr.bf16.mxu0 %v6966
    %9289 = vmatpush2.bf16.msra.mxu0 %v6965
    %9290 = vmatprep.subr.bf16.mxu0 %v6958
    %9291 = vmatpush2.bf16.msra.mxu0 %v6957
    %9292 = vmatprep.subr.bf16.mxu0 %v6950
    %9293 = vmatpush2.bf16.msra.mxu0 %v6949
    %9294 = vmatprep.subr.bf16.mxu0 %v6942
    %9295 = vmatpush2.bf16.msra.mxu0 %v6941
    %9296 = vmatprep.subr.bf16.mxu0 %v6934
    %9297 = vmatpush2.bf16.msra.mxu0 %v6933
    %9298 = vmatprep.subr.bf16.mxu0 %v6926
    %9299 = vmatpush2.bf16.msra.mxu0 %v6925
    %9300 = vmatprep.subr.bf16.mxu0 %v6918
    %9301 = vmatpush2.bf16.msra.mxu0 %v6917
    %9302 = vmatprep.mubr.bf16.mxu0 %v1854
    %9303 = vmatmul.mubr.bf16.gmra.mxu0 %v1853
    %v9304 = vpop.f32.mrf.mxu0
    %v9305 = vadd.f32 %v9264, %v9304
    %v9306 = vpop.f32.mrf.mxu0
    %v9307 = vadd.f32 %v9266, %v9306
    %v9308 = vpop.f32.mrf.mxu0
    %v9309 = vpop.f32.mrf.mxu0
    %9310 = vdwg.mxu0
    %v9319 = vcombine.low %v8321, %v8323
    %v9320 = vcombine.low %v8649, %v8651
    %v9322 = vunpack.c.l.s4 1983009808
    %v9323 = vunpack.c.0.s8 %v9322
    %v9324 = vlaneseq
    %v9325 = vshrl.u32 %v9324, 7
    %v9326 = vsub.s32 %v9323, %v9325
    %v9327 = vrot.slane %v9319, %v9326
    %v9329 = vunpack.c.l.s4 1983009808
    %v9330 = vunpack.c.0.s8 %v9329
    %v9331 = vlaneseq
    %v9332 = vshrl.u32 %v9331, 7
    %v9333 = vsub.s32 %v9330, %v9332
    %v9334 = vrot.slane %v9320, %v9333
    %v9335 = vcombine.low %v9327, %v9334
    %v9336 = vcombine.low %v8977, %v8979
    %v9337 = vcombine.low %v9305, %v9307
    %v9339 = vunpack.c.l.s4 1983009808
    %v9340 = vunpack.c.0.s8 %v9339
    %v9341 = vlaneseq
    %v9342 = vshrl.u32 %v9341, 7
    %v9343 = vsub.s32 %v9340, %v9342
    %v9344 = vrot.slane %v9336, %v9343
    %v9346 = vunpack.c.l.s4 1983009808
    %v9347 = vunpack.c.0.s8 %v9346
    %v9348 = vlaneseq
    %v9349 = vshrl.u32 %v9348, 7
    %v9350 = vsub.s32 %v9347, %v9349
    %v9351 = vrot.slane %v9337, %v9350
    %v9352 = vcombine.low %v9344, %v9351
    %v9355 = vadd.f32 %v1837, %v9335
    %v9356 = vadd.f32 %v1838, %v9352
    %9357 = vst [vmem:[#allocation2] sm:$0xff] %v9355
    %9358 = vst [vmem:[#allocation2 + $0x8] sm:$0xff] %v9356
    // Predicated region
    $region54: #{mlp_encoder_forward.1} parent=1 // pred_check
      %p9359 = pneg %p90
    $region55: #{mlp_encoder_forward.1} parent=1 // pred_check_branch
      %9361 = sbr.rel (%p9359) target = $region57
    $region56: #{mlp_encoder_forward.1} parent=1 // pred_region
      %v9362 = vld [vmem:[#allocation2] sm:$0xff]
      %v9363 = vld [vmem:[#allocation2 + $0x8] sm:$0xff]
      %v9364 = vld [vmem:[#allocation9] sm:$0xff]
      %v9366 = vlaneseq
      %v9367 = vshrl.u32 %v9366, 7
      %v9368 = vsub.s32 0, %v9367
      %v9369 = vrot.slane %v9364, %v9368
      %v9370 = vlaneseq
      %v9371 = vshrl.u32 %v9370, 7
      %v9372 = vsub.s32 1, %v9371
      %v9373 = vrot.slane %v9364, %v9372
      %v9374 = vlaneseq
      %v9375 = vshrl.u32 %v9374, 7
      %v9376 = vsub.s32 2, %v9375
      %v9377 = vrot.slane %v9364, %v9376
      %v9378 = vlaneseq
      %v9379 = vshrl.u32 %v9378, 7
      %v9380 = vsub.s32 3, %v9379
      %v9381 = vrot.slane %v9364, %v9380
      %v9382 = vlaneseq
      %v9383 = vshrl.u32 %v9382, 7
      %v9384 = vsub.s32 4, %v9383
      %v9385 = vrot.slane %v9364, %v9384
      %v9386 = vlaneseq
      %v9387 = vshrl.u32 %v9386, 7
      %v9388 = vsub.s32 5, %v9387
      %v9389 = vrot.slane %v9364, %v9388
      %v9390 = vlaneseq
      %v9391 = vshrl.u32 %v9390, 7
      %v9392 = vsub.s32 6, %v9391
      %v9393 = vrot.slane %v9364, %v9392
      %v9394 = vlaneseq
      %v9395 = vshrl.u32 %v9394, 7
      %v9396 = vsub.s32 7, %v9395
      %v9397 = vrot.slane %v9364, %v9396
      %v9398 = vcombine.low %v9369, %v9373
      %v9399 = vcombine.low %v9377, %v9381
      %v9401 = vunpack.c.l.s4 1983009808
      %v9402 = vunpack.c.0.s8 %v9401
      %v9403 = vlaneseq
      %v9404 = vshrl.u32 %v9403, 7
      %v9405 = vsub.s32 %v9402, %v9404
      %v9406 = vrot.slane %v9398, %v9405
      %v9408 = vunpack.c.l.s4 1983009808
      %v9409 = vunpack.c.0.s8 %v9408
      %v9410 = vlaneseq
      %v9411 = vshrl.u32 %v9410, 7
      %v9412 = vsub.s32 %v9409, %v9411
      %v9413 = vrot.slane %v9399, %v9412
      %v9414 = vcombine.low %v9406, %v9413
      %v9415 = vcombine.low %v9385, %v9389
      %v9416 = vcombine.low %v9393, %v9397
      %v9418 = vunpack.c.l.s4 1983009808
      %v9419 = vunpack.c.0.s8 %v9418
      %v9420 = vlaneseq
      %v9421 = vshrl.u32 %v9420, 7
      %v9422 = vsub.s32 %v9419, %v9421
      %v9423 = vrot.slane %v9415, %v9422
      %v9425 = vunpack.c.l.s4 1983009808
      %v9426 = vunpack.c.0.s8 %v9425
      %v9427 = vlaneseq
      %v9428 = vshrl.u32 %v9427, 7
      %v9429 = vsub.s32 %v9426, %v9428
      %v9430 = vrot.slane %v9416, %v9429
      %v9431 = vcombine.low %v9423, %v9430
      %v9434 = vadd.f32 %v9362, %v9414
      %v9435 = vadd.f32 %v9363, %v9431
      %v9436 = vmul.f32 %v9434, 0.5
      %v9437 = vmul.f32 %v9435, 0.5
      %v9438 = vmul.f32 %v9434, %v9434
      %v9439 = vmul.f32 %v9435, %v9435
      %v9440 = vmul.f32 %v9438, %v9434
      %v9441 = vmul.f32 %v9439, %v9435
      %v9442 = vmul.f32 %v9440, 0.044715
      %v9443 = vmul.f32 %v9441, 0.044715
      %v9444 = vadd.f32 %v9434, %v9442
      %v9445 = vadd.f32 %v9435, %v9443
      %v9446 = vmul.f32 %v9444, 0.7978846
      %v9447 = vmul.f32 %v9445, 0.7978846
      %v9448 = vtanh.pop %v9446
      %v9449 = vtanh.pop %v9447
      %v9450 = vadd.f32 %v9448, 1.0
      %v9451 = vadd.f32 %v9449, 1.0
      %v9452 = vmul.f32 %v9436, %v9450
      %v9453 = vmul.f32 %v9437, %v9451
      %v9456 = vcombine.high %v9452, %v9452
      %v9458 = vunpack.c.l.s4 1983009808
      %v9459 = vunpack.c.0.s8 %v9458
      %v9460 = vlaneseq
      %v9461 = vshrl.u32 %v9460, 7
      %v9462 = vsub.s32 %v9459, %v9461
      %v9463 = vrot.slane %v9452, %v9462
      %v9465 = vunpack.c.l.s4 1983009808
      %v9466 = vunpack.c.0.s8 %v9465
      %v9467 = vlaneseq
      %v9468 = vshrl.u32 %v9467, 7
      %v9469 = vsub.s32 %v9466, %v9468
      %v9470 = vrot.slane %v9456, %v9469
      %v9471 = vcombine.high %v9463, %v9463
      %v9472 = vcombine.high %v9470, %v9470
      %v9473 = vcombine.high %v9453, %v9453
      %v9475 = vunpack.c.l.s4 1983009808
      %v9476 = vunpack.c.0.s8 %v9475
      %v9477 = vlaneseq
      %v9478 = vshrl.u32 %v9477, 7
      %v9479 = vsub.s32 %v9476, %v9478
      %v9480 = vrot.slane %v9453, %v9479
      %v9482 = vunpack.c.l.s4 1983009808
      %v9483 = vunpack.c.0.s8 %v9482
      %v9484 = vlaneseq
      %v9485 = vshrl.u32 %v9484, 7
      %v9486 = vsub.s32 %v9483, %v9485
      %v9487 = vrot.slane %v9473, %v9486
      %v9488 = vcombine.high %v9480, %v9480
      %v9489 = vcombine.high %v9487, %v9487
      %v9498 = vpack.c.bf16 %v9463, %v9463
      %v9499 = vpack.c.bf16 %v9471, %v9471
      %v9500 = vpack.c.bf16 %v9470, %v9470
      %v9501 = vpack.c.bf16 %v9472, %v9472
      %v9502 = vpack.c.bf16 %v9480, %v9480
      %v9503 = vpack.c.bf16 %v9488, %v9488
      %v9504 = vpack.c.bf16 %v9487, %v9487
      %v9505 = vpack.c.bf16 %v9489, %v9489
      %v9506 = vld [vmem:[%s5] sm:$0xf]
      %v9507 = vld [vmem:[%s5 + $0x4] sm:$0xf]
      %v9508 = vld [vmem:[%s5 + $0x8] sm:$0xf]
      %v9509 = vld [vmem:[%s5 + $0xc] sm:$0xf]
      %v9510 = vld [vmem:[%s5 + $0x10] sm:$0xf]
      %v9511 = vld [vmem:[%s5 + $0x14] sm:$0xf]
      %v9512 = vld [vmem:[%s5 + $0x18] sm:$0xf]
      %v9513 = vld [vmem:[%s5 + $0x1c] sm:$0xf]
      %v9514 = vld [vmem:[%s5 + $0x20] sm:$0xf]
      %v9515 = vld [vmem:[%s5 + $0x24] sm:$0xf]
      %v9516 = vld [vmem:[%s5 + $0x28] sm:$0xf]
      %v9517 = vld [vmem:[%s5 + $0x2c] sm:$0xf]
      %v9518 = vld [vmem:[%s5 + $0x30] sm:$0xf]
      %v9519 = vld [vmem:[%s5 + $0x34] sm:$0xf]
      %v9520 = vld [vmem:[%s5 + $0x38] sm:$0xf]
      %v9521 = vld [vmem:[%s5 + $0x3c] sm:$0xf]
      %v9522 = vld [vmem:[%s5 + $0x40] sm:$0xf]
      %v9523 = vld [vmem:[%s5 + $0x44] sm:$0xf]
      %v9524 = vld [vmem:[%s5 + $0x48] sm:$0xf]
      %v9525 = vld [vmem:[%s5 + $0x4c] sm:$0xf]
      %v9526 = vld [vmem:[%s5 + $0x50] sm:$0xf]
      %v9527 = vld [vmem:[%s5 + $0x54] sm:$0xf]
      %v9528 = vld [vmem:[%s5 + $0x58] sm:$0xf]
      %v9529 = vld [vmem:[%s5 + $0x5c] sm:$0xf]
      %v9530 = vld [vmem:[%s5 + $0x60] sm:$0xf]
      %v9531 = vld [vmem:[%s5 + $0x64] sm:$0xf]
      %v9532 = vld [vmem:[%s5 + $0x68] sm:$0xf]
      %v9533 = vld [vmem:[%s5 + $0x6c] sm:$0xf]
      %v9534 = vld [vmem:[%s5 + $0x70] sm:$0xf]
      %v9535 = vld [vmem:[%s5 + $0x74] sm:$0xf]
      %v9536 = vld [vmem:[%s5 + $0x78] sm:$0xf]
      %v9537 = vld [vmem:[%s5 + $0x7c] sm:$0xf]
      %v9538 = vld [vmem:[%s5 + $0x80] sm:$0xf]
      %v9539 = vld [vmem:[%s5 + $0x84] sm:$0xf]
      %v9540 = vld [vmem:[%s5 + $0x88] sm:$0xf]
      %v9541 = vld [vmem:[%s5 + $0x8c] sm:$0xf]
      %v9542 = vld [vmem:[%s5 + $0x90] sm:$0xf]
      %v9543 = vld [vmem:[%s5 + $0x94] sm:$0xf]
      %v9544 = vld [vmem:[%s5 + $0x98] sm:$0xf]
      %v9545 = vld [vmem:[%s5 + $0x9c] sm:$0xf]
      %v9546 = vld [vmem:[%s5 + $0xa0] sm:$0xf]
      %v9547 = vld [vmem:[%s5 + $0xa4] sm:$0xf]
      %v9548 = vld [vmem:[%s5 + $0xa8] sm:$0xf]
      %v9549 = vld [vmem:[%s5 + $0xac] sm:$0xf]
      %v9550 = vld [vmem:[%s5 + $0xb0] sm:$0xf]
      %v9551 = vld [vmem:[%s5 + $0xb4] sm:$0xf]
      %v9552 = vld [vmem:[%s5 + $0xb8] sm:$0xf]
      %v9553 = vld [vmem:[%s5 + $0xbc] sm:$0xf]
      %v9554 = vld [vmem:[%s5 + $0xc0] sm:$0xf]
      %v9555 = vld [vmem:[%s5 + $0xc4] sm:$0xf]
      %v9556 = vld [vmem:[%s5 + $0xc8] sm:$0xf]
      %v9557 = vld [vmem:[%s5 + $0xcc] sm:$0xf]
      %v9558 = vld [vmem:[%s5 + $0xd0] sm:$0xf]
      %v9559 = vld [vmem:[%s5 + $0xd4] sm:$0xf]
      %v9560 = vld [vmem:[%s5 + $0xd8] sm:$0xf]
      %v9561 = vld [vmem:[%s5 + $0xdc] sm:$0xf]
      %v9562 = vld [vmem:[%s5 + $0xe0] sm:$0xf]
      %v9563 = vld [vmem:[%s5 + $0xe4] sm:$0xf]
      %v9564 = vld [vmem:[%s5 + $0xe8] sm:$0xf]
      %v9565 = vld [vmem:[%s5 + $0xec] sm:$0xf]
      %v9566 = vld [vmem:[%s5 + $0xf0] sm:$0xf]
      %v9567 = vld [vmem:[%s5 + $0xf4] sm:$0xf]
      %v9568 = vld [vmem:[%s5 + $0xf8] sm:$0xf]
      %v9569 = vld [vmem:[%s5 + $0xfc] sm:$0xf]
      %v9570 = vld [vmem:[%s5 + $0x100] sm:$0xf]
      %v9571 = vld [vmem:[%s5 + $0x104] sm:$0xf]
      %v9572 = vld [vmem:[%s5 + $0x108] sm:$0xf]
      %v9573 = vld [vmem:[%s5 + $0x10c] sm:$0xf]
      %v9574 = vld [vmem:[%s5 + $0x110] sm:$0xf]
      %v9575 = vld [vmem:[%s5 + $0x114] sm:$0xf]
      %v9576 = vld [vmem:[%s5 + $0x118] sm:$0xf]
      %v9577 = vld [vmem:[%s5 + $0x11c] sm:$0xf]
      %v9578 = vld [vmem:[%s5 + $0x120] sm:$0xf]
      %v9579 = vld [vmem:[%s5 + $0x124] sm:$0xf]
      %v9580 = vld [vmem:[%s5 + $0x128] sm:$0xf]
      %v9581 = vld [vmem:[%s5 + $0x12c] sm:$0xf]
      %v9582 = vld [vmem:[%s5 + $0x130] sm:$0xf]
      %v9583 = vld [vmem:[%s5 + $0x134] sm:$0xf]
      %v9584 = vld [vmem:[%s5 + $0x138] sm:$0xf]
      %v9585 = vld [vmem:[%s5 + $0x13c] sm:$0xf]
      %v9586 = vld [vmem:[%s5 + $0x140] sm:$0xf]
      %v9587 = vld [vmem:[%s5 + $0x144] sm:$0xf]
      %v9588 = vld [vmem:[%s5 + $0x148] sm:$0xf]
      %v9589 = vld [vmem:[%s5 + $0x14c] sm:$0xf]
      %v9590 = vld [vmem:[%s5 + $0x150] sm:$0xf]
      %v9591 = vld [vmem:[%s5 + $0x154] sm:$0xf]
      %v9592 = vld [vmem:[%s5 + $0x158] sm:$0xf]
      %v9593 = vld [vmem:[%s5 + $0x15c] sm:$0xf]
      %v9594 = vld [vmem:[%s5 + $0x160] sm:$0xf]
      %v9595 = vld [vmem:[%s5 + $0x164] sm:$0xf]
      %v9596 = vld [vmem:[%s5 + $0x168] sm:$0xf]
      %v9597 = vld [vmem:[%s5 + $0x16c] sm:$0xf]
      %v9598 = vld [vmem:[%s5 + $0x170] sm:$0xf]
      %v9599 = vld [vmem:[%s5 + $0x174] sm:$0xf]
      %v9600 = vld [vmem:[%s5 + $0x178] sm:$0xf]
      %v9601 = vld [vmem:[%s5 + $0x17c] sm:$0xf]
      %v9602 = vld [vmem:[%s5 + $0x180] sm:$0xf]
      %v9603 = vld [vmem:[%s5 + $0x184] sm:$0xf]
      %v9604 = vld [vmem:[%s5 + $0x188] sm:$0xf]
      %v9605 = vld [vmem:[%s5 + $0x18c] sm:$0xf]
      %v9606 = vld [vmem:[%s5 + $0x190] sm:$0xf]
      %v9607 = vld [vmem:[%s5 + $0x194] sm:$0xf]
      %v9608 = vld [vmem:[%s5 + $0x198] sm:$0xf]
      %v9609 = vld [vmem:[%s5 + $0x19c] sm:$0xf]
      %v9610 = vld [vmem:[%s5 + $0x1a0] sm:$0xf]
      %v9611 = vld [vmem:[%s5 + $0x1a4] sm:$0xf]
      %v9612 = vld [vmem:[%s5 + $0x1a8] sm:$0xf]
      %v9613 = vld [vmem:[%s5 + $0x1ac] sm:$0xf]
      %v9614 = vld [vmem:[%s5 + $0x1b0] sm:$0xf]
      %v9615 = vld [vmem:[%s5 + $0x1b4] sm:$0xf]
      %v9616 = vld [vmem:[%s5 + $0x1b8] sm:$0xf]
      %v9617 = vld [vmem:[%s5 + $0x1bc] sm:$0xf]
      %v9618 = vld [vmem:[%s5 + $0x1c0] sm:$0xf]
      %v9619 = vld [vmem:[%s5 + $0x1c4] sm:$0xf]
      %v9620 = vld [vmem:[%s5 + $0x1c8] sm:$0xf]
      %v9621 = vld [vmem:[%s5 + $0x1cc] sm:$0xf]
      %v9622 = vld [vmem:[%s5 + $0x1d0] sm:$0xf]
      %v9623 = vld [vmem:[%s5 + $0x1d4] sm:$0xf]
      %v9624 = vld [vmem:[%s5 + $0x1d8] sm:$0xf]
      %v9625 = vld [vmem:[%s5 + $0x1dc] sm:$0xf]
      %v9626 = vld [vmem:[%s5 + $0x1e0] sm:$0xf]
      %v9627 = vld [vmem:[%s5 + $0x1e4] sm:$0xf]
      %v9628 = vld [vmem:[%s5 + $0x1e8] sm:$0xf]
      %v9629 = vld [vmem:[%s5 + $0x1ec] sm:$0xf]
      %v9630 = vld [vmem:[%s5 + $0x1f0] sm:$0xf]
      %v9631 = vld [vmem:[%s5 + $0x1f4] sm:$0xf]
      %v9632 = vld [vmem:[%s5 + $0x1f8] sm:$0xf]
      %v9633 = vld [vmem:[%s5 + $0x1fc] sm:$0xf]
      %v9634 = vld [vmem:[#allocation11] sm:$0x1]
      %v9636 = vlaneseq
      %v9637 = vshrl.u32 %v9636, 7
      %v9638 = vsub.s32 0, %v9637
      %v9639 = vrot.slane %v9634, %v9638
      %v9769 = vunpack.c.l.b16 %v9506
      %v9770 = vunpack.c.l.b16 %v9507
      %v9771 = vunpack.c.l.b16 %v9508
      %v9772 = vunpack.c.l.b16 %v9509
      %v9773 = vunpack.c.l.b16 %v9510
      %v9774 = vunpack.c.l.b16 %v9511
      %v9775 = vunpack.c.l.b16 %v9512
      %v9776 = vunpack.c.l.b16 %v9513
      %v9777 = vunpack.c.l.b16 %v9514
      %v9778 = vunpack.c.l.b16 %v9515
      %v9779 = vunpack.c.l.b16 %v9516
      %v9780 = vunpack.c.l.b16 %v9517
      %v9781 = vunpack.c.l.b16 %v9518
      %v9782 = vunpack.c.l.b16 %v9519
      %v9783 = vunpack.c.l.b16 %v9520
      %v9784 = vunpack.c.l.b16 %v9521
      %v9785 = vunpack.c.l.b16 %v9522
      %v9786 = vunpack.c.l.b16 %v9523
      %v9787 = vunpack.c.l.b16 %v9524
      %v9788 = vunpack.c.l.b16 %v9525
      %v9789 = vunpack.c.l.b16 %v9526
      %v9790 = vunpack.c.l.b16 %v9527
      %v9791 = vunpack.c.l.b16 %v9528
      %v9792 = vunpack.c.l.b16 %v9529
      %v9793 = vunpack.c.l.b16 %v9530
      %v9794 = vunpack.c.l.b16 %v9531
      %v9795 = vunpack.c.l.b16 %v9532
      %v9796 = vunpack.c.l.b16 %v9533
      %v9797 = vunpack.c.l.b16 %v9534
      %v9798 = vunpack.c.l.b16 %v9535
      %v9799 = vunpack.c.l.b16 %v9536
      %v9800 = vunpack.c.l.b16 %v9537
      %v9801 = vunpack.c.l.b16 %v9538
      %v9802 = vunpack.c.l.b16 %v9539
      %v9803 = vunpack.c.l.b16 %v9540
      %v9804 = vunpack.c.l.b16 %v9541
      %v9805 = vunpack.c.l.b16 %v9542
      %v9806 = vunpack.c.l.b16 %v9543
      %v9807 = vunpack.c.l.b16 %v9544
      %v9808 = vunpack.c.l.b16 %v9545
      %v9809 = vunpack.c.l.b16 %v9546
      %v9810 = vunpack.c.l.b16 %v9547
      %v9811 = vunpack.c.l.b16 %v9548
      %v9812 = vunpack.c.l.b16 %v9549
      %v9813 = vunpack.c.l.b16 %v9550
      %v9814 = vunpack.c.l.b16 %v9551
      %v9815 = vunpack.c.l.b16 %v9552
      %v9816 = vunpack.c.l.b16 %v9553
      %v9817 = vunpack.c.l.b16 %v9554
      %v9818 = vunpack.c.l.b16 %v9555
      %v9819 = vunpack.c.l.b16 %v9556
      %v9820 = vunpack.c.l.b16 %v9557
      %v9821 = vunpack.c.l.b16 %v9558
      %v9822 = vunpack.c.l.b16 %v9559
      %v9823 = vunpack.c.l.b16 %v9560
      %v9824 = vunpack.c.l.b16 %v9561
      %v9825 = vunpack.c.l.b16 %v9562
      %v9826 = vunpack.c.l.b16 %v9563
      %v9827 = vunpack.c.l.b16 %v9564
      %v9828 = vunpack.c.l.b16 %v9565
      %v9829 = vunpack.c.l.b16 %v9566
      %v9830 = vunpack.c.l.b16 %v9567
      %v9831 = vunpack.c.l.b16 %v9568
      %v9832 = vunpack.c.l.b16 %v9569
      %v9833 = vunpack.c.l.b16 %v9570
      %v9834 = vunpack.c.l.b16 %v9571
      %v9835 = vunpack.c.l.b16 %v9572
      %v9836 = vunpack.c.l.b16 %v9573
      %v9837 = vunpack.c.l.b16 %v9574
      %v9838 = vunpack.c.l.b16 %v9575
      %v9839 = vunpack.c.l.b16 %v9576
      %v9840 = vunpack.c.l.b16 %v9577
      %v9841 = vunpack.c.l.b16 %v9578
      %v9842 = vunpack.c.l.b16 %v9579
      %v9843 = vunpack.c.l.b16 %v9580
      %v9844 = vunpack.c.l.b16 %v9581
      %v9845 = vunpack.c.l.b16 %v9582
      %v9846 = vunpack.c.l.b16 %v9583
      %v9847 = vunpack.c.l.b16 %v9584
      %v9848 = vunpack.c.l.b16 %v9585
      %v9849 = vunpack.c.l.b16 %v9586
      %v9850 = vunpack.c.l.b16 %v9587
      %v9851 = vunpack.c.l.b16 %v9588
      %v9852 = vunpack.c.l.b16 %v9589
      %v9853 = vunpack.c.l.b16 %v9590
      %v9854 = vunpack.c.l.b16 %v9591
      %v9855 = vunpack.c.l.b16 %v9592
      %v9856 = vunpack.c.l.b16 %v9593
      %v9857 = vunpack.c.l.b16 %v9594
      %v9858 = vunpack.c.l.b16 %v9595
      %v9859 = vunpack.c.l.b16 %v9596
      %v9860 = vunpack.c.l.b16 %v9597
      %v9861 = vunpack.c.l.b16 %v9598
      %v9862 = vunpack.c.l.b16 %v9599
      %v9863 = vunpack.c.l.b16 %v9600
      %v9864 = vunpack.c.l.b16 %v9601
      %v9865 = vunpack.c.l.b16 %v9602
      %v9866 = vunpack.c.l.b16 %v9603
      %v9867 = vunpack.c.l.b16 %v9604
      %v9868 = vunpack.c.l.b16 %v9605
      %v9869 = vunpack.c.l.b16 %v9606
      %v9870 = vunpack.c.l.b16 %v9607
      %v9871 = vunpack.c.l.b16 %v9608
      %v9872 = vunpack.c.l.b16 %v9609
      %v9873 = vunpack.c.l.b16 %v9610
      %v9874 = vunpack.c.l.b16 %v9611
      %v9875 = vunpack.c.l.b16 %v9612
      %v9876 = vunpack.c.l.b16 %v9613
      %v9877 = vunpack.c.l.b16 %v9614
      %v9878 = vunpack.c.l.b16 %v9615
      %v9879 = vunpack.c.l.b16 %v9616
      %v9880 = vunpack.c.l.b16 %v9617
      %v9881 = vunpack.c.l.b16 %v9618
      %v9882 = vunpack.c.l.b16 %v9619
      %v9883 = vunpack.c.l.b16 %v9620
      %v9884 = vunpack.c.l.b16 %v9621
      %v9885 = vunpack.c.l.b16 %v9622
      %v9886 = vunpack.c.l.b16 %v9623
      %v9887 = vunpack.c.l.b16 %v9624
      %v9888 = vunpack.c.l.b16 %v9625
      %v9889 = vunpack.c.l.b16 %v9626
      %v9890 = vunpack.c.l.b16 %v9627
      %v9891 = vunpack.c.l.b16 %v9628
      %v9892 = vunpack.c.l.b16 %v9629
      %v9893 = vunpack.c.l.b16 %v9630
      %v9894 = vunpack.c.l.b16 %v9631
      %v9895 = vunpack.c.l.b16 %v9632
      %v9896 = vunpack.c.l.b16 %v9633
      %v9897 = vpack.c.b16 %v9770, %v9769
      %v9898 = vpack.c.b16 %v9772, %v9771
      %v9899 = vpack.c.b16 %v9774, %v9773
      %v9900 = vpack.c.b16 %v9776, %v9775
      %v9901 = vpack.c.b16 %v9778, %v9777
      %v9902 = vpack.c.b16 %v9780, %v9779
      %v9903 = vpack.c.b16 %v9782, %v9781
      %v9904 = vpack.c.b16 %v9784, %v9783
      %v9905 = vpack.c.b16 %v9786, %v9785
      %v9906 = vpack.c.b16 %v9788, %v9787
      %v9907 = vpack.c.b16 %v9790, %v9789
      %v9908 = vpack.c.b16 %v9792, %v9791
      %v9909 = vpack.c.b16 %v9794, %v9793
      %v9910 = vpack.c.b16 %v9796, %v9795
      %v9911 = vpack.c.b16 %v9798, %v9797
      %v9912 = vpack.c.b16 %v9800, %v9799
      %v9913 = vpack.c.b16 %v9802, %v9801
      %v9914 = vpack.c.b16 %v9804, %v9803
      %v9915 = vpack.c.b16 %v9806, %v9805
      %v9916 = vpack.c.b16 %v9808, %v9807
      %v9917 = vpack.c.b16 %v9810, %v9809
      %v9918 = vpack.c.b16 %v9812, %v9811
      %v9919 = vpack.c.b16 %v9814, %v9813
      %v9920 = vpack.c.b16 %v9816, %v9815
      %v9921 = vpack.c.b16 %v9818, %v9817
      %v9922 = vpack.c.b16 %v9820, %v9819
      %v9923 = vpack.c.b16 %v9822, %v9821
      %v9924 = vpack.c.b16 %v9824, %v9823
      %v9925 = vpack.c.b16 %v9826, %v9825
      %v9926 = vpack.c.b16 %v9828, %v9827
      %v9927 = vpack.c.b16 %v9830, %v9829
      %v9928 = vpack.c.b16 %v9832, %v9831
      %v9929 = vpack.c.b16 %v9834, %v9833
      %v9930 = vpack.c.b16 %v9836, %v9835
      %v9931 = vpack.c.b16 %v9838, %v9837
      %v9932 = vpack.c.b16 %v9840, %v9839
      %v9933 = vpack.c.b16 %v9842, %v9841
      %v9934 = vpack.c.b16 %v9844, %v9843
      %v9935 = vpack.c.b16 %v9846, %v9845
      %v9936 = vpack.c.b16 %v9848, %v9847
      %v9937 = vpack.c.b16 %v9850, %v9849
      %v9938 = vpack.c.b16 %v9852, %v9851
      %v9939 = vpack.c.b16 %v9854, %v9853
      %v9940 = vpack.c.b16 %v9856, %v9855
      %v9941 = vpack.c.b16 %v9858, %v9857
      %v9942 = vpack.c.b16 %v9860, %v9859
      %v9943 = vpack.c.b16 %v9862, %v9861
      %v9944 = vpack.c.b16 %v9864, %v9863
      %v9945 = vpack.c.b16 %v9866, %v9865
      %v9946 = vpack.c.b16 %v9868, %v9867
      %v9947 = vpack.c.b16 %v9870, %v9869
      %v9948 = vpack.c.b16 %v9872, %v9871
      %v9949 = vpack.c.b16 %v9874, %v9873
      %v9950 = vpack.c.b16 %v9876, %v9875
      %v9951 = vpack.c.b16 %v9878, %v9877
      %v9952 = vpack.c.b16 %v9880, %v9879
      %v9953 = vpack.c.b16 %v9882, %v9881
      %v9954 = vpack.c.b16 %v9884, %v9883
      %v9955 = vpack.c.b16 %v9886, %v9885
      %v9956 = vpack.c.b16 %v9888, %v9887
      %v9957 = vpack.c.b16 %v9890, %v9889
      %v9958 = vpack.c.b16 %v9892, %v9891
      %v9959 = vpack.c.b16 %v9894, %v9893
      %v9960 = vpack.c.b16 %v9896, %v9895
      %10025 = vmatprep.subr.bf16.mxu0 0
      %10026 = vmatpush1.bf16.msra.mxu0 %v9904
      %10027 = vmatprep.subr.bf16.mxu0 0
      %10028 = vmatpush1.bf16.msra.mxu0 %v9903
      %10029 = vmatprep.subr.bf16.mxu0 0
      %10030 = vmatpush1.bf16.msra.mxu0 %v9902
      %10031 = vmatprep.subr.bf16.mxu0 0
      %10032 = vmatpush1.bf16.msra.mxu0 %v9901
      %10033 = vmatprep.subr.bf16.mxu0 0
      %10034 = vmatpush1.bf16.msra.mxu0 %v9900
      %10035 = vmatprep.subr.bf16.mxu0 0
      %10036 = vmatpush1.bf16.msra.mxu0 %v9899
      %10037 = vmatprep.subr.bf16.mxu0 0
      %10038 = vmatpush1.bf16.msra.mxu0 %v9898
      %10039 = vmatprep.subr.bf16.mxu0 0
      %10040 = vmatpush1.bf16.msra.mxu0 %v9897
      %10041 = vmatprep.subr.bf16.mxu0 0
      %10042 = vmatpush2.bf16.msra.mxu0 %v9912
      %10043 = vmatprep.subr.bf16.mxu0 0
      %10044 = vmatpush2.bf16.msra.mxu0 %v9911
      %10045 = vmatprep.subr.bf16.mxu0 0
      %10046 = vmatpush2.bf16.msra.mxu0 %v9910
      %10047 = vmatprep.subr.bf16.mxu0 0
      %10048 = vmatpush2.bf16.msra.mxu0 %v9909
      %10049 = vmatprep.subr.bf16.mxu0 0
      %10050 = vmatpush2.bf16.msra.mxu0 %v9908
      %10051 = vmatprep.subr.bf16.mxu0 0
      %10052 = vmatpush2.bf16.msra.mxu0 %v9907
      %10053 = vmatprep.subr.bf16.mxu0 0
      %10054 = vmatpush2.bf16.msra.mxu0 %v9906
      %10055 = vmatprep.subr.bf16.mxu0 0
      %10056 = vmatpush2.bf16.msra.mxu0 %v9905
      %10057 = vmatprep.mubr.bf16.mxu0 %v9499
      %10058 = vmatmul.mubr.bf16.gmra.mxu0 %v9498
      %v10059 = vpop.f32.mrf.mxu0
      %v10060 = vadd.f32 %v9639, %v10059
      %v10061 = vpop.f32.mrf.mxu0
      %v10062 = vpop.f32.mrf.mxu0
      %v10063 = vpop.f32.mrf.mxu0
      %10064 = vdwg.mxu0
      %10065 = vmatprep.subr.bf16.mxu0 0
      %10066 = vmatpush1.bf16.msra.mxu0 %v9920
      %10067 = vmatprep.subr.bf16.mxu0 0
      %10068 = vmatpush1.bf16.msra.mxu0 %v9919
      %10069 = vmatprep.subr.bf16.mxu0 0
      %10070 = vmatpush1.bf16.msra.mxu0 %v9918
      %10071 = vmatprep.subr.bf16.mxu0 0
      %10072 = vmatpush1.bf16.msra.mxu0 %v9917
      %10073 = vmatprep.subr.bf16.mxu0 0
      %10074 = vmatpush1.bf16.msra.mxu0 %v9916
      %10075 = vmatprep.subr.bf16.mxu0 0
      %10076 = vmatpush1.bf16.msra.mxu0 %v9915
      %10077 = vmatprep.subr.bf16.mxu0 0
      %10078 = vmatpush1.bf16.msra.mxu0 %v9914
      %10079 = vmatprep.subr.bf16.mxu0 0
      %10080 = vmatpush1.bf16.msra.mxu0 %v9913
      %10081 = vmatprep.subr.bf16.mxu0 0
      %10082 = vmatpush2.bf16.msra.mxu0 %v9928
      %10083 = vmatprep.subr.bf16.mxu0 0
      %10084 = vmatpush2.bf16.msra.mxu0 %v9927
      %10085 = vmatprep.subr.bf16.mxu0 0
      %10086 = vmatpush2.bf16.msra.mxu0 %v9926
      %10087 = vmatprep.subr.bf16.mxu0 0
      %10088 = vmatpush2.bf16.msra.mxu0 %v9925
      %10089 = vmatprep.subr.bf16.mxu0 0
      %10090 = vmatpush2.bf16.msra.mxu0 %v9924
      %10091 = vmatprep.subr.bf16.mxu0 0
      %10092 = vmatpush2.bf16.msra.mxu0 %v9923
      %10093 = vmatprep.subr.bf16.mxu0 0
      %10094 = vmatpush2.bf16.msra.mxu0 %v9922
      %10095 = vmatprep.subr.bf16.mxu0 0
      %10096 = vmatpush2.bf16.msra.mxu0 %v9921
      %10097 = vmatprep.mubr.bf16.mxu0 %v9501
      %10098 = vmatmul.mubr.bf16.gmra.mxu0 %v9500
      %v10099 = vpop.f32.mrf.mxu0
      %v10100 = vadd.f32 %v10060, %v10099
      %v10101 = vpop.f32.mrf.mxu0
      %v10102 = vpop.f32.mrf.mxu0
      %v10103 = vpop.f32.mrf.mxu0
      %10104 = vdwg.mxu0
      %10105 = vmatprep.subr.bf16.mxu0 0
      %10106 = vmatpush1.bf16.msra.mxu0 %v9936
      %10107 = vmatprep.subr.bf16.mxu0 0
      %10108 = vmatpush1.bf16.msra.mxu0 %v9935
      %10109 = vmatprep.subr.bf16.mxu0 0
      %10110 = vmatpush1.bf16.msra.mxu0 %v9934
      %10111 = vmatprep.subr.bf16.mxu0 0
      %10112 = vmatpush1.bf16.msra.mxu0 %v9933
      %10113 = vmatprep.subr.bf16.mxu0 0
      %10114 = vmatpush1.bf16.msra.mxu0 %v9932
      %10115 = vmatprep.subr.bf16.mxu0 0
      %10116 = vmatpush1.bf16.msra.mxu0 %v9931
      %10117 = vmatprep.subr.bf16.mxu0 0
      %10118 = vmatpush1.bf16.msra.mxu0 %v9930
      %10119 = vmatprep.subr.bf16.mxu0 0
      %10120 = vmatpush1.bf16.msra.mxu0 %v9929
      %10121 = vmatprep.subr.bf16.mxu0 0
      %10122 = vmatpush2.bf16.msra.mxu0 %v9944
      %10123 = vmatprep.subr.bf16.mxu0 0
      %10124 = vmatpush2.bf16.msra.mxu0 %v9943
      %10125 = vmatprep.subr.bf16.mxu0 0
      %10126 = vmatpush2.bf16.msra.mxu0 %v9942
      %10127 = vmatprep.subr.bf16.mxu0 0
      %10128 = vmatpush2.bf16.msra.mxu0 %v9941
      %10129 = vmatprep.subr.bf16.mxu0 0
      %10130 = vmatpush2.bf16.msra.mxu0 %v9940
      %10131 = vmatprep.subr.bf16.mxu0 0
      %10132 = vmatpush2.bf16.msra.mxu0 %v9939
      %10133 = vmatprep.subr.bf16.mxu0 0
      %10134 = vmatpush2.bf16.msra.mxu0 %v9938
      %10135 = vmatprep.subr.bf16.mxu0 0
      %10136 = vmatpush2.bf16.msra.mxu0 %v9937
      %10137 = vmatprep.mubr.bf16.mxu0 %v9503
      %10138 = vmatmul.mubr.bf16.gmra.mxu0 %v9502
      %v10139 = vpop.f32.mrf.mxu0
      %v10140 = vadd.f32 %v10100, %v10139
      %v10141 = vpop.f32.mrf.mxu0
      %v10142 = vpop.f32.mrf.mxu0
      %v10143 = vpop.f32.mrf.mxu0
      %10144 = vdwg.mxu0
      %10145 = vmatprep.subr.bf16.mxu0 0
      %10146 = vmatpush1.bf16.msra.mxu0 %v9952
      %10147 = vmatprep.subr.bf16.mxu0 0
      %10148 = vmatpush1.bf16.msra.mxu0 %v9951
      %10149 = vmatprep.subr.bf16.mxu0 0
      %10150 = vmatpush1.bf16.msra.mxu0 %v9950
      %10151 = vmatprep.subr.bf16.mxu0 0
      %10152 = vmatpush1.bf16.msra.mxu0 %v9949
      %10153 = vmatprep.subr.bf16.mxu0 0
      %10154 = vmatpush1.bf16.msra.mxu0 %v9948
      %10155 = vmatprep.subr.bf16.mxu0 0
      %10156 = vmatpush1.bf16.msra.mxu0 %v9947
      %10157 = vmatprep.subr.bf16.mxu0 0
      %10158 = vmatpush1.bf16.msra.mxu0 %v9946
      %10159 = vmatprep.subr.bf16.mxu0 0
      %10160 = vmatpush1.bf16.msra.mxu0 %v9945
      %10161 = vmatprep.subr.bf16.mxu0 0
      %10162 = vmatpush2.bf16.msra.mxu0 %v9960
      %10163 = vmatprep.subr.bf16.mxu0 0
      %10164 = vmatpush2.bf16.msra.mxu0 %v9959
      %10165 = vmatprep.subr.bf16.mxu0 0
      %10166 = vmatpush2.bf16.msra.mxu0 %v9958
      %10167 = vmatprep.subr.bf16.mxu0 0
      %10168 = vmatpush2.bf16.msra.mxu0 %v9957
      %10169 = vmatprep.subr.bf16.mxu0 0
      %10170 = vmatpush2.bf16.msra.mxu0 %v9956
      %10171 = vmatprep.subr.bf16.mxu0 0
      %10172 = vmatpush2.bf16.msra.mxu0 %v9955
      %10173 = vmatprep.subr.bf16.mxu0 0
      %10174 = vmatpush2.bf16.msra.mxu0 %v9954
      %10175 = vmatprep.subr.bf16.mxu0 0
      %10176 = vmatpush2.bf16.msra.mxu0 %v9953
      %10177 = vmatprep.mubr.bf16.mxu0 %v9505
      %10178 = vmatmul.mubr.bf16.gmra.mxu0 %v9504
      %v10179 = vpop.f32.mrf.mxu0
      %v10180 = vadd.f32 %v10140, %v10179
      %v10181 = vpop.f32.mrf.mxu0
      %v10182 = vpop.f32.mrf.mxu0
      %v10183 = vpop.f32.mrf.mxu0
      %10184 = vdwg.mxu0
      %vm10185 = vcmask 254976
      %10186 = vst.msk [vmem:[#allocation12] sm:$0x3] %vm10185, %v10180
    $region57: #{mlp_encoder_forward.1} parent=1 // pred_fallthru
      _
    // Predicated region
    $region58: #{mlp_encoder_forward.1} parent=1 // pred_check
      _
    $region59: #{mlp_encoder_forward.1} parent=1 // pred_check_branch
      %10188 = sbr.rel (0) target = $region61
    $region60: #{mlp_encoder_forward.1} parent=1 // pred_region
      %s10190 = ssub.s32 32, 32
      %10191 = vsyncadd [#allocation5], %s10190
      %s10193 = sshll.u32 [#allocation12], 4
      %s10194 = int_to_ptr.vmem [resolvable:$true] %s10193
      %10196 = dma.vmem_to_hbm [thread:$0]  %s10194, 32, %s7, [#allocation5]
    $region61: #{mlp_encoder_forward.1} parent=1 // pred_fallthru
      _
    // Predicated region
    $region62: #{mlp_encoder_forward.1} parent=1 // pred_check
      _
    $region63: #{mlp_encoder_forward.1} parent=1 // pred_check_branch
      %10198 = sbr.rel (0) target = $region65
    $region64: #{mlp_encoder_forward.1} parent=1 // pred_region
      %10199 = dma.done [#allocation5], 32
    $region65: #{mlp_encoder_forward.1} parent=1 // pred_fallthru
      _
    %10200 = vsyncpa [#allocation4], 1
    %10201 = vsyncpa [#allocation7], 1
    %10202 = vsyncpa [#allocation10], 1
    %10203 = vsyncpa [#allocation5], 1

</llo_original>
